<compile_context>
chip_gen: v5e
topology: v5e:2x2
jax: 0.10.0
libtpu: 0.0.40
codegen_flags: <defaults>
</compile_context>

<pallas_src>
import functools

import jax
import jax.numpy as jnp
from jax.experimental import pallas as pl
from jax.experimental.pallas import tpu as pltpu


# --------------------------- in-kernel conv helper (traced, constant unroll) --------------

def _conv_gemm(x, lhs_ref, w_ref, b_ref, *, h, w, tb, kh, kw, pad):
    """Stride-1 'same' conv as ONE im2col GEMM.

    x:       (h*w*tb, ic) f32 value, rows ordered (row, col, image).
    lhs_ref: (h*w*tb, kh*kw*ic) bf16 VMEM scratch (im2col LHS, zeros = implicit padding).
    w_ref:   (kh*kw*ic, oc) bf16 GEMM weights, rows ordered (i, j, ci).
    b_ref:   (1, oc) f32 bias.
    Returns relu(conv(x)): (h*w*tb, oc) f32, rows ordered (row, col, image).
    """
    ic = x.shape[-1]
    xb = x.astype(jnp.bfloat16)                                   # cast once per layer
    lhs_ref[...] = jnp.zeros(lhs_ref.shape, lhs_ref.dtype)
    for i in range(kh):
        for j in range(kw):
            kk = i * kw + j
            oh_lo, oh_hi = max(0, pad - i), min(h, h + pad - i)
            ow_lo, ow_hi = max(0, pad - j), min(w, w + pad - j)
            if oh_lo >= oh_hi or ow_lo >= ow_hi:
                continue
            nrow = (ow_hi - ow_lo) * tb
            for oh in range(oh_lo, oh_hi):
                dst = (oh * w + ow_lo) * tb
                src = ((oh + i - pad) * w + (ow_lo + j - pad)) * tb
                lhs_ref[dst:dst + nrow, kk * ic:(kk + 1) * ic] = xb[src:src + nrow, :]
    y = jnp.dot(lhs_ref[...], w_ref[...], preferred_element_type=jnp.float32)
    return jnp.maximum(y + b_ref[...], 0.0)


# --------------------------- the fused per-batch-tile kernel ------------------------------

def _alexnet_kernel(lab_ref, p0_ref, w0_ref, b0_ref, w1_ref, b1_ref,
                    w2_ref, b2_ref, w3_ref, b3_ref, w4_ref, b4_ref,
                    wfc_ref, bfc_ref, loss_ref, lhs1, lhs2, lhs3, lhs4, *, tb):
    # ---- conv0 (11x11, s4, p5) as one GEMM over wrapper-built patches.  Patch rows are
    #      ordered (dy, dx, a, b, image) so the 2x2/2 pool is a max over 4 contiguous chunks.
    y0 = jnp.dot(p0_ref[...], w0_ref[...], preferred_element_type=jnp.float32)
    y0 = jnp.maximum(y0 + b0_ref[...], 0.0)                              # (64*tb, 128)
    q = 16 * tb
    p0 = jnp.maximum(jnp.maximum(y0[0:q], y0[q:2 * q]),
                     jnp.maximum(y0[2 * q:3 * q], y0[3 * q:4 * q]))      # (16*tb, 128) rows (a,b,img)

    # ---- conv1 (5x5, p2) on the 4x4 map: one GEMM -------------------------------------
    y1 = _conv_gemm(p0, lhs1, w1_ref, b1_ref, h=4, w=4, tb=tb, kh=5, kw=5, pad=2)  # (16*tb, 256)

    # ---- 2x2/2 max pool 4x4 -> 2x2 (contiguous row-chunk maxima) -----------------------
    r = 4 * tb
    top = jnp.maximum(y1[0:r], y1[r:2 * r])                              # rows 0/1 -> a=0
    bot = jnp.maximum(y1[2 * r:3 * r], y1[3 * r:4 * r])                  # rows 2/3 -> a=1
    p1 = jnp.concatenate([
        jnp.maximum(top[0:tb], top[tb:2 * tb]),                          # (a,b)=(0,0)
        jnp.maximum(top[2 * tb:3 * tb], top[3 * tb:4 * tb]),             # (0,1)
        jnp.maximum(bot[0:tb], bot[tb:2 * tb]),                          # (1,0)
        jnp.maximum(bot[2 * tb:3 * tb], bot[3 * tb:4 * tb]),             # (1,1)
    ], axis=0)                                                           # (4*tb, 256) rows (a,b,img)

    # ---- conv2..conv4 (3x3, p1) on the 2x2 map: one GEMM each ---------------------------
    y2 = _conv_gemm(p1, lhs2, w2_ref, b2_ref, h=2, w=2, tb=tb, kh=3, kw=3, pad=1)  # (4*tb, 384)
    y3 = _conv_gemm(y2, lhs3, w3_ref, b3_ref, h=2, w=2, tb=tb, kh=3, kw=3, pad=1)  # (4*tb, 256)
    y4 = _conv_gemm(y3, lhs4, w4_ref, b4_ref, h=2, w=2, tb=tb, kh=3, kw=3, pad=1)  # (4*tb, 256)

    # ---- final 2x2/2 pool to 1x1 (spatial 1x1 => NHWC flatten == torch view) -----------
    feats = jnp.maximum(jnp.maximum(y4[0:tb], y4[tb:2 * tb]),
                        jnp.maximum(y4[2 * tb:3 * tb], y4[3 * tb:4 * tb]))  # (tb, 256)

    # ---- classifier + vectorized cross-entropy (tile sum; wrapper divides by batch) ----
    logits = jnp.dot(feats.astype(jnp.bfloat16), wfc_ref[...],
                     preferred_element_type=jnp.float32) + bfc_ref[...]     # (tb, 128)
    m = jnp.max(logits, axis=-1, keepdims=True)
    lse = m + jnp.log(jnp.sum(jnp.exp(logits - m), axis=-1, keepdims=True))
    cols = jax.lax.broadcasted_iota(jnp.int32, logits.shape, 1)
    picked = jnp.sum(jnp.where(cols == lab_ref[...], logits, 0.0),
                     axis=-1, keepdims=True)
    tile_sum = jnp.sum(lse - picked, axis=0, keepdims=True)                 # (1, 1)
    loss_ref[...] = jnp.broadcast_to(tile_sum, (8, 128))


# --------------------------- JAX wrapper (weight prep + conv0 im2col) ---------------------

def _conv_wmat(w, ic_pad=None):
    """Torch conv weight (OC, IC, KH, KW) -> GEMM matrix (KH*KW*IC, OC), rows ordered (i, j, c)."""
    oc, ic, kh, kw = w.shape
    if ic_pad is not None and ic_pad > ic:
        w = jnp.pad(w, ((0, 0), (0, ic_pad - ic), (0, 0), (0, 0)))
        ic = ic_pad
    return jnp.transpose(w, (2, 3, 1, 0)).reshape(kh * kw * ic, oc)


def _conv0_patches(x_nhwc, kh=11, kw=11, stride=4, pad=5):
    """im2col for the stride-4 input conv; rows ordered (dy, dx, a, b) x image, k = (i*kw+j)*C + c."""
    n, h, w, c = x_nhwc.shape
    xp = jnp.pad(x_nhwc, ((0, 0), (pad, pad), (pad, pad), (0, 0)))
    oh = (h + 2 * pad - kh) // stride + 1
    ow = (w + 2 * pad - kw) // stride + 1
    cols = []
    for i in range(kh):
        for j in range(kw):
            cols.append(xp[:, i:i + stride * oh:stride, j:j + stride * ow:stride, :])
    patches = jnp.stack(cols, axis=3).reshape(n, oh, ow, kh * kw * c)
    p = patches.reshape(n, oh // 2, 2, ow // 2, 2, kh * kw * c)          # (n, a, dy, b, dx, K)
    p = jnp.transpose(p, (2, 4, 1, 3, 0, 5))                             # (dy, dx, a, b, n, K)
    return p.reshape(4 * (oh // 2) * (ow // 2), n, kh * kw * c)          # (64, n, K)


def _pick_batch_tile(n):
    if n <= 32:                      # cap the tile so VMEM stays ~25 MiB (fits v7x's 64 MiB);
        return n                     # raise toward 128-256 on v6e/v5e for bigger GEMMs.
    for tb in (32, 24, 16, 8):
        if n % tb == 0:
            return tb
    return n                         # fallback: single tile for odd batch sizes


def init_params(key, num_classes=10):
    conv_shapes = [(64, 3, 11, 11), (192, 64, 5, 5), (384, 192, 3, 3),
                   (256, 384, 3, 3), (256, 256, 3, 3)]
    params = {}
    for idx, shape in enumerate(conv_shapes):
        key, k1, k2 = jax.random.split(key, 3)
        fan_in = shape[1] * shape[2] * shape[3]
        params[f"conv{idx}_w"] = (jax.random.normal(k1, shape, jnp.float32)
                                  / jnp.sqrt(float(fan_in)))
        params[f"conv{idx}_b"] = jax.random.normal(k2, (shape[0],), jnp.float32) * 0.01
    key, k1, k2 = jax.random.split(key, 3)
    params["fc_w"] = jax.random.normal(k1, (num_classes, 256), jnp.float32) / jnp.sqrt(256.0)
    params["fc_b"] = jax.random.normal(k2, (num_classes,), jnp.float32) * 0.01
    return params


def alexnet_forward(params, x_nchw, y):
    n, c, h, w = x_nchw.shape
    assert (c, h, w) == (3, 32, 32), "classifier fan-in of 256 requires 3x32x32 inputs"
    num_classes = params["fc_w"].shape[0]
    assert num_classes <= 128
    ncp = 128                                                     # lane-padded class dim

    x = jnp.transpose(x_nchw, (0, 2, 3, 1)).astype(jnp.float32)   # NCHW -> NHWC

    tb = _pick_batch_tile(n)
    nt = n // tb

    # conv0 im2col in XLA (only strided conv); pad K 363 -> 384; pre-tile along the batch.
    patches = _conv0_patches(x)                                   # (64, n, 363)
    k0 = patches.shape[-1]
    patches = jnp.pad(patches, ((0, 0), (0, 0), (0, 384 - k0)))
    patches = (patches.reshape(64, nt, tb, 384)
                      .transpose(1, 0, 2, 3)
                      .reshape(nt, 64 * tb, 384).astype(jnp.bfloat16))

    # GEMM-layout bf16 weights; conv0 OC / conv1 IC padded to 128, conv1 OC / conv2 IC to 256.
    w0 = jnp.pad(_conv_wmat(params["conv0_w"]),
                 ((0, 384 - k0), (0, 64))).astype(jnp.bfloat16)                    # (384, 128)
    b0 = jnp.pad(params["conv0_b"], (0, 64)).reshape(1, 128).astype(jnp.float32)
    w1 = jnp.pad(_conv_wmat(params["conv1_w"], ic_pad=128),
                 ((0, 0), (0, 64))).astype(jnp.bfloat16)                           # (3200, 256)
    b1 = jnp.pad(params["conv1_b"], (0, 64)).reshape(1, 256).astype(jnp.float32)
    w2 = _conv_wmat(params["conv2_w"], ic_pad=256).astype(jnp.bfloat16)            # (2304, 384)
    w3 = _conv_wmat(params["conv3_w"]).astype(jnp.bfloat16)                        # (3456, 256)
    w4 = _conv_wmat(params["conv4_w"]).astype(jnp.bfloat16)                        # (2304, 256)
    b2, b3, b4 = (params[f"conv{i}_b"].reshape(1, -1).astype(jnp.float32)
                  for i in range(2, 5))
    wfc = jnp.pad(params["fc_w"].T,
                  ((0, 0), (0, ncp - num_classes))).astype(jnp.bfloat16)           # (256, 128)
    bfc = jnp.pad(params["fc_b"], (0, ncp - num_classes),
                  constant_values=-1e30).reshape(1, ncp).astype(jnp.float32)

    labels = jnp.broadcast_to(y.astype(jnp.int32).reshape(n, 1), (n, ncp))

    def _const(arr):
        nd = arr.ndim
        return pl.BlockSpec(arr.shape, lambda b, _nd=nd: (0,) * _nd)

    out = pl.pallas_call(
        functools.partial(_alexnet_kernel, tb=tb),
        out_shape=jax.ShapeDtypeStruct((nt * 8, 128), jnp.float32),
        grid=(nt,),
        in_specs=[
            pl.BlockSpec((tb, ncp), lambda b: (b, 0)),                    # labels
            pl.BlockSpec((None, 64 * tb, 384), lambda b: (b, 0, 0)),      # conv0 patches (per tile)
            _const(w0), _const(b0), _const(w1), _const(b1),
            _const(w2), _const(b2), _const(w3), _const(b3),
            _const(w4), _const(b4), _const(wfc), _const(bfc),
        ],
        out_specs=pl.BlockSpec((8, 128), lambda b: (b, 0)),
        scratch_shapes=[
            pltpu.VMEM((16 * tb, 25 * 128), jnp.bfloat16),   # conv1 im2col LHS
            pltpu.VMEM((4 * tb, 9 * 256), jnp.bfloat16),     # conv2 im2col LHS
            pltpu.VMEM((4 * tb, 9 * 384), jnp.bfloat16),     # conv3 im2col LHS
            pltpu.VMEM((4 * tb, 9 * 256), jnp.bfloat16),     # conv4 im2col LHS
        ],
        compiler_params=pltpu.CompilerParams(
            dimension_semantics=("parallel",),                # per-tile outputs => parallel-safe
            vmem_limit_bytes=64 * 1024 * 1024,
        ),
    )(labels, patches, w0, b0, w1, b1, w2, b2, w3, b3, w4, b4, wfc, bfc)

    # each tile wrote its loss-sum broadcast over its own (8, 128) block
    return jnp.sum(out[::8, 0]) / n


if __name__ == "__main__":
    key = jax.random.PRNGKey(0)
    kp, kx, ky = jax.random.split(key, 3)
    params = init_params(kp, num_classes=10)
    # Input spatial must be 32x32 so the flattened feature dim is 256 (= classifier fan-in).
    x = jax.random.normal(kx, (2, 3, 32, 32), jnp.float32)               # NCHW, like PyTorch
    y = jax.random.randint(ky, (2,), 0, 10)
    loss = jax.jit(alexnet_forward)(params, x, y)
    jax.block_until_ready(loss)
    assert loss.shape == () and bool(jnp.isfinite(loss))
    print("KERNEL_OK")
</pallas_src>

<mosaic_0001>
module attributes {stable_mosaic.version = 11 : i64} {
  func.func @_alexnet_kernel(%arg0: i32, %arg1: memref<2x128xi32, #tpu.memory_space<vmem>>, %arg2: memref<1x128x384xbf16, #tpu.memory_space<vmem>>, %arg3: memref<384x128xbf16, #tpu.memory_space<vmem>>, %arg4: memref<1x128xf32, #tpu.memory_space<vmem>>, %arg5: memref<3200x256xbf16, #tpu.memory_space<vmem>>, %arg6: memref<1x256xf32, #tpu.memory_space<vmem>>, %arg7: memref<2304x384xbf16, #tpu.memory_space<vmem>>, %arg8: memref<1x384xf32, #tpu.memory_space<vmem>>, %arg9: memref<3456x256xbf16, #tpu.memory_space<vmem>>, %arg10: memref<1x256xf32, #tpu.memory_space<vmem>>, %arg11: memref<2304x256xbf16, #tpu.memory_space<vmem>>, %arg12: memref<1x256xf32, #tpu.memory_space<vmem>>, %arg13: memref<256x128xbf16, #tpu.memory_space<vmem>>, %arg14: memref<1x128xf32, #tpu.memory_space<vmem>>, %arg15: memref<8x128xf32, #tpu.memory_space<vmem>>, %arg16: memref<32x3200xbf16, #tpu.memory_space<vmem>>, %arg17: memref<8x2304xbf16, #tpu.memory_space<vmem>>, %arg18: memref<8x3456xbf16, #tpu.memory_space<vmem>>, %arg19: memref<8x2304xbf16, #tpu.memory_space<vmem>>) attributes {dimension_semantics = [#tpu.dimension_semantics<parallel>], iteration_bounds = array<i64: 1>, scalar_prefetch = 0 : i64, scratch_operands = 4 : i64, tpu.core_type = #tpu.core_type<tc>, window_params = [{transform_indices = @transform_0, window_bounds = array<i64: 2, 128>}, {transform_indices = @transform_1, window_bounds = array<i64: 1, 128, 384>}, {pipeline_mode = #tpu.pipeline_mode<synchronous>, transform_indices = @transform_2, window_bounds = array<i64: 384, 128>}, {pipeline_mode = #tpu.pipeline_mode<synchronous>, transform_indices = @transform_3, window_bounds = array<i64: 1, 128>}, {pipeline_mode = #tpu.pipeline_mode<synchronous>, transform_indices = @transform_4, window_bounds = array<i64: 3200, 256>}, {pipeline_mode = #tpu.pipeline_mode<synchronous>, transform_indices = @transform_5, window_bounds = array<i64: 1, 256>}, {pipeline_mode = #tpu.pipeline_mode<synchronous>, transform_indices = @transform_6, window_bounds = array<i64: 2304, 384>}, {pipeline_mode = #tpu.pipeline_mode<synchronous>, transform_indices = @transform_7, window_bounds = array<i64: 1, 384>}, {pipeline_mode = #tpu.pipeline_mode<synchronous>, transform_indices = @transform_8, window_bounds = array<i64: 3456, 256>}, {pipeline_mode = #tpu.pipeline_mode<synchronous>, transform_indices = @transform_9, window_bounds = array<i64: 1, 256>}, {pipeline_mode = #tpu.pipeline_mode<synchronous>, transform_indices = @transform_10, window_bounds = array<i64: 2304, 256>}, {pipeline_mode = #tpu.pipeline_mode<synchronous>, transform_indices = @transform_11, window_bounds = array<i64: 1, 256>}, {pipeline_mode = #tpu.pipeline_mode<synchronous>, transform_indices = @transform_12, window_bounds = array<i64: 256, 128>}, {pipeline_mode = #tpu.pipeline_mode<synchronous>, transform_indices = @transform_13, window_bounds = array<i64: 1, 128>}, {transform_indices = @transform_14, window_bounds = array<i64: 8, 128>}]} {
    %c0 = arith.constant 0 : index
    %c0_0 = arith.constant 0 : index
    %c0_1 = arith.constant 0 : index
    %0 = vector.load %arg2[%c0, %c0_0, %c0_1] : memref<1x128x384xbf16, #tpu.memory_space<vmem>>, vector<1x128x384xbf16>
    %1 = vector.shape_cast %0 : vector<1x128x384xbf16> to vector<128x384xbf16>
    %c0_2 = arith.constant 0 : index
    %c0_3 = arith.constant 0 : index
    %2 = vector.load %arg3[%c0_2, %c0_3] : memref<384x128xbf16, #tpu.memory_space<vmem>>, vector<384x128xbf16>
    %cst = arith.constant dense<0.000000e+00> : vector<128x128xf32>
    %3 = tpu.matmul %1, %2, %cst {dimension_numbers = #tpu.dot_dimension_numbers<[1], [0], [0], [1], [0, 0, 1, 1], [], []>} : vector<128x384xbf16>, vector<384x128xbf16>, vector<128x128xf32> -> vector<128x128xf32>
    %c0_4 = arith.constant 0 : index
    %c0_5 = arith.constant 0 : index
    %4 = vector.load %arg4[%c0_4, %c0_5] : memref<1x128xf32, #tpu.memory_space<vmem>>, vector<1x128xf32>
    %5 = vector.broadcast %4 : vector<1x128xf32> to vector<128x128xf32>
    %6 = arith.addf %3, %5 : vector<128x128xf32>
    %cst_6 = arith.constant 0.000000e+00 : f32
    %7 = vector.broadcast %cst_6 : f32 to vector<128x128xf32>
    %8 = arith.maximumf %6, %7 : vector<128x128xf32>
    %9 = vector.extract_strided_slice %8 {offsets = [0, 0], sizes = [32, 128], strides = [1, 1]} : vector<128x128xf32> to vector<32x128xf32>
    %10 = vector.extract_strided_slice %8 {offsets = [32, 0], sizes = [32, 128], strides = [1, 1]} : vector<128x128xf32> to vector<32x128xf32>
    %11 = arith.maximumf %9, %10 : vector<32x128xf32>
    %12 = vector.extract_strided_slice %8 {offsets = [64, 0], sizes = [32, 128], strides = [1, 1]} : vector<128x128xf32> to vector<32x128xf32>
    %13 = vector.extract_strided_slice %8 {offsets = [96, 0], sizes = [32, 128], strides = [1, 1]} : vector<128x128xf32> to vector<32x128xf32>
    %14 = arith.maximumf %12, %13 : vector<32x128xf32>
    %15 = arith.maximumf %11, %14 : vector<32x128xf32>
    %16 = arith.truncf %15 : vector<32x128xf32> to vector<32x128xbf16>
    %cst_7 = arith.constant 0.000000e+00 : bf16
    %17 = vector.broadcast %cst_7 : bf16 to vector<32x3200xbf16>
    %c0_8 = arith.constant 0 : index
    %c0_9 = arith.constant 0 : index
    %18 = vector.load %arg16[%c0_8, %c0_9] : memref<32x3200xbf16, #tpu.memory_space<vmem>>, vector<32x3200xbf16>
    tpu.vector_store %arg16[%c0_8, %c0_9], %17 {strides = array<i32>} : memref<32x3200xbf16, #tpu.memory_space<vmem>>, vector<32x3200xbf16>,
    %19 = vector.extract_strided_slice %16 {offsets = [0, 0], sizes = [4, 128], strides = [1, 1]} : vector<32x128xbf16> to vector<4x128xbf16>
    %c20 = arith.constant 20 : index
    %c0_10 = arith.constant 0 : index
    %20 = vector.load %arg16[%c20, %c0_10] : memref<32x3200xbf16, #tpu.memory_space<vmem>>, vector<4x128xbf16>
    tpu.vector_store %arg16[%c20, %c0_10], %19 {strides = array<i32>} : memref<32x3200xbf16, #tpu.memory_space<vmem>>, vector<4x128xbf16>,
    %21 = vector.extract_strided_slice %16 {offsets = [8, 0], sizes = [4, 128], strides = [1, 1]} : vector<32x128xbf16> to vector<4x128xbf16>
    %c28 = arith.constant 28 : index
    %c0_11 = arith.constant 0 : index
    %22 = vector.load %arg16[%c28, %c0_11] : memref<32x3200xbf16, #tpu.memory_space<vmem>>, vector<4x128xbf16>
    tpu.vector_store %arg16[%c28, %c0_11], %21 {strides = array<i32>} : memref<32x3200xbf16, #tpu.memory_space<vmem>>, vector<4x128xbf16>,
    %23 = vector.extract_strided_slice %16 {offsets = [0, 0], sizes = [6, 128], strides = [1, 1]} : vector<32x128xbf16> to vector<6x128xbf16>
    %c18 = arith.constant 18 : index
    %c128 = arith.constant 128 : index
    %24 = vector.load %arg16[%c18, %c128] : memref<32x3200xbf16, #tpu.memory_space<vmem>>, vector<6x128xbf16>
    tpu.vector_store %arg16[%c18, %c128], %23 {strides = array<i32>} : memref<32x3200xbf16, #tpu.memory_space<vmem>>, vector<6x128xbf16>,
    %25 = vector.extract_strided_slice %16 {offsets = [8, 0], sizes = [6, 128], strides = [1, 1]} : vector<32x128xbf16> to vector<6x128xbf16>
    %c26 = arith.constant 26 : index
    %c128_12 = arith.constant 128 : index
    %26 = vector.load %arg16[%c26, %c128_12] : memref<32x3200xbf16, #tpu.memory_space<vmem>>, vector<6x128xbf16>
    tpu.vector_store %arg16[%c26, %c128_12], %25 {strides = array<i32>} : memref<32x3200xbf16, #tpu.memory_space<vmem>>, vector<6x128xbf16>,
    %27 = vector.extract_strided_slice %16 {offsets = [0, 0], sizes = [8, 128], strides = [1, 1]} : vector<32x128xbf16> to vector<8x128xbf16>
    %c16 = arith.constant 16 : index
    %c256 = arith.constant 256 : index
    %28 = vector.load %arg16[%c16, %c256] : memref<32x3200xbf16, #tpu.memory_space<vmem>>, vector<8x128xbf16>
    tpu.vector_store %arg16[%c16, %c256], %27 {strides = array<i32>} : memref<32x3200xbf16, #tpu.memory_space<vmem>>, vector<8x128xbf16>,
    %29 = vector.extract_strided_slice %16 {offsets = [8, 0], sizes = [8, 128], strides = [1, 1]} : vector<32x128xbf16> to vector<8x128xbf16>
    %c24 = arith.constant 24 : index
    %c256_13 = arith.constant 256 : index
    %30 = vector.load %arg16[%c24, %c256_13] : memref<32x3200xbf16, #tpu.memory_space<vmem>>, vector<8x128xbf16>
    tpu.vector_store %arg16[%c24, %c256_13], %29 {strides = array<i32>} : memref<32x3200xbf16, #tpu.memory_space<vmem>>, vector<8x128xbf16>,
    %31 = vector.extract_strided_slice %16 {offsets = [2, 0], sizes = [6, 128], strides = [1, 1]} : vector<32x128xbf16> to vector<6x128xbf16>
    %c16_14 = arith.constant 16 : index
    %c384 = arith.constant 384 : index
    %32 = vector.load %arg16[%c16_14, %c384] : memref<32x3200xbf16, #tpu.memory_space<vmem>>, vector<6x128xbf16>
    tpu.vector_store %arg16[%c16_14, %c384], %31 {strides = array<i32>} : memref<32x3200xbf16, #tpu.memory_space<vmem>>, vector<6x128xbf16>,
    %33 = vector.extract_strided_slice %16 {offsets = [10, 0], sizes = [6, 128], strides = [1, 1]} : vector<32x128xbf16> to vector<6x128xbf16>
    %c24_15 = arith.constant 24 : index
    %c384_16 = arith.constant 384 : index
    %34 = vector.load %arg16[%c24_15, %c384_16] : memref<32x3200xbf16, #tpu.memory_space<vmem>>, vector<6x128xbf16>
    tpu.vector_store %arg16[%c24_15, %c384_16], %33 {strides = array<i32>} : memref<32x3200xbf16, #tpu.memory_space<vmem>>, vector<6x128xbf16>,
    %35 = vector.extract_strided_slice %16 {offsets = [4, 0], sizes = [4, 128], strides = [1, 1]} : vector<32x128xbf16> to vector<4x128xbf16>
    %c16_17 = arith.constant 16 : index
    %c512 = arith.constant 512 : index
    %36 = vector.load %arg16[%c16_17, %c512] : memref<32x3200xbf16, #tpu.memory_space<vmem>>, vector<4x128xbf16>
    tpu.vector_store %arg16[%c16_17, %c512], %35 {strides = array<i32>} : memref<32x3200xbf16, #tpu.memory_space<vmem>>, vector<4x128xbf16>,
    %37 = vector.extract_strided_slice %16 {offsets = [12, 0], sizes = [4, 128], strides = [1, 1]} : vector<32x128xbf16> to vector<4x128xbf16>
    %c24_18 = arith.constant 24 : index
    %c512_19 = arith.constant 512 : index
    %38 = vector.load %arg16[%c24_18, %c512_19] : memref<32x3200xbf16, #tpu.memory_space<vmem>>, vector<4x128xbf16>
    tpu.vector_store %arg16[%c24_18, %c512_19], %37 {strides = array<i32>} : memref<32x3200xbf16, #tpu.memory_space<vmem>>, vector<4x128xbf16>,
    %39 = vector.extract_strided_slice %16 {offsets = [0, 0], sizes = [4, 128], strides = [1, 1]} : vector<32x128xbf16> to vector<4x128xbf16>
    %c12 = arith.constant 12 : index
    %c640 = arith.constant 640 : index
    %40 = vector.load %arg16[%c12, %c640] : memref<32x3200xbf16, #tpu.memory_space<vmem>>, vector<4x128xbf16>
    tpu.vector_store %arg16[%c12, %c640], %39 {strides = array<i32>} : memref<32x3200xbf16, #tpu.memory_space<vmem>>, vector<4x128xbf16>,
    %41 = vector.extract_strided_slice %16 {offsets = [8, 0], sizes = [4, 128], strides = [1, 1]} : vector<32x128xbf16> to vector<4x128xbf16>
    %c20_20 = arith.constant 20 : index
    %c640_21 = arith.constant 640 : index
    %42 = vector.load %arg16[%c20_20, %c640_21] : memref<32x3200xbf16, #tpu.memory_space<vmem>>, vector<4x128xbf16>
    tpu.vector_store %arg16[%c20_20, %c640_21], %41 {strides = array<i32>} : memref<32x3200xbf16, #tpu.memory_space<vmem>>, vector<4x128xbf16>,
    %43 = vector.extract_strided_slice %16 {offsets = [16, 0], sizes = [4, 128], strides = [1, 1]} : vector<32x128xbf16> to vector<4x128xbf16>
    %c28_22 = arith.constant 28 : index
    %c640_23 = arith.constant 640 : index
    %44 = vector.load %arg16[%c28_22, %c640_23] : memref<32x3200xbf16, #tpu.memory_space<vmem>>, vector<4x128xbf16>
    tpu.vector_store %arg16[%c28_22, %c640_23], %43 {strides = array<i32>} : memref<32x3200xbf16, #tpu.memory_space<vmem>>, vector<4x128xbf16>,
    %45 = vector.extract_strided_slice %16 {offsets = [0, 0], sizes = [6, 128], strides = [1, 1]} : vector<32x128xbf16> to vector<6x128xbf16>
    %c10 = arith.constant 10 : index
    %c768 = arith.constant 768 : index
    %46 = vector.load %arg16[%c10, %c768] : memref<32x3200xbf16, #tpu.memory_space<vmem>>, vector<6x128xbf16>
    tpu.vector_store %arg16[%c10, %c768], %45 {strides = array<i32>} : memref<32x3200xbf16, #tpu.memory_space<vmem>>, vector<6x128xbf16>,
    %47 = vector.extract_strided_slice %16 {offsets = [8, 0], sizes = [6, 128], strides = [1, 1]} : vector<32x128xbf16> to vector<6x128xbf16>
    %c18_24 = arith.constant 18 : index
    %c768_25 = arith.constant 768 : index
    %48 = vector.load %arg16[%c18_24, %c768_25] : memref<32x3200xbf16, #tpu.memory_space<vmem>>, vector<6x128xbf16>
    tpu.vector_store %arg16[%c18_24, %c768_25], %47 {strides = array<i32>} : memref<32x3200xbf16, #tpu.memory_space<vmem>>, vector<6x128xbf16>,
    %49 = vector.extract_strided_slice %16 {offsets = [16, 0], sizes = [6, 128], strides = [1, 1]} : vector<32x128xbf16> to vector<6x128xbf16>
    %c26_26 = arith.constant 26 : index
    %c768_27 = arith.constant 768 : index
    %50 = vector.load %arg16[%c26_26, %c768_27] : memref<32x3200xbf16, #tpu.memory_space<vmem>>, vector<6x128xbf16>
    tpu.vector_store %arg16[%c26_26, %c768_27], %49 {strides = array<i32>} : memref<32x3200xbf16, #tpu.memory_space<vmem>>, vector<6x128xbf16>,
    %51 = vector.extract_strided_slice %16 {offsets = [0, 0], sizes = [8, 128], strides = [1, 1]} : vector<32x128xbf16> to vector<8x128xbf16>
    %c8 = arith.constant 8 : index
    %c896 = arith.constant 896 : index
    %52 = vector.load %arg16[%c8, %c896] : memref<32x3200xbf16, #tpu.memory_space<vmem>>, vector<8x128xbf16>
    tpu.vector_store %arg16[%c8, %c896], %51 {strides = array<i32>} : memref<32x3200xbf16, #tpu.memory_space<vmem>>, vector<8x128xbf16>,
    %53 = vector.extract_strided_slice %16 {offsets = [8, 0], sizes = [8, 128], strides = [1, 1]} : vector<32x128xbf16> to vector<8x128xbf16>
    %c16_28 = arith.constant 16 : index
    %c896_29 = arith.constant 896 : index
    %54 = vector.load %arg16[%c16_28, %c896_29] : memref<32x3200xbf16, #tpu.memory_space<vmem>>, vector<8x128xbf16>
    tpu.vector_store %arg16[%c16_28, %c896_29], %53 {strides = array<i32>} : memref<32x3200xbf16, #tpu.memory_space<vmem>>, vector<8x128xbf16>,
    %55 = vector.extract_strided_slice %16 {offsets = [16, 0], sizes = [8, 128], strides = [1, 1]} : vector<32x128xbf16> to vector<8x128xbf16>
    %c24_30 = arith.constant 24 : index
    %c896_31 = arith.constant 896 : index
    %56 = vector.load %arg16[%c24_30, %c896_31] : memref<32x3200xbf16, #tpu.memory_space<vmem>>, vector<8x128xbf16>
    tpu.vector_store %arg16[%c24_30, %c896_31], %55 {strides = array<i32>} : memref<32x3200xbf16, #tpu.memory_space<vmem>>, vector<8x128xbf16>,
    %57 = vector.extract_strided_slice %16 {offsets = [2, 0], sizes = [6, 128], strides = [1, 1]} : vector<32x128xbf16> to vector<6x128xbf16>
    %c8_32 = arith.constant 8 : index
    %c1024 = arith.constant 1024 : index
    %58 = vector.load %arg16[%c8_32, %c1024] : memref<32x3200xbf16, #tpu.memory_space<vmem>>, vector<6x128xbf16>
    tpu.vector_store %arg16[%c8_32, %c1024], %57 {strides = array<i32>} : memref<32x3200xbf16, #tpu.memory_space<vmem>>, vector<6x128xbf16>,
    %59 = vector.extract_strided_slice %16 {offsets = [10, 0], sizes = [6, 128], strides = [1, 1]} : vector<32x128xbf16> to vector<6x128xbf16>
    %c16_33 = arith.constant 16 : index
    %c1024_34 = arith.constant 1024 : index
    %60 = vector.load %arg16[%c16_33, %c1024_34] : memref<32x3200xbf16, #tpu.memory_space<vmem>>, vector<6x128xbf16>
    tpu.vector_store %arg16[%c16_33, %c1024_34], %59 {strides = array<i32>} : memref<32x3200xbf16, #tpu.memory_space<vmem>>, vector<6x128xbf16>,
    %61 = vector.extract_strided_slice %16 {offsets = [18, 0], sizes = [6, 128], strides = [1, 1]} : vector<32x128xbf16> to vector<6x128xbf16>
    %c24_35 = arith.constant 24 : index
    %c1024_36 = arith.constant 1024 : index
    %62 = vector.load %arg16[%c24_35, %c1024_36] : memref<32x3200xbf16, #tpu.memory_space<vmem>>, vector<6x128xbf16>
    tpu.vector_store %arg16[%c24_35, %c1024_36], %61 {strides = array<i32>} : memref<32x3200xbf16, #tpu.memory_space<vmem>>, vector<6x128xbf16>,
    %63 = vector.extract_strided_slice %16 {offsets = [4, 0], sizes = [4, 128], strides = [1, 1]} : vector<32x128xbf16> to vector<4x128xbf16>
    %c8_37 = arith.constant 8 : index
    %c1152 = arith.constant 1152 : index
    %64 = vector.load %arg16[%c8_37, %c1152] : memref<32x3200xbf16, #tpu.memory_space<vmem>>, vector<4x128xbf16>
    tpu.vector_store %arg16[%c8_37, %c1152], %63 {strides = array<i32>} : memref<32x3200xbf16, #tpu.memory_space<vmem>>, vector<4x128xbf16>,
    %65 = vector.extract_strided_slice %16 {offsets = [12, 0], sizes = [4, 128], strides = [1, 1]} : vector<32x128xbf16> to vector<4x128xbf16>
    %c16_38 = arith.constant 16 : index
    %c1152_39 = arith.constant 1152 : index
    %66 = vector.load %arg16[%c16_38, %c1152_39] : memref<32x3200xbf16, #tpu.memory_space<vmem>>, vector<4x128xbf16>
    tpu.vector_store %arg16[%c16_38, %c1152_39], %65 {strides = array<i32>} : memref<32x3200xbf16, #tpu.memory_space<vmem>>, vector<4x128xbf16>,
    %67 = vector.extract_strided_slice %16 {offsets = [20, 0], sizes = [4, 128], strides = [1, 1]} : vector<32x128xbf16> to vector<4x128xbf16>
    %c24_40 = arith.constant 24 : index
    %c1152_41 = arith.constant 1152 : index
    %68 = vector.load %arg16[%c24_40, %c1152_41] : memref<32x3200xbf16, #tpu.memory_space<vmem>>, vector<4x128xbf16>
    tpu.vector_store %arg16[%c24_40, %c1152_41], %67 {strides = array<i32>} : memref<32x3200xbf16, #tpu.memory_space<vmem>>, vector<4x128xbf16>,
    %69 = vector.extract_strided_slice %16 {offsets = [0, 0], sizes = [4, 128], strides = [1, 1]} : vector<32x128xbf16> to vector<4x128xbf16>
    %c4 = arith.constant 4 : index
    %c1280 = arith.constant 1280 : index
    %70 = vector.load %arg16[%c4, %c1280] : memref<32x3200xbf16, #tpu.memory_space<vmem>>, vector<4x128xbf16>
    tpu.vector_store %arg16[%c4, %c1280], %69 {strides = array<i32>} : memref<32x3200xbf16, #tpu.memory_space<vmem>>, vector<4x128xbf16>,
    %71 = vector.extract_strided_slice %16 {offsets = [8, 0], sizes = [4, 128], strides = [1, 1]} : vector<32x128xbf16> to vector<4x128xbf16>
    %c12_42 = arith.constant 12 : index
    %c1280_43 = arith.constant 1280 : index
    %72 = vector.load %arg16[%c12_42, %c1280_43] : memref<32x3200xbf16, #tpu.memory_space<vmem>>, vector<4x128xbf16>
    tpu.vector_store %arg16[%c12_42, %c1280_43], %71 {strides = array<i32>} : memref<32x3200xbf16, #tpu.memory_space<vmem>>, vector<4x128xbf16>,
    %73 = vector.extract_strided_slice %16 {offsets = [16, 0], sizes = [4, 128], strides = [1, 1]} : vector<32x128xbf16> to vector<4x128xbf16>
    %c20_44 = arith.constant 20 : index
    %c1280_45 = arith.constant 1280 : index
    %74 = vector.load %arg16[%c20_44, %c1280_45] : memref<32x3200xbf16, #tpu.memory_space<vmem>>, vector<4x128xbf16>
    tpu.vector_store %arg16[%c20_44, %c1280_45], %73 {strides = array<i32>} : memref<32x3200xbf16, #tpu.memory_space<vmem>>, vector<4x128xbf16>,
    %75 = vector.extract_strided_slice %16 {offsets = [24, 0], sizes = [4, 128], strides = [1, 1]} : vector<32x128xbf16> to vector<4x128xbf16>
    %c28_46 = arith.constant 28 : index
    %c1280_47 = arith.constant 1280 : index
    %76 = vector.load %arg16[%c28_46, %c1280_47] : memref<32x3200xbf16, #tpu.memory_space<vmem>>, vector<4x128xbf16>
    tpu.vector_store %arg16[%c28_46, %c1280_47], %75 {strides = array<i32>} : memref<32x3200xbf16, #tpu.memory_space<vmem>>, vector<4x128xbf16>,
    %77 = vector.extract_strided_slice %16 {offsets = [0, 0], sizes = [6, 128], strides = [1, 1]} : vector<32x128xbf16> to vector<6x128xbf16>
    %c2 = arith.constant 2 : index
    %c1408 = arith.constant 1408 : index
    %78 = vector.load %arg16[%c2, %c1408] : memref<32x3200xbf16, #tpu.memory_space<vmem>>, vector<6x128xbf16>
    tpu.vector_store %arg16[%c2, %c1408], %77 {strides = array<i32>} : memref<32x3200xbf16, #tpu.memory_space<vmem>>, vector<6x128xbf16>,
    %79 = vector.extract_strided_slice %16 {offsets = [8, 0], sizes = [6, 128], strides = [1, 1]} : vector<32x128xbf16> to vector<6x128xbf16>
    %c10_48 = arith.constant 10 : index
    %c1408_49 = arith.constant 1408 : index
    %80 = vector.load %arg16[%c10_48, %c1408_49] : memref<32x3200xbf16, #tpu.memory_space<vmem>>, vector<6x128xbf16>
    tpu.vector_store %arg16[%c10_48, %c1408_49], %79 {strides = array<i32>} : memref<32x3200xbf16, #tpu.memory_space<vmem>>, vector<6x128xbf16>,
    %81 = vector.extract_strided_slice %16 {offsets = [16, 0], sizes = [6, 128], strides = [1, 1]} : vector<32x128xbf16> to vector<6x128xbf16>
    %c18_50 = arith.constant 18 : index
    %c1408_51 = arith.constant 1408 : index
    %82 = vector.load %arg16[%c18_50, %c1408_51] : memref<32x3200xbf16, #tpu.memory_space<vmem>>, vector<6x128xbf16>
    tpu.vector_store %arg16[%c18_50, %c1408_51], %81 {strides = array<i32>} : memref<32x3200xbf16, #tpu.memory_space<vmem>>, vector<6x128xbf16>,
    %83 = vector.extract_strided_slice %16 {offsets = [24, 0], sizes = [6, 128], strides = [1, 1]} : vector<32x128xbf16> to vector<6x128xbf16>
    %c26_52 = arith.constant 26 : index
    %c1408_53 = arith.constant 1408 : index
    %84 = vector.load %arg16[%c26_52, %c1408_53] : memref<32x3200xbf16, #tpu.memory_space<vmem>>, vector<6x128xbf16>
    tpu.vector_store %arg16[%c26_52, %c1408_53], %83 {strides = array<i32>} : memref<32x3200xbf16, #tpu.memory_space<vmem>>, vector<6x128xbf16>,
    %85 = vector.extract_strided_slice %16 {offsets = [0, 0], sizes = [8, 128], strides = [1, 1]} : vector<32x128xbf16> to vector<8x128xbf16>
    %c0_54 = arith.constant 0 : index
    %c1536 = arith.constant 1536 : index
    %86 = vector.load %arg16[%c0_54, %c1536] : memref<32x3200xbf16, #tpu.memory_space<vmem>>, vector<8x128xbf16>
    tpu.vector_store %arg16[%c0_54, %c1536], %85 {strides = array<i32>} : memref<32x3200xbf16, #tpu.memory_space<vmem>>, vector<8x128xbf16>,
    %87 = vector.extract_strided_slice %16 {offsets = [8, 0], sizes = [8, 128], strides = [1, 1]} : vector<32x128xbf16> to vector<8x128xbf16>
    %c8_55 = arith.constant 8 : index
    %c1536_56 = arith.constant 1536 : index
    %88 = vector.load %arg16[%c8_55, %c1536_56] : memref<32x3200xbf16, #tpu.memory_space<vmem>>, vector<8x128xbf16>
    tpu.vector_store %arg16[%c8_55, %c1536_56], %87 {strides = array<i32>} : memref<32x3200xbf16, #tpu.memory_space<vmem>>, vector<8x128xbf16>,
    %89 = vector.extract_strided_slice %16 {offsets = [16, 0], sizes = [8, 128], strides = [1, 1]} : vector<32x128xbf16> to vector<8x128xbf16>
    %c16_57 = arith.constant 16 : index
    %c1536_58 = arith.constant 1536 : index
    %90 = vector.load %arg16[%c16_57, %c1536_58] : memref<32x3200xbf16, #tpu.memory_space<vmem>>, vector<8x128xbf16>
    tpu.vector_store %arg16[%c16_57, %c1536_58], %89 {strides = array<i32>} : memref<32x3200xbf16, #tpu.memory_space<vmem>>, vector<8x128xbf16>,
    %91 = vector.extract_strided_slice %16 {offsets = [24, 0], sizes = [8, 128], strides = [1, 1]} : vector<32x128xbf16> to vector<8x128xbf16>
    %c24_59 = arith.constant 24 : index
    %c1536_60 = arith.constant 1536 : index
    %92 = vector.load %arg16[%c24_59, %c1536_60] : memref<32x3200xbf16, #tpu.memory_space<vmem>>, vector<8x128xbf16>
    tpu.vector_store %arg16[%c24_59, %c1536_60], %91 {strides = array<i32>} : memref<32x3200xbf16, #tpu.memory_space<vmem>>, vector<8x128xbf16>,
    %93 = vector.extract_strided_slice %16 {offsets = [2, 0], sizes = [6, 128], strides = [1, 1]} : vector<32x128xbf16> to vector<6x128xbf16>
    %c0_61 = arith.constant 0 : index
    %c1664 = arith.constant 1664 : index
    %94 = vector.load %arg16[%c0_61, %c1664] : memref<32x3200xbf16, #tpu.memory_space<vmem>>, vector<6x128xbf16>
    tpu.vector_store %arg16[%c0_61, %c1664], %93 {strides = array<i32>} : memref<32x3200xbf16, #tpu.memory_space<vmem>>, vector<6x128xbf16>,
    %95 = vector.extract_strided_slice %16 {offsets = [10, 0], sizes = [6, 128], strides = [1, 1]} : vector<32x128xbf16> to vector<6x128xbf16>
    %c8_62 = arith.constant 8 : index
    %c1664_63 = arith.constant 1664 : index
    %96 = vector.load %arg16[%c8_62, %c1664_63] : memref<32x3200xbf16, #tpu.memory_space<vmem>>, vector<6x128xbf16>
    tpu.vector_store %arg16[%c8_62, %c1664_63], %95 {strides = array<i32>} : memref<32x3200xbf16, #tpu.memory_space<vmem>>, vector<6x128xbf16>,
    %97 = vector.extract_strided_slice %16 {offsets = [18, 0], sizes = [6, 128], strides = [1, 1]} : vector<32x128xbf16> to vector<6x128xbf16>
    %c16_64 = arith.constant 16 : index
    %c1664_65 = arith.constant 1664 : index
    %98 = vector.load %arg16[%c16_64, %c1664_65] : memref<32x3200xbf16, #tpu.memory_space<vmem>>, vector<6x128xbf16>
    tpu.vector_store %arg16[%c16_64, %c1664_65], %97 {strides = array<i32>} : memref<32x3200xbf16, #tpu.memory_space<vmem>>, vector<6x128xbf16>,
    %99 = vector.extract_strided_slice %16 {offsets = [26, 0], sizes = [6, 128], strides = [1, 1]} : vector<32x128xbf16> to vector<6x128xbf16>
    %c24_66 = arith.constant 24 : index
    %c1664_67 = arith.constant 1664 : index
    %100 = vector.load %arg16[%c24_66, %c1664_67] : memref<32x3200xbf16, #tpu.memory_space<vmem>>, vector<6x128xbf16>
    tpu.vector_store %arg16[%c24_66, %c1664_67], %99 {strides = array<i32>} : memref<32x3200xbf16, #tpu.memory_space<vmem>>, vector<6x128xbf16>,
    %101 = vector.extract_strided_slice %16 {offsets = [4, 0], sizes = [4, 128], strides = [1, 1]} : vector<32x128xbf16> to vector<4x128xbf16>
    %c0_68 = arith.constant 0 : index
    %c1792 = arith.constant 1792 : index
    %102 = vector.load %arg16[%c0_68, %c1792] : memref<32x3200xbf16, #tpu.memory_space<vmem>>, vector<4x128xbf16>
    tpu.vector_store %arg16[%c0_68, %c1792], %101 {strides = array<i32>} : memref<32x3200xbf16, #tpu.memory_space<vmem>>, vector<4x128xbf16>,
    %103 = vector.extract_strided_slice %16 {offsets = [12, 0], sizes = [4, 128], strides = [1, 1]} : vector<32x128xbf16> to vector<4x128xbf16>
    %c8_69 = arith.constant 8 : index
    %c1792_70 = arith.constant 1792 : index
    %104 = vector.load %arg16[%c8_69, %c1792_70] : memref<32x3200xbf16, #tpu.memory_space<vmem>>, vector<4x128xbf16>
    tpu.vector_store %arg16[%c8_69, %c1792_70], %103 {strides = array<i32>} : memref<32x3200xbf16, #tpu.memory_space<vmem>>, vector<4x128xbf16>,
    %105 = vector.extract_strided_slice %16 {offsets = [20, 0], sizes = [4, 128], strides = [1, 1]} : vector<32x128xbf16> to vector<4x128xbf16>
    %c16_71 = arith.constant 16 : index
    %c1792_72 = arith.constant 1792 : index
    %106 = vector.load %arg16[%c16_71, %c1792_72] : memref<32x3200xbf16, #tpu.memory_space<vmem>>, vector<4x128xbf16>
    tpu.vector_store %arg16[%c16_71, %c1792_72], %105 {strides = array<i32>} : memref<32x3200xbf16, #tpu.memory_space<vmem>>, vector<4x128xbf16>,
    %107 = vector.extract_strided_slice %16 {offsets = [28, 0], sizes = [4, 128], strides = [1, 1]} : vector<32x128xbf16> to vector<4x128xbf16>
    %c24_73 = arith.constant 24 : index
    %c1792_74 = arith.constant 1792 : index
    %108 = vector.load %arg16[%c24_73, %c1792_74] : memref<32x3200xbf16, #tpu.memory_space<vmem>>, vector<4x128xbf16>
    tpu.vector_store %arg16[%c24_73, %c1792_74], %107 {strides = array<i32>} : memref<32x3200xbf16, #tpu.memory_space<vmem>>, vector<4x128xbf16>,
    %109 = vector.extract_strided_slice %16 {offsets = [8, 0], sizes = [4, 128], strides = [1, 1]} : vector<32x128xbf16> to vector<4x128xbf16>
    %c4_75 = arith.constant 4 : index
    %c1920 = arith.constant 1920 : index
    %110 = vector.load %arg16[%c4_75, %c1920] : memref<32x3200xbf16, #tpu.memory_space<vmem>>, vector<4x128xbf16>
    tpu.vector_store %arg16[%c4_75, %c1920], %109 {strides = array<i32>} : memref<32x3200xbf16, #tpu.memory_space<vmem>>, vector<4x128xbf16>,
    %111 = vector.extract_strided_slice %16 {offsets = [16, 0], sizes = [4, 128], strides = [1, 1]} : vector<32x128xbf16> to vector<4x128xbf16>
    %c12_76 = arith.constant 12 : index
    %c1920_77 = arith.constant 1920 : index
    %112 = vector.load %arg16[%c12_76, %c1920_77] : memref<32x3200xbf16, #tpu.memory_space<vmem>>, vector<4x128xbf16>
    tpu.vector_store %arg16[%c12_76, %c1920_77], %111 {strides = array<i32>} : memref<32x3200xbf16, #tpu.memory_space<vmem>>, vector<4x128xbf16>,
    %113 = vector.extract_strided_slice %16 {offsets = [24, 0], sizes = [4, 128], strides = [1, 1]} : vector<32x128xbf16> to vector<4x128xbf16>
    %c20_78 = arith.constant 20 : index
    %c1920_79 = arith.constant 1920 : index
    %114 = vector.load %arg16[%c20_78, %c1920_79] : memref<32x3200xbf16, #tpu.memory_space<vmem>>, vector<4x128xbf16>
    tpu.vector_store %arg16[%c20_78, %c1920_79], %113 {strides = array<i32>} : memref<32x3200xbf16, #tpu.memory_space<vmem>>, vector<4x128xbf16>,
    %115 = vector.extract_strided_slice %16 {offsets = [8, 0], sizes = [6, 128], strides = [1, 1]} : vector<32x128xbf16> to vector<6x128xbf16>
    %c2_80 = arith.constant 2 : index
    %c2048 = arith.constant 2048 : index
    %116 = vector.load %arg16[%c2_80, %c2048] : memref<32x3200xbf16, #tpu.memory_space<vmem>>, vector<6x128xbf16>
    tpu.vector_store %arg16[%c2_80, %c2048], %115 {strides = array<i32>} : memref<32x3200xbf16, #tpu.memory_space<vmem>>, vector<6x128xbf16>,
    %117 = vector.extract_strided_slice %16 {offsets = [16, 0], sizes = [6, 128], strides = [1, 1]} : vector<32x128xbf16> to vector<6x128xbf16>
    %c10_81 = arith.constant 10 : index
    %c2048_82 = arith.constant 2048 : index
    %118 = vector.load %arg16[%c10_81, %c2048_82] : memref<32x3200xbf16, #tpu.memory_space<vmem>>, vector<6x128xbf16>
    tpu.vector_store %arg16[%c10_81, %c2048_82], %117 {strides = array<i32>} : memref<32x3200xbf16, #tpu.memory_space<vmem>>, vector<6x128xbf16>,
    %119 = vector.extract_strided_slice %16 {offsets = [24, 0], sizes = [6, 128], strides = [1, 1]} : vector<32x128xbf16> to vector<6x128xbf16>
    %c18_83 = arith.constant 18 : index
    %c2048_84 = arith.constant 2048 : index
    %120 = vector.load %arg16[%c18_83, %c2048_84] : memref<32x3200xbf16, #tpu.memory_space<vmem>>, vector<6x128xbf16>
    tpu.vector_store %arg16[%c18_83, %c2048_84], %119 {strides = array<i32>} : memref<32x3200xbf16, #tpu.memory_space<vmem>>, vector<6x128xbf16>,
    %121 = vector.extract_strided_slice %16 {offsets = [8, 0], sizes = [8, 128], strides = [1, 1]} : vector<32x128xbf16> to vector<8x128xbf16>
    %c0_85 = arith.constant 0 : index
    %c2176 = arith.constant 2176 : index
    %122 = vector.load %arg16[%c0_85, %c2176] : memref<32x3200xbf16, #tpu.memory_space<vmem>>, vector<8x128xbf16>
    tpu.vector_store %arg16[%c0_85, %c2176], %121 {strides = array<i32>} : memref<32x3200xbf16, #tpu.memory_space<vmem>>, vector<8x128xbf16>,
    %123 = vector.extract_strided_slice %16 {offsets = [16, 0], sizes = [8, 128], strides = [1, 1]} : vector<32x128xbf16> to vector<8x128xbf16>
    %c8_86 = arith.constant 8 : index
    %c2176_87 = arith.constant 2176 : index
    %124 = vector.load %arg16[%c8_86, %c2176_87] : memref<32x3200xbf16, #tpu.memory_space<vmem>>, vector<8x128xbf16>
    tpu.vector_store %arg16[%c8_86, %c2176_87], %123 {strides = array<i32>} : memref<32x3200xbf16, #tpu.memory_space<vmem>>, vector<8x128xbf16>,
    %125 = vector.extract_strided_slice %16 {offsets = [24, 0], sizes = [8, 128], strides = [1, 1]} : vector<32x128xbf16> to vector<8x128xbf16>
    %c16_88 = arith.constant 16 : index
    %c2176_89 = arith.constant 2176 : index
    %126 = vector.load %arg16[%c16_88, %c2176_89] : memref<32x3200xbf16, #tpu.memory_space<vmem>>, vector<8x128xbf16>
    tpu.vector_store %arg16[%c16_88, %c2176_89], %125 {strides = array<i32>} : memref<32x3200xbf16, #tpu.memory_space<vmem>>, vector<8x128xbf16>,
    %127 = vector.extract_strided_slice %16 {offsets = [10, 0], sizes = [6, 128], strides = [1, 1]} : vector<32x128xbf16> to vector<6x128xbf16>
    %c0_90 = arith.constant 0 : index
    %c2304 = arith.constant 2304 : index
    %128 = vector.load %arg16[%c0_90, %c2304] : memref<32x3200xbf16, #tpu.memory_space<vmem>>, vector<6x128xbf16>
    tpu.vector_store %arg16[%c0_90, %c2304], %127 {strides = array<i32>} : memref<32x3200xbf16, #tpu.memory_space<vmem>>, vector<6x128xbf16>,
    %129 = vector.extract_strided_slice %16 {offsets = [18, 0], sizes = [6, 128], strides = [1, 1]} : vector<32x128xbf16> to vector<6x128xbf16>
    %c8_91 = arith.constant 8 : index
    %c2304_92 = arith.constant 2304 : index
    %130 = vector.load %arg16[%c8_91, %c2304_92] : memref<32x3200xbf16, #tpu.memory_space<vmem>>, vector<6x128xbf16>
    tpu.vector_store %arg16[%c8_91, %c2304_92], %129 {strides = array<i32>} : memref<32x3200xbf16, #tpu.memory_space<vmem>>, vector<6x128xbf16>,
    %131 = vector.extract_strided_slice %16 {offsets = [26, 0], sizes = [6, 128], strides = [1, 1]} : vector<32x128xbf16> to vector<6x128xbf16>
    %c16_93 = arith.constant 16 : index
    %c2304_94 = arith.constant 2304 : index
    %132 = vector.load %arg16[%c16_93, %c2304_94] : memref<32x3200xbf16, #tpu.memory_space<vmem>>, vector<6x128xbf16>
    tpu.vector_store %arg16[%c16_93, %c2304_94], %131 {strides = array<i32>} : memref<32x3200xbf16, #tpu.memory_space<vmem>>, vector<6x128xbf16>,
    %133 = vector.extract_strided_slice %16 {offsets = [12, 0], sizes = [4, 128], strides = [1, 1]} : vector<32x128xbf16> to vector<4x128xbf16>
    %c0_95 = arith.constant 0 : index
    %c2432 = arith.constant 2432 : index
    %134 = vector.load %arg16[%c0_95, %c2432] : memref<32x3200xbf16, #tpu.memory_space<vmem>>, vector<4x128xbf16>
    tpu.vector_store %arg16[%c0_95, %c2432], %133 {strides = array<i32>} : memref<32x3200xbf16, #tpu.memory_space<vmem>>, vector<4x128xbf16>,
    %135 = vector.extract_strided_slice %16 {offsets = [20, 0], sizes = [4, 128], strides = [1, 1]} : vector<32x128xbf16> to vector<4x128xbf16>
    %c8_96 = arith.constant 8 : index
    %c2432_97 = arith.constant 2432 : index
    %136 = vector.load %arg16[%c8_96, %c2432_97] : memref<32x3200xbf16, #tpu.memory_space<vmem>>, vector<4x128xbf16>
    tpu.vector_store %arg16[%c8_96, %c2432_97], %135 {strides = array<i32>} : memref<32x3200xbf16, #tpu.memory_space<vmem>>, vector<4x128xbf16>,
    %137 = vector.extract_strided_slice %16 {offsets = [28, 0], sizes = [4, 128], strides = [1, 1]} : vector<32x128xbf16> to vector<4x128xbf16>
    %c16_98 = arith.constant 16 : index
    %c2432_99 = arith.constant 2432 : index
    %138 = vector.load %arg16[%c16_98, %c2432_99] : memref<32x3200xbf16, #tpu.memory_space<vmem>>, vector<4x128xbf16>
    tpu.vector_store %arg16[%c16_98, %c2432_99], %137 {strides = array<i32>} : memref<32x3200xbf16, #tpu.memory_space<vmem>>, vector<4x128xbf16>,
    %139 = vector.extract_strided_slice %16 {offsets = [16, 0], sizes = [4, 128], strides = [1, 1]} : vector<32x128xbf16> to vector<4x128xbf16>
    %c4_100 = arith.constant 4 : index
    %c2560 = arith.constant 2560 : index
    %140 = vector.load %arg16[%c4_100, %c2560] : memref<32x3200xbf16, #tpu.memory_space<vmem>>, vector<4x128xbf16>
    tpu.vector_store %arg16[%c4_100, %c2560], %139 {strides = array<i32>} : memref<32x3200xbf16, #tpu.memory_space<vmem>>, vector<4x128xbf16>,
    %141 = vector.extract_strided_slice %16 {offsets = [24, 0], sizes = [4, 128], strides = [1, 1]} : vector<32x128xbf16> to vector<4x128xbf16>
    %c12_101 = arith.constant 12 : index
    %c2560_102 = arith.constant 2560 : index
    %142 = vector.load %arg16[%c12_101, %c2560_102] : memref<32x3200xbf16, #tpu.memory_space<vmem>>, vector<4x128xbf16>
    tpu.vector_store %arg16[%c12_101, %c2560_102], %141 {strides = array<i32>} : memref<32x3200xbf16, #tpu.memory_space<vmem>>, vector<4x128xbf16>,
    %143 = vector.extract_strided_slice %16 {offsets = [16, 0], sizes = [6, 128], strides = [1, 1]} : vector<32x128xbf16> to vector<6x128xbf16>
    %c2_103 = arith.constant 2 : index
    %c2688 = arith.constant 2688 : index
    %144 = vector.load %arg16[%c2_103, %c2688] : memref<32x3200xbf16, #tpu.memory_space<vmem>>, vector<6x128xbf16>
    tpu.vector_store %arg16[%c2_103, %c2688], %143 {strides = array<i32>} : memref<32x3200xbf16, #tpu.memory_space<vmem>>, vector<6x128xbf16>,
    %145 = vector.extract_strided_slice %16 {offsets = [24, 0], sizes = [6, 128], strides = [1, 1]} : vector<32x128xbf16> to vector<6x128xbf16>
    %c10_104 = arith.constant 10 : index
    %c2688_105 = arith.constant 2688 : index
    %146 = vector.load %arg16[%c10_104, %c2688_105] : memref<32x3200xbf16, #tpu.memory_space<vmem>>, vector<6x128xbf16>
    tpu.vector_store %arg16[%c10_104, %c2688_105], %145 {strides = array<i32>} : memref<32x3200xbf16, #tpu.memory_space<vmem>>, vector<6x128xbf16>,
    %147 = vector.extract_strided_slice %16 {offsets = [16, 0], sizes = [8, 128], strides = [1, 1]} : vector<32x128xbf16> to vector<8x128xbf16>
    %c0_106 = arith.constant 0 : index
    %c2816 = arith.constant 2816 : index
    %148 = vector.load %arg16[%c0_106, %c2816] : memref<32x3200xbf16, #tpu.memory_space<vmem>>, vector<8x128xbf16>
    tpu.vector_store %arg16[%c0_106, %c2816], %147 {strides = array<i32>} : memref<32x3200xbf16, #tpu.memory_space<vmem>>, vector<8x128xbf16>,
    %149 = vector.extract_strided_slice %16 {offsets = [24, 0], sizes = [8, 128], strides = [1, 1]} : vector<32x128xbf16> to vector<8x128xbf16>
    %c8_107 = arith.constant 8 : index
    %c2816_108 = arith.constant 2816 : index
    %150 = vector.load %arg16[%c8_107, %c2816_108] : memref<32x3200xbf16, #tpu.memory_space<vmem>>, vector<8x128xbf16>
    tpu.vector_store %arg16[%c8_107, %c2816_108], %149 {strides = array<i32>} : memref<32x3200xbf16, #tpu.memory_space<vmem>>, vector<8x128xbf16>,
    %151 = vector.extract_strided_slice %16 {offsets = [18, 0], sizes = [6, 128], strides = [1, 1]} : vector<32x128xbf16> to vector<6x128xbf16>
    %c0_109 = arith.constant 0 : index
    %c2944 = arith.constant 2944 : index
    %152 = vector.load %arg16[%c0_109, %c2944] : memref<32x3200xbf16, #tpu.memory_space<vmem>>, vector<6x128xbf16>
    tpu.vector_store %arg16[%c0_109, %c2944], %151 {strides = array<i32>} : memref<32x3200xbf16, #tpu.memory_space<vmem>>, vector<6x128xbf16>,
    %153 = vector.extract_strided_slice %16 {offsets = [26, 0], sizes = [6, 128], strides = [1, 1]} : vector<32x128xbf16> to vector<6x128xbf16>
    %c8_110 = arith.constant 8 : index
    %c2944_111 = arith.constant 2944 : index
    %154 = vector.load %arg16[%c8_110, %c2944_111] : memref<32x3200xbf16, #tpu.memory_space<vmem>>, vector<6x128xbf16>
    tpu.vector_store %arg16[%c8_110, %c2944_111], %153 {strides = array<i32>} : memref<32x3200xbf16, #tpu.memory_space<vmem>>, vector<6x128xbf16>,
    %155 = vector.extract_strided_slice %16 {offsets = [20, 0], sizes = [4, 128], strides = [1, 1]} : vector<32x128xbf16> to vector<4x128xbf16>
    %c0_112 = arith.constant 0 : index
    %c3072 = arith.constant 3072 : index
    %156 = vector.load %arg16[%c0_112, %c3072] : memref<32x3200xbf16, #tpu.memory_space<vmem>>, vector<4x128xbf16>
    tpu.vector_store %arg16[%c0_112, %c3072], %155 {strides = array<i32>} : memref<32x3200xbf16, #tpu.memory_space<vmem>>, vector<4x128xbf16>,
    %157 = vector.extract_strided_slice %16 {offsets = [28, 0], sizes = [4, 128], strides = [1, 1]} : vector<32x128xbf16> to vector<4x128xbf16>
    %c8_113 = arith.constant 8 : index
    %c3072_114 = arith.constant 3072 : index
    %158 = vector.load %arg16[%c8_113, %c3072_114] : memref<32x3200xbf16, #tpu.memory_space<vmem>>, vector<4x128xbf16>
    tpu.vector_store %arg16[%c8_113, %c3072_114], %157 {strides = array<i32>} : memref<32x3200xbf16, #tpu.memory_space<vmem>>, vector<4x128xbf16>,
    %c0_115 = arith.constant 0 : index
    %c0_116 = arith.constant 0 : index
    %159 = vector.load %arg16[%c0_115, %c0_116] : memref<32x3200xbf16, #tpu.memory_space<vmem>>, vector<32x3200xbf16>
    %c0_117 = arith.constant 0 : index
    %c0_118 = arith.constant 0 : index
    %160 = vector.load %arg5[%c0_117, %c0_118] : memref<3200x256xbf16, #tpu.memory_space<vmem>>, vector<3200x256xbf16>
    %cst_119 = arith.constant dense<0.000000e+00> : vector<32x256xf32>
    %161 = tpu.matmul %159, %160, %cst_119 {dimension_numbers = #tpu.dot_dimension_numbers<[1], [0], [0], [1], [0, 0, 1, 1], [], []>} : vector<32x3200xbf16>, vector<3200x256xbf16>, vector<32x256xf32> -> vector<32x256xf32>
    %c0_120 = arith.constant 0 : index
    %c0_121 = arith.constant 0 : index
    %162 = vector.load %arg6[%c0_120, %c0_121] : memref<1x256xf32, #tpu.memory_space<vmem>>, vector<1x256xf32>
    %163 = vector.broadcast %162 : vector<1x256xf32> to vector<32x256xf32>
    %164 = arith.addf %161, %163 : vector<32x256xf32>
    %cst_122 = arith.constant 0.000000e+00 : f32
    %165 = vector.broadcast %cst_122 : f32 to vector<32x256xf32>
    %166 = arith.maximumf %164, %165 : vector<32x256xf32>
    %167 = vector.extract_strided_slice %166 {offsets = [0, 0], sizes = [8, 256], strides = [1, 1]} : vector<32x256xf32> to vector<8x256xf32>
    %168 = vector.extract_strided_slice %166 {offsets = [8, 0], sizes = [8, 256], strides = [1, 1]} : vector<32x256xf32> to vector<8x256xf32>
    %169 = arith.maximumf %167, %168 : vector<8x256xf32>
    %170 = vector.extract_strided_slice %166 {offsets = [16, 0], sizes = [8, 256], strides = [1, 1]} : vector<32x256xf32> to vector<8x256xf32>
    %171 = vector.extract_strided_slice %166 {offsets = [24, 0], sizes = [8, 256], strides = [1, 1]} : vector<32x256xf32> to vector<8x256xf32>
    %172 = arith.maximumf %170, %171 : vector<8x256xf32>
    %173 = vector.extract_strided_slice %169 {offsets = [0, 0], sizes = [2, 256], strides = [1, 1]} : vector<8x256xf32> to vector<2x256xf32>
    %174 = vector.extract_strided_slice %169 {offsets = [2, 0], sizes = [2, 256], strides = [1, 1]} : vector<8x256xf32> to vector<2x256xf32>
    %175 = arith.maximumf %173, %174 : vector<2x256xf32>
    %176 = vector.extract_strided_slice %169 {offsets = [4, 0], sizes = [2, 256], strides = [1, 1]} : vector<8x256xf32> to vector<2x256xf32>
    %177 = vector.extract_strided_slice %169 {offsets = [6, 0], sizes = [2, 256], strides = [1, 1]} : vector<8x256xf32> to vector<2x256xf32>
    %178 = arith.maximumf %176, %177 : vector<2x256xf32>
    %179 = vector.extract_strided_slice %172 {offsets = [0, 0], sizes = [2, 256], strides = [1, 1]} : vector<8x256xf32> to vector<2x256xf32>
    %180 = vector.extract_strided_slice %172 {offsets = [2, 0], sizes = [2, 256], strides = [1, 1]} : vector<8x256xf32> to vector<2x256xf32>
    %181 = arith.maximumf %179, %180 : vector<2x256xf32>
    %182 = vector.extract_strided_slice %172 {offsets = [4, 0], sizes = [2, 256], strides = [1, 1]} : vector<8x256xf32> to vector<2x256xf32>
    %183 = vector.extract_strided_slice %172 {offsets = [6, 0], sizes = [2, 256], strides = [1, 1]} : vector<8x256xf32> to vector<2x256xf32>
    %184 = arith.maximumf %182, %183 : vector<2x256xf32>
    %185 = tpu.concatenate %175, %178, %181, %184 in 0 : vector<2x256xf32>, vector<2x256xf32>, vector<2x256xf32>, vector<2x256xf32> -> vector<8x256xf32>
    %186 = arith.truncf %185 : vector<8x256xf32> to vector<8x256xbf16>
    %cst_123 = arith.constant 0.000000e+00 : bf16
    %187 = vector.broadcast %cst_123 : bf16 to vector<8x2304xbf16>
    %c0_124 = arith.constant 0 : index
    %c0_125 = arith.constant 0 : index
    %188 = vector.load %arg17[%c0_124, %c0_125] : memref<8x2304xbf16, #tpu.memory_space<vmem>>, vector<8x2304xbf16>
    tpu.vector_store %arg17[%c0_124, %c0_125], %187 {strides = array<i32>} : memref<8x2304xbf16, #tpu.memory_space<vmem>>, vector<8x2304xbf16>,
    %189 = vector.extract_strided_slice %186 {offsets = [0, 0], sizes = [2, 256], strides = [1, 1]} : vector<8x256xbf16> to vector<2x256xbf16>
    %c6 = arith.constant 6 : index
    %c0_126 = arith.constant 0 : index
    %190 = vector.load %arg17[%c6, %c0_126] : memref<8x2304xbf16, #tpu.memory_space<vmem>>, vector<2x256xbf16>
    tpu.vector_store %arg17[%c6, %c0_126], %189 {strides = array<i32>} : memref<8x2304xbf16, #tpu.memory_space<vmem>>, vector<2x256xbf16>,
    %191 = vector.extract_strided_slice %186 {offsets = [0, 0], sizes = [4, 256], strides = [1, 1]} : vector<8x256xbf16> to vector<4x256xbf16>
    %c4_127 = arith.constant 4 : index
    %c256_128 = arith.constant 256 : index
    %192 = vector.load %arg17[%c4_127, %c256_128] : memref<8x2304xbf16, #tpu.memory_space<vmem>>, vector<4x256xbf16>
    tpu.vector_store %arg17[%c4_127, %c256_128], %191 {strides = array<i32>} : memref<8x2304xbf16, #tpu.memory_space<vmem>>, vector<4x256xbf16>,
    %193 = vector.extract_strided_slice %186 {offsets = [2, 0], sizes = [2, 256], strides = [1, 1]} : vector<8x256xbf16> to vector<2x256xbf16>
    %c4_129 = arith.constant 4 : index
    %c512_130 = arith.constant 512 : index
    %194 = vector.load %arg17[%c4_129, %c512_130] : memref<8x2304xbf16, #tpu.memory_space<vmem>>, vector<2x256xbf16>
    tpu.vector_store %arg17[%c4_129, %c512_130], %193 {strides = array<i32>} : memref<8x2304xbf16, #tpu.memory_space<vmem>>, vector<2x256xbf16>,
    %195 = vector.extract_strided_slice %186 {offsets = [0, 0], sizes = [2, 256], strides = [1, 1]} : vector<8x256xbf16> to vector<2x256xbf16>
    %c2_131 = arith.constant 2 : index
    %c768_132 = arith.constant 768 : index
    %196 = vector.load %arg17[%c2_131, %c768_132] : memref<8x2304xbf16, #tpu.memory_space<vmem>>, vector<2x256xbf16>
    tpu.vector_store %arg17[%c2_131, %c768_132], %195 {strides = array<i32>} : memref<8x2304xbf16, #tpu.memory_space<vmem>>, vector<2x256xbf16>,
    %197 = vector.extract_strided_slice %186 {offsets = [4, 0], sizes = [2, 256], strides = [1, 1]} : vector<8x256xbf16> to vector<2x256xbf16>
    %c6_133 = arith.constant 6 : index
    %c768_134 = arith.constant 768 : index
    %198 = vector.load %arg17[%c6_133, %c768_134] : memref<8x2304xbf16, #tpu.memory_space<vmem>>, vector<2x256xbf16>
    tpu.vector_store %arg17[%c6_133, %c768_134], %197 {strides = array<i32>} : memref<8x2304xbf16, #tpu.memory_space<vmem>>, vector<2x256xbf16>,
    %199 = vector.extract_strided_slice %186 {offsets = [0, 0], sizes = [4, 256], strides = [1, 1]} : vector<8x256xbf16> to vector<4x256xbf16>
    %c0_135 = arith.constant 0 : index
    %c1024_136 = arith.constant 1024 : index
    %200 = vector.load %arg17[%c0_135, %c1024_136] : memref<8x2304xbf16, #tpu.memory_space<vmem>>, vector<4x256xbf16>
    tpu.vector_store %arg17[%c0_135, %c1024_136], %199 {strides = array<i32>} : memref<8x2304xbf16, #tpu.memory_space<vmem>>, vector<4x256xbf16>,
    %201 = vector.extract_strided_slice %186 {offsets = [4, 0], sizes = [4, 256], strides = [1, 1]} : vector<8x256xbf16> to vector<4x256xbf16>
    %c4_137 = arith.constant 4 : index
    %c1024_138 = arith.constant 1024 : index
    %202 = vector.load %arg17[%c4_137, %c1024_138] : memref<8x2304xbf16, #tpu.memory_space<vmem>>, vector<4x256xbf16>
    tpu.vector_store %arg17[%c4_137, %c1024_138], %201 {strides = array<i32>} : memref<8x2304xbf16, #tpu.memory_space<vmem>>, vector<4x256xbf16>,
    %203 = vector.extract_strided_slice %186 {offsets = [2, 0], sizes = [2, 256], strides = [1, 1]} : vector<8x256xbf16> to vector<2x256xbf16>
    %c0_139 = arith.constant 0 : index
    %c1280_140 = arith.constant 1280 : index
    %204 = vector.load %arg17[%c0_139, %c1280_140] : memref<8x2304xbf16, #tpu.memory_space<vmem>>, vector<2x256xbf16>
    tpu.vector_store %arg17[%c0_139, %c1280_140], %203 {strides = array<i32>} : memref<8x2304xbf16, #tpu.memory_space<vmem>>, vector<2x256xbf16>,
    %205 = vector.extract_strided_slice %186 {offsets = [6, 0], sizes = [2, 256], strides = [1, 1]} : vector<8x256xbf16> to vector<2x256xbf16>
    %c4_141 = arith.constant 4 : index
    %c1280_142 = arith.constant 1280 : index
    %206 = vector.load %arg17[%c4_141, %c1280_142] : memref<8x2304xbf16, #tpu.memory_space<vmem>>, vector<2x256xbf16>
    tpu.vector_store %arg17[%c4_141, %c1280_142], %205 {strides = array<i32>} : memref<8x2304xbf16, #tpu.memory_space<vmem>>, vector<2x256xbf16>,
    %207 = vector.extract_strided_slice %186 {offsets = [4, 0], sizes = [2, 256], strides = [1, 1]} : vector<8x256xbf16> to vector<2x256xbf16>
    %c2_143 = arith.constant 2 : index
    %c1536_144 = arith.constant 1536 : index
    %208 = vector.load %arg17[%c2_143, %c1536_144] : memref<8x2304xbf16, #tpu.memory_space<vmem>>, vector<2x256xbf16>
    tpu.vector_store %arg17[%c2_143, %c1536_144], %207 {strides = array<i32>} : memref<8x2304xbf16, #tpu.memory_space<vmem>>, vector<2x256xbf16>,
    %209 = vector.extract_strided_slice %186 {offsets = [4, 0], sizes = [4, 256], strides = [1, 1]} : vector<8x256xbf16> to vector<4x256xbf16>
    %c0_145 = arith.constant 0 : index
    %c1792_146 = arith.constant 1792 : index
    %210 = vector.load %arg17[%c0_145, %c1792_146] : memref<8x2304xbf16, #tpu.memory_space<vmem>>, vector<4x256xbf16>
    tpu.vector_store %arg17[%c0_145, %c1792_146], %209 {strides = array<i32>} : memref<8x2304xbf16, #tpu.memory_space<vmem>>, vector<4x256xbf16>,
    %211 = vector.extract_strided_slice %186 {offsets = [6, 0], sizes = [2, 256], strides = [1, 1]} : vector<8x256xbf16> to vector<2x256xbf16>
    %c0_147 = arith.constant 0 : index
    %c2048_148 = arith.constant 2048 : index
    %212 = vector.load %arg17[%c0_147, %c2048_148] : memref<8x2304xbf16, #tpu.memory_space<vmem>>, vector<2x256xbf16>
    tpu.vector_store %arg17[%c0_147, %c2048_148], %211 {strides = array<i32>} : memref<8x2304xbf16, #tpu.memory_space<vmem>>, vector<2x256xbf16>,
    %c0_149 = arith.constant 0 : index
    %c0_150 = arith.constant 0 : index
    %213 = vector.load %arg17[%c0_149, %c0_150] : memref<8x2304xbf16, #tpu.memory_space<vmem>>, vector<8x2304xbf16>
    %c0_151 = arith.constant 0 : index
    %c0_152 = arith.constant 0 : index
    %214 = vector.load %arg7[%c0_151, %c0_152] : memref<2304x384xbf16, #tpu.memory_space<vmem>>, vector<2304x384xbf16>
    %cst_153 = arith.constant dense<0.000000e+00> : vector<8x384xf32>
    %215 = tpu.matmul %213, %214, %cst_153 {dimension_numbers = #tpu.dot_dimension_numbers<[1], [0], [0], [1], [0, 0, 1, 1], [], []>} : vector<8x2304xbf16>, vector<2304x384xbf16>, vector<8x384xf32> -> vector<8x384xf32>
    %c0_154 = arith.constant 0 : index
    %c0_155 = arith.constant 0 : index
    %216 = vector.load %arg8[%c0_154, %c0_155] : memref<1x384xf32, #tpu.memory_space<vmem>>, vector<1x384xf32>
    %217 = vector.broadcast %216 : vector<1x384xf32> to vector<8x384xf32>
    %218 = arith.addf %215, %217 : vector<8x384xf32>
    %cst_156 = arith.constant 0.000000e+00 : f32
    %219 = vector.broadcast %cst_156 : f32 to vector<8x384xf32>
    %220 = arith.maximumf %218, %219 : vector<8x384xf32>
    %221 = arith.truncf %220 : vector<8x384xf32> to vector<8x384xbf16>
    %cst_157 = arith.constant 0.000000e+00 : bf16
    %222 = vector.broadcast %cst_157 : bf16 to vector<8x3456xbf16>
    %c0_158 = arith.constant 0 : index
    %c0_159 = arith.constant 0 : index
    %223 = vector.load %arg18[%c0_158, %c0_159] : memref<8x3456xbf16, #tpu.memory_space<vmem>>, vector<8x3456xbf16>
    tpu.vector_store %arg18[%c0_158, %c0_159], %222 {strides = array<i32>} : memref<8x3456xbf16, #tpu.memory_space<vmem>>, vector<8x3456xbf16>,
    %224 = vector.extract_strided_slice %221 {offsets = [0, 0], sizes = [2, 384], strides = [1, 1]} : vector<8x384xbf16> to vector<2x384xbf16>
    %c6_160 = arith.constant 6 : index
    %c0_161 = arith.constant 0 : index
    %225 = vector.load %arg18[%c6_160, %c0_161] : memref<8x3456xbf16, #tpu.memory_space<vmem>>, vector<2x384xbf16>
    tpu.vector_store %arg18[%c6_160, %c0_161], %224 {strides = array<i32>} : memref<8x3456xbf16, #tpu.memory_space<vmem>>, vector<2x384xbf16>,
    %226 = vector.extract_strided_slice %221 {offsets = [0, 0], sizes = [4, 384], strides = [1, 1]} : vector<8x384xbf16> to vector<4x384xbf16>
    %c4_162 = arith.constant 4 : index
    %c384_163 = arith.constant 384 : index
    %227 = vector.load %arg18[%c4_162, %c384_163] : memref<8x3456xbf16, #tpu.memory_space<vmem>>, vector<4x384xbf16>
    tpu.vector_store %arg18[%c4_162, %c384_163], %226 {strides = array<i32>} : memref<8x3456xbf16, #tpu.memory_space<vmem>>, vector<4x384xbf16>,
    %228 = vector.extract_strided_slice %221 {offsets = [2, 0], sizes = [2, 384], strides = [1, 1]} : vector<8x384xbf16> to vector<2x384xbf16>
    %c4_164 = arith.constant 4 : index
    %c768_165 = arith.constant 768 : index
    %229 = vector.load %arg18[%c4_164, %c768_165] : memref<8x3456xbf16, #tpu.memory_space<vmem>>, vector<2x384xbf16>
    tpu.vector_store %arg18[%c4_164, %c768_165], %228 {strides = array<i32>} : memref<8x3456xbf16, #tpu.memory_space<vmem>>, vector<2x384xbf16>,
    %230 = vector.extract_strided_slice %221 {offsets = [0, 0], sizes = [2, 384], strides = [1, 1]} : vector<8x384xbf16> to vector<2x384xbf16>
    %c2_166 = arith.constant 2 : index
    %c1152_167 = arith.constant 1152 : index
    %231 = vector.load %arg18[%c2_166, %c1152_167] : memref<8x3456xbf16, #tpu.memory_space<vmem>>, vector<2x384xbf16>
    tpu.vector_store %arg18[%c2_166, %c1152_167], %230 {strides = array<i32>} : memref<8x3456xbf16, #tpu.memory_space<vmem>>, vector<2x384xbf16>,
    %232 = vector.extract_strided_slice %221 {offsets = [4, 0], sizes = [2, 384], strides = [1, 1]} : vector<8x384xbf16> to vector<2x384xbf16>
    %c6_168 = arith.constant 6 : index
    %c1152_169 = arith.constant 1152 : index
    %233 = vector.load %arg18[%c6_168, %c1152_169] : memref<8x3456xbf16, #tpu.memory_space<vmem>>, vector<2x384xbf16>
    tpu.vector_store %arg18[%c6_168, %c1152_169], %232 {strides = array<i32>} : memref<8x3456xbf16, #tpu.memory_space<vmem>>, vector<2x384xbf16>,
    %234 = vector.extract_strided_slice %221 {offsets = [0, 0], sizes = [4, 384], strides = [1, 1]} : vector<8x384xbf16> to vector<4x384xbf16>
    %c0_170 = arith.constant 0 : index
    %c1536_171 = arith.constant 1536 : index
    %235 = vector.load %arg18[%c0_170, %c1536_171] : memref<8x3456xbf16, #tpu.memory_space<vmem>>, vector<4x384xbf16>
    tpu.vector_store %arg18[%c0_170, %c1536_171], %234 {strides = array<i32>} : memref<8x3456xbf16, #tpu.memory_space<vmem>>, vector<4x384xbf16>,
    %236 = vector.extract_strided_slice %221 {offsets = [4, 0], sizes = [4, 384], strides = [1, 1]} : vector<8x384xbf16> to vector<4x384xbf16>
    %c4_172 = arith.constant 4 : index
    %c1536_173 = arith.constant 1536 : index
    %237 = vector.load %arg18[%c4_172, %c1536_173] : memref<8x3456xbf16, #tpu.memory_space<vmem>>, vector<4x384xbf16>
    tpu.vector_store %arg18[%c4_172, %c1536_173], %236 {strides = array<i32>} : memref<8x3456xbf16, #tpu.memory_space<vmem>>, vector<4x384xbf16>,
    %238 = vector.extract_strided_slice %221 {offsets = [2, 0], sizes = [2, 384], strides = [1, 1]} : vector<8x384xbf16> to vector<2x384xbf16>
    %c0_174 = arith.constant 0 : index
    %c1920_175 = arith.constant 1920 : index
    %239 = vector.load %arg18[%c0_174, %c1920_175] : memref<8x3456xbf16, #tpu.memory_space<vmem>>, vector<2x384xbf16>
    tpu.vector_store %arg18[%c0_174, %c1920_175], %238 {strides = array<i32>} : memref<8x3456xbf16, #tpu.memory_space<vmem>>, vector<2x384xbf16>,
    %240 = vector.extract_strided_slice %221 {offsets = [6, 0], sizes = [2, 384], strides = [1, 1]} : vector<8x384xbf16> to vector<2x384xbf16>
    %c4_176 = arith.constant 4 : index
    %c1920_177 = arith.constant 1920 : index
    %241 = vector.load %arg18[%c4_176, %c1920_177] : memref<8x3456xbf16, #tpu.memory_space<vmem>>, vector<2x384xbf16>
    tpu.vector_store %arg18[%c4_176, %c1920_177], %240 {strides = array<i32>} : memref<8x3456xbf16, #tpu.memory_space<vmem>>, vector<2x384xbf16>,
    %242 = vector.extract_strided_slice %221 {offsets = [4, 0], sizes = [2, 384], strides = [1, 1]} : vector<8x384xbf16> to vector<2x384xbf16>
    %c2_178 = arith.constant 2 : index
    %c2304_179 = arith.constant 2304 : index
    %243 = vector.load %arg18[%c2_178, %c2304_179] : memref<8x3456xbf16, #tpu.memory_space<vmem>>, vector<2x384xbf16>
    tpu.vector_store %arg18[%c2_178, %c2304_179], %242 {strides = array<i32>} : memref<8x3456xbf16, #tpu.memory_space<vmem>>, vector<2x384xbf16>,
    %244 = vector.extract_strided_slice %221 {offsets = [4, 0], sizes = [4, 384], strides = [1, 1]} : vector<8x384xbf16> to vector<4x384xbf16>
    %c0_180 = arith.constant 0 : index
    %c2688_181 = arith.constant 2688 : index
    %245 = vector.load %arg18[%c0_180, %c2688_181] : memref<8x3456xbf16, #tpu.memory_space<vmem>>, vector<4x384xbf16>
    tpu.vector_store %arg18[%c0_180, %c2688_181], %244 {strides = array<i32>} : memref<8x3456xbf16, #tpu.memory_space<vmem>>, vector<4x384xbf16>,
    %246 = vector.extract_strided_slice %221 {offsets = [6, 0], sizes = [2, 384], strides = [1, 1]} : vector<8x384xbf16> to vector<2x384xbf16>
    %c0_182 = arith.constant 0 : index
    %c3072_183 = arith.constant 3072 : index
    %247 = vector.load %arg18[%c0_182, %c3072_183] : memref<8x3456xbf16, #tpu.memory_space<vmem>>, vector<2x384xbf16>
    tpu.vector_store %arg18[%c0_182, %c3072_183], %246 {strides = array<i32>} : memref<8x3456xbf16, #tpu.memory_space<vmem>>, vector<2x384xbf16>,
    %c0_184 = arith.constant 0 : index
    %c0_185 = arith.constant 0 : index
    %248 = vector.load %arg18[%c0_184, %c0_185] : memref<8x3456xbf16, #tpu.memory_space<vmem>>, vector<8x3456xbf16>
    %c0_186 = arith.constant 0 : index
    %c0_187 = arith.constant 0 : index
    %249 = vector.load %arg9[%c0_186, %c0_187] : memref<3456x256xbf16, #tpu.memory_space<vmem>>, vector<3456x256xbf16>
    %cst_188 = arith.constant dense<0.000000e+00> : vector<8x256xf32>
    %250 = tpu.matmul %248, %249, %cst_188 {dimension_numbers = #tpu.dot_dimension_numbers<[1], [0], [0], [1], [0, 0, 1, 1], [], []>} : vector<8x3456xbf16>, vector<3456x256xbf16>, vector<8x256xf32> -> vector<8x256xf32>
    %c0_189 = arith.constant 0 : index
    %c0_190 = arith.constant 0 : index
    %251 = vector.load %arg10[%c0_189, %c0_190] : memref<1x256xf32, #tpu.memory_space<vmem>>, vector<1x256xf32>
    %252 = vector.broadcast %251 : vector<1x256xf32> to vector<8x256xf32>
    %253 = arith.addf %250, %252 : vector<8x256xf32>
    %cst_191 = arith.constant 0.000000e+00 : f32
    %254 = vector.broadcast %cst_191 : f32 to vector<8x256xf32>
    %255 = arith.maximumf %253, %254 : vector<8x256xf32>
    %256 = arith.truncf %255 : vector<8x256xf32> to vector<8x256xbf16>
    %cst_192 = arith.constant 0.000000e+00 : bf16
    %257 = vector.broadcast %cst_192 : bf16 to vector<8x2304xbf16>
    %c0_193 = arith.constant 0 : index
    %c0_194 = arith.constant 0 : index
    %258 = vector.load %arg19[%c0_193, %c0_194] : memref<8x2304xbf16, #tpu.memory_space<vmem>>, vector<8x2304xbf16>
    tpu.vector_store %arg19[%c0_193, %c0_194], %257 {strides = array<i32>} : memref<8x2304xbf16, #tpu.memory_space<vmem>>, vector<8x2304xbf16>,
    %259 = vector.extract_strided_slice %256 {offsets = [0, 0], sizes = [2, 256], strides = [1, 1]} : vector<8x256xbf16> to vector<2x256xbf16>
    %c6_195 = arith.constant 6 : index
    %c0_196 = arith.constant 0 : index
    %260 = vector.load %arg19[%c6_195, %c0_196] : memref<8x2304xbf16, #tpu.memory_space<vmem>>, vector<2x256xbf16>
    tpu.vector_store %arg19[%c6_195, %c0_196], %259 {strides = array<i32>} : memref<8x2304xbf16, #tpu.memory_space<vmem>>, vector<2x256xbf16>,
    %261 = vector.extract_strided_slice %256 {offsets = [0, 0], sizes = [4, 256], strides = [1, 1]} : vector<8x256xbf16> to vector<4x256xbf16>
    %c4_197 = arith.constant 4 : index
    %c256_198 = arith.constant 256 : index
    %262 = vector.load %arg19[%c4_197, %c256_198] : memref<8x2304xbf16, #tpu.memory_space<vmem>>, vector<4x256xbf16>
    tpu.vector_store %arg19[%c4_197, %c256_198], %261 {strides = array<i32>} : memref<8x2304xbf16, #tpu.memory_space<vmem>>, vector<4x256xbf16>,
    %263 = vector.extract_strided_slice %256 {offsets = [2, 0], sizes = [2, 256], strides = [1, 1]} : vector<8x256xbf16> to vector<2x256xbf16>
    %c4_199 = arith.constant 4 : index
    %c512_200 = arith.constant 512 : index
    %264 = vector.load %arg19[%c4_199, %c512_200] : memref<8x2304xbf16, #tpu.memory_space<vmem>>, vector<2x256xbf16>
    tpu.vector_store %arg19[%c4_199, %c512_200], %263 {strides = array<i32>} : memref<8x2304xbf16, #tpu.memory_space<vmem>>, vector<2x256xbf16>,
    %265 = vector.extract_strided_slice %256 {offsets = [0, 0], sizes = [2, 256], strides = [1, 1]} : vector<8x256xbf16> to vector<2x256xbf16>
    %c2_201 = arith.constant 2 : index
    %c768_202 = arith.constant 768 : index
    %266 = vector.load %arg19[%c2_201, %c768_202] : memref<8x2304xbf16, #tpu.memory_space<vmem>>, vector<2x256xbf16>
    tpu.vector_store %arg19[%c2_201, %c768_202], %265 {strides = array<i32>} : memref<8x2304xbf16, #tpu.memory_space<vmem>>, vector<2x256xbf16>,
    %267 = vector.extract_strided_slice %256 {offsets = [4, 0], sizes = [2, 256], strides = [1, 1]} : vector<8x256xbf16> to vector<2x256xbf16>
    %c6_203 = arith.constant 6 : index
    %c768_204 = arith.constant 768 : index
    %268 = vector.load %arg19[%c6_203, %c768_204] : memref<8x2304xbf16, #tpu.memory_space<vmem>>, vector<2x256xbf16>
    tpu.vector_store %arg19[%c6_203, %c768_204], %267 {strides = array<i32>} : memref<8x2304xbf16, #tpu.memory_space<vmem>>, vector<2x256xbf16>,
    %269 = vector.extract_strided_slice %256 {offsets = [0, 0], sizes = [4, 256], strides = [1, 1]} : vector<8x256xbf16> to vector<4x256xbf16>
    %c0_205 = arith.constant 0 : index
    %c1024_206 = arith.constant 1024 : index
    %270 = vector.load %arg19[%c0_205, %c1024_206] : memref<8x2304xbf16, #tpu.memory_space<vmem>>, vector<4x256xbf16>
    tpu.vector_store %arg19[%c0_205, %c1024_206], %269 {strides = array<i32>} : memref<8x2304xbf16, #tpu.memory_space<vmem>>, vector<4x256xbf16>,
    %271 = vector.extract_strided_slice %256 {offsets = [4, 0], sizes = [4, 256], strides = [1, 1]} : vector<8x256xbf16> to vector<4x256xbf16>
    %c4_207 = arith.constant 4 : index
    %c1024_208 = arith.constant 1024 : index
    %272 = vector.load %arg19[%c4_207, %c1024_208] : memref<8x2304xbf16, #tpu.memory_space<vmem>>, vector<4x256xbf16>
    tpu.vector_store %arg19[%c4_207, %c1024_208], %271 {strides = array<i32>} : memref<8x2304xbf16, #tpu.memory_space<vmem>>, vector<4x256xbf16>,
    %273 = vector.extract_strided_slice %256 {offsets = [2, 0], sizes = [2, 256], strides = [1, 1]} : vector<8x256xbf16> to vector<2x256xbf16>
    %c0_209 = arith.constant 0 : index
    %c1280_210 = arith.constant 1280 : index
    %274 = vector.load %arg19[%c0_209, %c1280_210] : memref<8x2304xbf16, #tpu.memory_space<vmem>>, vector<2x256xbf16>
    tpu.vector_store %arg19[%c0_209, %c1280_210], %273 {strides = array<i32>} : memref<8x2304xbf16, #tpu.memory_space<vmem>>, vector<2x256xbf16>,
    %275 = vector.extract_strided_slice %256 {offsets = [6, 0], sizes = [2, 256], strides = [1, 1]} : vector<8x256xbf16> to vector<2x256xbf16>
    %c4_211 = arith.constant 4 : index
    %c1280_212 = arith.constant 1280 : index
    %276 = vector.load %arg19[%c4_211, %c1280_212] : memref<8x2304xbf16, #tpu.memory_space<vmem>>, vector<2x256xbf16>
    tpu.vector_store %arg19[%c4_211, %c1280_212], %275 {strides = array<i32>} : memref<8x2304xbf16, #tpu.memory_space<vmem>>, vector<2x256xbf16>,
    %277 = vector.extract_strided_slice %256 {offsets = [4, 0], sizes = [2, 256], strides = [1, 1]} : vector<8x256xbf16> to vector<2x256xbf16>
    %c2_213 = arith.constant 2 : index
    %c1536_214 = arith.constant 1536 : index
    %278 = vector.load %arg19[%c2_213, %c1536_214] : memref<8x2304xbf16, #tpu.memory_space<vmem>>, vector<2x256xbf16>
    tpu.vector_store %arg19[%c2_213, %c1536_214], %277 {strides = array<i32>} : memref<8x2304xbf16, #tpu.memory_space<vmem>>, vector<2x256xbf16>,
    %279 = vector.extract_strided_slice %256 {offsets = [4, 0], sizes = [4, 256], strides = [1, 1]} : vector<8x256xbf16> to vector<4x256xbf16>
    %c0_215 = arith.constant 0 : index
    %c1792_216 = arith.constant 1792 : index
    %280 = vector.load %arg19[%c0_215, %c1792_216] : memref<8x2304xbf16, #tpu.memory_space<vmem>>, vector<4x256xbf16>
    tpu.vector_store %arg19[%c0_215, %c1792_216], %279 {strides = array<i32>} : memref<8x2304xbf16, #tpu.memory_space<vmem>>, vector<4x256xbf16>,
    %281 = vector.extract_strided_slice %256 {offsets = [6, 0], sizes = [2, 256], strides = [1, 1]} : vector<8x256xbf16> to vector<2x256xbf16>
    %c0_217 = arith.constant 0 : index
    %c2048_218 = arith.constant 2048 : index
    %282 = vector.load %arg19[%c0_217, %c2048_218] : memref<8x2304xbf16, #tpu.memory_space<vmem>>, vector<2x256xbf16>
    tpu.vector_store %arg19[%c0_217, %c2048_218], %281 {strides = array<i32>} : memref<8x2304xbf16, #tpu.memory_space<vmem>>, vector<2x256xbf16>,
    %c0_219 = arith.constant 0 : index
    %c0_220 = arith.constant 0 : index
    %283 = vector.load %arg19[%c0_219, %c0_220] : memref<8x2304xbf16, #tpu.memory_space<vmem>>, vector<8x2304xbf16>
    %c0_221 = arith.constant 0 : index
    %c0_222 = arith.constant 0 : index
    %284 = vector.load %arg11[%c0_221, %c0_222] : memref<2304x256xbf16, #tpu.memory_space<vmem>>, vector<2304x256xbf16>
    %cst_223 = arith.constant dense<0.000000e+00> : vector<8x256xf32>
    %285 = tpu.matmul %283, %284, %cst_223 {dimension_numbers = #tpu.dot_dimension_numbers<[1], [0], [0], [1], [0, 0, 1, 1], [], []>} : vector<8x2304xbf16>, vector<2304x256xbf16>, vector<8x256xf32> -> vector<8x256xf32>
    %c0_224 = arith.constant 0 : index
    %c0_225 = arith.constant 0 : index
    %286 = vector.load %arg12[%c0_224, %c0_225] : memref<1x256xf32, #tpu.memory_space<vmem>>, vector<1x256xf32>
    %287 = vector.broadcast %286 : vector<1x256xf32> to vector<8x256xf32>
    %288 = arith.addf %285, %287 : vector<8x256xf32>
    %cst_226 = arith.constant 0.000000e+00 : f32
    %289 = vector.broadcast %cst_226 : f32 to vector<8x256xf32>
    %290 = arith.maximumf %288, %289 : vector<8x256xf32>
    %291 = vector.extract_strided_slice %290 {offsets = [0, 0], sizes = [2, 256], strides = [1, 1]} : vector<8x256xf32> to vector<2x256xf32>
    %292 = vector.extract_strided_slice %290 {offsets = [2, 0], sizes = [2, 256], strides = [1, 1]} : vector<8x256xf32> to vector<2x256xf32>
    %293 = arith.maximumf %291, %292 : vector<2x256xf32>
    %294 = vector.extract_strided_slice %290 {offsets = [4, 0], sizes = [2, 256], strides = [1, 1]} : vector<8x256xf32> to vector<2x256xf32>
    %295 = vector.extract_strided_slice %290 {offsets = [6, 0], sizes = [2, 256], strides = [1, 1]} : vector<8x256xf32> to vector<2x256xf32>
    %296 = arith.maximumf %294, %295 : vector<2x256xf32>
    %297 = arith.maximumf %293, %296 : vector<2x256xf32>
    %298 = arith.truncf %297 : vector<2x256xf32> to vector<2x256xbf16>
    %c0_227 = arith.constant 0 : index
    %c0_228 = arith.constant 0 : index
    %299 = vector.load %arg13[%c0_227, %c0_228] : memref<256x128xbf16, #tpu.memory_space<vmem>>, vector<256x128xbf16>
    %cst_229 = arith.constant dense<0.000000e+00> : vector<2x128xf32>
    %300 = tpu.matmul %298, %299, %cst_229 {dimension_numbers = #tpu.dot_dimension_numbers<[1], [0], [0], [1], [0, 0, 1, 1], [], []>} : vector<2x256xbf16>, vector<256x128xbf16>, vector<2x128xf32> -> vector<2x128xf32>
    %c0_230 = arith.constant 0 : index
    %c0_231 = arith.constant 0 : index
    %301 = vector.load %arg14[%c0_230, %c0_231] : memref<1x128xf32, #tpu.memory_space<vmem>>, vector<1x128xf32>
    %302 = vector.broadcast %301 : vector<1x128xf32> to vector<2x128xf32>
    %303 = arith.addf %300, %302 : vector<2x128xf32>
    %cst_232 = arith.constant dense<0xFF800000> : vector<2xf32>
    %304 = vector.multi_reduction <maximumf>, %303, %cst_232 [1] : vector<2x128xf32> to vector<2xf32>
    %305 = vector.shape_cast %304 : vector<2xf32> to vector<2x1xf32>
    %306 = vector.broadcast %305 : vector<2x1xf32> to vector<2x128xf32>
    %307 = arith.subf %303, %306 : vector<2x128xf32>
    %308 = math.exp %307 : vector<2x128xf32>
    %cst_233 = arith.constant dense<0.000000e+00> : vector<2xf32>
    %309 = vector.multi_reduction <add>, %308, %cst_233 [1] : vector<2x128xf32> to vector<2xf32>
    %310 = vector.shape_cast %309 : vector<2xf32> to vector<2x1xf32>
    %311 = math.log %310 : vector<2x1xf32>
    %312 = arith.addf %305, %311 : vector<2x1xf32>
    %313 = tpu.iota {dimensions = array<i32: 1>} : vector<2x128xi32>
    %c0_234 = arith.constant 0 : index
    %c0_235 = arith.constant 0 : index
    %314 = vector.load %arg1[%c0_234, %c0_235] : memref<2x128xi32, #tpu.memory_space<vmem>>, vector<2x128xi32>
    %315 = arith.cmpi eq, %313, %314 : vector<2x128xi32>
    %cst_236 = arith.constant 0.000000e+00 : f32
    %316 = vector.broadcast %cst_236 : f32 to vector<2x128xf32>
    %317 = arith.select %315, %303, %316 : vector<2x128xi1>, vector<2x128xf32>
    %cst_237 = arith.constant dense<0.000000e+00> : vector<2xf32>
    %318 = vector.multi_reduction <add>, %317, %cst_237 [1] : vector<2x128xf32> to vector<2xf32>
    %319 = vector.shape_cast %318 : vector<2xf32> to vector<2x1xf32>
    %320 = arith.subf %312, %319 : vector<2x1xf32>
    %cst_238 = arith.constant dense<0.000000e+00> : vector<1xf32>
    %321 = vector.multi_reduction <add>, %320, %cst_238 [0] : vector<2x1xf32> to vector<1xf32>
    %322 = vector.shape_cast %321 : vector<1xf32> to vector<1x1xf32>
    %323 = vector.shape_cast %322 : vector<1x1xf32> to vector<1x1xf32>
    %324 = vector.broadcast %323 : vector<1x1xf32> to vector<8x128xf32>
    %c0_239 = arith.constant 0 : index
    %c0_240 = arith.constant 0 : index
    %325 = vector.load %arg15[%c0_239, %c0_240] : memref<8x128xf32, #tpu.memory_space<vmem>>, vector<8x128xf32>
    tpu.vector_store %arg15[%c0_239, %c0_240], %324 {strides = array<i32>} : memref<8x128xf32, #tpu.memory_space<vmem>>, vector<8x128xf32>,
    return
  }
  func.func @transform_0(%arg0: i32) -> (i32, i32) {
    %c0_i32 = arith.constant 0 : i32
    %c0_i32_0 = arith.constant 0 : i32
    return %arg0, %c0_i32 : i32, i32
  }
  func.func @transform_1(%arg0: i32) -> (i32, i32, i32) {
    %c0_i32 = arith.constant 0 : i32
    %c0_i32_0 = arith.constant 0 : i32
    %c0_i32_1 = arith.constant 0 : i32
    return %arg0, %c0_i32, %c0_i32_0 : i32, i32, i32
  }
  func.func @transform_2(%arg0: i32) -> (i32, i32) {
    %c0_i32 = arith.constant 0 : i32
    %c0_i32_0 = arith.constant 0 : i32
    %c0_i32_1 = arith.constant 0 : i32
    return %c0_i32, %c0_i32_0 : i32, i32
  }
  func.func @transform_3(%arg0: i32) -> (i32, i32) {
    %c0_i32 = arith.constant 0 : i32
    %c0_i32_0 = arith.constant 0 : i32
    %c0_i32_1 = arith.constant 0 : i32
    return %c0_i32, %c0_i32_0 : i32, i32
  }
  func.func @transform_4(%arg0: i32) -> (i32, i32) {
    %c0_i32 = arith.constant 0 : i32
    %c0_i32_0 = arith.constant 0 : i32
    %c0_i32_1 = arith.constant 0 : i32
    return %c0_i32, %c0_i32_0 : i32, i32
  }
  func.func @transform_5(%arg0: i32) -> (i32, i32) {
    %c0_i32 = arith.constant 0 : i32
    %c0_i32_0 = arith.constant 0 : i32
    %c0_i32_1 = arith.constant 0 : i32
    return %c0_i32, %c0_i32_0 : i32, i32
  }
  func.func @transform_6(%arg0: i32) -> (i32, i32) {
    %c0_i32 = arith.constant 0 : i32
    %c0_i32_0 = arith.constant 0 : i32
    %c0_i32_1 = arith.constant 0 : i32
    return %c0_i32, %c0_i32_0 : i32, i32
  }
  func.func @transform_7(%arg0: i32) -> (i32, i32) {
    %c0_i32 = arith.constant 0 : i32
    %c0_i32_0 = arith.constant 0 : i32
    %c0_i32_1 = arith.constant 0 : i32
    return %c0_i32, %c0_i32_0 : i32, i32
  }
  func.func @transform_8(%arg0: i32) -> (i32, i32) {
    %c0_i32 = arith.constant 0 : i32
    %c0_i32_0 = arith.constant 0 : i32
    %c0_i32_1 = arith.constant 0 : i32
    return %c0_i32, %c0_i32_0 : i32, i32
  }
  func.func @transform_9(%arg0: i32) -> (i32, i32) {
    %c0_i32 = arith.constant 0 : i32
    %c0_i32_0 = arith.constant 0 : i32
    %c0_i32_1 = arith.constant 0 : i32
    return %c0_i32, %c0_i32_0 : i32, i32
  }
  func.func @transform_10(%arg0: i32) -> (i32, i32) {
    %c0_i32 = arith.constant 0 : i32
    %c0_i32_0 = arith.constant 0 : i32
    %c0_i32_1 = arith.constant 0 : i32
    return %c0_i32, %c0_i32_0 : i32, i32
  }
  func.func @transform_11(%arg0: i32) -> (i32, i32) {
    %c0_i32 = arith.constant 0 : i32
    %c0_i32_0 = arith.constant 0 : i32
    %c0_i32_1 = arith.constant 0 : i32
    return %c0_i32, %c0_i32_0 : i32, i32
  }
  func.func @transform_12(%arg0: i32) -> (i32, i32) {
    %c0_i32 = arith.constant 0 : i32
    %c0_i32_0 = arith.constant 0 : i32
    %c0_i32_1 = arith.constant 0 : i32
    return %c0_i32, %c0_i32_0 : i32, i32
  }
  func.func @transform_13(%arg0: i32) -> (i32, i32) {
    %c0_i32 = arith.constant 0 : i32
    %c0_i32_0 = arith.constant 0 : i32
    %c0_i32_1 = arith.constant 0 : i32
    return %c0_i32, %c0_i32_0 : i32, i32
  }
  func.func @transform_14(%arg0: i32) -> (i32, i32) {
    %c0_i32 = arith.constant 0 : i32
    %c0_i32_0 = arith.constant 0 : i32
    return %arg0, %c0_i32 : i32, i32
  }
}

</mosaic_0001>

<llo_original>
// kernel: alexnet_forward.1
$region0: #{alexnet_forward.1}
  #allocation0 [shape = 'u32[]', space=smem, size = 0x4, offset = 0x4, fixed_abs, tag = 'smem constant byte address 0x4 - core index']
  #allocation1 [shape = 'u32[72,128]{1,0:T(1,128)}', space=vmem, size = 0x9000, scoped, tag = 'internal scratch']
  #allocation2 [shape = 'bf16[32,3200]{1,0:T(8,128)(2,1)}', space=vmem, size = 0x32000, scoped, tag = 'scratch operand']
  #allocation3 [shape = 'bf16[8,2304]{1,0:T(8,128)(2,1)}', space=vmem, size = 0x9000, scoped, tag = 'scratch operand']
  #allocation4 [shape = 'bf16[8,3456]{1,0:T(8,128)(2,1)}', space=vmem, size = 0xd800, scoped, tag = 'scratch operand']
  #allocation5 [shape = 'bf16[8,2304]{1,0:T(8,128)(2,1)}', space=vmem, size = 0x9000, scoped, tag = 'scratch operand']
  %s0 = inlined_call_operand.vmem [shape: s32[2,128], index: 0, kind: input, shape index: {}]
  %s1 = inlined_call_operand.vmem [shape: bf16[1,128,384], index: 1, kind: input, shape index: {}]
  %s2 = inlined_call_operand.vmem [shape: bf16[384,128], index: 2, kind: input, shape index: {}]
  %s3 = inlined_call_operand.vmem [shape: f32[1,128], index: 3, kind: input, shape index: {}]
  %s4 = inlined_call_operand.vmem [shape: bf16[3200,256], index: 4, kind: input, shape index: {}]
  %s5 = inlined_call_operand.vmem [shape: f32[1,256], index: 5, kind: input, shape index: {}]
  %s6 = inlined_call_operand.vmem [shape: bf16[2304,384], index: 6, kind: input, shape index: {}]
  %s7 = inlined_call_operand.vmem [shape: f32[1,384], index: 7, kind: input, shape index: {}]
  %s8 = inlined_call_operand.vmem [shape: bf16[3456,256], index: 8, kind: input, shape index: {}]
  %s9 = inlined_call_operand.vmem [shape: f32[1,256], index: 9, kind: input, shape index: {}]
  %s10 = inlined_call_operand.vmem [shape: bf16[2304,256], index: 10, kind: input, shape index: {}]
  %s11 = inlined_call_operand.vmem [shape: f32[1,256], index: 11, kind: input, shape index: {}]
  %s12 = inlined_call_operand.vmem [shape: bf16[256,128], index: 12, kind: input, shape index: {}]
  %s13 = inlined_call_operand.vmem [shape: f32[1,128], index: 13, kind: input, shape index: {}]
  %s14 = inlined_call_operand.vmem [shape: f32[8,128], index: 14, kind: output, shape index: {}]
  %s15 = sld [smem:[#allocation0]]
  $region66: #{alexnet_forward.1} parent=0
    _
  %s17 = ssub.s32 1, %s15
  %s18 = scalar_select 0, %s17, %s15
  // Predicated region
  $region2: #{alexnet_forward.1} parent=0 // pred_check
    _
  $region3: #{alexnet_forward.1} parent=0 // pred_check_branch
    %20 = sbr.rel (0) target = $region5
  $region4: #{alexnet_forward.1} parent=0 // pred_region
    _
  $region5: #{alexnet_forward.1} parent=0 // pred_fallthru
    _
  // Predicated region
  $region6: #{alexnet_forward.1} parent=0 // pred_check
    _
  $region7: #{alexnet_forward.1} parent=0 // pred_check_branch
    %22 = sbr.rel (0) target = $region9
  $region8: #{alexnet_forward.1} parent=0 // pred_region
    _
  $region9: #{alexnet_forward.1} parent=0 // pred_fallthru
    _
  // Predicated region
  $region10: #{alexnet_forward.1} parent=0 // pred_check
    _
  $region11: #{alexnet_forward.1} parent=0 // pred_check_branch
    %24 = sbr.rel (0) target = $region13
  $region12: #{alexnet_forward.1} parent=0 // pred_region
    _
  $region13: #{alexnet_forward.1} parent=0 // pred_fallthru
    _
  // Predicated region
  $region14: #{alexnet_forward.1} parent=0 // pred_check
    _
  $region15: #{alexnet_forward.1} parent=0 // pred_check_branch
    %26 = sbr.rel (0) target = $region17
  $region16: #{alexnet_forward.1} parent=0 // pred_region
    _
  $region17: #{alexnet_forward.1} parent=0 // pred_fallthru
    _
  // Predicated region
  $region18: #{alexnet_forward.1} parent=0 // pred_check
    _
  $region19: #{alexnet_forward.1} parent=0 // pred_check_branch
    %28 = sbr.rel (0) target = $region21
  $region20: #{alexnet_forward.1} parent=0 // pred_region
    _
  $region21: #{alexnet_forward.1} parent=0 // pred_fallthru
    _
  // Predicated region
  $region22: #{alexnet_forward.1} parent=0 // pred_check
    _
  $region23: #{alexnet_forward.1} parent=0 // pred_check_branch
    %30 = sbr.rel (0) target = $region25
  $region24: #{alexnet_forward.1} parent=0 // pred_region
    _
  $region25: #{alexnet_forward.1} parent=0 // pred_fallthru
    _
  // Predicated region
  $region26: #{alexnet_forward.1} parent=0 // pred_check
    _
  $region27: #{alexnet_forward.1} parent=0 // pred_check_branch
    %32 = sbr.rel (0) target = $region29
  $region28: #{alexnet_forward.1} parent=0 // pred_region
    _
  $region29: #{alexnet_forward.1} parent=0 // pred_fallthru
    _
  // Predicated region
  $region30: #{alexnet_forward.1} parent=0 // pred_check
    _
  $region31: #{alexnet_forward.1} parent=0 // pred_check_branch
    %34 = sbr.rel (0) target = $region33
  $region32: #{alexnet_forward.1} parent=0 // pred_region
    _
  $region33: #{alexnet_forward.1} parent=0 // pred_fallthru
    _
  // Predicated region
  $region34: #{alexnet_forward.1} parent=0 // pred_check
    _
  $region35: #{alexnet_forward.1} parent=0 // pred_check_branch
    %36 = sbr.rel (0) target = $region37
  $region36: #{alexnet_forward.1} parent=0 // pred_region
    _
  $region37: #{alexnet_forward.1} parent=0 // pred_fallthru
    _
  // Predicated region
  $region38: #{alexnet_forward.1} parent=0 // pred_check
    _
  $region39: #{alexnet_forward.1} parent=0 // pred_check_branch
    %38 = sbr.rel (0) target = $region41
  $region40: #{alexnet_forward.1} parent=0 // pred_region
    _
  $region41: #{alexnet_forward.1} parent=0 // pred_fallthru
    _
  // Predicated region
  $region42: #{alexnet_forward.1} parent=0 // pred_check
    _
  $region43: #{alexnet_forward.1} parent=0 // pred_check_branch
    %40 = sbr.rel (0) target = $region45
  $region44: #{alexnet_forward.1} parent=0 // pred_region
    _
  $region45: #{alexnet_forward.1} parent=0 // pred_fallthru
    _
  // Predicated region
  $region46: #{alexnet_forward.1} parent=0 // pred_check
    _
  $region47: #{alexnet_forward.1} parent=0 // pred_check_branch
    %42 = sbr.rel (0) target = $region49
  $region48: #{alexnet_forward.1} parent=0 // pred_region
    _
  $region49: #{alexnet_forward.1} parent=0 // pred_fallthru
    _
  // Predicated region
  $region50: #{alexnet_forward.1} parent=0 // pred_check
    _
  $region51: #{alexnet_forward.1} parent=0 // pred_check_branch
    %44 = sbr.rel (0) target = $region53
  $region52: #{alexnet_forward.1} parent=0 // pred_region
    _
  $region53: #{alexnet_forward.1} parent=0 // pred_fallthru
    _
  // Predicated region
  $region54: #{alexnet_forward.1} parent=0 // pred_check
    _
  $region55: #{alexnet_forward.1} parent=0 // pred_check_branch
    %46 = sbr.rel (0) target = $region57
  $region56: #{alexnet_forward.1} parent=0 // pred_region
    _
  $region57: #{alexnet_forward.1} parent=0 // pred_fallthru
    _
  %v48 = vld [vmem:[%s1] sm:$0xff]
  %v49 = vld [vmem:[%s1 + $0x8] sm:$0xf]
  %v50 = vld [vmem:[%s1 + $0xc] sm:$0xff]
  %v51 = vld [vmem:[%s1 + $0x14] sm:$0xf]
  %v52 = vld [vmem:[%s1 + $0x18] sm:$0xff]
  %v53 = vld [vmem:[%s1 + $0x20] sm:$0xf]
  %v54 = vld [vmem:[%s1 + $0x24] sm:$0xff]
  %v55 = vld [vmem:[%s1 + $0x2c] sm:$0xf]
  %v56 = vld [vmem:[%s1 + $0x30] sm:$0xff]
  %v57 = vld [vmem:[%s1 + $0x38] sm:$0xf]
  %v58 = vld [vmem:[%s1 + $0x3c] sm:$0xff]
  %v59 = vld [vmem:[%s1 + $0x44] sm:$0xf]
  %v60 = vld [vmem:[%s1 + $0x48] sm:$0xff]
  %v61 = vld [vmem:[%s1 + $0x50] sm:$0xf]
  %v62 = vld [vmem:[%s1 + $0x54] sm:$0xff]
  %v63 = vld [vmem:[%s1 + $0x5c] sm:$0xf]
  %v64 = vld [vmem:[%s1 + $0x60] sm:$0xff]
  %v65 = vld [vmem:[%s1 + $0x68] sm:$0xf]
  %v66 = vld [vmem:[%s1 + $0x6c] sm:$0xff]
  %v67 = vld [vmem:[%s1 + $0x74] sm:$0xf]
  %v68 = vld [vmem:[%s1 + $0x78] sm:$0xff]
  %v69 = vld [vmem:[%s1 + $0x80] sm:$0xf]
  %v70 = vld [vmem:[%s1 + $0x84] sm:$0xff]
  %v71 = vld [vmem:[%s1 + $0x8c] sm:$0xf]
  %v72 = vld [vmem:[%s1 + $0x90] sm:$0xff]
  %v73 = vld [vmem:[%s1 + $0x98] sm:$0xf]
  %v74 = vld [vmem:[%s1 + $0x9c] sm:$0xff]
  %v75 = vld [vmem:[%s1 + $0xa4] sm:$0xf]
  %v76 = vld [vmem:[%s1 + $0xa8] sm:$0xff]
  %v77 = vld [vmem:[%s1 + $0xb0] sm:$0xf]
  %v78 = vld [vmem:[%s1 + $0xb4] sm:$0xff]
  %v79 = vld [vmem:[%s1 + $0xbc] sm:$0xf]
  %v80 = vld [vmem:[%s2] sm:$0xf]
  %v81 = vld [vmem:[%s2 + $0x4] sm:$0xf]
  %v82 = vld [vmem:[%s2 + $0x8] sm:$0xf]
  %v83 = vld [vmem:[%s2 + $0xc] sm:$0xf]
  %v84 = vld [vmem:[%s2 + $0x10] sm:$0xf]
  %v85 = vld [vmem:[%s2 + $0x14] sm:$0xf]
  %v86 = vld [vmem:[%s2 + $0x18] sm:$0xf]
  %v87 = vld [vmem:[%s2 + $0x1c] sm:$0xf]
  %v88 = vld [vmem:[%s2 + $0x20] sm:$0xf]
  %v89 = vld [vmem:[%s2 + $0x24] sm:$0xf]
  %v90 = vld [vmem:[%s2 + $0x28] sm:$0xf]
  %v91 = vld [vmem:[%s2 + $0x2c] sm:$0xf]
  %v92 = vld [vmem:[%s2 + $0x30] sm:$0xf]
  %v93 = vld [vmem:[%s2 + $0x34] sm:$0xf]
  %v94 = vld [vmem:[%s2 + $0x38] sm:$0xf]
  %v95 = vld [vmem:[%s2 + $0x3c] sm:$0xf]
  %v96 = vld [vmem:[%s2 + $0x40] sm:$0xf]
  %v97 = vld [vmem:[%s2 + $0x44] sm:$0xf]
  %v98 = vld [vmem:[%s2 + $0x48] sm:$0xf]
  %v99 = vld [vmem:[%s2 + $0x4c] sm:$0xf]
  %v100 = vld [vmem:[%s2 + $0x50] sm:$0xf]
  %v101 = vld [vmem:[%s2 + $0x54] sm:$0xf]
  %v102 = vld [vmem:[%s2 + $0x58] sm:$0xf]
  %v103 = vld [vmem:[%s2 + $0x5c] sm:$0xf]
  %v104 = vld [vmem:[%s2 + $0x60] sm:$0xf]
  %v105 = vld [vmem:[%s2 + $0x64] sm:$0xf]
  %v106 = vld [vmem:[%s2 + $0x68] sm:$0xf]
  %v107 = vld [vmem:[%s2 + $0x6c] sm:$0xf]
  %v108 = vld [vmem:[%s2 + $0x70] sm:$0xf]
  %v109 = vld [vmem:[%s2 + $0x74] sm:$0xf]
  %v110 = vld [vmem:[%s2 + $0x78] sm:$0xf]
  %v111 = vld [vmem:[%s2 + $0x7c] sm:$0xf]
  %v112 = vld [vmem:[%s2 + $0x80] sm:$0xf]
  %v113 = vld [vmem:[%s2 + $0x84] sm:$0xf]
  %v114 = vld [vmem:[%s2 + $0x88] sm:$0xf]
  %v115 = vld [vmem:[%s2 + $0x8c] sm:$0xf]
  %v116 = vld [vmem:[%s2 + $0x90] sm:$0xf]
  %v117 = vld [vmem:[%s2 + $0x94] sm:$0xf]
  %v118 = vld [vmem:[%s2 + $0x98] sm:$0xf]
  %v119 = vld [vmem:[%s2 + $0x9c] sm:$0xf]
  %v120 = vld [vmem:[%s2 + $0xa0] sm:$0xf]
  %v121 = vld [vmem:[%s2 + $0xa4] sm:$0xf]
  %v122 = vld [vmem:[%s2 + $0xa8] sm:$0xf]
  %v123 = vld [vmem:[%s2 + $0xac] sm:$0xf]
  %v124 = vld [vmem:[%s2 + $0xb0] sm:$0xf]
  %v125 = vld [vmem:[%s2 + $0xb4] sm:$0xf]
  %v126 = vld [vmem:[%s2 + $0xb8] sm:$0xf]
  %v127 = vld [vmem:[%s2 + $0xbc] sm:$0xf]
  %v128 = vld [vmem:[%s3] sm:$0x1]
  %v130 = vperm.slane %v128, 0
  %v164 = vunpack.c.l.b16 %v48
  %v165 = vunpack.c.h.b16 %v48
  %v166 = vunpack.c.l.b16 %v49
  %v167 = vunpack.c.l.b16 %v50
  %v168 = vunpack.c.h.b16 %v50
  %v169 = vunpack.c.l.b16 %v51
  %v170 = vunpack.c.l.b16 %v52
  %v171 = vunpack.c.h.b16 %v52
  %v172 = vunpack.c.l.b16 %v53
  %v173 = vunpack.c.l.b16 %v54
  %v174 = vunpack.c.h.b16 %v54
  %v175 = vunpack.c.l.b16 %v55
  %v176 = vunpack.c.l.b16 %v56
  %v177 = vunpack.c.h.b16 %v56
  %v178 = vunpack.c.l.b16 %v57
  %v179 = vunpack.c.l.b16 %v58
  %v180 = vunpack.c.h.b16 %v58
  %v181 = vunpack.c.l.b16 %v59
  %v182 = vunpack.c.l.b16 %v60
  %v183 = vunpack.c.h.b16 %v60
  %v184 = vunpack.c.l.b16 %v61
  %v185 = vunpack.c.l.b16 %v62
  %v186 = vunpack.c.h.b16 %v62
  %v187 = vunpack.c.l.b16 %v63
  %v188 = vunpack.c.l.b16 %v64
  %v189 = vunpack.c.h.b16 %v64
  %v190 = vunpack.c.l.b16 %v65
  %v191 = vunpack.c.l.b16 %v66
  %v192 = vunpack.c.h.b16 %v66
  %v193 = vunpack.c.l.b16 %v67
  %v194 = vunpack.c.l.b16 %v68
  %v195 = vunpack.c.h.b16 %v68
  %v196 = vunpack.c.l.b16 %v69
  %v197 = vunpack.c.l.b16 %v70
  %v198 = vunpack.c.h.b16 %v70
  %v199 = vunpack.c.l.b16 %v71
  %v200 = vunpack.c.l.b16 %v72
  %v201 = vunpack.c.h.b16 %v72
  %v202 = vunpack.c.l.b16 %v73
  %v203 = vunpack.c.l.b16 %v74
  %v204 = vunpack.c.h.b16 %v74
  %v205 = vunpack.c.l.b16 %v75
  %v206 = vunpack.c.l.b16 %v76
  %v207 = vunpack.c.h.b16 %v76
  %v208 = vunpack.c.l.b16 %v77
  %v209 = vunpack.c.l.b16 %v78
  %v210 = vunpack.c.h.b16 %v78
  %v211 = vunpack.c.l.b16 %v79
  %v212 = vpack.c.b16 %v167, %v164
  %v213 = vpack.c.b16 %v168, %v165
  %v214 = vpack.c.b16 %v169, %v166
  %v215 = vpack.c.b16 %v173, %v170
  %v216 = vpack.c.b16 %v174, %v171
  %v217 = vpack.c.b16 %v175, %v172
  %v218 = vpack.c.b16 %v179, %v176
  %v219 = vpack.c.b16 %v180, %v177
  %v220 = vpack.c.b16 %v181, %v178
  %v221 = vpack.c.b16 %v185, %v182
  %v222 = vpack.c.b16 %v186, %v183
  %v223 = vpack.c.b16 %v187, %v184
  %v224 = vpack.c.b16 %v191, %v188
  %v225 = vpack.c.b16 %v192, %v189
  %v226 = vpack.c.b16 %v193, %v190
  %v227 = vpack.c.b16 %v197, %v194
  %v228 = vpack.c.b16 %v198, %v195
  %v229 = vpack.c.b16 %v199, %v196
  %v230 = vpack.c.b16 %v203, %v200
  %v231 = vpack.c.b16 %v204, %v201
  %v232 = vpack.c.b16 %v205, %v202
  %v233 = vpack.c.b16 %v209, %v206
  %v234 = vpack.c.b16 %v210, %v207
  %v235 = vpack.c.b16 %v211, %v208
  %v308 = vunpack.c.l.b16 %v80
  %v309 = vunpack.c.l.b16 %v81
  %v310 = vunpack.c.l.b16 %v82
  %v311 = vunpack.c.l.b16 %v83
  %v312 = vunpack.c.l.b16 %v84
  %v313 = vunpack.c.l.b16 %v85
  %v314 = vunpack.c.l.b16 %v86
  %v315 = vunpack.c.l.b16 %v87
  %v316 = vunpack.c.l.b16 %v88
  %v317 = vunpack.c.l.b16 %v89
  %v318 = vunpack.c.l.b16 %v90
  %v319 = vunpack.c.l.b16 %v91
  %v320 = vunpack.c.l.b16 %v92
  %v321 = vunpack.c.l.b16 %v93
  %v322 = vunpack.c.l.b16 %v94
  %v323 = vunpack.c.l.b16 %v95
  %v324 = vunpack.c.l.b16 %v96
  %v325 = vunpack.c.l.b16 %v97
  %v326 = vunpack.c.l.b16 %v98
  %v327 = vunpack.c.l.b16 %v99
  %v328 = vunpack.c.l.b16 %v100
  %v329 = vunpack.c.l.b16 %v101
  %v330 = vunpack.c.l.b16 %v102
  %v331 = vunpack.c.l.b16 %v103
  %v332 = vunpack.c.l.b16 %v104
  %v333 = vunpack.c.l.b16 %v105
  %v334 = vunpack.c.l.b16 %v106
  %v335 = vunpack.c.l.b16 %v107
  %v336 = vunpack.c.l.b16 %v108
  %v337 = vunpack.c.l.b16 %v109
  %v338 = vunpack.c.l.b16 %v110
  %v339 = vunpack.c.l.b16 %v111
  %v340 = vunpack.c.l.b16 %v112
  %v341 = vunpack.c.l.b16 %v113
  %v342 = vunpack.c.l.b16 %v114
  %v343 = vunpack.c.l.b16 %v115
  %v344 = vunpack.c.l.b16 %v116
  %v345 = vunpack.c.l.b16 %v117
  %v346 = vunpack.c.l.b16 %v118
  %v347 = vunpack.c.l.b16 %v119
  %v348 = vunpack.c.l.b16 %v120
  %v349 = vunpack.c.l.b16 %v121
  %v350 = vunpack.c.l.b16 %v122
  %v351 = vunpack.c.l.b16 %v123
  %v352 = vunpack.c.l.b16 %v124
  %v353 = vunpack.c.l.b16 %v125
  %v354 = vunpack.c.l.b16 %v126
  %v355 = vunpack.c.l.b16 %v127
  %v356 = vpack.c.b16 %v309, %v308
  %v357 = vpack.c.b16 %v311, %v310
  %v358 = vpack.c.b16 %v313, %v312
  %v359 = vpack.c.b16 %v315, %v314
  %v360 = vpack.c.b16 %v317, %v316
  %v361 = vpack.c.b16 %v319, %v318
  %v362 = vpack.c.b16 %v321, %v320
  %v363 = vpack.c.b16 %v323, %v322
  %v364 = vpack.c.b16 %v325, %v324
  %v365 = vpack.c.b16 %v327, %v326
  %v366 = vpack.c.b16 %v329, %v328
  %v367 = vpack.c.b16 %v331, %v330
  %v368 = vpack.c.b16 %v333, %v332
  %v369 = vpack.c.b16 %v335, %v334
  %v370 = vpack.c.b16 %v337, %v336
  %v371 = vpack.c.b16 %v339, %v338
  %v372 = vpack.c.b16 %v341, %v340
  %v373 = vpack.c.b16 %v343, %v342
  %v374 = vpack.c.b16 %v345, %v344
  %v375 = vpack.c.b16 %v347, %v346
  %v376 = vpack.c.b16 %v349, %v348
  %v377 = vpack.c.b16 %v351, %v350
  %v378 = vpack.c.b16 %v353, %v352
  %v379 = vpack.c.b16 %v355, %v354
  %404 = vmatpush.bf16.msra.mxu0 %v363
  %405 = vmatpush.bf16.msra.mxu0 %v362
  %406 = vmatpush.bf16.msra.mxu0 %v361
  %407 = vmatpush.bf16.msra.mxu0 %v360
  %408 = vmatpush.bf16.msra.mxu0 %v359
  %409 = vmatpush.bf16.msra.mxu0 %v358
  %410 = vmatpush.bf16.msra.mxu0 %v357
  %411 = vmatpush.bf16.msra.mxu0 %v356
  %412 = vmatmul.bf16.gmra.mxu0 %v212
  %v413 = vpop.f32.mrf.mxu0
  %v414 = vadd.f32 %v130, %v413
  %v415 = vpop.f32.mrf.mxu0
  %v416 = vadd.f32 %v130, %v415
  %417 = vmatmul.bf16.gmra.mxu0 %v215
  %v418 = vpop.f32.mrf.mxu0
  %v419 = vadd.f32 %v130, %v418
  %v420 = vpop.f32.mrf.mxu0
  %v421 = vadd.f32 %v130, %v420
  %422 = vmatmul.bf16.gmra.mxu0 %v218
  %v423 = vpop.f32.mrf.mxu0
  %v424 = vadd.f32 %v130, %v423
  %v425 = vpop.f32.mrf.mxu0
  %v426 = vadd.f32 %v130, %v425
  %427 = vmatmul.bf16.gmra.mxu0 %v221
  %v428 = vpop.f32.mrf.mxu0
  %v429 = vadd.f32 %v130, %v428
  %v430 = vpop.f32.mrf.mxu0
  %v431 = vadd.f32 %v130, %v430
  %432 = vmatmul.bf16.gmra.mxu0 %v224
  %v433 = vpop.f32.mrf.mxu0
  %v434 = vadd.f32 %v130, %v433
  %v435 = vpop.f32.mrf.mxu0
  %v436 = vadd.f32 %v130, %v435
  %437 = vmatmul.bf16.gmra.mxu0 %v227
  %v438 = vpop.f32.mrf.mxu0
  %v439 = vadd.f32 %v130, %v438
  %v440 = vpop.f32.mrf.mxu0
  %v441 = vadd.f32 %v130, %v440
  %442 = vmatmul.bf16.gmra.mxu0 %v230
  %v443 = vpop.f32.mrf.mxu0
  %v444 = vadd.f32 %v130, %v443
  %v445 = vpop.f32.mrf.mxu0
  %v446 = vadd.f32 %v130, %v445
  %447 = vmatmul.bf16.gmra.mxu0 %v233
  %v448 = vpop.f32.mrf.mxu0
  %v449 = vadd.f32 %v130, %v448
  %v450 = vpop.f32.mrf.mxu0
  %v451 = vadd.f32 %v130, %v450
  %452 = vdwg.mxu0
  %453 = vmatpush.bf16.msra.mxu0 %v371
  %454 = vmatpush.bf16.msra.mxu0 %v370
  %455 = vmatpush.bf16.msra.mxu0 %v369
  %456 = vmatpush.bf16.msra.mxu0 %v368
  %457 = vmatpush.bf16.msra.mxu0 %v367
  %458 = vmatpush.bf16.msra.mxu0 %v366
  %459 = vmatpush.bf16.msra.mxu0 %v365
  %460 = vmatpush.bf16.msra.mxu0 %v364
  %461 = vmatmul.bf16.gmra.mxu0 %v213
  %v462 = vpop.f32.mrf.mxu0
  %v463 = vadd.f32 %v414, %v462
  %v464 = vpop.f32.mrf.mxu0
  %v465 = vadd.f32 %v416, %v464
  %466 = vmatmul.bf16.gmra.mxu0 %v216
  %v467 = vpop.f32.mrf.mxu0
  %v468 = vadd.f32 %v419, %v467
  %v469 = vpop.f32.mrf.mxu0
  %v470 = vadd.f32 %v421, %v469
  %471 = vmatmul.bf16.gmra.mxu0 %v219
  %v472 = vpop.f32.mrf.mxu0
  %v473 = vadd.f32 %v424, %v472
  %v474 = vpop.f32.mrf.mxu0
  %v475 = vadd.f32 %v426, %v474
  %476 = vmatmul.bf16.gmra.mxu0 %v222
  %v477 = vpop.f32.mrf.mxu0
  %v478 = vadd.f32 %v429, %v477
  %v479 = vpop.f32.mrf.mxu0
  %v480 = vadd.f32 %v431, %v479
  %481 = vmatmul.bf16.gmra.mxu0 %v225
  %v482 = vpop.f32.mrf.mxu0
  %v483 = vadd.f32 %v434, %v482
  %v484 = vpop.f32.mrf.mxu0
  %v485 = vadd.f32 %v436, %v484
  %486 = vmatmul.bf16.gmra.mxu0 %v228
  %v487 = vpop.f32.mrf.mxu0
  %v488 = vadd.f32 %v439, %v487
  %v489 = vpop.f32.mrf.mxu0
  %v490 = vadd.f32 %v441, %v489
  %491 = vmatmul.bf16.gmra.mxu0 %v231
  %v492 = vpop.f32.mrf.mxu0
  %v493 = vadd.f32 %v444, %v492
  %v494 = vpop.f32.mrf.mxu0
  %v495 = vadd.f32 %v446, %v494
  %496 = vmatmul.bf16.gmra.mxu0 %v234
  %v497 = vpop.f32.mrf.mxu0
  %v498 = vadd.f32 %v449, %v497
  %v499 = vpop.f32.mrf.mxu0
  %v500 = vadd.f32 %v451, %v499
  %501 = vdwg.mxu0
  %502 = vmatpush.bf16.msra.mxu0 %v379
  %503 = vmatpush.bf16.msra.mxu0 %v378
  %504 = vmatpush.bf16.msra.mxu0 %v377
  %505 = vmatpush.bf16.msra.mxu0 %v376
  %506 = vmatpush.bf16.msra.mxu0 %v375
  %507 = vmatpush.bf16.msra.mxu0 %v374
  %508 = vmatpush.bf16.msra.mxu0 %v373
  %509 = vmatpush.bf16.msra.mxu0 %v372
  %510 = vmatmul.bf16.gmra.mxu0 %v214
  %v511 = vpop.f32.mrf.mxu0
  %v512 = vadd.f32 %v463, %v511
  %v513 = vpop.f32.mrf.mxu0
  %v514 = vadd.f32 %v465, %v513
  %515 = vmatmul.bf16.gmra.mxu0 %v217
  %v516 = vpop.f32.mrf.mxu0
  %v517 = vadd.f32 %v468, %v516
  %v518 = vpop.f32.mrf.mxu0
  %v519 = vadd.f32 %v470, %v518
  %520 = vmatmul.bf16.gmra.mxu0 %v220
  %v521 = vpop.f32.mrf.mxu0
  %v522 = vadd.f32 %v473, %v521
  %v523 = vpop.f32.mrf.mxu0
  %v524 = vadd.f32 %v475, %v523
  %525 = vmatmul.bf16.gmra.mxu0 %v223
  %v526 = vpop.f32.mrf.mxu0
  %v527 = vadd.f32 %v478, %v526
  %v528 = vpop.f32.mrf.mxu0
  %v529 = vadd.f32 %v480, %v528
  %530 = vmatmul.bf16.gmra.mxu0 %v226
  %v531 = vpop.f32.mrf.mxu0
  %v532 = vadd.f32 %v483, %v531
  %v533 = vpop.f32.mrf.mxu0
  %v534 = vadd.f32 %v485, %v533
  %535 = vmatmul.bf16.gmra.mxu0 %v229
  %v536 = vpop.f32.mrf.mxu0
  %v537 = vadd.f32 %v488, %v536
  %v538 = vpop.f32.mrf.mxu0
  %v539 = vadd.f32 %v490, %v538
  %540 = vmatmul.bf16.gmra.mxu0 %v232
  %v541 = vpop.f32.mrf.mxu0
  %v542 = vadd.f32 %v493, %v541
  %v543 = vpop.f32.mrf.mxu0
  %v544 = vadd.f32 %v495, %v543
  %545 = vmatmul.bf16.gmra.mxu0 %v235
  %v546 = vpop.f32.mrf.mxu0
  %v547 = vadd.f32 %v498, %v546
  %v548 = vpop.f32.mrf.mxu0
  %v549 = vadd.f32 %v500, %v548
  %550 = vdwg.mxu0
  %v551 = vmax.f32 %v512, 0.0
  %v552 = vmax.f32 %v514, 0.0
  %v553 = vmax.f32 %v517, 0.0
  %v554 = vmax.f32 %v519, 0.0
  %v555 = vmax.f32 %v522, 0.0
  %v556 = vmax.f32 %v524, 0.0
  %v557 = vmax.f32 %v527, 0.0
  %v558 = vmax.f32 %v529, 0.0
  %v559 = vmax.f32 %v532, 0.0
  %v560 = vmax.f32 %v534, 0.0
  %v561 = vmax.f32 %v537, 0.0
  %v562 = vmax.f32 %v539, 0.0
  %v563 = vmax.f32 %v542, 0.0
  %v564 = vmax.f32 %v544, 0.0
  %v565 = vmax.f32 %v547, 0.0
  %v566 = vmax.f32 %v549, 0.0
  %v567 = vmax.f32 %v551, %v555
  %v568 = vmax.f32 %v552, %v556
  %v569 = vmax.f32 %v553, %v557
  %v570 = vmax.f32 %v554, %v558
  %v571 = vmax.f32 %v559, %v563
  %v572 = vmax.f32 %v560, %v564
  %v573 = vmax.f32 %v561, %v565
  %v574 = vmax.f32 %v562, %v566
  %v575 = vmax.f32 %v567, %v571
  %v576 = vmax.f32 %v568, %v572
  %v577 = vmax.f32 %v569, %v573
  %v578 = vmax.f32 %v570, %v574
  %v579 = vpack.c.bf16 %v575, %v575
  %v580 = vpack.c.bf16 %v576, %v576
  %v581 = vpack.c.bf16 %v577, %v577
  %v582 = vpack.c.bf16 %v578, %v578
  %583 = vst [vmem:[#allocation2] sm:$0xff] 0
  %584 = vst [vmem:[#allocation2 + $0x8] sm:$0xff] 0
  %585 = vst [vmem:[#allocation2 + $0x10] sm:$0xff] 0
  %586 = vst [vmem:[#allocation2 + $0x18] sm:$0xff] 0
  %587 = vst [vmem:[#allocation2 + $0x20] sm:$0xff] 0
  %588 = vst [vmem:[#allocation2 + $0x28] sm:$0xff] 0
  %589 = vst [vmem:[#allocation2 + $0x30] sm:$0xff] 0
  %590 = vst [vmem:[#allocation2 + $0x38] sm:$0xff] 0
  %591 = vst [vmem:[#allocation2 + $0x40] sm:$0xff] 0
  %592 = vst [vmem:[#allocation2 + $0x48] sm:$0xff] 0
  %593 = vst [vmem:[#allocation2 + $0x50] sm:$0xff] 0
  %594 = vst [vmem:[#allocation2 + $0x58] sm:$0xff] 0
  %595 = vst [vmem:[#allocation2 + $0x60] sm:$0xf] 0
  %596 = vst [vmem:[#allocation2 + $0x64] sm:$0xff] 0
  %597 = vst [vmem:[#allocation2 + $0x6c] sm:$0xff] 0
  %598 = vst [vmem:[#allocation2 + $0x74] sm:$0xff] 0
  %599 = vst [vmem:[#allocation2 + $0x7c] sm:$0xff] 0
  %600 = vst [vmem:[#allocation2 + $0x84] sm:$0xff] 0
  %601 = vst [vmem:[#allocation2 + $0x8c] sm:$0xff] 0
  %602 = vst [vmem:[#allocation2 + $0x94] sm:$0xff] 0
  %603 = vst [vmem:[#allocation2 + $0x9c] sm:$0xff] 0
  %604 = vst [vmem:[#allocation2 + $0xa4] sm:$0xff] 0
  %605 = vst [vmem:[#allocation2 + $0xac] sm:$0xff] 0
  %606 = vst [vmem:[#allocation2 + $0xb4] sm:$0xff] 0
  %607 = vst [vmem:[#allocation2 + $0xbc] sm:$0xff] 0
  %608 = vst [vmem:[#allocation2 + $0xc4] sm:$0xf] 0
  %609 = vst [vmem:[#allocation2 + $0xc8] sm:$0xff] 0
  %610 = vst [vmem:[#allocation2 + $0xd0] sm:$0xff] 0
  %611 = vst [vmem:[#allocation2 + $0xd8] sm:$0xff] 0
  %612 = vst [vmem:[#allocation2 + $0xe0] sm:$0xff] 0
  %613 = vst [vmem:[#allocation2 + $0xe8] sm:$0xff] 0
  %614 = vst [vmem:[#allocation2 + $0xf0] sm:$0xff] 0
  %615 = vst [vmem:[#allocation2 + $0xf8] sm:$0xff] 0
  %616 = vst [vmem:[#allocation2 + $0x100] sm:$0xff] 0
  %617 = vst [vmem:[#allocation2 + $0x108] sm:$0xff] 0
  %618 = vst [vmem:[#allocation2 + $0x110] sm:$0xff] 0
  %619 = vst [vmem:[#allocation2 + $0x118] sm:$0xff] 0
  %620 = vst [vmem:[#allocation2 + $0x120] sm:$0xff] 0
  %621 = vst [vmem:[#allocation2 + $0x128] sm:$0xf] 0
  %622 = vst [vmem:[#allocation2 + $0x12c] sm:$0xff] 0
  %623 = vst [vmem:[#allocation2 + $0x134] sm:$0xff] 0
  %624 = vst [vmem:[#allocation2 + $0x13c] sm:$0xff] 0
  %625 = vst [vmem:[#allocation2 + $0x144] sm:$0xff] 0
  %626 = vst [vmem:[#allocation2 + $0x14c] sm:$0xff] 0
  %627 = vst [vmem:[#allocation2 + $0x154] sm:$0xff] 0
  %628 = vst [vmem:[#allocation2 + $0x15c] sm:$0xff] 0
  %629 = vst [vmem:[#allocation2 + $0x164] sm:$0xff] 0
  %630 = vst [vmem:[#allocation2 + $0x16c] sm:$0xff] 0
  %631 = vst [vmem:[#allocation2 + $0x174] sm:$0xff] 0
  %632 = vst [vmem:[#allocation2 + $0x17c] sm:$0xff] 0
  %633 = vst [vmem:[#allocation2 + $0x184] sm:$0xff] 0
  %634 = vst [vmem:[#allocation2 + $0x18c] sm:$0xf] 0
  %v636 = vrot.slane %v579, 6
  %638 = vst [vmem:[#allocation2 + $0xc8] sm:$0xc] %v636
  %v640 = vrot.slane %v580, 6
  %642 = vst [vmem:[#allocation2 + $0x12c] sm:$0xc] %v640
  %v643 = vrot.slane %v579, 7
  %645 = vst [vmem:[#allocation2 + $0xcc] sm:$0xe] %v643
  %v646 = vrot.slane %v580, 7
  %648 = vst [vmem:[#allocation2 + $0x130] sm:$0xe] %v646
  %649 = vst [vmem:[#allocation2 + $0xd0] sm:$0xf] %v579
  %650 = vst [vmem:[#allocation2 + $0x134] sm:$0xf] %v580
  %v651 = vrot.slane %v579, 5
  %v652 = vrot.slane %v651, 4
  %654 = vst [vmem:[#allocation2 + $0xd4] sm:$0x7] %v652
  %v655 = vrot.slane %v580, 5
  %v656 = vrot.slane %v655, 4
  %658 = vst [vmem:[#allocation2 + $0x138] sm:$0x7] %v656
  %v659 = vrot.slane %v636, 4
  %661 = vst [vmem:[#allocation2 + $0xd8] sm:$0x3] %v659
  %v662 = vrot.slane %v640, 4
  %664 = vst [vmem:[#allocation2 + $0x13c] sm:$0x3] %v662
  %665 = vst [vmem:[#allocation2 + $0x78] sm:$0xc] %v636
  %666 = vst [vmem:[#allocation2 + $0xdc] sm:$0xc] %v640
  %v668 = vrot.slane %v581, 6
  %670 = vst [vmem:[#allocation2 + $0x140] sm:$0xc] %v668
  %671 = vst [vmem:[#allocation2 + $0x7c] sm:$0xe] %v643
  %672 = vst [vmem:[#allocation2 + $0xe0] sm:$0xe] %v646
  %v673 = vrot.slane %v581, 7
  %675 = vst [vmem:[#allocation2 + $0x144] sm:$0xe] %v673
  %676 = vst [vmem:[#allocation2 + $0x80] sm:$0xf] %v579
  %677 = vst [vmem:[#allocation2 + $0xe4] sm:$0xf] %v580
  %678 = vst [vmem:[#allocation2 + $0x148] sm:$0xf] %v581
  %679 = vst [vmem:[#allocation2 + $0x84] sm:$0x7] %v652
  %680 = vst [vmem:[#allocation2 + $0xe8] sm:$0x7] %v656
  %v681 = vrot.slane %v581, 5
  %v682 = vrot.slane %v681, 4
  %684 = vst [vmem:[#allocation2 + $0x14c] sm:$0x7] %v682
  %685 = vst [vmem:[#allocation2 + $0x88] sm:$0x3] %v659
  %686 = vst [vmem:[#allocation2 + $0xec] sm:$0x3] %v662
  %v687 = vrot.slane %v668, 4
  %689 = vst [vmem:[#allocation2 + $0x150] sm:$0x3] %v687
  %690 = vst [vmem:[#allocation2 + $0x28] sm:$0xc] %v636
  %691 = vst [vmem:[#allocation2 + $0x8c] sm:$0xc] %v640
  %692 = vst [vmem:[#allocation2 + $0xf0] sm:$0xc] %v668
  %v694 = vrot.slane %v582, 6
  %696 = vst [vmem:[#allocation2 + $0x154] sm:$0xc] %v694
  %697 = vst [vmem:[#allocation2 + $0x2c] sm:$0xe] %v643
  %698 = vst [vmem:[#allocation2 + $0x90] sm:$0xe] %v646
  %699 = vst [vmem:[#allocation2 + $0xf4] sm:$0xe] %v673
  %v700 = vrot.slane %v582, 7
  %702 = vst [vmem:[#allocation2 + $0x158] sm:$0xe] %v700
  %703 = vst [vmem:[#allocation2 + $0x30] sm:$0xf] %v579
  %704 = vst [vmem:[#allocation2 + $0x94] sm:$0xf] %v580
  %705 = vst [vmem:[#allocation2 + $0xf8] sm:$0xf] %v581
  %706 = vst [vmem:[#allocation2 + $0x15c] sm:$0xf] %v582
  %707 = vst [vmem:[#allocation2 + $0x34] sm:$0x7] %v652
  %708 = vst [vmem:[#allocation2 + $0x98] sm:$0x7] %v656
  %709 = vst [vmem:[#allocation2 + $0xfc] sm:$0x7] %v682
  %v710 = vrot.slane %v582, 5
  %v711 = vrot.slane %v710, 4
  %713 = vst [vmem:[#allocation2 + $0x160] sm:$0x7] %v711
  %714 = vst [vmem:[#allocation2 + $0x38] sm:$0x3] %v659
  %715 = vst [vmem:[#allocation2 + $0x9c] sm:$0x3] %v662
  %716 = vst [vmem:[#allocation2 + $0x100] sm:$0x3] %v687
  %v717 = vrot.slane %v694, 4
  %719 = vst [vmem:[#allocation2 + $0x164] sm:$0x3] %v717
  %720 = vst [vmem:[#allocation2 + $0x3c] sm:$0xc] %v640
  %721 = vst [vmem:[#allocation2 + $0xa0] sm:$0xc] %v668
  %722 = vst [vmem:[#allocation2 + $0x104] sm:$0xc] %v694
  %723 = vst [vmem:[#allocation2 + $0x40] sm:$0xe] %v646
  %724 = vst [vmem:[#allocation2 + $0xa4] sm:$0xe] %v673
  %725 = vst [vmem:[#allocation2 + $0x108] sm:$0xe] %v700
  %726 = vst [vmem:[#allocation2 + $0x44] sm:$0xf] %v580
  %727 = vst [vmem:[#allocation2 + $0xa8] sm:$0xf] %v581
  %728 = vst [vmem:[#allocation2 + $0x10c] sm:$0xf] %v582
  %729 = vst [vmem:[#allocation2 + $0x48] sm:$0x7] %v656
  %730 = vst [vmem:[#allocation2 + $0xac] sm:$0x7] %v682
  %731 = vst [vmem:[#allocation2 + $0x110] sm:$0x7] %v711
  %732 = vst [vmem:[#allocation2 + $0x4c] sm:$0x3] %v662
  %733 = vst [vmem:[#allocation2 + $0xb0] sm:$0x3] %v687
  %734 = vst [vmem:[#allocation2 + $0x114] sm:$0x3] %v717
  %735 = vst [vmem:[#allocation2 + $0x50] sm:$0xc] %v668
  %736 = vst [vmem:[#allocation2 + $0xb4] sm:$0xc] %v694
  %737 = vst [vmem:[#allocation2 + $0x54] sm:$0xe] %v673
  %738 = vst [vmem:[#allocation2 + $0xb8] sm:$0xe] %v700
  %739 = vst [vmem:[#allocation2 + $0x58] sm:$0xf] %v581
  %740 = vst [vmem:[#allocation2 + $0xbc] sm:$0xf] %v582
  %741 = vst [vmem:[#allocation2 + $0x5c] sm:$0x7] %v682
  %742 = vst [vmem:[#allocation2 + $0xc0] sm:$0x7] %v711
  %743 = vst [vmem:[#allocation2 + $0x60] sm:$0x3] %v687
  %744 = vst [vmem:[#allocation2 + $0xc4] sm:$0x3] %v717
  %v745 = vld [vmem:[#allocation2] sm:$0xff]
  %v746 = vld [vmem:[#allocation2 + $0x8] sm:$0xff]
  %v747 = vld [vmem:[#allocation2 + $0x10] sm:$0xff]
  %v748 = vld [vmem:[#allocation2 + $0x18] sm:$0xff]
  %v749 = vld [vmem:[#allocation2 + $0x20] sm:$0xff]
  %v750 = vld [vmem:[#allocation2 + $0x28] sm:$0xff]
  %v751 = vld [vmem:[#allocation2 + $0x30] sm:$0xff]
  %v752 = vld [vmem:[#allocation2 + $0x38] sm:$0xff]
  %v753 = vld [vmem:[#allocation2 + $0x40] sm:$0xff]
  %v754 = vld [vmem:[#allocation2 + $0x48] sm:$0xff]
  %v755 = vld [vmem:[#allocation2 + $0x50] sm:$0xff]
  %v756 = vld [vmem:[#allocation2 + $0x58] sm:$0xff]
  %v757 = vld [vmem:[#allocation2 + $0x60] sm:$0xf]
  %v758 = vld [vmem:[#allocation2 + $0x64] sm:$0xff]
  %v759 = vld [vmem:[#allocation2 + $0x6c] sm:$0xff]
  %v760 = vld [vmem:[#allocation2 + $0x74] sm:$0xff]
  %v761 = vld [vmem:[#allocation2 + $0x7c] sm:$0xff]
  %v762 = vld [vmem:[#allocation2 + $0x84] sm:$0xff]
  %v763 = vld [vmem:[#allocation2 + $0x8c] sm:$0xff]
  %v764 = vld [vmem:[#allocation2 + $0x94] sm:$0xff]
  %v765 = vld [vmem:[#allocation2 + $0x9c] sm:$0xff]
  %v766 = vld [vmem:[#allocation2 + $0xa4] sm:$0xff]
  %v767 = vld [vmem:[#allocation2 + $0xac] sm:$0xff]
  %v768 = vld [vmem:[#allocation2 + $0xb4] sm:$0xff]
  %v769 = vld [vmem:[#allocation2 + $0xbc] sm:$0xff]
  %v770 = vld [vmem:[#allocation2 + $0xc4] sm:$0xf]
  %v771 = vld [vmem:[#allocation2 + $0xc8] sm:$0xff]
  %v772 = vld [vmem:[#allocation2 + $0xd0] sm:$0xff]
  %v773 = vld [vmem:[#allocation2 + $0xd8] sm:$0xff]
  %v774 = vld [vmem:[#allocation2 + $0xe0] sm:$0xff]
  %v775 = vld [vmem:[#allocation2 + $0xe8] sm:$0xff]
  %v776 = vld [vmem:[#allocation2 + $0xf0] sm:$0xff]
  %v777 = vld [vmem:[#allocation2 + $0xf8] sm:$0xff]
  %v778 = vld [vmem:[#allocation2 + $0x100] sm:$0xff]
  %v779 = vld [vmem:[#allocation2 + $0x108] sm:$0xff]
  %v780 = vld [vmem:[#allocation2 + $0x110] sm:$0xff]
  %v781 = vld [vmem:[#allocation2 + $0x118] sm:$0xff]
  %v782 = vld [vmem:[#allocation2 + $0x120] sm:$0xff]
  %v783 = vld [vmem:[#allocation2 + $0x128] sm:$0xf]
  %v784 = vld [vmem:[#allocation2 + $0x12c] sm:$0xff]
  %v785 = vld [vmem:[#allocation2 + $0x134] sm:$0xff]
  %v786 = vld [vmem:[#allocation2 + $0x13c] sm:$0xff]
  %v787 = vld [vmem:[#allocation2 + $0x144] sm:$0xff]
  %v788 = vld [vmem:[#allocation2 + $0x14c] sm:$0xff]
  %v789 = vld [vmem:[#allocation2 + $0x154] sm:$0xff]
  %v790 = vld [vmem:[#allocation2 + $0x15c] sm:$0xff]
  %v791 = vld [vmem:[#allocation2 + $0x164] sm:$0xff]
  %v792 = vld [vmem:[#allocation2 + $0x16c] sm:$0xff]
  %v793 = vld [vmem:[#allocation2 + $0x174] sm:$0xff]
  %v794 = vld [vmem:[#allocation2 + $0x17c] sm:$0xff]
  %v795 = vld [vmem:[#allocation2 + $0x184] sm:$0xff]
  %v796 = vld [vmem:[#allocation2 + $0x18c] sm:$0xf]
  %v797 = vld [vmem:[%s4] sm:$0xff]
  %v798 = vld [vmem:[%s4 + $0x8] sm:$0xff]
  %v799 = vld [vmem:[%s4 + $0x10] sm:$0xff]
  %v800 = vld [vmem:[%s4 + $0x18] sm:$0xff]
  %v801 = vld [vmem:[%s4 + $0x20] sm:$0xff]
  %v802 = vld [vmem:[%s4 + $0x28] sm:$0xff]
  %v803 = vld [vmem:[%s4 + $0x30] sm:$0xff]
  %v804 = vld [vmem:[%s4 + $0x38] sm:$0xff]
  %v805 = vld [vmem:[%s4 + $0x40] sm:$0xff]
  %v806 = vld [vmem:[%s4 + $0x48] sm:$0xff]
  %v807 = vld [vmem:[%s4 + $0x50] sm:$0xff]
  %v808 = vld [vmem:[%s4 + $0x58] sm:$0xff]
  %v809 = vld [vmem:[%s4 + $0x60] sm:$0xff]
  %v810 = vld [vmem:[%s4 + $0x68] sm:$0xff]
  %v811 = vld [vmem:[%s4 + $0x70] sm:$0xff]
  %v812 = vld [vmem:[%s4 + $0x78] sm:$0xff]
  %v813 = vld [vmem:[%s4 + $0x80] sm:$0xff]
  %v814 = vld [vmem:[%s4 + $0x88] sm:$0xff]
  %v815 = vld [vmem:[%s4 + $0x90] sm:$0xff]
  %v816 = vld [vmem:[%s4 + $0x98] sm:$0xff]
  %v817 = vld [vmem:[%s4 + $0xa0] sm:$0xff]
  %v818 = vld [vmem:[%s4 + $0xa8] sm:$0xff]
  %v819 = vld [vmem:[%s4 + $0xb0] sm:$0xff]
  %v820 = vld [vmem:[%s4 + $0xb8] sm:$0xff]
  %v821 = vld [vmem:[%s4 + $0xc0] sm:$0xff]
  %v822 = vld [vmem:[%s4 + $0xc8] sm:$0xff]
  %v823 = vld [vmem:[%s4 + $0xd0] sm:$0xff]
  %v824 = vld [vmem:[%s4 + $0xd8] sm:$0xff]
  %v825 = vld [vmem:[%s4 + $0xe0] sm:$0xff]
  %v826 = vld [vmem:[%s4 + $0xe8] sm:$0xff]
  %v827 = vld [vmem:[%s4 + $0xf0] sm:$0xff]
  %v828 = vld [vmem:[%s4 + $0xf8] sm:$0xff]
  %v829 = vld [vmem:[%s4 + $0x100] sm:$0xff]
  %v830 = vld [vmem:[%s4 + $0x108] sm:$0xff]
  %v831 = vld [vmem:[%s4 + $0x110] sm:$0xff]
  %v832 = vld [vmem:[%s4 + $0x118] sm:$0xff]
  %v833 = vld [vmem:[%s4 + $0x120] sm:$0xff]
  %v834 = vld [vmem:[%s4 + $0x128] sm:$0xff]
  %v835 = vld [vmem:[%s4 + $0x130] sm:$0xff]
  %v836 = vld [vmem:[%s4 + $0x138] sm:$0xff]
  %v837 = vld [vmem:[%s4 + $0x140] sm:$0xff]
  %v838 = vld [vmem:[%s4 + $0x148] sm:$0xff]
  %v839 = vld [vmem:[%s4 + $0x150] sm:$0xff]
  %v840 = vld [vmem:[%s4 + $0x158] sm:$0xff]
  %v841 = vld [vmem:[%s4 + $0x160] sm:$0xff]
  %v842 = vld [vmem:[%s4 + $0x168] sm:$0xff]
  %v843 = vld [vmem:[%s4 + $0x170] sm:$0xff]
  %v844 = vld [vmem:[%s4 + $0x178] sm:$0xff]
  %v845 = vld [vmem:[%s4 + $0x180] sm:$0xff]
  %v846 = vld [vmem:[%s4 + $0x188] sm:$0xff]
  %v847 = vld [vmem:[%s4 + $0x190] sm:$0xff]
  %v848 = vld [vmem:[%s4 + $0x198] sm:$0xff]
  %v849 = vld [vmem:[%s4 + $0x1a0] sm:$0xff]
  %v850 = vld [vmem:[%s4 + $0x1a8] sm:$0xff]
  %v851 = vld [vmem:[%s4 + $0x1b0] sm:$0xff]
  %v852 = vld [vmem:[%s4 + $0x1b8] sm:$0xff]
  %v853 = vld [vmem:[%s4 + $0x1c0] sm:$0xff]
  %v854 = vld [vmem:[%s4 + $0x1c8] sm:$0xff]
  %v855 = vld [vmem:[%s4 + $0x1d0] sm:$0xff]
  %v856 = vld [vmem:[%s4 + $0x1d8] sm:$0xff]
  %v857 = vld [vmem:[%s4 + $0x1e0] sm:$0xff]
  %v858 = vld [vmem:[%s4 + $0x1e8] sm:$0xff]
  %v859 = vld [vmem:[%s4 + $0x1f0] sm:$0xff]
  %v860 = vld [vmem:[%s4 + $0x1f8] sm:$0xff]
  %v861 = vld [vmem:[%s4 + $0x200] sm:$0xff]
  %v862 = vld [vmem:[%s4 + $0x208] sm:$0xff]
  %v863 = vld [vmem:[%s4 + $0x210] sm:$0xff]
  %v864 = vld [vmem:[%s4 + $0x218] sm:$0xff]
  %v865 = vld [vmem:[%s4 + $0x220] sm:$0xff]
  %v866 = vld [vmem:[%s4 + $0x228] sm:$0xff]
  %v867 = vld [vmem:[%s4 + $0x230] sm:$0xff]
  %v868 = vld [vmem:[%s4 + $0x238] sm:$0xff]
  %v869 = vld [vmem:[%s4 + $0x240] sm:$0xff]
  %v870 = vld [vmem:[%s4 + $0x248] sm:$0xff]
  %v871 = vld [vmem:[%s4 + $0x250] sm:$0xff]
  %v872 = vld [vmem:[%s4 + $0x258] sm:$0xff]
  %v873 = vld [vmem:[%s4 + $0x260] sm:$0xff]
  %v874 = vld [vmem:[%s4 + $0x268] sm:$0xff]
  %v875 = vld [vmem:[%s4 + $0x270] sm:$0xff]
  %v876 = vld [vmem:[%s4 + $0x278] sm:$0xff]
  %v877 = vld [vmem:[%s4 + $0x280] sm:$0xff]
  %v878 = vld [vmem:[%s4 + $0x288] sm:$0xff]
  %v879 = vld [vmem:[%s4 + $0x290] sm:$0xff]
  %v880 = vld [vmem:[%s4 + $0x298] sm:$0xff]
  %v881 = vld [vmem:[%s4 + $0x2a0] sm:$0xff]
  %v882 = vld [vmem:[%s4 + $0x2a8] sm:$0xff]
  %v883 = vld [vmem:[%s4 + $0x2b0] sm:$0xff]
  %v884 = vld [vmem:[%s4 + $0x2b8] sm:$0xff]
  %v885 = vld [vmem:[%s4 + $0x2c0] sm:$0xff]
  %v886 = vld [vmem:[%s4 + $0x2c8] sm:$0xff]
  %v887 = vld [vmem:[%s4 + $0x2d0] sm:$0xff]
  %v888 = vld [vmem:[%s4 + $0x2d8] sm:$0xff]
  %v889 = vld [vmem:[%s4 + $0x2e0] sm:$0xff]
  %v890 = vld [vmem:[%s4 + $0x2e8] sm:$0xff]
  %v891 = vld [vmem:[%s4 + $0x2f0] sm:$0xff]
  %v892 = vld [vmem:[%s4 + $0x2f8] sm:$0xff]
  %v893 = vld [vmem:[%s4 + $0x300] sm:$0xff]
  %v894 = vld [vmem:[%s4 + $0x308] sm:$0xff]
  %v895 = vld [vmem:[%s4 + $0x310] sm:$0xff]
  %v896 = vld [vmem:[%s4 + $0x318] sm:$0xff]
  %v897 = vld [vmem:[%s4 + $0x320] sm:$0xff]
  %v898 = vld [vmem:[%s4 + $0x328] sm:$0xff]
  %v899 = vld [vmem:[%s4 + $0x330] sm:$0xff]
  %v900 = vld [vmem:[%s4 + $0x338] sm:$0xff]
  %v901 = vld [vmem:[%s4 + $0x340] sm:$0xff]
  %v902 = vld [vmem:[%s4 + $0x348] sm:$0xff]
  %v903 = vld [vmem:[%s4 + $0x350] sm:$0xff]
  %v904 = vld [vmem:[%s4 + $0x358] sm:$0xff]
  %v905 = vld [vmem:[%s4 + $0x360] sm:$0xff]
  %v906 = vld [vmem:[%s4 + $0x368] sm:$0xff]
  %v907 = vld [vmem:[%s4 + $0x370] sm:$0xff]
  %v908 = vld [vmem:[%s4 + $0x378] sm:$0xff]
  %v909 = vld [vmem:[%s4 + $0x380] sm:$0xff]
  %v910 = vld [vmem:[%s4 + $0x388] sm:$0xff]
  %v911 = vld [vmem:[%s4 + $0x390] sm:$0xff]
  %v912 = vld [vmem:[%s4 + $0x398] sm:$0xff]
  %v913 = vld [vmem:[%s4 + $0x3a0] sm:$0xff]
  %v914 = vld [vmem:[%s4 + $0x3a8] sm:$0xff]
  %v915 = vld [vmem:[%s4 + $0x3b0] sm:$0xff]
  %v916 = vld [vmem:[%s4 + $0x3b8] sm:$0xff]
  %v917 = vld [vmem:[%s4 + $0x3c0] sm:$0xff]
  %v918 = vld [vmem:[%s4 + $0x3c8] sm:$0xff]
  %v919 = vld [vmem:[%s4 + $0x3d0] sm:$0xff]
  %v920 = vld [vmem:[%s4 + $0x3d8] sm:$0xff]
  %v921 = vld [vmem:[%s4 + $0x3e0] sm:$0xff]
  %v922 = vld [vmem:[%s4 + $0x3e8] sm:$0xff]
  %v923 = vld [vmem:[%s4 + $0x3f0] sm:$0xff]
  %v924 = vld [vmem:[%s4 + $0x3f8] sm:$0xff]
  %v925 = vld [vmem:[%s4 + $0x400] sm:$0xff]
  %v926 = vld [vmem:[%s4 + $0x408] sm:$0xff]
  %v927 = vld [vmem:[%s4 + $0x410] sm:$0xff]
  %v928 = vld [vmem:[%s4 + $0x418] sm:$0xff]
  %v929 = vld [vmem:[%s4 + $0x420] sm:$0xff]
  %v930 = vld [vmem:[%s4 + $0x428] sm:$0xff]
  %v931 = vld [vmem:[%s4 + $0x430] sm:$0xff]
  %v932 = vld [vmem:[%s4 + $0x438] sm:$0xff]
  %v933 = vld [vmem:[%s4 + $0x440] sm:$0xff]
  %v934 = vld [vmem:[%s4 + $0x448] sm:$0xff]
  %v935 = vld [vmem:[%s4 + $0x450] sm:$0xff]
  %v936 = vld [vmem:[%s4 + $0x458] sm:$0xff]
  %v937 = vld [vmem:[%s4 + $0x460] sm:$0xff]
  %v938 = vld [vmem:[%s4 + $0x468] sm:$0xff]
  %v939 = vld [vmem:[%s4 + $0x470] sm:$0xff]
  %v940 = vld [vmem:[%s4 + $0x478] sm:$0xff]
  %v941 = vld [vmem:[%s4 + $0x480] sm:$0xff]
  %v942 = vld [vmem:[%s4 + $0x488] sm:$0xff]
  %v943 = vld [vmem:[%s4 + $0x490] sm:$0xff]
  %v944 = vld [vmem:[%s4 + $0x498] sm:$0xff]
  %v945 = vld [vmem:[%s4 + $0x4a0] sm:$0xff]
  %v946 = vld [vmem:[%s4 + $0x4a8] sm:$0xff]
  %v947 = vld [vmem:[%s4 + $0x4b0] sm:$0xff]
  %v948 = vld [vmem:[%s4 + $0x4b8] sm:$0xff]
  %v949 = vld [vmem:[%s4 + $0x4c0] sm:$0xff]
  %v950 = vld [vmem:[%s4 + $0x4c8] sm:$0xff]
  %v951 = vld [vmem:[%s4 + $0x4d0] sm:$0xff]
  %v952 = vld [vmem:[%s4 + $0x4d8] sm:$0xff]
  %v953 = vld [vmem:[%s4 + $0x4e0] sm:$0xff]
  %v954 = vld [vmem:[%s4 + $0x4e8] sm:$0xff]
  %v955 = vld [vmem:[%s4 + $0x4f0] sm:$0xff]
  %v956 = vld [vmem:[%s4 + $0x4f8] sm:$0xff]
  %v957 = vld [vmem:[%s4 + $0x500] sm:$0xff]
  %v958 = vld [vmem:[%s4 + $0x508] sm:$0xff]
  %v959 = vld [vmem:[%s4 + $0x510] sm:$0xff]
  %v960 = vld [vmem:[%s4 + $0x518] sm:$0xff]
  %v961 = vld [vmem:[%s4 + $0x520] sm:$0xff]
  %v962 = vld [vmem:[%s4 + $0x528] sm:$0xff]
  %v963 = vld [vmem:[%s4 + $0x530] sm:$0xff]
  %v964 = vld [vmem:[%s4 + $0x538] sm:$0xff]
  %v965 = vld [vmem:[%s4 + $0x540] sm:$0xff]
  %v966 = vld [vmem:[%s4 + $0x548] sm:$0xff]
  %v967 = vld [vmem:[%s4 + $0x550] sm:$0xff]
  %v968 = vld [vmem:[%s4 + $0x558] sm:$0xff]
  %v969 = vld [vmem:[%s4 + $0x560] sm:$0xff]
  %v970 = vld [vmem:[%s4 + $0x568] sm:$0xff]
  %v971 = vld [vmem:[%s4 + $0x570] sm:$0xff]
  %v972 = vld [vmem:[%s4 + $0x578] sm:$0xff]
  %v973 = vld [vmem:[%s4 + $0x580] sm:$0xff]
  %v974 = vld [vmem:[%s4 + $0x588] sm:$0xff]
  %v975 = vld [vmem:[%s4 + $0x590] sm:$0xff]
  %v976 = vld [vmem:[%s4 + $0x598] sm:$0xff]
  %v977 = vld [vmem:[%s4 + $0x5a0] sm:$0xff]
  %v978 = vld [vmem:[%s4 + $0x5a8] sm:$0xff]
  %v979 = vld [vmem:[%s4 + $0x5b0] sm:$0xff]
  %v980 = vld [vmem:[%s4 + $0x5b8] sm:$0xff]
  %v981 = vld [vmem:[%s4 + $0x5c0] sm:$0xff]
  %v982 = vld [vmem:[%s4 + $0x5c8] sm:$0xff]
  %v983 = vld [vmem:[%s4 + $0x5d0] sm:$0xff]
  %v984 = vld [vmem:[%s4 + $0x5d8] sm:$0xff]
  %v985 = vld [vmem:[%s4 + $0x5e0] sm:$0xff]
  %v986 = vld [vmem:[%s4 + $0x5e8] sm:$0xff]
  %v987 = vld [vmem:[%s4 + $0x5f0] sm:$0xff]
  %v988 = vld [vmem:[%s4 + $0x5f8] sm:$0xff]
  %v989 = vld [vmem:[%s4 + $0x600] sm:$0xff]
  %v990 = vld [vmem:[%s4 + $0x608] sm:$0xff]
  %v991 = vld [vmem:[%s4 + $0x610] sm:$0xff]
  %v992 = vld [vmem:[%s4 + $0x618] sm:$0xff]
  %v993 = vld [vmem:[%s4 + $0x620] sm:$0xff]
  %v994 = vld [vmem:[%s4 + $0x628] sm:$0xff]
  %v995 = vld [vmem:[%s4 + $0x630] sm:$0xff]
  %v996 = vld [vmem:[%s4 + $0x638] sm:$0xff]
  %v997 = vld [vmem:[%s4 + $0x640] sm:$0xff]
  %v998 = vld [vmem:[%s4 + $0x648] sm:$0xff]
  %v999 = vld [vmem:[%s4 + $0x650] sm:$0xff]
  %v1000 = vld [vmem:[%s4 + $0x658] sm:$0xff]
  %v1001 = vld [vmem:[%s4 + $0x660] sm:$0xff]
  %v1002 = vld [vmem:[%s4 + $0x668] sm:$0xff]
  %v1003 = vld [vmem:[%s4 + $0x670] sm:$0xff]
  %v1004 = vld [vmem:[%s4 + $0x678] sm:$0xff]
  %v1005 = vld [vmem:[%s4 + $0x680] sm:$0xff]
  %v1006 = vld [vmem:[%s4 + $0x688] sm:$0xff]
  %v1007 = vld [vmem:[%s4 + $0x690] sm:$0xff]
  %v1008 = vld [vmem:[%s4 + $0x698] sm:$0xff]
  %v1009 = vld [vmem:[%s4 + $0x6a0] sm:$0xff]
  %v1010 = vld [vmem:[%s4 + $0x6a8] sm:$0xff]
  %v1011 = vld [vmem:[%s4 + $0x6b0] sm:$0xff]
  %v1012 = vld [vmem:[%s4 + $0x6b8] sm:$0xff]
  %v1013 = vld [vmem:[%s4 + $0x6c0] sm:$0xff]
  %v1014 = vld [vmem:[%s4 + $0x6c8] sm:$0xff]
  %v1015 = vld [vmem:[%s4 + $0x6d0] sm:$0xff]
  %v1016 = vld [vmem:[%s4 + $0x6d8] sm:$0xff]
  %v1017 = vld [vmem:[%s4 + $0x6e0] sm:$0xff]
  %v1018 = vld [vmem:[%s4 + $0x6e8] sm:$0xff]
  %v1019 = vld [vmem:[%s4 + $0x6f0] sm:$0xff]
  %v1020 = vld [vmem:[%s4 + $0x6f8] sm:$0xff]
  %v1021 = vld [vmem:[%s4 + $0x700] sm:$0xff]
  %v1022 = vld [vmem:[%s4 + $0x708] sm:$0xff]
  %v1023 = vld [vmem:[%s4 + $0x710] sm:$0xff]
  %v1024 = vld [vmem:[%s4 + $0x718] sm:$0xff]
  %v1025 = vld [vmem:[%s4 + $0x720] sm:$0xff]
  %v1026 = vld [vmem:[%s4 + $0x728] sm:$0xff]
  %v1027 = vld [vmem:[%s4 + $0x730] sm:$0xff]
  %v1028 = vld [vmem:[%s4 + $0x738] sm:$0xff]
  %v1029 = vld [vmem:[%s4 + $0x740] sm:$0xff]
  %v1030 = vld [vmem:[%s4 + $0x748] sm:$0xff]
  %v1031 = vld [vmem:[%s4 + $0x750] sm:$0xff]
  %v1032 = vld [vmem:[%s4 + $0x758] sm:$0xff]
  %v1033 = vld [vmem:[%s4 + $0x760] sm:$0xff]
  %v1034 = vld [vmem:[%s4 + $0x768] sm:$0xff]
  %v1035 = vld [vmem:[%s4 + $0x770] sm:$0xff]
  %v1036 = vld [vmem:[%s4 + $0x778] sm:$0xff]
  %v1037 = vld [vmem:[%s4 + $0x780] sm:$0xff]
  %v1038 = vld [vmem:[%s4 + $0x788] sm:$0xff]
  %v1039 = vld [vmem:[%s4 + $0x790] sm:$0xff]
  %v1040 = vld [vmem:[%s4 + $0x798] sm:$0xff]
  %v1041 = vld [vmem:[%s4 + $0x7a0] sm:$0xff]
  %v1042 = vld [vmem:[%s4 + $0x7a8] sm:$0xff]
  %v1043 = vld [vmem:[%s4 + $0x7b0] sm:$0xff]
  %v1044 = vld [vmem:[%s4 + $0x7b8] sm:$0xff]
  %v1045 = vld [vmem:[%s4 + $0x7c0] sm:$0xff]
  %v1046 = vld [vmem:[%s4 + $0x7c8] sm:$0xff]
  %v1047 = vld [vmem:[%s4 + $0x7d0] sm:$0xff]
  %v1048 = vld [vmem:[%s4 + $0x7d8] sm:$0xff]
  %v1049 = vld [vmem:[%s4 + $0x7e0] sm:$0xff]
  %v1050 = vld [vmem:[%s4 + $0x7e8] sm:$0xff]
  %v1051 = vld [vmem:[%s4 + $0x7f0] sm:$0xff]
  %v1052 = vld [vmem:[%s4 + $0x7f8] sm:$0xff]
  %v1053 = vld [vmem:[%s4 + $0x800] sm:$0xff]
  %v1054 = vld [vmem:[%s4 + $0x808] sm:$0xff]
  %v1055 = vld [vmem:[%s4 + $0x810] sm:$0xff]
  %v1056 = vld [vmem:[%s4 + $0x818] sm:$0xff]
  %v1057 = vld [vmem:[%s4 + $0x820] sm:$0xff]
  %v1058 = vld [vmem:[%s4 + $0x828] sm:$0xff]
  %v1059 = vld [vmem:[%s4 + $0x830] sm:$0xff]
  %v1060 = vld [vmem:[%s4 + $0x838] sm:$0xff]
  %v1061 = vld [vmem:[%s4 + $0x840] sm:$0xff]
  %v1062 = vld [vmem:[%s4 + $0x848] sm:$0xff]
  %v1063 = vld [vmem:[%s4 + $0x850] sm:$0xff]
  %v1064 = vld [vmem:[%s4 + $0x858] sm:$0xff]
  %v1065 = vld [vmem:[%s4 + $0x860] sm:$0xff]
  %v1066 = vld [vmem:[%s4 + $0x868] sm:$0xff]
  %v1067 = vld [vmem:[%s4 + $0x870] sm:$0xff]
  %v1068 = vld [vmem:[%s4 + $0x878] sm:$0xff]
  %v1069 = vld [vmem:[%s4 + $0x880] sm:$0xff]
  %v1070 = vld [vmem:[%s4 + $0x888] sm:$0xff]
  %v1071 = vld [vmem:[%s4 + $0x890] sm:$0xff]
  %v1072 = vld [vmem:[%s4 + $0x898] sm:$0xff]
  %v1073 = vld [vmem:[%s4 + $0x8a0] sm:$0xff]
  %v1074 = vld [vmem:[%s4 + $0x8a8] sm:$0xff]
  %v1075 = vld [vmem:[%s4 + $0x8b0] sm:$0xff]
  %v1076 = vld [vmem:[%s4 + $0x8b8] sm:$0xff]
  %v1077 = vld [vmem:[%s4 + $0x8c0] sm:$0xff]
  %v1078 = vld [vmem:[%s4 + $0x8c8] sm:$0xff]
  %v1079 = vld [vmem:[%s4 + $0x8d0] sm:$0xff]
  %v1080 = vld [vmem:[%s4 + $0x8d8] sm:$0xff]
  %v1081 = vld [vmem:[%s4 + $0x8e0] sm:$0xff]
  %v1082 = vld [vmem:[%s4 + $0x8e8] sm:$0xff]
  %v1083 = vld [vmem:[%s4 + $0x8f0] sm:$0xff]
  %v1084 = vld [vmem:[%s4 + $0x8f8] sm:$0xff]
  %v1085 = vld [vmem:[%s4 + $0x900] sm:$0xff]
  %v1086 = vld [vmem:[%s4 + $0x908] sm:$0xff]
  %v1087 = vld [vmem:[%s4 + $0x910] sm:$0xff]
  %v1088 = vld [vmem:[%s4 + $0x918] sm:$0xff]
  %v1089 = vld [vmem:[%s4 + $0x920] sm:$0xff]
  %v1090 = vld [vmem:[%s4 + $0x928] sm:$0xff]
  %v1091 = vld [vmem:[%s4 + $0x930] sm:$0xff]
  %v1092 = vld [vmem:[%s4 + $0x938] sm:$0xff]
  %v1093 = vld [vmem:[%s4 + $0x940] sm:$0xff]
  %v1094 = vld [vmem:[%s4 + $0x948] sm:$0xff]
  %v1095 = vld [vmem:[%s4 + $0x950] sm:$0xff]
  %v1096 = vld [vmem:[%s4 + $0x958] sm:$0xff]
  %v1097 = vld [vmem:[%s4 + $0x960] sm:$0xff]
  %v1098 = vld [vmem:[%s4 + $0x968] sm:$0xff]
  %v1099 = vld [vmem:[%s4 + $0x970] sm:$0xff]
  %v1100 = vld [vmem:[%s4 + $0x978] sm:$0xff]
  %v1101 = vld [vmem:[%s4 + $0x980] sm:$0xff]
  %v1102 = vld [vmem:[%s4 + $0x988] sm:$0xff]
  %v1103 = vld [vmem:[%s4 + $0x990] sm:$0xff]
  %v1104 = vld [vmem:[%s4 + $0x998] sm:$0xff]
  %v1105 = vld [vmem:[%s4 + $0x9a0] sm:$0xff]
  %v1106 = vld [vmem:[%s4 + $0x9a8] sm:$0xff]
  %v1107 = vld [vmem:[%s4 + $0x9b0] sm:$0xff]
  %v1108 = vld [vmem:[%s4 + $0x9b8] sm:$0xff]
  %v1109 = vld [vmem:[%s4 + $0x9c0] sm:$0xff]
  %v1110 = vld [vmem:[%s4 + $0x9c8] sm:$0xff]
  %v1111 = vld [vmem:[%s4 + $0x9d0] sm:$0xff]
  %v1112 = vld [vmem:[%s4 + $0x9d8] sm:$0xff]
  %v1113 = vld [vmem:[%s4 + $0x9e0] sm:$0xff]
  %v1114 = vld [vmem:[%s4 + $0x9e8] sm:$0xff]
  %v1115 = vld [vmem:[%s4 + $0x9f0] sm:$0xff]
  %v1116 = vld [vmem:[%s4 + $0x9f8] sm:$0xff]
  %v1117 = vld [vmem:[%s4 + $0xa00] sm:$0xff]
  %v1118 = vld [vmem:[%s4 + $0xa08] sm:$0xff]
  %v1119 = vld [vmem:[%s4 + $0xa10] sm:$0xff]
  %v1120 = vld [vmem:[%s4 + $0xa18] sm:$0xff]
  %v1121 = vld [vmem:[%s4 + $0xa20] sm:$0xff]
  %v1122 = vld [vmem:[%s4 + $0xa28] sm:$0xff]
  %v1123 = vld [vmem:[%s4 + $0xa30] sm:$0xff]
  %v1124 = vld [vmem:[%s4 + $0xa38] sm:$0xff]
  %v1125 = vld [vmem:[%s4 + $0xa40] sm:$0xff]
  %v1126 = vld [vmem:[%s4 + $0xa48] sm:$0xff]
  %v1127 = vld [vmem:[%s4 + $0xa50] sm:$0xff]
  %v1128 = vld [vmem:[%s4 + $0xa58] sm:$0xff]
  %v1129 = vld [vmem:[%s4 + $0xa60] sm:$0xff]
  %v1130 = vld [vmem:[%s4 + $0xa68] sm:$0xff]
  %v1131 = vld [vmem:[%s4 + $0xa70] sm:$0xff]
  %v1132 = vld [vmem:[%s4 + $0xa78] sm:$0xff]
  %v1133 = vld [vmem:[%s4 + $0xa80] sm:$0xff]
  %v1134 = vld [vmem:[%s4 + $0xa88] sm:$0xff]
  %v1135 = vld [vmem:[%s4 + $0xa90] sm:$0xff]
  %v1136 = vld [vmem:[%s4 + $0xa98] sm:$0xff]
  %v1137 = vld [vmem:[%s4 + $0xaa0] sm:$0xff]
  %v1138 = vld [vmem:[%s4 + $0xaa8] sm:$0xff]
  %v1139 = vld [vmem:[%s4 + $0xab0] sm:$0xff]
  %v1140 = vld [vmem:[%s4 + $0xab8] sm:$0xff]
  %v1141 = vld [vmem:[%s4 + $0xac0] sm:$0xff]
  %v1142 = vld [vmem:[%s4 + $0xac8] sm:$0xff]
  %v1143 = vld [vmem:[%s4 + $0xad0] sm:$0xff]
  %v1144 = vld [vmem:[%s4 + $0xad8] sm:$0xff]
  %v1145 = vld [vmem:[%s4 + $0xae0] sm:$0xff]
  %v1146 = vld [vmem:[%s4 + $0xae8] sm:$0xff]
  %v1147 = vld [vmem:[%s4 + $0xaf0] sm:$0xff]
  %v1148 = vld [vmem:[%s4 + $0xaf8] sm:$0xff]
  %v1149 = vld [vmem:[%s4 + $0xb00] sm:$0xff]
  %v1150 = vld [vmem:[%s4 + $0xb08] sm:$0xff]
  %v1151 = vld [vmem:[%s4 + $0xb10] sm:$0xff]
  %v1152 = vld [vmem:[%s4 + $0xb18] sm:$0xff]
  %v1153 = vld [vmem:[%s4 + $0xb20] sm:$0xff]
  %v1154 = vld [vmem:[%s4 + $0xb28] sm:$0xff]
  %v1155 = vld [vmem:[%s4 + $0xb30] sm:$0xff]
  %v1156 = vld [vmem:[%s4 + $0xb38] sm:$0xff]
  %v1157 = vld [vmem:[%s4 + $0xb40] sm:$0xff]
  %v1158 = vld [vmem:[%s4 + $0xb48] sm:$0xff]
  %v1159 = vld [vmem:[%s4 + $0xb50] sm:$0xff]
  %v1160 = vld [vmem:[%s4 + $0xb58] sm:$0xff]
  %v1161 = vld [vmem:[%s4 + $0xb60] sm:$0xff]
  %v1162 = vld [vmem:[%s4 + $0xb68] sm:$0xff]
  %v1163 = vld [vmem:[%s4 + $0xb70] sm:$0xff]
  %v1164 = vld [vmem:[%s4 + $0xb78] sm:$0xff]
  %v1165 = vld [vmem:[%s4 + $0xb80] sm:$0xff]
  %v1166 = vld [vmem:[%s4 + $0xb88] sm:$0xff]
  %v1167 = vld [vmem:[%s4 + $0xb90] sm:$0xff]
  %v1168 = vld [vmem:[%s4 + $0xb98] sm:$0xff]
  %v1169 = vld [vmem:[%s4 + $0xba0] sm:$0xff]
  %v1170 = vld [vmem:[%s4 + $0xba8] sm:$0xff]
  %v1171 = vld [vmem:[%s4 + $0xbb0] sm:$0xff]
  %v1172 = vld [vmem:[%s4 + $0xbb8] sm:$0xff]
  %v1173 = vld [vmem:[%s4 + $0xbc0] sm:$0xff]
  %v1174 = vld [vmem:[%s4 + $0xbc8] sm:$0xff]
  %v1175 = vld [vmem:[%s4 + $0xbd0] sm:$0xff]
  %v1176 = vld [vmem:[%s4 + $0xbd8] sm:$0xff]
  %v1177 = vld [vmem:[%s4 + $0xbe0] sm:$0xff]
  %v1178 = vld [vmem:[%s4 + $0xbe8] sm:$0xff]
  %v1179 = vld [vmem:[%s4 + $0xbf0] sm:$0xff]
  %v1180 = vld [vmem:[%s4 + $0xbf8] sm:$0xff]
  %v1181 = vld [vmem:[%s4 + $0xc00] sm:$0xff]
  %v1182 = vld [vmem:[%s4 + $0xc08] sm:$0xff]
  %v1183 = vld [vmem:[%s4 + $0xc10] sm:$0xff]
  %v1184 = vld [vmem:[%s4 + $0xc18] sm:$0xff]
  %v1185 = vld [vmem:[%s4 + $0xc20] sm:$0xff]
  %v1186 = vld [vmem:[%s4 + $0xc28] sm:$0xff]
  %v1187 = vld [vmem:[%s4 + $0xc30] sm:$0xff]
  %v1188 = vld [vmem:[%s4 + $0xc38] sm:$0xff]
  %v1189 = vld [vmem:[%s4 + $0xc40] sm:$0xff]
  %v1190 = vld [vmem:[%s4 + $0xc48] sm:$0xff]
  %v1191 = vld [vmem:[%s4 + $0xc50] sm:$0xff]
  %v1192 = vld [vmem:[%s4 + $0xc58] sm:$0xff]
  %v1193 = vld [vmem:[%s4 + $0xc60] sm:$0xff]
  %v1194 = vld [vmem:[%s4 + $0xc68] sm:$0xff]
  %v1195 = vld [vmem:[%s4 + $0xc70] sm:$0xff]
  %v1196 = vld [vmem:[%s4 + $0xc78] sm:$0xff]
  %v1197 = vld [vmem:[%s5] sm:$0x3]
  %v1199 = vperm.slane %v1197, 0
  %v1200 = vperm.slane %v1197, 1
  %v1255 = vunpack.c.l.b16 %v745
  %v1256 = vunpack.c.h.b16 %v745
  %v1257 = vunpack.c.l.b16 %v746
  %v1258 = vunpack.c.h.b16 %v746
  %v1259 = vunpack.c.l.b16 %v747
  %v1260 = vunpack.c.h.b16 %v747
  %v1261 = vunpack.c.l.b16 %v748
  %v1262 = vunpack.c.h.b16 %v748
  %v1263 = vunpack.c.l.b16 %v749
  %v1264 = vunpack.c.h.b16 %v749
  %v1265 = vunpack.c.l.b16 %v750
  %v1266 = vunpack.c.h.b16 %v750
  %v1267 = vunpack.c.l.b16 %v751
  %v1268 = vunpack.c.h.b16 %v751
  %v1269 = vunpack.c.l.b16 %v752
  %v1270 = vunpack.c.h.b16 %v752
  %v1271 = vunpack.c.l.b16 %v753
  %v1272 = vunpack.c.h.b16 %v753
  %v1273 = vunpack.c.l.b16 %v754
  %v1274 = vunpack.c.h.b16 %v754
  %v1275 = vunpack.c.l.b16 %v755
  %v1276 = vunpack.c.h.b16 %v755
  %v1277 = vunpack.c.l.b16 %v756
  %v1278 = vunpack.c.h.b16 %v756
  %v1279 = vunpack.c.l.b16 %v757
  %v1280 = vunpack.c.l.b16 %v758
  %v1281 = vunpack.c.h.b16 %v758
  %v1282 = vunpack.c.l.b16 %v759
  %v1283 = vunpack.c.h.b16 %v759
  %v1284 = vunpack.c.l.b16 %v760
  %v1285 = vunpack.c.h.b16 %v760
  %v1286 = vunpack.c.l.b16 %v761
  %v1287 = vunpack.c.h.b16 %v761
  %v1288 = vunpack.c.l.b16 %v762
  %v1289 = vunpack.c.h.b16 %v762
  %v1290 = vunpack.c.l.b16 %v763
  %v1291 = vunpack.c.h.b16 %v763
  %v1292 = vunpack.c.l.b16 %v764
  %v1293 = vunpack.c.h.b16 %v764
  %v1294 = vunpack.c.l.b16 %v765
  %v1295 = vunpack.c.h.b16 %v765
  %v1296 = vunpack.c.l.b16 %v766
  %v1297 = vunpack.c.h.b16 %v766
  %v1298 = vunpack.c.l.b16 %v767
  %v1299 = vunpack.c.h.b16 %v767
  %v1300 = vunpack.c.l.b16 %v768
  %v1301 = vunpack.c.h.b16 %v768
  %v1302 = vunpack.c.l.b16 %v769
  %v1303 = vunpack.c.h.b16 %v769
  %v1304 = vunpack.c.l.b16 %v770
  %v1305 = vunpack.c.l.b16 %v771
  %v1306 = vunpack.c.h.b16 %v771
  %v1307 = vunpack.c.l.b16 %v772
  %v1308 = vunpack.c.h.b16 %v772
  %v1309 = vunpack.c.l.b16 %v773
  %v1310 = vunpack.c.h.b16 %v773
  %v1311 = vunpack.c.l.b16 %v774
  %v1312 = vunpack.c.h.b16 %v774
  %v1313 = vunpack.c.l.b16 %v775
  %v1314 = vunpack.c.h.b16 %v775
  %v1315 = vunpack.c.l.b16 %v776
  %v1316 = vunpack.c.h.b16 %v776
  %v1317 = vunpack.c.l.b16 %v777
  %v1318 = vunpack.c.h.b16 %v777
  %v1319 = vunpack.c.l.b16 %v778
  %v1320 = vunpack.c.h.b16 %v778
  %v1321 = vunpack.c.l.b16 %v779
  %v1322 = vunpack.c.h.b16 %v779
  %v1323 = vunpack.c.l.b16 %v780
  %v1324 = vunpack.c.h.b16 %v780
  %v1325 = vunpack.c.l.b16 %v781
  %v1326 = vunpack.c.h.b16 %v781
  %v1327 = vunpack.c.l.b16 %v782
  %v1328 = vunpack.c.h.b16 %v782
  %v1329 = vunpack.c.l.b16 %v783
  %v1330 = vunpack.c.l.b16 %v784
  %v1331 = vunpack.c.h.b16 %v784
  %v1332 = vunpack.c.l.b16 %v785
  %v1333 = vunpack.c.h.b16 %v785
  %v1334 = vunpack.c.l.b16 %v786
  %v1335 = vunpack.c.h.b16 %v786
  %v1336 = vunpack.c.l.b16 %v787
  %v1337 = vunpack.c.h.b16 %v787
  %v1338 = vunpack.c.l.b16 %v788
  %v1339 = vunpack.c.h.b16 %v788
  %v1340 = vunpack.c.l.b16 %v789
  %v1341 = vunpack.c.h.b16 %v789
  %v1342 = vunpack.c.l.b16 %v790
  %v1343 = vunpack.c.h.b16 %v790
  %v1344 = vunpack.c.l.b16 %v791
  %v1345 = vunpack.c.h.b16 %v791
  %v1346 = vunpack.c.l.b16 %v792
  %v1347 = vunpack.c.h.b16 %v792
  %v1348 = vunpack.c.l.b16 %v793
  %v1349 = vunpack.c.h.b16 %v793
  %v1350 = vunpack.c.l.b16 %v794
  %v1351 = vunpack.c.h.b16 %v794
  %v1352 = vunpack.c.l.b16 %v795
  %v1353 = vunpack.c.h.b16 %v795
  %v1354 = vunpack.c.l.b16 %v796
  %v1355 = vpack.c.b16 %v1280, %v1255
  %v1356 = vpack.c.b16 %v1281, %v1256
  %v1357 = vpack.c.b16 %v1282, %v1257
  %v1358 = vpack.c.b16 %v1283, %v1258
  %v1359 = vpack.c.b16 %v1284, %v1259
  %v1360 = vpack.c.b16 %v1285, %v1260
  %v1361 = vpack.c.b16 %v1286, %v1261
  %v1362 = vpack.c.b16 %v1287, %v1262
  %v1363 = vpack.c.b16 %v1288, %v1263
  %v1364 = vpack.c.b16 %v1289, %v1264
  %v1365 = vpack.c.b16 %v1290, %v1265
  %v1366 = vpack.c.b16 %v1291, %v1266
  %v1367 = vpack.c.b16 %v1292, %v1267
  %v1368 = vpack.c.b16 %v1293, %v1268
  %v1369 = vpack.c.b16 %v1294, %v1269
  %v1370 = vpack.c.b16 %v1295, %v1270
  %v1371 = vpack.c.b16 %v1296, %v1271
  %v1372 = vpack.c.b16 %v1297, %v1272
  %v1373 = vpack.c.b16 %v1298, %v1273
  %v1374 = vpack.c.b16 %v1299, %v1274
  %v1375 = vpack.c.b16 %v1300, %v1275
  %v1376 = vpack.c.b16 %v1301, %v1276
  %v1377 = vpack.c.b16 %v1302, %v1277
  %v1378 = vpack.c.b16 %v1303, %v1278
  %v1379 = vpack.c.b16 %v1304, %v1279
  %v1380 = vpack.c.b16 %v1330, %v1305
  %v1381 = vpack.c.b16 %v1331, %v1306
  %v1382 = vpack.c.b16 %v1332, %v1307
  %v1383 = vpack.c.b16 %v1333, %v1308
  %v1384 = vpack.c.b16 %v1334, %v1309
  %v1385 = vpack.c.b16 %v1335, %v1310
  %v1386 = vpack.c.b16 %v1336, %v1311
  %v1387 = vpack.c.b16 %v1337, %v1312
  %v1388 = vpack.c.b16 %v1338, %v1313
  %v1389 = vpack.c.b16 %v1339, %v1314
  %v1390 = vpack.c.b16 %v1340, %v1315
  %v1391 = vpack.c.b16 %v1341, %v1316
  %v1392 = vpack.c.b16 %v1342, %v1317
  %v1393 = vpack.c.b16 %v1343, %v1318
  %v1394 = vpack.c.b16 %v1344, %v1319
  %v1395 = vpack.c.b16 %v1345, %v1320
  %v1396 = vpack.c.b16 %v1346, %v1321
  %v1397 = vpack.c.b16 %v1347, %v1322
  %v1398 = vpack.c.b16 %v1348, %v1323
  %v1399 = vpack.c.b16 %v1349, %v1324
  %v1400 = vpack.c.b16 %v1350, %v1325
  %v1401 = vpack.c.b16 %v1351, %v1326
  %v1402 = vpack.c.b16 %v1352, %v1327
  %v1403 = vpack.c.b16 %v1353, %v1328
  %v1404 = vpack.c.b16 %v1354, %v1329
  %v1855 = vunpack.c.l.b16 %v797
  %v1856 = vunpack.c.h.b16 %v797
  %v1857 = vunpack.c.l.b16 %v798
  %v1858 = vunpack.c.h.b16 %v798
  %v1859 = vunpack.c.l.b16 %v799
  %v1860 = vunpack.c.h.b16 %v799
  %v1861 = vunpack.c.l.b16 %v800
  %v1862 = vunpack.c.h.b16 %v800
  %v1863 = vunpack.c.l.b16 %v801
  %v1864 = vunpack.c.h.b16 %v801
  %v1865 = vunpack.c.l.b16 %v802
  %v1866 = vunpack.c.h.b16 %v802
  %v1867 = vunpack.c.l.b16 %v803
  %v1868 = vunpack.c.h.b16 %v803
  %v1869 = vunpack.c.l.b16 %v804
  %v1870 = vunpack.c.h.b16 %v804
  %v1871 = vunpack.c.l.b16 %v805
  %v1872 = vunpack.c.h.b16 %v805
  %v1873 = vunpack.c.l.b16 %v806
  %v1874 = vunpack.c.h.b16 %v806
  %v1875 = vunpack.c.l.b16 %v807
  %v1876 = vunpack.c.h.b16 %v807
  %v1877 = vunpack.c.l.b16 %v808
  %v1878 = vunpack.c.h.b16 %v808
  %v1879 = vunpack.c.l.b16 %v809
  %v1880 = vunpack.c.h.b16 %v809
  %v1881 = vunpack.c.l.b16 %v810
  %v1882 = vunpack.c.h.b16 %v810
  %v1883 = vunpack.c.l.b16 %v811
  %v1884 = vunpack.c.h.b16 %v811
  %v1885 = vunpack.c.l.b16 %v812
  %v1886 = vunpack.c.h.b16 %v812
  %v1887 = vunpack.c.l.b16 %v813
  %v1888 = vunpack.c.h.b16 %v813
  %v1889 = vunpack.c.l.b16 %v814
  %v1890 = vunpack.c.h.b16 %v814
  %v1891 = vunpack.c.l.b16 %v815
  %v1892 = vunpack.c.h.b16 %v815
  %v1893 = vunpack.c.l.b16 %v816
  %v1894 = vunpack.c.h.b16 %v816
  %v1895 = vunpack.c.l.b16 %v817
  %v1896 = vunpack.c.h.b16 %v817
  %v1897 = vunpack.c.l.b16 %v818
  %v1898 = vunpack.c.h.b16 %v818
  %v1899 = vunpack.c.l.b16 %v819
  %v1900 = vunpack.c.h.b16 %v819
  %v1901 = vunpack.c.l.b16 %v820
  %v1902 = vunpack.c.h.b16 %v820
  %v1903 = vunpack.c.l.b16 %v821
  %v1904 = vunpack.c.h.b16 %v821
  %v1905 = vunpack.c.l.b16 %v822
  %v1906 = vunpack.c.h.b16 %v822
  %v1907 = vunpack.c.l.b16 %v823
  %v1908 = vunpack.c.h.b16 %v823
  %v1909 = vunpack.c.l.b16 %v824
  %v1910 = vunpack.c.h.b16 %v824
  %v1911 = vunpack.c.l.b16 %v825
  %v1912 = vunpack.c.h.b16 %v825
  %v1913 = vunpack.c.l.b16 %v826
  %v1914 = vunpack.c.h.b16 %v826
  %v1915 = vunpack.c.l.b16 %v827
  %v1916 = vunpack.c.h.b16 %v827
  %v1917 = vunpack.c.l.b16 %v828
  %v1918 = vunpack.c.h.b16 %v828
  %v1919 = vunpack.c.l.b16 %v829
  %v1920 = vunpack.c.h.b16 %v829
  %v1921 = vunpack.c.l.b16 %v830
  %v1922 = vunpack.c.h.b16 %v830
  %v1923 = vunpack.c.l.b16 %v831
  %v1924 = vunpack.c.h.b16 %v831
  %v1925 = vunpack.c.l.b16 %v832
  %v1926 = vunpack.c.h.b16 %v832
  %v1927 = vunpack.c.l.b16 %v833
  %v1928 = vunpack.c.h.b16 %v833
  %v1929 = vunpack.c.l.b16 %v834
  %v1930 = vunpack.c.h.b16 %v834
  %v1931 = vunpack.c.l.b16 %v835
  %v1932 = vunpack.c.h.b16 %v835
  %v1933 = vunpack.c.l.b16 %v836
  %v1934 = vunpack.c.h.b16 %v836
  %v1935 = vunpack.c.l.b16 %v837
  %v1936 = vunpack.c.h.b16 %v837
  %v1937 = vunpack.c.l.b16 %v838
  %v1938 = vunpack.c.h.b16 %v838
  %v1939 = vunpack.c.l.b16 %v839
  %v1940 = vunpack.c.h.b16 %v839
  %v1941 = vunpack.c.l.b16 %v840
  %v1942 = vunpack.c.h.b16 %v840
  %v1943 = vunpack.c.l.b16 %v841
  %v1944 = vunpack.c.h.b16 %v841
  %v1945 = vunpack.c.l.b16 %v842
  %v1946 = vunpack.c.h.b16 %v842
  %v1947 = vunpack.c.l.b16 %v843
  %v1948 = vunpack.c.h.b16 %v843
  %v1949 = vunpack.c.l.b16 %v844
  %v1950 = vunpack.c.h.b16 %v844
  %v1951 = vunpack.c.l.b16 %v845
  %v1952 = vunpack.c.h.b16 %v845
  %v1953 = vunpack.c.l.b16 %v846
  %v1954 = vunpack.c.h.b16 %v846
  %v1955 = vunpack.c.l.b16 %v847
  %v1956 = vunpack.c.h.b16 %v847
  %v1957 = vunpack.c.l.b16 %v848
  %v1958 = vunpack.c.h.b16 %v848
  %v1959 = vunpack.c.l.b16 %v849
  %v1960 = vunpack.c.h.b16 %v849
  %v1961 = vunpack.c.l.b16 %v850
  %v1962 = vunpack.c.h.b16 %v850
  %v1963 = vunpack.c.l.b16 %v851
  %v1964 = vunpack.c.h.b16 %v851
  %v1965 = vunpack.c.l.b16 %v852
  %v1966 = vunpack.c.h.b16 %v852
  %v1967 = vunpack.c.l.b16 %v853
  %v1968 = vunpack.c.h.b16 %v853
  %v1969 = vunpack.c.l.b16 %v854
  %v1970 = vunpack.c.h.b16 %v854
  %v1971 = vunpack.c.l.b16 %v855
  %v1972 = vunpack.c.h.b16 %v855
  %v1973 = vunpack.c.l.b16 %v856
  %v1974 = vunpack.c.h.b16 %v856
  %v1975 = vunpack.c.l.b16 %v857
  %v1976 = vunpack.c.h.b16 %v857
  %v1977 = vunpack.c.l.b16 %v858
  %v1978 = vunpack.c.h.b16 %v858
  %v1979 = vunpack.c.l.b16 %v859
  %v1980 = vunpack.c.h.b16 %v859
  %v1981 = vunpack.c.l.b16 %v860
  %v1982 = vunpack.c.h.b16 %v860
  %v1983 = vunpack.c.l.b16 %v861
  %v1984 = vunpack.c.h.b16 %v861
  %v1985 = vunpack.c.l.b16 %v862
  %v1986 = vunpack.c.h.b16 %v862
  %v1987 = vunpack.c.l.b16 %v863
  %v1988 = vunpack.c.h.b16 %v863
  %v1989 = vunpack.c.l.b16 %v864
  %v1990 = vunpack.c.h.b16 %v864
  %v1991 = vunpack.c.l.b16 %v865
  %v1992 = vunpack.c.h.b16 %v865
  %v1993 = vunpack.c.l.b16 %v866
  %v1994 = vunpack.c.h.b16 %v866
  %v1995 = vunpack.c.l.b16 %v867
  %v1996 = vunpack.c.h.b16 %v867
  %v1997 = vunpack.c.l.b16 %v868
  %v1998 = vunpack.c.h.b16 %v868
  %v1999 = vunpack.c.l.b16 %v869
  %v2000 = vunpack.c.h.b16 %v869
  %v2001 = vunpack.c.l.b16 %v870
  %v2002 = vunpack.c.h.b16 %v870
  %v2003 = vunpack.c.l.b16 %v871
  %v2004 = vunpack.c.h.b16 %v871
  %v2005 = vunpack.c.l.b16 %v872
  %v2006 = vunpack.c.h.b16 %v872
  %v2007 = vunpack.c.l.b16 %v873
  %v2008 = vunpack.c.h.b16 %v873
  %v2009 = vunpack.c.l.b16 %v874
  %v2010 = vunpack.c.h.b16 %v874
  %v2011 = vunpack.c.l.b16 %v875
  %v2012 = vunpack.c.h.b16 %v875
  %v2013 = vunpack.c.l.b16 %v876
  %v2014 = vunpack.c.h.b16 %v876
  %v2015 = vunpack.c.l.b16 %v877
  %v2016 = vunpack.c.h.b16 %v877
  %v2017 = vunpack.c.l.b16 %v878
  %v2018 = vunpack.c.h.b16 %v878
  %v2019 = vunpack.c.l.b16 %v879
  %v2020 = vunpack.c.h.b16 %v879
  %v2021 = vunpack.c.l.b16 %v880
  %v2022 = vunpack.c.h.b16 %v880
  %v2023 = vunpack.c.l.b16 %v881
  %v2024 = vunpack.c.h.b16 %v881
  %v2025 = vunpack.c.l.b16 %v882
  %v2026 = vunpack.c.h.b16 %v882
  %v2027 = vunpack.c.l.b16 %v883
  %v2028 = vunpack.c.h.b16 %v883
  %v2029 = vunpack.c.l.b16 %v884
  %v2030 = vunpack.c.h.b16 %v884
  %v2031 = vunpack.c.l.b16 %v885
  %v2032 = vunpack.c.h.b16 %v885
  %v2033 = vunpack.c.l.b16 %v886
  %v2034 = vunpack.c.h.b16 %v886
  %v2035 = vunpack.c.l.b16 %v887
  %v2036 = vunpack.c.h.b16 %v887
  %v2037 = vunpack.c.l.b16 %v888
  %v2038 = vunpack.c.h.b16 %v888
  %v2039 = vunpack.c.l.b16 %v889
  %v2040 = vunpack.c.h.b16 %v889
  %v2041 = vunpack.c.l.b16 %v890
  %v2042 = vunpack.c.h.b16 %v890
  %v2043 = vunpack.c.l.b16 %v891
  %v2044 = vunpack.c.h.b16 %v891
  %v2045 = vunpack.c.l.b16 %v892
  %v2046 = vunpack.c.h.b16 %v892
  %v2047 = vunpack.c.l.b16 %v893
  %v2048 = vunpack.c.h.b16 %v893
  %v2049 = vunpack.c.l.b16 %v894
  %v2050 = vunpack.c.h.b16 %v894
  %v2051 = vunpack.c.l.b16 %v895
  %v2052 = vunpack.c.h.b16 %v895
  %v2053 = vunpack.c.l.b16 %v896
  %v2054 = vunpack.c.h.b16 %v896
  %v2055 = vunpack.c.l.b16 %v897
  %v2056 = vunpack.c.h.b16 %v897
  %v2057 = vunpack.c.l.b16 %v898
  %v2058 = vunpack.c.h.b16 %v898
  %v2059 = vunpack.c.l.b16 %v899
  %v2060 = vunpack.c.h.b16 %v899
  %v2061 = vunpack.c.l.b16 %v900
  %v2062 = vunpack.c.h.b16 %v900
  %v2063 = vunpack.c.l.b16 %v901
  %v2064 = vunpack.c.h.b16 %v901
  %v2065 = vunpack.c.l.b16 %v902
  %v2066 = vunpack.c.h.b16 %v902
  %v2067 = vunpack.c.l.b16 %v903
  %v2068 = vunpack.c.h.b16 %v903
  %v2069 = vunpack.c.l.b16 %v904
  %v2070 = vunpack.c.h.b16 %v904
  %v2071 = vunpack.c.l.b16 %v905
  %v2072 = vunpack.c.h.b16 %v905
  %v2073 = vunpack.c.l.b16 %v906
  %v2074 = vunpack.c.h.b16 %v906
  %v2075 = vunpack.c.l.b16 %v907
  %v2076 = vunpack.c.h.b16 %v907
  %v2077 = vunpack.c.l.b16 %v908
  %v2078 = vunpack.c.h.b16 %v908
  %v2079 = vunpack.c.l.b16 %v909
  %v2080 = vunpack.c.h.b16 %v909
  %v2081 = vunpack.c.l.b16 %v910
  %v2082 = vunpack.c.h.b16 %v910
  %v2083 = vunpack.c.l.b16 %v911
  %v2084 = vunpack.c.h.b16 %v911
  %v2085 = vunpack.c.l.b16 %v912
  %v2086 = vunpack.c.h.b16 %v912
  %v2087 = vunpack.c.l.b16 %v913
  %v2088 = vunpack.c.h.b16 %v913
  %v2089 = vunpack.c.l.b16 %v914
  %v2090 = vunpack.c.h.b16 %v914
  %v2091 = vunpack.c.l.b16 %v915
  %v2092 = vunpack.c.h.b16 %v915
  %v2093 = vunpack.c.l.b16 %v916
  %v2094 = vunpack.c.h.b16 %v916
  %v2095 = vunpack.c.l.b16 %v917
  %v2096 = vunpack.c.h.b16 %v917
  %v2097 = vunpack.c.l.b16 %v918
  %v2098 = vunpack.c.h.b16 %v918
  %v2099 = vunpack.c.l.b16 %v919
  %v2100 = vunpack.c.h.b16 %v919
  %v2101 = vunpack.c.l.b16 %v920
  %v2102 = vunpack.c.h.b16 %v920
  %v2103 = vunpack.c.l.b16 %v921
  %v2104 = vunpack.c.h.b16 %v921
  %v2105 = vunpack.c.l.b16 %v922
  %v2106 = vunpack.c.h.b16 %v922
  %v2107 = vunpack.c.l.b16 %v923
  %v2108 = vunpack.c.h.b16 %v923
  %v2109 = vunpack.c.l.b16 %v924
  %v2110 = vunpack.c.h.b16 %v924
  %v2111 = vunpack.c.l.b16 %v925
  %v2112 = vunpack.c.h.b16 %v925
  %v2113 = vunpack.c.l.b16 %v926
  %v2114 = vunpack.c.h.b16 %v926
  %v2115 = vunpack.c.l.b16 %v927
  %v2116 = vunpack.c.h.b16 %v927
  %v2117 = vunpack.c.l.b16 %v928
  %v2118 = vunpack.c.h.b16 %v928
  %v2119 = vunpack.c.l.b16 %v929
  %v2120 = vunpack.c.h.b16 %v929
  %v2121 = vunpack.c.l.b16 %v930
  %v2122 = vunpack.c.h.b16 %v930
  %v2123 = vunpack.c.l.b16 %v931
  %v2124 = vunpack.c.h.b16 %v931
  %v2125 = vunpack.c.l.b16 %v932
  %v2126 = vunpack.c.h.b16 %v932
  %v2127 = vunpack.c.l.b16 %v933
  %v2128 = vunpack.c.h.b16 %v933
  %v2129 = vunpack.c.l.b16 %v934
  %v2130 = vunpack.c.h.b16 %v934
  %v2131 = vunpack.c.l.b16 %v935
  %v2132 = vunpack.c.h.b16 %v935
  %v2133 = vunpack.c.l.b16 %v936
  %v2134 = vunpack.c.h.b16 %v936
  %v2135 = vunpack.c.l.b16 %v937
  %v2136 = vunpack.c.h.b16 %v937
  %v2137 = vunpack.c.l.b16 %v938
  %v2138 = vunpack.c.h.b16 %v938
  %v2139 = vunpack.c.l.b16 %v939
  %v2140 = vunpack.c.h.b16 %v939
  %v2141 = vunpack.c.l.b16 %v940
  %v2142 = vunpack.c.h.b16 %v940
  %v2143 = vunpack.c.l.b16 %v941
  %v2144 = vunpack.c.h.b16 %v941
  %v2145 = vunpack.c.l.b16 %v942
  %v2146 = vunpack.c.h.b16 %v942
  %v2147 = vunpack.c.l.b16 %v943
  %v2148 = vunpack.c.h.b16 %v943
  %v2149 = vunpack.c.l.b16 %v944
  %v2150 = vunpack.c.h.b16 %v944
  %v2151 = vunpack.c.l.b16 %v945
  %v2152 = vunpack.c.h.b16 %v945
  %v2153 = vunpack.c.l.b16 %v946
  %v2154 = vunpack.c.h.b16 %v946
  %v2155 = vunpack.c.l.b16 %v947
  %v2156 = vunpack.c.h.b16 %v947
  %v2157 = vunpack.c.l.b16 %v948
  %v2158 = vunpack.c.h.b16 %v948
  %v2159 = vunpack.c.l.b16 %v949
  %v2160 = vunpack.c.h.b16 %v949
  %v2161 = vunpack.c.l.b16 %v950
  %v2162 = vunpack.c.h.b16 %v950
  %v2163 = vunpack.c.l.b16 %v951
  %v2164 = vunpack.c.h.b16 %v951
  %v2165 = vunpack.c.l.b16 %v952
  %v2166 = vunpack.c.h.b16 %v952
  %v2167 = vunpack.c.l.b16 %v953
  %v2168 = vunpack.c.h.b16 %v953
  %v2169 = vunpack.c.l.b16 %v954
  %v2170 = vunpack.c.h.b16 %v954
  %v2171 = vunpack.c.l.b16 %v955
  %v2172 = vunpack.c.h.b16 %v955
  %v2173 = vunpack.c.l.b16 %v956
  %v2174 = vunpack.c.h.b16 %v956
  %v2175 = vunpack.c.l.b16 %v957
  %v2176 = vunpack.c.h.b16 %v957
  %v2177 = vunpack.c.l.b16 %v958
  %v2178 = vunpack.c.h.b16 %v958
  %v2179 = vunpack.c.l.b16 %v959
  %v2180 = vunpack.c.h.b16 %v959
  %v2181 = vunpack.c.l.b16 %v960
  %v2182 = vunpack.c.h.b16 %v960
  %v2183 = vunpack.c.l.b16 %v961
  %v2184 = vunpack.c.h.b16 %v961
  %v2185 = vunpack.c.l.b16 %v962
  %v2186 = vunpack.c.h.b16 %v962
  %v2187 = vunpack.c.l.b16 %v963
  %v2188 = vunpack.c.h.b16 %v963
  %v2189 = vunpack.c.l.b16 %v964
  %v2190 = vunpack.c.h.b16 %v964
  %v2191 = vunpack.c.l.b16 %v965
  %v2192 = vunpack.c.h.b16 %v965
  %v2193 = vunpack.c.l.b16 %v966
  %v2194 = vunpack.c.h.b16 %v966
  %v2195 = vunpack.c.l.b16 %v967
  %v2196 = vunpack.c.h.b16 %v967
  %v2197 = vunpack.c.l.b16 %v968
  %v2198 = vunpack.c.h.b16 %v968
  %v2199 = vunpack.c.l.b16 %v969
  %v2200 = vunpack.c.h.b16 %v969
  %v2201 = vunpack.c.l.b16 %v970
  %v2202 = vunpack.c.h.b16 %v970
  %v2203 = vunpack.c.l.b16 %v971
  %v2204 = vunpack.c.h.b16 %v971
  %v2205 = vunpack.c.l.b16 %v972
  %v2206 = vunpack.c.h.b16 %v972
  %v2207 = vunpack.c.l.b16 %v973
  %v2208 = vunpack.c.h.b16 %v973
  %v2209 = vunpack.c.l.b16 %v974
  %v2210 = vunpack.c.h.b16 %v974
  %v2211 = vunpack.c.l.b16 %v975
  %v2212 = vunpack.c.h.b16 %v975
  %v2213 = vunpack.c.l.b16 %v976
  %v2214 = vunpack.c.h.b16 %v976
  %v2215 = vunpack.c.l.b16 %v977
  %v2216 = vunpack.c.h.b16 %v977
  %v2217 = vunpack.c.l.b16 %v978
  %v2218 = vunpack.c.h.b16 %v978
  %v2219 = vunpack.c.l.b16 %v979
  %v2220 = vunpack.c.h.b16 %v979
  %v2221 = vunpack.c.l.b16 %v980
  %v2222 = vunpack.c.h.b16 %v980
  %v2223 = vunpack.c.l.b16 %v981
  %v2224 = vunpack.c.h.b16 %v981
  %v2225 = vunpack.c.l.b16 %v982
  %v2226 = vunpack.c.h.b16 %v982
  %v2227 = vunpack.c.l.b16 %v983
  %v2228 = vunpack.c.h.b16 %v983
  %v2229 = vunpack.c.l.b16 %v984
  %v2230 = vunpack.c.h.b16 %v984
  %v2231 = vunpack.c.l.b16 %v985
  %v2232 = vunpack.c.h.b16 %v985
  %v2233 = vunpack.c.l.b16 %v986
  %v2234 = vunpack.c.h.b16 %v986
  %v2235 = vunpack.c.l.b16 %v987
  %v2236 = vunpack.c.h.b16 %v987
  %v2237 = vunpack.c.l.b16 %v988
  %v2238 = vunpack.c.h.b16 %v988
  %v2239 = vunpack.c.l.b16 %v989
  %v2240 = vunpack.c.h.b16 %v989
  %v2241 = vunpack.c.l.b16 %v990
  %v2242 = vunpack.c.h.b16 %v990
  %v2243 = vunpack.c.l.b16 %v991
  %v2244 = vunpack.c.h.b16 %v991
  %v2245 = vunpack.c.l.b16 %v992
  %v2246 = vunpack.c.h.b16 %v992
  %v2247 = vunpack.c.l.b16 %v993
  %v2248 = vunpack.c.h.b16 %v993
  %v2249 = vunpack.c.l.b16 %v994
  %v2250 = vunpack.c.h.b16 %v994
  %v2251 = vunpack.c.l.b16 %v995
  %v2252 = vunpack.c.h.b16 %v995
  %v2253 = vunpack.c.l.b16 %v996
  %v2254 = vunpack.c.h.b16 %v996
  %v2255 = vunpack.c.l.b16 %v997
  %v2256 = vunpack.c.h.b16 %v997
  %v2257 = vunpack.c.l.b16 %v998
  %v2258 = vunpack.c.h.b16 %v998
  %v2259 = vunpack.c.l.b16 %v999
  %v2260 = vunpack.c.h.b16 %v999
  %v2261 = vunpack.c.l.b16 %v1000
  %v2262 = vunpack.c.h.b16 %v1000
  %v2263 = vunpack.c.l.b16 %v1001
  %v2264 = vunpack.c.h.b16 %v1001
  %v2265 = vunpack.c.l.b16 %v1002
  %v2266 = vunpack.c.h.b16 %v1002
  %v2267 = vunpack.c.l.b16 %v1003
  %v2268 = vunpack.c.h.b16 %v1003
  %v2269 = vunpack.c.l.b16 %v1004
  %v2270 = vunpack.c.h.b16 %v1004
  %v2271 = vunpack.c.l.b16 %v1005
  %v2272 = vunpack.c.h.b16 %v1005
  %v2273 = vunpack.c.l.b16 %v1006
  %v2274 = vunpack.c.h.b16 %v1006
  %v2275 = vunpack.c.l.b16 %v1007
  %v2276 = vunpack.c.h.b16 %v1007
  %v2277 = vunpack.c.l.b16 %v1008
  %v2278 = vunpack.c.h.b16 %v1008
  %v2279 = vunpack.c.l.b16 %v1009
  %v2280 = vunpack.c.h.b16 %v1009
  %v2281 = vunpack.c.l.b16 %v1010
  %v2282 = vunpack.c.h.b16 %v1010
  %v2283 = vunpack.c.l.b16 %v1011
  %v2284 = vunpack.c.h.b16 %v1011
  %v2285 = vunpack.c.l.b16 %v1012
  %v2286 = vunpack.c.h.b16 %v1012
  %v2287 = vunpack.c.l.b16 %v1013
  %v2288 = vunpack.c.h.b16 %v1013
  %v2289 = vunpack.c.l.b16 %v1014
  %v2290 = vunpack.c.h.b16 %v1014
  %v2291 = vunpack.c.l.b16 %v1015
  %v2292 = vunpack.c.h.b16 %v1015
  %v2293 = vunpack.c.l.b16 %v1016
  %v2294 = vunpack.c.h.b16 %v1016
  %v2295 = vunpack.c.l.b16 %v1017
  %v2296 = vunpack.c.h.b16 %v1017
  %v2297 = vunpack.c.l.b16 %v1018
  %v2298 = vunpack.c.h.b16 %v1018
  %v2299 = vunpack.c.l.b16 %v1019
  %v2300 = vunpack.c.h.b16 %v1019
  %v2301 = vunpack.c.l.b16 %v1020
  %v2302 = vunpack.c.h.b16 %v1020
  %v2303 = vunpack.c.l.b16 %v1021
  %v2304 = vunpack.c.h.b16 %v1021
  %v2305 = vunpack.c.l.b16 %v1022
  %v2306 = vunpack.c.h.b16 %v1022
  %v2307 = vunpack.c.l.b16 %v1023
  %v2308 = vunpack.c.h.b16 %v1023
  %v2309 = vunpack.c.l.b16 %v1024
  %v2310 = vunpack.c.h.b16 %v1024
  %v2311 = vunpack.c.l.b16 %v1025
  %v2312 = vunpack.c.h.b16 %v1025
  %v2313 = vunpack.c.l.b16 %v1026
  %v2314 = vunpack.c.h.b16 %v1026
  %v2315 = vunpack.c.l.b16 %v1027
  %v2316 = vunpack.c.h.b16 %v1027
  %v2317 = vunpack.c.l.b16 %v1028
  %v2318 = vunpack.c.h.b16 %v1028
  %v2319 = vunpack.c.l.b16 %v1029
  %v2320 = vunpack.c.h.b16 %v1029
  %v2321 = vunpack.c.l.b16 %v1030
  %v2322 = vunpack.c.h.b16 %v1030
  %v2323 = vunpack.c.l.b16 %v1031
  %v2324 = vunpack.c.h.b16 %v1031
  %v2325 = vunpack.c.l.b16 %v1032
  %v2326 = vunpack.c.h.b16 %v1032
  %v2327 = vunpack.c.l.b16 %v1033
  %v2328 = vunpack.c.h.b16 %v1033
  %v2329 = vunpack.c.l.b16 %v1034
  %v2330 = vunpack.c.h.b16 %v1034
  %v2331 = vunpack.c.l.b16 %v1035
  %v2332 = vunpack.c.h.b16 %v1035
  %v2333 = vunpack.c.l.b16 %v1036
  %v2334 = vunpack.c.h.b16 %v1036
  %v2335 = vunpack.c.l.b16 %v1037
  %v2336 = vunpack.c.h.b16 %v1037
  %v2337 = vunpack.c.l.b16 %v1038
  %v2338 = vunpack.c.h.b16 %v1038
  %v2339 = vunpack.c.l.b16 %v1039
  %v2340 = vunpack.c.h.b16 %v1039
  %v2341 = vunpack.c.l.b16 %v1040
  %v2342 = vunpack.c.h.b16 %v1040
  %v2343 = vunpack.c.l.b16 %v1041
  %v2344 = vunpack.c.h.b16 %v1041
  %v2345 = vunpack.c.l.b16 %v1042
  %v2346 = vunpack.c.h.b16 %v1042
  %v2347 = vunpack.c.l.b16 %v1043
  %v2348 = vunpack.c.h.b16 %v1043
  %v2349 = vunpack.c.l.b16 %v1044
  %v2350 = vunpack.c.h.b16 %v1044
  %v2351 = vunpack.c.l.b16 %v1045
  %v2352 = vunpack.c.h.b16 %v1045
  %v2353 = vunpack.c.l.b16 %v1046
  %v2354 = vunpack.c.h.b16 %v1046
  %v2355 = vunpack.c.l.b16 %v1047
  %v2356 = vunpack.c.h.b16 %v1047
  %v2357 = vunpack.c.l.b16 %v1048
  %v2358 = vunpack.c.h.b16 %v1048
  %v2359 = vunpack.c.l.b16 %v1049
  %v2360 = vunpack.c.h.b16 %v1049
  %v2361 = vunpack.c.l.b16 %v1050
  %v2362 = vunpack.c.h.b16 %v1050
  %v2363 = vunpack.c.l.b16 %v1051
  %v2364 = vunpack.c.h.b16 %v1051
  %v2365 = vunpack.c.l.b16 %v1052
  %v2366 = vunpack.c.h.b16 %v1052
  %v2367 = vunpack.c.l.b16 %v1053
  %v2368 = vunpack.c.h.b16 %v1053
  %v2369 = vunpack.c.l.b16 %v1054
  %v2370 = vunpack.c.h.b16 %v1054
  %v2371 = vunpack.c.l.b16 %v1055
  %v2372 = vunpack.c.h.b16 %v1055
  %v2373 = vunpack.c.l.b16 %v1056
  %v2374 = vunpack.c.h.b16 %v1056
  %v2375 = vunpack.c.l.b16 %v1057
  %v2376 = vunpack.c.h.b16 %v1057
  %v2377 = vunpack.c.l.b16 %v1058
  %v2378 = vunpack.c.h.b16 %v1058
  %v2379 = vunpack.c.l.b16 %v1059
  %v2380 = vunpack.c.h.b16 %v1059
  %v2381 = vunpack.c.l.b16 %v1060
  %v2382 = vunpack.c.h.b16 %v1060
  %v2383 = vunpack.c.l.b16 %v1061
  %v2384 = vunpack.c.h.b16 %v1061
  %v2385 = vunpack.c.l.b16 %v1062
  %v2386 = vunpack.c.h.b16 %v1062
  %v2387 = vunpack.c.l.b16 %v1063
  %v2388 = vunpack.c.h.b16 %v1063
  %v2389 = vunpack.c.l.b16 %v1064
  %v2390 = vunpack.c.h.b16 %v1064
  %v2391 = vunpack.c.l.b16 %v1065
  %v2392 = vunpack.c.h.b16 %v1065
  %v2393 = vunpack.c.l.b16 %v1066
  %v2394 = vunpack.c.h.b16 %v1066
  %v2395 = vunpack.c.l.b16 %v1067
  %v2396 = vunpack.c.h.b16 %v1067
  %v2397 = vunpack.c.l.b16 %v1068
  %v2398 = vunpack.c.h.b16 %v1068
  %v2399 = vunpack.c.l.b16 %v1069
  %v2400 = vunpack.c.h.b16 %v1069
  %v2401 = vunpack.c.l.b16 %v1070
  %v2402 = vunpack.c.h.b16 %v1070
  %v2403 = vunpack.c.l.b16 %v1071
  %v2404 = vunpack.c.h.b16 %v1071
  %v2405 = vunpack.c.l.b16 %v1072
  %v2406 = vunpack.c.h.b16 %v1072
  %v2407 = vunpack.c.l.b16 %v1073
  %v2408 = vunpack.c.h.b16 %v1073
  %v2409 = vunpack.c.l.b16 %v1074
  %v2410 = vunpack.c.h.b16 %v1074
  %v2411 = vunpack.c.l.b16 %v1075
  %v2412 = vunpack.c.h.b16 %v1075
  %v2413 = vunpack.c.l.b16 %v1076
  %v2414 = vunpack.c.h.b16 %v1076
  %v2415 = vunpack.c.l.b16 %v1077
  %v2416 = vunpack.c.h.b16 %v1077
  %v2417 = vunpack.c.l.b16 %v1078
  %v2418 = vunpack.c.h.b16 %v1078
  %v2419 = vunpack.c.l.b16 %v1079
  %v2420 = vunpack.c.h.b16 %v1079
  %v2421 = vunpack.c.l.b16 %v1080
  %v2422 = vunpack.c.h.b16 %v1080
  %v2423 = vunpack.c.l.b16 %v1081
  %v2424 = vunpack.c.h.b16 %v1081
  %v2425 = vunpack.c.l.b16 %v1082
  %v2426 = vunpack.c.h.b16 %v1082
  %v2427 = vunpack.c.l.b16 %v1083
  %v2428 = vunpack.c.h.b16 %v1083
  %v2429 = vunpack.c.l.b16 %v1084
  %v2430 = vunpack.c.h.b16 %v1084
  %v2431 = vunpack.c.l.b16 %v1085
  %v2432 = vunpack.c.h.b16 %v1085
  %v2433 = vunpack.c.l.b16 %v1086
  %v2434 = vunpack.c.h.b16 %v1086
  %v2435 = vunpack.c.l.b16 %v1087
  %v2436 = vunpack.c.h.b16 %v1087
  %v2437 = vunpack.c.l.b16 %v1088
  %v2438 = vunpack.c.h.b16 %v1088
  %v2439 = vunpack.c.l.b16 %v1089
  %v2440 = vunpack.c.h.b16 %v1089
  %v2441 = vunpack.c.l.b16 %v1090
  %v2442 = vunpack.c.h.b16 %v1090
  %v2443 = vunpack.c.l.b16 %v1091
  %v2444 = vunpack.c.h.b16 %v1091
  %v2445 = vunpack.c.l.b16 %v1092
  %v2446 = vunpack.c.h.b16 %v1092
  %v2447 = vunpack.c.l.b16 %v1093
  %v2448 = vunpack.c.h.b16 %v1093
  %v2449 = vunpack.c.l.b16 %v1094
  %v2450 = vunpack.c.h.b16 %v1094
  %v2451 = vunpack.c.l.b16 %v1095
  %v2452 = vunpack.c.h.b16 %v1095
  %v2453 = vunpack.c.l.b16 %v1096
  %v2454 = vunpack.c.h.b16 %v1096
  %v2455 = vunpack.c.l.b16 %v1097
  %v2456 = vunpack.c.h.b16 %v1097
  %v2457 = vunpack.c.l.b16 %v1098
  %v2458 = vunpack.c.h.b16 %v1098
  %v2459 = vunpack.c.l.b16 %v1099
  %v2460 = vunpack.c.h.b16 %v1099
  %v2461 = vunpack.c.l.b16 %v1100
  %v2462 = vunpack.c.h.b16 %v1100
  %v2463 = vunpack.c.l.b16 %v1101
  %v2464 = vunpack.c.h.b16 %v1101
  %v2465 = vunpack.c.l.b16 %v1102
  %v2466 = vunpack.c.h.b16 %v1102
  %v2467 = vunpack.c.l.b16 %v1103
  %v2468 = vunpack.c.h.b16 %v1103
  %v2469 = vunpack.c.l.b16 %v1104
  %v2470 = vunpack.c.h.b16 %v1104
  %v2471 = vunpack.c.l.b16 %v1105
  %v2472 = vunpack.c.h.b16 %v1105
  %v2473 = vunpack.c.l.b16 %v1106
  %v2474 = vunpack.c.h.b16 %v1106
  %v2475 = vunpack.c.l.b16 %v1107
  %v2476 = vunpack.c.h.b16 %v1107
  %v2477 = vunpack.c.l.b16 %v1108
  %v2478 = vunpack.c.h.b16 %v1108
  %v2479 = vunpack.c.l.b16 %v1109
  %v2480 = vunpack.c.h.b16 %v1109
  %v2481 = vunpack.c.l.b16 %v1110
  %v2482 = vunpack.c.h.b16 %v1110
  %v2483 = vunpack.c.l.b16 %v1111
  %v2484 = vunpack.c.h.b16 %v1111
  %v2485 = vunpack.c.l.b16 %v1112
  %v2486 = vunpack.c.h.b16 %v1112
  %v2487 = vunpack.c.l.b16 %v1113
  %v2488 = vunpack.c.h.b16 %v1113
  %v2489 = vunpack.c.l.b16 %v1114
  %v2490 = vunpack.c.h.b16 %v1114
  %v2491 = vunpack.c.l.b16 %v1115
  %v2492 = vunpack.c.h.b16 %v1115
  %v2493 = vunpack.c.l.b16 %v1116
  %v2494 = vunpack.c.h.b16 %v1116
  %v2495 = vunpack.c.l.b16 %v1117
  %v2496 = vunpack.c.h.b16 %v1117
  %v2497 = vunpack.c.l.b16 %v1118
  %v2498 = vunpack.c.h.b16 %v1118
  %v2499 = vunpack.c.l.b16 %v1119
  %v2500 = vunpack.c.h.b16 %v1119
  %v2501 = vunpack.c.l.b16 %v1120
  %v2502 = vunpack.c.h.b16 %v1120
  %v2503 = vunpack.c.l.b16 %v1121
  %v2504 = vunpack.c.h.b16 %v1121
  %v2505 = vunpack.c.l.b16 %v1122
  %v2506 = vunpack.c.h.b16 %v1122
  %v2507 = vunpack.c.l.b16 %v1123
  %v2508 = vunpack.c.h.b16 %v1123
  %v2509 = vunpack.c.l.b16 %v1124
  %v2510 = vunpack.c.h.b16 %v1124
  %v2511 = vunpack.c.l.b16 %v1125
  %v2512 = vunpack.c.h.b16 %v1125
  %v2513 = vunpack.c.l.b16 %v1126
  %v2514 = vunpack.c.h.b16 %v1126
  %v2515 = vunpack.c.l.b16 %v1127
  %v2516 = vunpack.c.h.b16 %v1127
  %v2517 = vunpack.c.l.b16 %v1128
  %v2518 = vunpack.c.h.b16 %v1128
  %v2519 = vunpack.c.l.b16 %v1129
  %v2520 = vunpack.c.h.b16 %v1129
  %v2521 = vunpack.c.l.b16 %v1130
  %v2522 = vunpack.c.h.b16 %v1130
  %v2523 = vunpack.c.l.b16 %v1131
  %v2524 = vunpack.c.h.b16 %v1131
  %v2525 = vunpack.c.l.b16 %v1132
  %v2526 = vunpack.c.h.b16 %v1132
  %v2527 = vunpack.c.l.b16 %v1133
  %v2528 = vunpack.c.h.b16 %v1133
  %v2529 = vunpack.c.l.b16 %v1134
  %v2530 = vunpack.c.h.b16 %v1134
  %v2531 = vunpack.c.l.b16 %v1135
  %v2532 = vunpack.c.h.b16 %v1135
  %v2533 = vunpack.c.l.b16 %v1136
  %v2534 = vunpack.c.h.b16 %v1136
  %v2535 = vunpack.c.l.b16 %v1137
  %v2536 = vunpack.c.h.b16 %v1137
  %v2537 = vunpack.c.l.b16 %v1138
  %v2538 = vunpack.c.h.b16 %v1138
  %v2539 = vunpack.c.l.b16 %v1139
  %v2540 = vunpack.c.h.b16 %v1139
  %v2541 = vunpack.c.l.b16 %v1140
  %v2542 = vunpack.c.h.b16 %v1140
  %v2543 = vunpack.c.l.b16 %v1141
  %v2544 = vunpack.c.h.b16 %v1141
  %v2545 = vunpack.c.l.b16 %v1142
  %v2546 = vunpack.c.h.b16 %v1142
  %v2547 = vunpack.c.l.b16 %v1143
  %v2548 = vunpack.c.h.b16 %v1143
  %v2549 = vunpack.c.l.b16 %v1144
  %v2550 = vunpack.c.h.b16 %v1144
  %v2551 = vunpack.c.l.b16 %v1145
  %v2552 = vunpack.c.h.b16 %v1145
  %v2553 = vunpack.c.l.b16 %v1146
  %v2554 = vunpack.c.h.b16 %v1146
  %v2555 = vunpack.c.l.b16 %v1147
  %v2556 = vunpack.c.h.b16 %v1147
  %v2557 = vunpack.c.l.b16 %v1148
  %v2558 = vunpack.c.h.b16 %v1148
  %v2559 = vunpack.c.l.b16 %v1149
  %v2560 = vunpack.c.h.b16 %v1149
  %v2561 = vunpack.c.l.b16 %v1150
  %v2562 = vunpack.c.h.b16 %v1150
  %v2563 = vunpack.c.l.b16 %v1151
  %v2564 = vunpack.c.h.b16 %v1151
  %v2565 = vunpack.c.l.b16 %v1152
  %v2566 = vunpack.c.h.b16 %v1152
  %v2567 = vunpack.c.l.b16 %v1153
  %v2568 = vunpack.c.h.b16 %v1153
  %v2569 = vunpack.c.l.b16 %v1154
  %v2570 = vunpack.c.h.b16 %v1154
  %v2571 = vunpack.c.l.b16 %v1155
  %v2572 = vunpack.c.h.b16 %v1155
  %v2573 = vunpack.c.l.b16 %v1156
  %v2574 = vunpack.c.h.b16 %v1156
  %v2575 = vunpack.c.l.b16 %v1157
  %v2576 = vunpack.c.h.b16 %v1157
  %v2577 = vunpack.c.l.b16 %v1158
  %v2578 = vunpack.c.h.b16 %v1158
  %v2579 = vunpack.c.l.b16 %v1159
  %v2580 = vunpack.c.h.b16 %v1159
  %v2581 = vunpack.c.l.b16 %v1160
  %v2582 = vunpack.c.h.b16 %v1160
  %v2583 = vunpack.c.l.b16 %v1161
  %v2584 = vunpack.c.h.b16 %v1161
  %v2585 = vunpack.c.l.b16 %v1162
  %v2586 = vunpack.c.h.b16 %v1162
  %v2587 = vunpack.c.l.b16 %v1163
  %v2588 = vunpack.c.h.b16 %v1163
  %v2589 = vunpack.c.l.b16 %v1164
  %v2590 = vunpack.c.h.b16 %v1164
  %v2591 = vunpack.c.l.b16 %v1165
  %v2592 = vunpack.c.h.b16 %v1165
  %v2593 = vunpack.c.l.b16 %v1166
  %v2594 = vunpack.c.h.b16 %v1166
  %v2595 = vunpack.c.l.b16 %v1167
  %v2596 = vunpack.c.h.b16 %v1167
  %v2597 = vunpack.c.l.b16 %v1168
  %v2598 = vunpack.c.h.b16 %v1168
  %v2599 = vunpack.c.l.b16 %v1169
  %v2600 = vunpack.c.h.b16 %v1169
  %v2601 = vunpack.c.l.b16 %v1170
  %v2602 = vunpack.c.h.b16 %v1170
  %v2603 = vunpack.c.l.b16 %v1171
  %v2604 = vunpack.c.h.b16 %v1171
  %v2605 = vunpack.c.l.b16 %v1172
  %v2606 = vunpack.c.h.b16 %v1172
  %v2607 = vunpack.c.l.b16 %v1173
  %v2608 = vunpack.c.h.b16 %v1173
  %v2609 = vunpack.c.l.b16 %v1174
  %v2610 = vunpack.c.h.b16 %v1174
  %v2611 = vunpack.c.l.b16 %v1175
  %v2612 = vunpack.c.h.b16 %v1175
  %v2613 = vunpack.c.l.b16 %v1176
  %v2614 = vunpack.c.h.b16 %v1176
  %v2615 = vunpack.c.l.b16 %v1177
  %v2616 = vunpack.c.h.b16 %v1177
  %v2617 = vunpack.c.l.b16 %v1178
  %v2618 = vunpack.c.h.b16 %v1178
  %v2619 = vunpack.c.l.b16 %v1179
  %v2620 = vunpack.c.h.b16 %v1179
  %v2621 = vunpack.c.l.b16 %v1180
  %v2622 = vunpack.c.h.b16 %v1180
  %v2623 = vunpack.c.l.b16 %v1181
  %v2624 = vunpack.c.h.b16 %v1181
  %v2625 = vunpack.c.l.b16 %v1182
  %v2626 = vunpack.c.h.b16 %v1182
  %v2627 = vunpack.c.l.b16 %v1183
  %v2628 = vunpack.c.h.b16 %v1183
  %v2629 = vunpack.c.l.b16 %v1184
  %v2630 = vunpack.c.h.b16 %v1184
  %v2631 = vunpack.c.l.b16 %v1185
  %v2632 = vunpack.c.h.b16 %v1185
  %v2633 = vunpack.c.l.b16 %v1186
  %v2634 = vunpack.c.h.b16 %v1186
  %v2635 = vunpack.c.l.b16 %v1187
  %v2636 = vunpack.c.h.b16 %v1187
  %v2637 = vunpack.c.l.b16 %v1188
  %v2638 = vunpack.c.h.b16 %v1188
  %v2639 = vunpack.c.l.b16 %v1189
  %v2640 = vunpack.c.h.b16 %v1189
  %v2641 = vunpack.c.l.b16 %v1190
  %v2642 = vunpack.c.h.b16 %v1190
  %v2643 = vunpack.c.l.b16 %v1191
  %v2644 = vunpack.c.h.b16 %v1191
  %v2645 = vunpack.c.l.b16 %v1192
  %v2646 = vunpack.c.h.b16 %v1192
  %v2647 = vunpack.c.l.b16 %v1193
  %v2648 = vunpack.c.h.b16 %v1193
  %v2649 = vunpack.c.l.b16 %v1194
  %v2650 = vunpack.c.h.b16 %v1194
  %v2651 = vunpack.c.l.b16 %v1195
  %v2652 = vunpack.c.h.b16 %v1195
  %v2653 = vunpack.c.l.b16 %v1196
  %v2654 = vunpack.c.h.b16 %v1196
  %v2655 = vpack.c.b16 %v1857, %v1855
  %v2656 = vpack.c.b16 %v1858, %v1856
  %v2657 = vpack.c.b16 %v1861, %v1859
  %v2658 = vpack.c.b16 %v1862, %v1860
  %v2659 = vpack.c.b16 %v1865, %v1863
  %v2660 = vpack.c.b16 %v1866, %v1864
  %v2661 = vpack.c.b16 %v1869, %v1867
  %v2662 = vpack.c.b16 %v1870, %v1868
  %v2663 = vpack.c.b16 %v1873, %v1871
  %v2664 = vpack.c.b16 %v1874, %v1872
  %v2665 = vpack.c.b16 %v1877, %v1875
  %v2666 = vpack.c.b16 %v1878, %v1876
  %v2667 = vpack.c.b16 %v1881, %v1879
  %v2668 = vpack.c.b16 %v1882, %v1880
  %v2669 = vpack.c.b16 %v1885, %v1883
  %v2670 = vpack.c.b16 %v1886, %v1884
  %v2671 = vpack.c.b16 %v1889, %v1887
  %v2672 = vpack.c.b16 %v1890, %v1888
  %v2673 = vpack.c.b16 %v1893, %v1891
  %v2674 = vpack.c.b16 %v1894, %v1892
  %v2675 = vpack.c.b16 %v1897, %v1895
  %v2676 = vpack.c.b16 %v1898, %v1896
  %v2677 = vpack.c.b16 %v1901, %v1899
  %v2678 = vpack.c.b16 %v1902, %v1900
  %v2679 = vpack.c.b16 %v1905, %v1903
  %v2680 = vpack.c.b16 %v1906, %v1904
  %v2681 = vpack.c.b16 %v1909, %v1907
  %v2682 = vpack.c.b16 %v1910, %v1908
  %v2683 = vpack.c.b16 %v1913, %v1911
  %v2684 = vpack.c.b16 %v1914, %v1912
  %v2685 = vpack.c.b16 %v1917, %v1915
  %v2686 = vpack.c.b16 %v1918, %v1916
  %v2687 = vpack.c.b16 %v1921, %v1919
  %v2688 = vpack.c.b16 %v1922, %v1920
  %v2689 = vpack.c.b16 %v1925, %v1923
  %v2690 = vpack.c.b16 %v1926, %v1924
  %v2691 = vpack.c.b16 %v1929, %v1927
  %v2692 = vpack.c.b16 %v1930, %v1928
  %v2693 = vpack.c.b16 %v1933, %v1931
  %v2694 = vpack.c.b16 %v1934, %v1932
  %v2695 = vpack.c.b16 %v1937, %v1935
  %v2696 = vpack.c.b16 %v1938, %v1936
  %v2697 = vpack.c.b16 %v1941, %v1939
  %v2698 = vpack.c.b16 %v1942, %v1940
  %v2699 = vpack.c.b16 %v1945, %v1943
  %v2700 = vpack.c.b16 %v1946, %v1944
  %v2701 = vpack.c.b16 %v1949, %v1947
  %v2702 = vpack.c.b16 %v1950, %v1948
  %v2703 = vpack.c.b16 %v1953, %v1951
  %v2704 = vpack.c.b16 %v1954, %v1952
  %v2705 = vpack.c.b16 %v1957, %v1955
  %v2706 = vpack.c.b16 %v1958, %v1956
  %v2707 = vpack.c.b16 %v1961, %v1959
  %v2708 = vpack.c.b16 %v1962, %v1960
  %v2709 = vpack.c.b16 %v1965, %v1963
  %v2710 = vpack.c.b16 %v1966, %v1964
  %v2711 = vpack.c.b16 %v1969, %v1967
  %v2712 = vpack.c.b16 %v1970, %v1968
  %v2713 = vpack.c.b16 %v1973, %v1971
  %v2714 = vpack.c.b16 %v1974, %v1972
  %v2715 = vpack.c.b16 %v1977, %v1975
  %v2716 = vpack.c.b16 %v1978, %v1976
  %v2717 = vpack.c.b16 %v1981, %v1979
  %v2718 = vpack.c.b16 %v1982, %v1980
  %v2719 = vpack.c.b16 %v1985, %v1983
  %v2720 = vpack.c.b16 %v1986, %v1984
  %v2721 = vpack.c.b16 %v1989, %v1987
  %v2722 = vpack.c.b16 %v1990, %v1988
  %v2723 = vpack.c.b16 %v1993, %v1991
  %v2724 = vpack.c.b16 %v1994, %v1992
  %v2725 = vpack.c.b16 %v1997, %v1995
  %v2726 = vpack.c.b16 %v1998, %v1996
  %v2727 = vpack.c.b16 %v2001, %v1999
  %v2728 = vpack.c.b16 %v2002, %v2000
  %v2729 = vpack.c.b16 %v2005, %v2003
  %v2730 = vpack.c.b16 %v2006, %v2004
  %v2731 = vpack.c.b16 %v2009, %v2007
  %v2732 = vpack.c.b16 %v2010, %v2008
  %v2733 = vpack.c.b16 %v2013, %v2011
  %v2734 = vpack.c.b16 %v2014, %v2012
  %v2735 = vpack.c.b16 %v2017, %v2015
  %v2736 = vpack.c.b16 %v2018, %v2016
  %v2737 = vpack.c.b16 %v2021, %v2019
  %v2738 = vpack.c.b16 %v2022, %v2020
  %v2739 = vpack.c.b16 %v2025, %v2023
  %v2740 = vpack.c.b16 %v2026, %v2024
  %v2741 = vpack.c.b16 %v2029, %v2027
  %v2742 = vpack.c.b16 %v2030, %v2028
  %v2743 = vpack.c.b16 %v2033, %v2031
  %v2744 = vpack.c.b16 %v2034, %v2032
  %v2745 = vpack.c.b16 %v2037, %v2035
  %v2746 = vpack.c.b16 %v2038, %v2036
  %v2747 = vpack.c.b16 %v2041, %v2039
  %v2748 = vpack.c.b16 %v2042, %v2040
  %v2749 = vpack.c.b16 %v2045, %v2043
  %v2750 = vpack.c.b16 %v2046, %v2044
  %v2751 = vpack.c.b16 %v2049, %v2047
  %v2752 = vpack.c.b16 %v2050, %v2048
  %v2753 = vpack.c.b16 %v2053, %v2051
  %v2754 = vpack.c.b16 %v2054, %v2052
  %v2755 = vpack.c.b16 %v2057, %v2055
  %v2756 = vpack.c.b16 %v2058, %v2056
  %v2757 = vpack.c.b16 %v2061, %v2059
  %v2758 = vpack.c.b16 %v2062, %v2060
  %v2759 = vpack.c.b16 %v2065, %v2063
  %v2760 = vpack.c.b16 %v2066, %v2064
  %v2761 = vpack.c.b16 %v2069, %v2067
  %v2762 = vpack.c.b16 %v2070, %v2068
  %v2763 = vpack.c.b16 %v2073, %v2071
  %v2764 = vpack.c.b16 %v2074, %v2072
  %v2765 = vpack.c.b16 %v2077, %v2075
  %v2766 = vpack.c.b16 %v2078, %v2076
  %v2767 = vpack.c.b16 %v2081, %v2079
  %v2768 = vpack.c.b16 %v2082, %v2080
  %v2769 = vpack.c.b16 %v2085, %v2083
  %v2770 = vpack.c.b16 %v2086, %v2084
  %v2771 = vpack.c.b16 %v2089, %v2087
  %v2772 = vpack.c.b16 %v2090, %v2088
  %v2773 = vpack.c.b16 %v2093, %v2091
  %v2774 = vpack.c.b16 %v2094, %v2092
  %v2775 = vpack.c.b16 %v2097, %v2095
  %v2776 = vpack.c.b16 %v2098, %v2096
  %v2777 = vpack.c.b16 %v2101, %v2099
  %v2778 = vpack.c.b16 %v2102, %v2100
  %v2779 = vpack.c.b16 %v2105, %v2103
  %v2780 = vpack.c.b16 %v2106, %v2104
  %v2781 = vpack.c.b16 %v2109, %v2107
  %v2782 = vpack.c.b16 %v2110, %v2108
  %v2783 = vpack.c.b16 %v2113, %v2111
  %v2784 = vpack.c.b16 %v2114, %v2112
  %v2785 = vpack.c.b16 %v2117, %v2115
  %v2786 = vpack.c.b16 %v2118, %v2116
  %v2787 = vpack.c.b16 %v2121, %v2119
  %v2788 = vpack.c.b16 %v2122, %v2120
  %v2789 = vpack.c.b16 %v2125, %v2123
  %v2790 = vpack.c.b16 %v2126, %v2124
  %v2791 = vpack.c.b16 %v2129, %v2127
  %v2792 = vpack.c.b16 %v2130, %v2128
  %v2793 = vpack.c.b16 %v2133, %v2131
  %v2794 = vpack.c.b16 %v2134, %v2132
  %v2795 = vpack.c.b16 %v2137, %v2135
  %v2796 = vpack.c.b16 %v2138, %v2136
  %v2797 = vpack.c.b16 %v2141, %v2139
  %v2798 = vpack.c.b16 %v2142, %v2140
  %v2799 = vpack.c.b16 %v2145, %v2143
  %v2800 = vpack.c.b16 %v2146, %v2144
  %v2801 = vpack.c.b16 %v2149, %v2147
  %v2802 = vpack.c.b16 %v2150, %v2148
  %v2803 = vpack.c.b16 %v2153, %v2151
  %v2804 = vpack.c.b16 %v2154, %v2152
  %v2805 = vpack.c.b16 %v2157, %v2155
  %v2806 = vpack.c.b16 %v2158, %v2156
  %v2807 = vpack.c.b16 %v2161, %v2159
  %v2808 = vpack.c.b16 %v2162, %v2160
  %v2809 = vpack.c.b16 %v2165, %v2163
  %v2810 = vpack.c.b16 %v2166, %v2164
  %v2811 = vpack.c.b16 %v2169, %v2167
  %v2812 = vpack.c.b16 %v2170, %v2168
  %v2813 = vpack.c.b16 %v2173, %v2171
  %v2814 = vpack.c.b16 %v2174, %v2172
  %v2815 = vpack.c.b16 %v2177, %v2175
  %v2816 = vpack.c.b16 %v2178, %v2176
  %v2817 = vpack.c.b16 %v2181, %v2179
  %v2818 = vpack.c.b16 %v2182, %v2180
  %v2819 = vpack.c.b16 %v2185, %v2183
  %v2820 = vpack.c.b16 %v2186, %v2184
  %v2821 = vpack.c.b16 %v2189, %v2187
  %v2822 = vpack.c.b16 %v2190, %v2188
  %v2823 = vpack.c.b16 %v2193, %v2191
  %v2824 = vpack.c.b16 %v2194, %v2192
  %v2825 = vpack.c.b16 %v2197, %v2195
  %v2826 = vpack.c.b16 %v2198, %v2196
  %v2827 = vpack.c.b16 %v2201, %v2199
  %v2828 = vpack.c.b16 %v2202, %v2200
  %v2829 = vpack.c.b16 %v2205, %v2203
  %v2830 = vpack.c.b16 %v2206, %v2204
  %v2831 = vpack.c.b16 %v2209, %v2207
  %v2832 = vpack.c.b16 %v2210, %v2208
  %v2833 = vpack.c.b16 %v2213, %v2211
  %v2834 = vpack.c.b16 %v2214, %v2212
  %v2835 = vpack.c.b16 %v2217, %v2215
  %v2836 = vpack.c.b16 %v2218, %v2216
  %v2837 = vpack.c.b16 %v2221, %v2219
  %v2838 = vpack.c.b16 %v2222, %v2220
  %v2839 = vpack.c.b16 %v2225, %v2223
  %v2840 = vpack.c.b16 %v2226, %v2224
  %v2841 = vpack.c.b16 %v2229, %v2227
  %v2842 = vpack.c.b16 %v2230, %v2228
  %v2843 = vpack.c.b16 %v2233, %v2231
  %v2844 = vpack.c.b16 %v2234, %v2232
  %v2845 = vpack.c.b16 %v2237, %v2235
  %v2846 = vpack.c.b16 %v2238, %v2236
  %v2847 = vpack.c.b16 %v2241, %v2239
  %v2848 = vpack.c.b16 %v2242, %v2240
  %v2849 = vpack.c.b16 %v2245, %v2243
  %v2850 = vpack.c.b16 %v2246, %v2244
  %v2851 = vpack.c.b16 %v2249, %v2247
  %v2852 = vpack.c.b16 %v2250, %v2248
  %v2853 = vpack.c.b16 %v2253, %v2251
  %v2854 = vpack.c.b16 %v2254, %v2252
  %v2855 = vpack.c.b16 %v2257, %v2255
  %v2856 = vpack.c.b16 %v2258, %v2256
  %v2857 = vpack.c.b16 %v2261, %v2259
  %v2858 = vpack.c.b16 %v2262, %v2260
  %v2859 = vpack.c.b16 %v2265, %v2263
  %v2860 = vpack.c.b16 %v2266, %v2264
  %v2861 = vpack.c.b16 %v2269, %v2267
  %v2862 = vpack.c.b16 %v2270, %v2268
  %v2863 = vpack.c.b16 %v2273, %v2271
  %v2864 = vpack.c.b16 %v2274, %v2272
  %v2865 = vpack.c.b16 %v2277, %v2275
  %v2866 = vpack.c.b16 %v2278, %v2276
  %v2867 = vpack.c.b16 %v2281, %v2279
  %v2868 = vpack.c.b16 %v2282, %v2280
  %v2869 = vpack.c.b16 %v2285, %v2283
  %v2870 = vpack.c.b16 %v2286, %v2284
  %v2871 = vpack.c.b16 %v2289, %v2287
  %v2872 = vpack.c.b16 %v2290, %v2288
  %v2873 = vpack.c.b16 %v2293, %v2291
  %v2874 = vpack.c.b16 %v2294, %v2292
  %v2875 = vpack.c.b16 %v2297, %v2295
  %v2876 = vpack.c.b16 %v2298, %v2296
  %v2877 = vpack.c.b16 %v2301, %v2299
  %v2878 = vpack.c.b16 %v2302, %v2300
  %v2879 = vpack.c.b16 %v2305, %v2303
  %v2880 = vpack.c.b16 %v2306, %v2304
  %v2881 = vpack.c.b16 %v2309, %v2307
  %v2882 = vpack.c.b16 %v2310, %v2308
  %v2883 = vpack.c.b16 %v2313, %v2311
  %v2884 = vpack.c.b16 %v2314, %v2312
  %v2885 = vpack.c.b16 %v2317, %v2315
  %v2886 = vpack.c.b16 %v2318, %v2316
  %v2887 = vpack.c.b16 %v2321, %v2319
  %v2888 = vpack.c.b16 %v2322, %v2320
  %v2889 = vpack.c.b16 %v2325, %v2323
  %v2890 = vpack.c.b16 %v2326, %v2324
  %v2891 = vpack.c.b16 %v2329, %v2327
  %v2892 = vpack.c.b16 %v2330, %v2328
  %v2893 = vpack.c.b16 %v2333, %v2331
  %v2894 = vpack.c.b16 %v2334, %v2332
  %v2895 = vpack.c.b16 %v2337, %v2335
  %v2896 = vpack.c.b16 %v2338, %v2336
  %v2897 = vpack.c.b16 %v2341, %v2339
  %v2898 = vpack.c.b16 %v2342, %v2340
  %v2899 = vpack.c.b16 %v2345, %v2343
  %v2900 = vpack.c.b16 %v2346, %v2344
  %v2901 = vpack.c.b16 %v2349, %v2347
  %v2902 = vpack.c.b16 %v2350, %v2348
  %v2903 = vpack.c.b16 %v2353, %v2351
  %v2904 = vpack.c.b16 %v2354, %v2352
  %v2905 = vpack.c.b16 %v2357, %v2355
  %v2906 = vpack.c.b16 %v2358, %v2356
  %v2907 = vpack.c.b16 %v2361, %v2359
  %v2908 = vpack.c.b16 %v2362, %v2360
  %v2909 = vpack.c.b16 %v2365, %v2363
  %v2910 = vpack.c.b16 %v2366, %v2364
  %v2911 = vpack.c.b16 %v2369, %v2367
  %v2912 = vpack.c.b16 %v2370, %v2368
  %v2913 = vpack.c.b16 %v2373, %v2371
  %v2914 = vpack.c.b16 %v2374, %v2372
  %v2915 = vpack.c.b16 %v2377, %v2375
  %v2916 = vpack.c.b16 %v2378, %v2376
  %v2917 = vpack.c.b16 %v2381, %v2379
  %v2918 = vpack.c.b16 %v2382, %v2380
  %v2919 = vpack.c.b16 %v2385, %v2383
  %v2920 = vpack.c.b16 %v2386, %v2384
  %v2921 = vpack.c.b16 %v2389, %v2387
  %v2922 = vpack.c.b16 %v2390, %v2388
  %v2923 = vpack.c.b16 %v2393, %v2391
  %v2924 = vpack.c.b16 %v2394, %v2392
  %v2925 = vpack.c.b16 %v2397, %v2395
  %v2926 = vpack.c.b16 %v2398, %v2396
  %v2927 = vpack.c.b16 %v2401, %v2399
  %v2928 = vpack.c.b16 %v2402, %v2400
  %v2929 = vpack.c.b16 %v2405, %v2403
  %v2930 = vpack.c.b16 %v2406, %v2404
  %v2931 = vpack.c.b16 %v2409, %v2407
  %v2932 = vpack.c.b16 %v2410, %v2408
  %v2933 = vpack.c.b16 %v2413, %v2411
  %v2934 = vpack.c.b16 %v2414, %v2412
  %v2935 = vpack.c.b16 %v2417, %v2415
  %v2936 = vpack.c.b16 %v2418, %v2416
  %v2937 = vpack.c.b16 %v2421, %v2419
  %v2938 = vpack.c.b16 %v2422, %v2420
  %v2939 = vpack.c.b16 %v2425, %v2423
  %v2940 = vpack.c.b16 %v2426, %v2424
  %v2941 = vpack.c.b16 %v2429, %v2427
  %v2942 = vpack.c.b16 %v2430, %v2428
  %v2943 = vpack.c.b16 %v2433, %v2431
  %v2944 = vpack.c.b16 %v2434, %v2432
  %v2945 = vpack.c.b16 %v2437, %v2435
  %v2946 = vpack.c.b16 %v2438, %v2436
  %v2947 = vpack.c.b16 %v2441, %v2439
  %v2948 = vpack.c.b16 %v2442, %v2440
  %v2949 = vpack.c.b16 %v2445, %v2443
  %v2950 = vpack.c.b16 %v2446, %v2444
  %v2951 = vpack.c.b16 %v2449, %v2447
  %v2952 = vpack.c.b16 %v2450, %v2448
  %v2953 = vpack.c.b16 %v2453, %v2451
  %v2954 = vpack.c.b16 %v2454, %v2452
  %v2955 = vpack.c.b16 %v2457, %v2455
  %v2956 = vpack.c.b16 %v2458, %v2456
  %v2957 = vpack.c.b16 %v2461, %v2459
  %v2958 = vpack.c.b16 %v2462, %v2460
  %v2959 = vpack.c.b16 %v2465, %v2463
  %v2960 = vpack.c.b16 %v2466, %v2464
  %v2961 = vpack.c.b16 %v2469, %v2467
  %v2962 = vpack.c.b16 %v2470, %v2468
  %v2963 = vpack.c.b16 %v2473, %v2471
  %v2964 = vpack.c.b16 %v2474, %v2472
  %v2965 = vpack.c.b16 %v2477, %v2475
  %v2966 = vpack.c.b16 %v2478, %v2476
  %v2967 = vpack.c.b16 %v2481, %v2479
  %v2968 = vpack.c.b16 %v2482, %v2480
  %v2969 = vpack.c.b16 %v2485, %v2483
  %v2970 = vpack.c.b16 %v2486, %v2484
  %v2971 = vpack.c.b16 %v2489, %v2487
  %v2972 = vpack.c.b16 %v2490, %v2488
  %v2973 = vpack.c.b16 %v2493, %v2491
  %v2974 = vpack.c.b16 %v2494, %v2492
  %v2975 = vpack.c.b16 %v2497, %v2495
  %v2976 = vpack.c.b16 %v2498, %v2496
  %v2977 = vpack.c.b16 %v2501, %v2499
  %v2978 = vpack.c.b16 %v2502, %v2500
  %v2979 = vpack.c.b16 %v2505, %v2503
  %v2980 = vpack.c.b16 %v2506, %v2504
  %v2981 = vpack.c.b16 %v2509, %v2507
  %v2982 = vpack.c.b16 %v2510, %v2508
  %v2983 = vpack.c.b16 %v2513, %v2511
  %v2984 = vpack.c.b16 %v2514, %v2512
  %v2985 = vpack.c.b16 %v2517, %v2515
  %v2986 = vpack.c.b16 %v2518, %v2516
  %v2987 = vpack.c.b16 %v2521, %v2519
  %v2988 = vpack.c.b16 %v2522, %v2520
  %v2989 = vpack.c.b16 %v2525, %v2523
  %v2990 = vpack.c.b16 %v2526, %v2524
  %v2991 = vpack.c.b16 %v2529, %v2527
  %v2992 = vpack.c.b16 %v2530, %v2528
  %v2993 = vpack.c.b16 %v2533, %v2531
  %v2994 = vpack.c.b16 %v2534, %v2532
  %v2995 = vpack.c.b16 %v2537, %v2535
  %v2996 = vpack.c.b16 %v2538, %v2536
  %v2997 = vpack.c.b16 %v2541, %v2539
  %v2998 = vpack.c.b16 %v2542, %v2540
  %v2999 = vpack.c.b16 %v2545, %v2543
  %v3000 = vpack.c.b16 %v2546, %v2544
  %v3001 = vpack.c.b16 %v2549, %v2547
  %v3002 = vpack.c.b16 %v2550, %v2548
  %v3003 = vpack.c.b16 %v2553, %v2551
  %v3004 = vpack.c.b16 %v2554, %v2552
  %v3005 = vpack.c.b16 %v2557, %v2555
  %v3006 = vpack.c.b16 %v2558, %v2556
  %v3007 = vpack.c.b16 %v2561, %v2559
  %v3008 = vpack.c.b16 %v2562, %v2560
  %v3009 = vpack.c.b16 %v2565, %v2563
  %v3010 = vpack.c.b16 %v2566, %v2564
  %v3011 = vpack.c.b16 %v2569, %v2567
  %v3012 = vpack.c.b16 %v2570, %v2568
  %v3013 = vpack.c.b16 %v2573, %v2571
  %v3014 = vpack.c.b16 %v2574, %v2572
  %v3015 = vpack.c.b16 %v2577, %v2575
  %v3016 = vpack.c.b16 %v2578, %v2576
  %v3017 = vpack.c.b16 %v2581, %v2579
  %v3018 = vpack.c.b16 %v2582, %v2580
  %v3019 = vpack.c.b16 %v2585, %v2583
  %v3020 = vpack.c.b16 %v2586, %v2584
  %v3021 = vpack.c.b16 %v2589, %v2587
  %v3022 = vpack.c.b16 %v2590, %v2588
  %v3023 = vpack.c.b16 %v2593, %v2591
  %v3024 = vpack.c.b16 %v2594, %v2592
  %v3025 = vpack.c.b16 %v2597, %v2595
  %v3026 = vpack.c.b16 %v2598, %v2596
  %v3027 = vpack.c.b16 %v2601, %v2599
  %v3028 = vpack.c.b16 %v2602, %v2600
  %v3029 = vpack.c.b16 %v2605, %v2603
  %v3030 = vpack.c.b16 %v2606, %v2604
  %v3031 = vpack.c.b16 %v2609, %v2607
  %v3032 = vpack.c.b16 %v2610, %v2608
  %v3033 = vpack.c.b16 %v2613, %v2611
  %v3034 = vpack.c.b16 %v2614, %v2612
  %v3035 = vpack.c.b16 %v2617, %v2615
  %v3036 = vpack.c.b16 %v2618, %v2616
  %v3037 = vpack.c.b16 %v2621, %v2619
  %v3038 = vpack.c.b16 %v2622, %v2620
  %v3039 = vpack.c.b16 %v2625, %v2623
  %v3040 = vpack.c.b16 %v2626, %v2624
  %v3041 = vpack.c.b16 %v2629, %v2627
  %v3042 = vpack.c.b16 %v2630, %v2628
  %v3043 = vpack.c.b16 %v2633, %v2631
  %v3044 = vpack.c.b16 %v2634, %v2632
  %v3045 = vpack.c.b16 %v2637, %v2635
  %v3046 = vpack.c.b16 %v2638, %v2636
  %v3047 = vpack.c.b16 %v2641, %v2639
  %v3048 = vpack.c.b16 %v2642, %v2640
  %v3049 = vpack.c.b16 %v2645, %v2643
  %v3050 = vpack.c.b16 %v2646, %v2644
  %v3051 = vpack.c.b16 %v2649, %v2647
  %v3052 = vpack.c.b16 %v2650, %v2648
  %v3053 = vpack.c.b16 %v2653, %v2651
  %v3054 = vpack.c.b16 %v2654, %v2652
  %3455 = vmatpush.bf16.msra.mxu0 %v2669
  %3456 = vmatpush.bf16.msra.mxu0 %v2667
  %3457 = vmatpush.bf16.msra.mxu0 %v2665
  %3458 = vmatpush.bf16.msra.mxu0 %v2663
  %3459 = vmatpush.bf16.msra.mxu0 %v2661
  %3460 = vmatpush.bf16.msra.mxu0 %v2659
  %3461 = vmatpush.bf16.msra.mxu0 %v2657
  %3462 = vmatpush.bf16.msra.mxu0 %v2655
  %3463 = vmatmul.bf16.gmra.mxu0 %v1355
  %v3464 = vpop.f32.mrf.mxu0
  %v3465 = vadd.f32 %v1199, %v3464
  %v3466 = vpop.f32.mrf.mxu0
  %v3467 = vadd.f32 %v1199, %v3466
  %3468 = vmatmul.bf16.gmra.mxu0 %v1380
  %v3469 = vpop.f32.mrf.mxu0
  %v3470 = vadd.f32 %v1199, %v3469
  %v3471 = vpop.f32.mrf.mxu0
  %v3472 = vadd.f32 %v1199, %v3471
  %3473 = vdwg.mxu0
  %3474 = vmatpush.bf16.msra.mxu0 %v2685
  %3475 = vmatpush.bf16.msra.mxu0 %v2683
  %3476 = vmatpush.bf16.msra.mxu0 %v2681
  %3477 = vmatpush.bf16.msra.mxu0 %v2679
  %3478 = vmatpush.bf16.msra.mxu0 %v2677
  %3479 = vmatpush.bf16.msra.mxu0 %v2675
  %3480 = vmatpush.bf16.msra.mxu0 %v2673
  %3481 = vmatpush.bf16.msra.mxu0 %v2671
  %3482 = vmatmul.bf16.gmra.mxu0 %v1356
  %v3483 = vpop.f32.mrf.mxu0
  %v3484 = vadd.f32 %v3465, %v3483
  %v3485 = vpop.f32.mrf.mxu0
  %v3486 = vadd.f32 %v3467, %v3485
  %3487 = vmatmul.bf16.gmra.mxu0 %v1381
  %v3488 = vpop.f32.mrf.mxu0
  %v3489 = vadd.f32 %v3470, %v3488
  %v3490 = vpop.f32.mrf.mxu0
  %v3491 = vadd.f32 %v3472, %v3490
  %3492 = vdwg.mxu0
  %3493 = vmatpush.bf16.msra.mxu0 %v2701
  %3494 = vmatpush.bf16.msra.mxu0 %v2699
  %3495 = vmatpush.bf16.msra.mxu0 %v2697
  %3496 = vmatpush.bf16.msra.mxu0 %v2695
  %3497 = vmatpush.bf16.msra.mxu0 %v2693
  %3498 = vmatpush.bf16.msra.mxu0 %v2691
  %3499 = vmatpush.bf16.msra.mxu0 %v2689
  %3500 = vmatpush.bf16.msra.mxu0 %v2687
  %3501 = vmatmul.bf16.gmra.mxu0 %v1357
  %v3502 = vpop.f32.mrf.mxu0
  %v3503 = vadd.f32 %v3484, %v3502
  %v3504 = vpop.f32.mrf.mxu0
  %v3505 = vadd.f32 %v3486, %v3504
  %3506 = vmatmul.bf16.gmra.mxu0 %v1382
  %v3507 = vpop.f32.mrf.mxu0
  %v3508 = vadd.f32 %v3489, %v3507
  %v3509 = vpop.f32.mrf.mxu0
  %v3510 = vadd.f32 %v3491, %v3509
  %3511 = vdwg.mxu0
  %3512 = vmatpush.bf16.msra.mxu0 %v2717
  %3513 = vmatpush.bf16.msra.mxu0 %v2715
  %3514 = vmatpush.bf16.msra.mxu0 %v2713
  %3515 = vmatpush.bf16.msra.mxu0 %v2711
  %3516 = vmatpush.bf16.msra.mxu0 %v2709
  %3517 = vmatpush.bf16.msra.mxu0 %v2707
  %3518 = vmatpush.bf16.msra.mxu0 %v2705
  %3519 = vmatpush.bf16.msra.mxu0 %v2703
  %3520 = vmatmul.bf16.gmra.mxu0 %v1358
  %v3521 = vpop.f32.mrf.mxu0
  %v3522 = vadd.f32 %v3503, %v3521
  %v3523 = vpop.f32.mrf.mxu0
  %v3524 = vadd.f32 %v3505, %v3523
  %3525 = vmatmul.bf16.gmra.mxu0 %v1383
  %v3526 = vpop.f32.mrf.mxu0
  %v3527 = vadd.f32 %v3508, %v3526
  %v3528 = vpop.f32.mrf.mxu0
  %v3529 = vadd.f32 %v3510, %v3528
  %3530 = vdwg.mxu0
  %3531 = vmatpush.bf16.msra.mxu0 %v2733
  %3532 = vmatpush.bf16.msra.mxu0 %v2731
  %3533 = vmatpush.bf16.msra.mxu0 %v2729
  %3534 = vmatpush.bf16.msra.mxu0 %v2727
  %3535 = vmatpush.bf16.msra.mxu0 %v2725
  %3536 = vmatpush.bf16.msra.mxu0 %v2723
  %3537 = vmatpush.bf16.msra.mxu0 %v2721
  %3538 = vmatpush.bf16.msra.mxu0 %v2719
  %3539 = vmatmul.bf16.gmra.mxu0 %v1359
  %v3540 = vpop.f32.mrf.mxu0
  %v3541 = vadd.f32 %v3522, %v3540
  %v3542 = vpop.f32.mrf.mxu0
  %v3543 = vadd.f32 %v3524, %v3542
  %3544 = vmatmul.bf16.gmra.mxu0 %v1384
  %v3545 = vpop.f32.mrf.mxu0
  %v3546 = vadd.f32 %v3527, %v3545
  %v3547 = vpop.f32.mrf.mxu0
  %v3548 = vadd.f32 %v3529, %v3547
  %3549 = vdwg.mxu0
  %3550 = vmatpush.bf16.msra.mxu0 %v2749
  %3551 = vmatpush.bf16.msra.mxu0 %v2747
  %3552 = vmatpush.bf16.msra.mxu0 %v2745
  %3553 = vmatpush.bf16.msra.mxu0 %v2743
  %3554 = vmatpush.bf16.msra.mxu0 %v2741
  %3555 = vmatpush.bf16.msra.mxu0 %v2739
  %3556 = vmatpush.bf16.msra.mxu0 %v2737
  %3557 = vmatpush.bf16.msra.mxu0 %v2735
  %3558 = vmatmul.bf16.gmra.mxu0 %v1360
  %v3559 = vpop.f32.mrf.mxu0
  %v3560 = vadd.f32 %v3541, %v3559
  %v3561 = vpop.f32.mrf.mxu0
  %v3562 = vadd.f32 %v3543, %v3561
  %3563 = vmatmul.bf16.gmra.mxu0 %v1385
  %v3564 = vpop.f32.mrf.mxu0
  %v3565 = vadd.f32 %v3546, %v3564
  %v3566 = vpop.f32.mrf.mxu0
  %v3567 = vadd.f32 %v3548, %v3566
  %3568 = vdwg.mxu0
  %3569 = vmatpush.bf16.msra.mxu0 %v2765
  %3570 = vmatpush.bf16.msra.mxu0 %v2763
  %3571 = vmatpush.bf16.msra.mxu0 %v2761
  %3572 = vmatpush.bf16.msra.mxu0 %v2759
  %3573 = vmatpush.bf16.msra.mxu0 %v2757
  %3574 = vmatpush.bf16.msra.mxu0 %v2755
  %3575 = vmatpush.bf16.msra.mxu0 %v2753
  %3576 = vmatpush.bf16.msra.mxu0 %v2751
  %3577 = vmatmul.bf16.gmra.mxu0 %v1361
  %v3578 = vpop.f32.mrf.mxu0
  %v3579 = vadd.f32 %v3560, %v3578
  %v3580 = vpop.f32.mrf.mxu0
  %v3581 = vadd.f32 %v3562, %v3580
  %3582 = vmatmul.bf16.gmra.mxu0 %v1386
  %v3583 = vpop.f32.mrf.mxu0
  %v3584 = vadd.f32 %v3565, %v3583
  %v3585 = vpop.f32.mrf.mxu0
  %v3586 = vadd.f32 %v3567, %v3585
  %3587 = vdwg.mxu0
  %3588 = vmatpush.bf16.msra.mxu0 %v2781
  %3589 = vmatpush.bf16.msra.mxu0 %v2779
  %3590 = vmatpush.bf16.msra.mxu0 %v2777
  %3591 = vmatpush.bf16.msra.mxu0 %v2775
  %3592 = vmatpush.bf16.msra.mxu0 %v2773
  %3593 = vmatpush.bf16.msra.mxu0 %v2771
  %3594 = vmatpush.bf16.msra.mxu0 %v2769
  %3595 = vmatpush.bf16.msra.mxu0 %v2767
  %3596 = vmatmul.bf16.gmra.mxu0 %v1362
  %v3597 = vpop.f32.mrf.mxu0
  %v3598 = vadd.f32 %v3579, %v3597
  %v3599 = vpop.f32.mrf.mxu0
  %v3600 = vadd.f32 %v3581, %v3599
  %3601 = vmatmul.bf16.gmra.mxu0 %v1387
  %v3602 = vpop.f32.mrf.mxu0
  %v3603 = vadd.f32 %v3584, %v3602
  %v3604 = vpop.f32.mrf.mxu0
  %v3605 = vadd.f32 %v3586, %v3604
  %3606 = vdwg.mxu0
  %3607 = vmatpush.bf16.msra.mxu0 %v2797
  %3608 = vmatpush.bf16.msra.mxu0 %v2795
  %3609 = vmatpush.bf16.msra.mxu0 %v2793
  %3610 = vmatpush.bf16.msra.mxu0 %v2791
  %3611 = vmatpush.bf16.msra.mxu0 %v2789
  %3612 = vmatpush.bf16.msra.mxu0 %v2787
  %3613 = vmatpush.bf16.msra.mxu0 %v2785
  %3614 = vmatpush.bf16.msra.mxu0 %v2783
  %3615 = vmatmul.bf16.gmra.mxu0 %v1363
  %v3616 = vpop.f32.mrf.mxu0
  %v3617 = vadd.f32 %v3598, %v3616
  %v3618 = vpop.f32.mrf.mxu0
  %v3619 = vadd.f32 %v3600, %v3618
  %3620 = vmatmul.bf16.gmra.mxu0 %v1388
  %v3621 = vpop.f32.mrf.mxu0
  %v3622 = vadd.f32 %v3603, %v3621
  %v3623 = vpop.f32.mrf.mxu0
  %v3624 = vadd.f32 %v3605, %v3623
  %3625 = vdwg.mxu0
  %3626 = vmatpush.bf16.msra.mxu0 %v2813
  %3627 = vmatpush.bf16.msra.mxu0 %v2811
  %3628 = vmatpush.bf16.msra.mxu0 %v2809
  %3629 = vmatpush.bf16.msra.mxu0 %v2807
  %3630 = vmatpush.bf16.msra.mxu0 %v2805
  %3631 = vmatpush.bf16.msra.mxu0 %v2803
  %3632 = vmatpush.bf16.msra.mxu0 %v2801
  %3633 = vmatpush.bf16.msra.mxu0 %v2799
  %3634 = vmatmul.bf16.gmra.mxu0 %v1364
  %v3635 = vpop.f32.mrf.mxu0
  %v3636 = vadd.f32 %v3617, %v3635
  %v3637 = vpop.f32.mrf.mxu0
  %v3638 = vadd.f32 %v3619, %v3637
  %3639 = vmatmul.bf16.gmra.mxu0 %v1389
  %v3640 = vpop.f32.mrf.mxu0
  %v3641 = vadd.f32 %v3622, %v3640
  %v3642 = vpop.f32.mrf.mxu0
  %v3643 = vadd.f32 %v3624, %v3642
  %3644 = vdwg.mxu0
  %3645 = vmatpush.bf16.msra.mxu0 %v2829
  %3646 = vmatpush.bf16.msra.mxu0 %v2827
  %3647 = vmatpush.bf16.msra.mxu0 %v2825
  %3648 = vmatpush.bf16.msra.mxu0 %v2823
  %3649 = vmatpush.bf16.msra.mxu0 %v2821
  %3650 = vmatpush.bf16.msra.mxu0 %v2819
  %3651 = vmatpush.bf16.msra.mxu0 %v2817
  %3652 = vmatpush.bf16.msra.mxu0 %v2815
  %3653 = vmatmul.bf16.gmra.mxu0 %v1365
  %v3654 = vpop.f32.mrf.mxu0
  %v3655 = vadd.f32 %v3636, %v3654
  %v3656 = vpop.f32.mrf.mxu0
  %v3657 = vadd.f32 %v3638, %v3656
  %3658 = vmatmul.bf16.gmra.mxu0 %v1390
  %v3659 = vpop.f32.mrf.mxu0
  %v3660 = vadd.f32 %v3641, %v3659
  %v3661 = vpop.f32.mrf.mxu0
  %v3662 = vadd.f32 %v3643, %v3661
  %3663 = vdwg.mxu0
  %3664 = vmatpush.bf16.msra.mxu0 %v2845
  %3665 = vmatpush.bf16.msra.mxu0 %v2843
  %3666 = vmatpush.bf16.msra.mxu0 %v2841
  %3667 = vmatpush.bf16.msra.mxu0 %v2839
  %3668 = vmatpush.bf16.msra.mxu0 %v2837
  %3669 = vmatpush.bf16.msra.mxu0 %v2835
  %3670 = vmatpush.bf16.msra.mxu0 %v2833
  %3671 = vmatpush.bf16.msra.mxu0 %v2831
  %3672 = vmatmul.bf16.gmra.mxu0 %v1366
  %v3673 = vpop.f32.mrf.mxu0
  %v3674 = vadd.f32 %v3655, %v3673
  %v3675 = vpop.f32.mrf.mxu0
  %v3676 = vadd.f32 %v3657, %v3675
  %3677 = vmatmul.bf16.gmra.mxu0 %v1391
  %v3678 = vpop.f32.mrf.mxu0
  %v3679 = vadd.f32 %v3660, %v3678
  %v3680 = vpop.f32.mrf.mxu0
  %v3681 = vadd.f32 %v3662, %v3680
  %3682 = vdwg.mxu0
  %3683 = vmatpush.bf16.msra.mxu0 %v2861
  %3684 = vmatpush.bf16.msra.mxu0 %v2859
  %3685 = vmatpush.bf16.msra.mxu0 %v2857
  %3686 = vmatpush.bf16.msra.mxu0 %v2855
  %3687 = vmatpush.bf16.msra.mxu0 %v2853
  %3688 = vmatpush.bf16.msra.mxu0 %v2851
  %3689 = vmatpush.bf16.msra.mxu0 %v2849
  %3690 = vmatpush.bf16.msra.mxu0 %v2847
  %3691 = vmatmul.bf16.gmra.mxu0 %v1367
  %v3692 = vpop.f32.mrf.mxu0
  %v3693 = vadd.f32 %v3674, %v3692
  %v3694 = vpop.f32.mrf.mxu0
  %v3695 = vadd.f32 %v3676, %v3694
  %3696 = vmatmul.bf16.gmra.mxu0 %v1392
  %v3697 = vpop.f32.mrf.mxu0
  %v3698 = vadd.f32 %v3679, %v3697
  %v3699 = vpop.f32.mrf.mxu0
  %v3700 = vadd.f32 %v3681, %v3699
  %3701 = vdwg.mxu0
  %3702 = vmatpush.bf16.msra.mxu0 %v2877
  %3703 = vmatpush.bf16.msra.mxu0 %v2875
  %3704 = vmatpush.bf16.msra.mxu0 %v2873
  %3705 = vmatpush.bf16.msra.mxu0 %v2871
  %3706 = vmatpush.bf16.msra.mxu0 %v2869
  %3707 = vmatpush.bf16.msra.mxu0 %v2867
  %3708 = vmatpush.bf16.msra.mxu0 %v2865
  %3709 = vmatpush.bf16.msra.mxu0 %v2863
  %3710 = vmatmul.bf16.gmra.mxu0 %v1368
  %v3711 = vpop.f32.mrf.mxu0
  %v3712 = vadd.f32 %v3693, %v3711
  %v3713 = vpop.f32.mrf.mxu0
  %v3714 = vadd.f32 %v3695, %v3713
  %3715 = vmatmul.bf16.gmra.mxu0 %v1393
  %v3716 = vpop.f32.mrf.mxu0
  %v3717 = vadd.f32 %v3698, %v3716
  %v3718 = vpop.f32.mrf.mxu0
  %v3719 = vadd.f32 %v3700, %v3718
  %3720 = vdwg.mxu0
  %3721 = vmatpush.bf16.msra.mxu0 %v2893
  %3722 = vmatpush.bf16.msra.mxu0 %v2891
  %3723 = vmatpush.bf16.msra.mxu0 %v2889
  %3724 = vmatpush.bf16.msra.mxu0 %v2887
  %3725 = vmatpush.bf16.msra.mxu0 %v2885
  %3726 = vmatpush.bf16.msra.mxu0 %v2883
  %3727 = vmatpush.bf16.msra.mxu0 %v2881
  %3728 = vmatpush.bf16.msra.mxu0 %v2879
  %3729 = vmatmul.bf16.gmra.mxu0 %v1369
  %v3730 = vpop.f32.mrf.mxu0
  %v3731 = vadd.f32 %v3712, %v3730
  %v3732 = vpop.f32.mrf.mxu0
  %v3733 = vadd.f32 %v3714, %v3732
  %3734 = vmatmul.bf16.gmra.mxu0 %v1394
  %v3735 = vpop.f32.mrf.mxu0
  %v3736 = vadd.f32 %v3717, %v3735
  %v3737 = vpop.f32.mrf.mxu0
  %v3738 = vadd.f32 %v3719, %v3737
  %3739 = vdwg.mxu0
  %3740 = vmatpush.bf16.msra.mxu0 %v2909
  %3741 = vmatpush.bf16.msra.mxu0 %v2907
  %3742 = vmatpush.bf16.msra.mxu0 %v2905
  %3743 = vmatpush.bf16.msra.mxu0 %v2903
  %3744 = vmatpush.bf16.msra.mxu0 %v2901
  %3745 = vmatpush.bf16.msra.mxu0 %v2899
  %3746 = vmatpush.bf16.msra.mxu0 %v2897
  %3747 = vmatpush.bf16.msra.mxu0 %v2895
  %3748 = vmatmul.bf16.gmra.mxu0 %v1370
  %v3749 = vpop.f32.mrf.mxu0
  %v3750 = vadd.f32 %v3731, %v3749
  %v3751 = vpop.f32.mrf.mxu0
  %v3752 = vadd.f32 %v3733, %v3751
  %3753 = vmatmul.bf16.gmra.mxu0 %v1395
  %v3754 = vpop.f32.mrf.mxu0
  %v3755 = vadd.f32 %v3736, %v3754
  %v3756 = vpop.f32.mrf.mxu0
  %v3757 = vadd.f32 %v3738, %v3756
  %3758 = vdwg.mxu0
  %3759 = vmatpush.bf16.msra.mxu0 %v2925
  %3760 = vmatpush.bf16.msra.mxu0 %v2923
  %3761 = vmatpush.bf16.msra.mxu0 %v2921
  %3762 = vmatpush.bf16.msra.mxu0 %v2919
  %3763 = vmatpush.bf16.msra.mxu0 %v2917
  %3764 = vmatpush.bf16.msra.mxu0 %v2915
  %3765 = vmatpush.bf16.msra.mxu0 %v2913
  %3766 = vmatpush.bf16.msra.mxu0 %v2911
  %3767 = vmatmul.bf16.gmra.mxu0 %v1371
  %v3768 = vpop.f32.mrf.mxu0
  %v3769 = vadd.f32 %v3750, %v3768
  %v3770 = vpop.f32.mrf.mxu0
  %v3771 = vadd.f32 %v3752, %v3770
  %3772 = vmatmul.bf16.gmra.mxu0 %v1396
  %v3773 = vpop.f32.mrf.mxu0
  %v3774 = vadd.f32 %v3755, %v3773
  %v3775 = vpop.f32.mrf.mxu0
  %v3776 = vadd.f32 %v3757, %v3775
  %3777 = vdwg.mxu0
  %3778 = vmatpush.bf16.msra.mxu0 %v2941
  %3779 = vmatpush.bf16.msra.mxu0 %v2939
  %3780 = vmatpush.bf16.msra.mxu0 %v2937
  %3781 = vmatpush.bf16.msra.mxu0 %v2935
  %3782 = vmatpush.bf16.msra.mxu0 %v2933
  %3783 = vmatpush.bf16.msra.mxu0 %v2931
  %3784 = vmatpush.bf16.msra.mxu0 %v2929
  %3785 = vmatpush.bf16.msra.mxu0 %v2927
  %3786 = vmatmul.bf16.gmra.mxu0 %v1372
  %v3787 = vpop.f32.mrf.mxu0
  %v3788 = vadd.f32 %v3769, %v3787
  %v3789 = vpop.f32.mrf.mxu0
  %v3790 = vadd.f32 %v3771, %v3789
  %3791 = vmatmul.bf16.gmra.mxu0 %v1397
  %v3792 = vpop.f32.mrf.mxu0
  %v3793 = vadd.f32 %v3774, %v3792
  %v3794 = vpop.f32.mrf.mxu0
  %v3795 = vadd.f32 %v3776, %v3794
  %3796 = vdwg.mxu0
  %3797 = vmatpush.bf16.msra.mxu0 %v2957
  %3798 = vmatpush.bf16.msra.mxu0 %v2955
  %3799 = vmatpush.bf16.msra.mxu0 %v2953
  %3800 = vmatpush.bf16.msra.mxu0 %v2951
  %3801 = vmatpush.bf16.msra.mxu0 %v2949
  %3802 = vmatpush.bf16.msra.mxu0 %v2947
  %3803 = vmatpush.bf16.msra.mxu0 %v2945
  %3804 = vmatpush.bf16.msra.mxu0 %v2943
  %3805 = vmatmul.bf16.gmra.mxu0 %v1373
  %v3806 = vpop.f32.mrf.mxu0
  %v3807 = vadd.f32 %v3788, %v3806
  %v3808 = vpop.f32.mrf.mxu0
  %v3809 = vadd.f32 %v3790, %v3808
  %3810 = vmatmul.bf16.gmra.mxu0 %v1398
  %v3811 = vpop.f32.mrf.mxu0
  %v3812 = vadd.f32 %v3793, %v3811
  %v3813 = vpop.f32.mrf.mxu0
  %v3814 = vadd.f32 %v3795, %v3813
  %3815 = vdwg.mxu0
  %3816 = vmatpush.bf16.msra.mxu0 %v2973
  %3817 = vmatpush.bf16.msra.mxu0 %v2971
  %3818 = vmatpush.bf16.msra.mxu0 %v2969
  %3819 = vmatpush.bf16.msra.mxu0 %v2967
  %3820 = vmatpush.bf16.msra.mxu0 %v2965
  %3821 = vmatpush.bf16.msra.mxu0 %v2963
  %3822 = vmatpush.bf16.msra.mxu0 %v2961
  %3823 = vmatpush.bf16.msra.mxu0 %v2959
  %3824 = vmatmul.bf16.gmra.mxu0 %v1374
  %v3825 = vpop.f32.mrf.mxu0
  %v3826 = vadd.f32 %v3807, %v3825
  %v3827 = vpop.f32.mrf.mxu0
  %v3828 = vadd.f32 %v3809, %v3827
  %3829 = vmatmul.bf16.gmra.mxu0 %v1399
  %v3830 = vpop.f32.mrf.mxu0
  %v3831 = vadd.f32 %v3812, %v3830
  %v3832 = vpop.f32.mrf.mxu0
  %v3833 = vadd.f32 %v3814, %v3832
  %3834 = vdwg.mxu0
  %3835 = vmatpush.bf16.msra.mxu0 %v2989
  %3836 = vmatpush.bf16.msra.mxu0 %v2987
  %3837 = vmatpush.bf16.msra.mxu0 %v2985
  %3838 = vmatpush.bf16.msra.mxu0 %v2983
  %3839 = vmatpush.bf16.msra.mxu0 %v2981
  %3840 = vmatpush.bf16.msra.mxu0 %v2979
  %3841 = vmatpush.bf16.msra.mxu0 %v2977
  %3842 = vmatpush.bf16.msra.mxu0 %v2975
  %3843 = vmatmul.bf16.gmra.mxu0 %v1375
  %v3844 = vpop.f32.mrf.mxu0
  %v3845 = vadd.f32 %v3826, %v3844
  %v3846 = vpop.f32.mrf.mxu0
  %v3847 = vadd.f32 %v3828, %v3846
  %3848 = vmatmul.bf16.gmra.mxu0 %v1400
  %v3849 = vpop.f32.mrf.mxu0
  %v3850 = vadd.f32 %v3831, %v3849
  %v3851 = vpop.f32.mrf.mxu0
  %v3852 = vadd.f32 %v3833, %v3851
  %3853 = vdwg.mxu0
  %3854 = vmatpush.bf16.msra.mxu0 %v3005
  %3855 = vmatpush.bf16.msra.mxu0 %v3003
  %3856 = vmatpush.bf16.msra.mxu0 %v3001
  %3857 = vmatpush.bf16.msra.mxu0 %v2999
  %3858 = vmatpush.bf16.msra.mxu0 %v2997
  %3859 = vmatpush.bf16.msra.mxu0 %v2995
  %3860 = vmatpush.bf16.msra.mxu0 %v2993
  %3861 = vmatpush.bf16.msra.mxu0 %v2991
  %3862 = vmatmul.bf16.gmra.mxu0 %v1376
  %v3863 = vpop.f32.mrf.mxu0
  %v3864 = vadd.f32 %v3845, %v3863
  %v3865 = vpop.f32.mrf.mxu0
  %v3866 = vadd.f32 %v3847, %v3865
  %3867 = vmatmul.bf16.gmra.mxu0 %v1401
  %v3868 = vpop.f32.mrf.mxu0
  %v3869 = vadd.f32 %v3850, %v3868
  %v3870 = vpop.f32.mrf.mxu0
  %v3871 = vadd.f32 %v3852, %v3870
  %3872 = vdwg.mxu0
  %3873 = vmatpush.bf16.msra.mxu0 %v3021
  %3874 = vmatpush.bf16.msra.mxu0 %v3019
  %3875 = vmatpush.bf16.msra.mxu0 %v3017
  %3876 = vmatpush.bf16.msra.mxu0 %v3015
  %3877 = vmatpush.bf16.msra.mxu0 %v3013
  %3878 = vmatpush.bf16.msra.mxu0 %v3011
  %3879 = vmatpush.bf16.msra.mxu0 %v3009
  %3880 = vmatpush.bf16.msra.mxu0 %v3007
  %3881 = vmatmul.bf16.gmra.mxu0 %v1377
  %v3882 = vpop.f32.mrf.mxu0
  %v3883 = vadd.f32 %v3864, %v3882
  %v3884 = vpop.f32.mrf.mxu0
  %v3885 = vadd.f32 %v3866, %v3884
  %3886 = vmatmul.bf16.gmra.mxu0 %v1402
  %v3887 = vpop.f32.mrf.mxu0
  %v3888 = vadd.f32 %v3869, %v3887
  %v3889 = vpop.f32.mrf.mxu0
  %v3890 = vadd.f32 %v3871, %v3889
  %3891 = vdwg.mxu0
  %3892 = vmatpush.bf16.msra.mxu0 %v3037
  %3893 = vmatpush.bf16.msra.mxu0 %v3035
  %3894 = vmatpush.bf16.msra.mxu0 %v3033
  %3895 = vmatpush.bf16.msra.mxu0 %v3031
  %3896 = vmatpush.bf16.msra.mxu0 %v3029
  %3897 = vmatpush.bf16.msra.mxu0 %v3027
  %3898 = vmatpush.bf16.msra.mxu0 %v3025
  %3899 = vmatpush.bf16.msra.mxu0 %v3023
  %3900 = vmatmul.bf16.gmra.mxu0 %v1378
  %v3901 = vpop.f32.mrf.mxu0
  %v3902 = vadd.f32 %v3883, %v3901
  %v3903 = vpop.f32.mrf.mxu0
  %v3904 = vadd.f32 %v3885, %v3903
  %3905 = vmatmul.bf16.gmra.mxu0 %v1403
  %v3906 = vpop.f32.mrf.mxu0
  %v3907 = vadd.f32 %v3888, %v3906
  %v3908 = vpop.f32.mrf.mxu0
  %v3909 = vadd.f32 %v3890, %v3908
  %3910 = vdwg.mxu0
  %3911 = vmatpush.bf16.msra.mxu0 %v3053
  %3912 = vmatpush.bf16.msra.mxu0 %v3051
  %3913 = vmatpush.bf16.msra.mxu0 %v3049
  %3914 = vmatpush.bf16.msra.mxu0 %v3047
  %3915 = vmatpush.bf16.msra.mxu0 %v3045
  %3916 = vmatpush.bf16.msra.mxu0 %v3043
  %3917 = vmatpush.bf16.msra.mxu0 %v3041
  %3918 = vmatpush.bf16.msra.mxu0 %v3039
  %3919 = vmatmul.bf16.gmra.mxu0 %v1379
  %v3920 = vpop.f32.mrf.mxu0
  %v3921 = vadd.f32 %v3902, %v3920
  %v3922 = vpop.f32.mrf.mxu0
  %v3923 = vadd.f32 %v3904, %v3922
  %3924 = vmatmul.bf16.gmra.mxu0 %v1404
  %v3925 = vpop.f32.mrf.mxu0
  %v3926 = vadd.f32 %v3907, %v3925
  %v3927 = vpop.f32.mrf.mxu0
  %v3928 = vadd.f32 %v3909, %v3927
  %3929 = vdwg.mxu0
  %3930 = vmatpush.bf16.msra.mxu0 %v2670
  %3931 = vmatpush.bf16.msra.mxu0 %v2668
  %3932 = vmatpush.bf16.msra.mxu0 %v2666
  %3933 = vmatpush.bf16.msra.mxu0 %v2664
  %3934 = vmatpush.bf16.msra.mxu0 %v2662
  %3935 = vmatpush.bf16.msra.mxu0 %v2660
  %3936 = vmatpush.bf16.msra.mxu0 %v2658
  %3937 = vmatpush.bf16.msra.mxu0 %v2656
  %3938 = vmatmul.bf16.gmra.mxu0 %v1355
  %v3939 = vpop.f32.mrf.mxu0
  %v3940 = vadd.f32 %v1200, %v3939
  %v3941 = vpop.f32.mrf.mxu0
  %v3942 = vadd.f32 %v1200, %v3941
  %3943 = vmatmul.bf16.gmra.mxu0 %v1380
  %v3944 = vpop.f32.mrf.mxu0
  %v3945 = vadd.f32 %v1200, %v3944
  %v3946 = vpop.f32.mrf.mxu0
  %v3947 = vadd.f32 %v1200, %v3946
  %3948 = vdwg.mxu0
  %3949 = vmatpush.bf16.msra.mxu0 %v2686
  %3950 = vmatpush.bf16.msra.mxu0 %v2684
  %3951 = vmatpush.bf16.msra.mxu0 %v2682
  %3952 = vmatpush.bf16.msra.mxu0 %v2680
  %3953 = vmatpush.bf16.msra.mxu0 %v2678
  %3954 = vmatpush.bf16.msra.mxu0 %v2676
  %3955 = vmatpush.bf16.msra.mxu0 %v2674
  %3956 = vmatpush.bf16.msra.mxu0 %v2672
  %3957 = vmatmul.bf16.gmra.mxu0 %v1356
  %v3958 = vpop.f32.mrf.mxu0
  %v3959 = vadd.f32 %v3940, %v3958
  %v3960 = vpop.f32.mrf.mxu0
  %v3961 = vadd.f32 %v3942, %v3960
  %3962 = vmatmul.bf16.gmra.mxu0 %v1381
  %v3963 = vpop.f32.mrf.mxu0
  %v3964 = vadd.f32 %v3945, %v3963
  %v3965 = vpop.f32.mrf.mxu0
  %v3966 = vadd.f32 %v3947, %v3965
  %3967 = vdwg.mxu0
  %3968 = vmatpush.bf16.msra.mxu0 %v2702
  %3969 = vmatpush.bf16.msra.mxu0 %v2700
  %3970 = vmatpush.bf16.msra.mxu0 %v2698
  %3971 = vmatpush.bf16.msra.mxu0 %v2696
  %3972 = vmatpush.bf16.msra.mxu0 %v2694
  %3973 = vmatpush.bf16.msra.mxu0 %v2692
  %3974 = vmatpush.bf16.msra.mxu0 %v2690
  %3975 = vmatpush.bf16.msra.mxu0 %v2688
  %3976 = vmatmul.bf16.gmra.mxu0 %v1357
  %v3977 = vpop.f32.mrf.mxu0
  %v3978 = vadd.f32 %v3959, %v3977
  %v3979 = vpop.f32.mrf.mxu0
  %v3980 = vadd.f32 %v3961, %v3979
  %3981 = vmatmul.bf16.gmra.mxu0 %v1382
  %v3982 = vpop.f32.mrf.mxu0
  %v3983 = vadd.f32 %v3964, %v3982
  %v3984 = vpop.f32.mrf.mxu0
  %v3985 = vadd.f32 %v3966, %v3984
  %3986 = vdwg.mxu0
  %3987 = vmatpush.bf16.msra.mxu0 %v2718
  %3988 = vmatpush.bf16.msra.mxu0 %v2716
  %3989 = vmatpush.bf16.msra.mxu0 %v2714
  %3990 = vmatpush.bf16.msra.mxu0 %v2712
  %3991 = vmatpush.bf16.msra.mxu0 %v2710
  %3992 = vmatpush.bf16.msra.mxu0 %v2708
  %3993 = vmatpush.bf16.msra.mxu0 %v2706
  %3994 = vmatpush.bf16.msra.mxu0 %v2704
  %3995 = vmatmul.bf16.gmra.mxu0 %v1358
  %v3996 = vpop.f32.mrf.mxu0
  %v3997 = vadd.f32 %v3978, %v3996
  %v3998 = vpop.f32.mrf.mxu0
  %v3999 = vadd.f32 %v3980, %v3998
  %4000 = vmatmul.bf16.gmra.mxu0 %v1383
  %v4001 = vpop.f32.mrf.mxu0
  %v4002 = vadd.f32 %v3983, %v4001
  %v4003 = vpop.f32.mrf.mxu0
  %v4004 = vadd.f32 %v3985, %v4003
  %4005 = vdwg.mxu0
  %4006 = vmatpush.bf16.msra.mxu0 %v2734
  %4007 = vmatpush.bf16.msra.mxu0 %v2732
  %4008 = vmatpush.bf16.msra.mxu0 %v2730
  %4009 = vmatpush.bf16.msra.mxu0 %v2728
  %4010 = vmatpush.bf16.msra.mxu0 %v2726
  %4011 = vmatpush.bf16.msra.mxu0 %v2724
  %4012 = vmatpush.bf16.msra.mxu0 %v2722
  %4013 = vmatpush.bf16.msra.mxu0 %v2720
  %4014 = vmatmul.bf16.gmra.mxu0 %v1359
  %v4015 = vpop.f32.mrf.mxu0
  %v4016 = vadd.f32 %v3997, %v4015
  %v4017 = vpop.f32.mrf.mxu0
  %v4018 = vadd.f32 %v3999, %v4017
  %4019 = vmatmul.bf16.gmra.mxu0 %v1384
  %v4020 = vpop.f32.mrf.mxu0
  %v4021 = vadd.f32 %v4002, %v4020
  %v4022 = vpop.f32.mrf.mxu0
  %v4023 = vadd.f32 %v4004, %v4022
  %4024 = vdwg.mxu0
  %4025 = vmatpush.bf16.msra.mxu0 %v2750
  %4026 = vmatpush.bf16.msra.mxu0 %v2748
  %4027 = vmatpush.bf16.msra.mxu0 %v2746
  %4028 = vmatpush.bf16.msra.mxu0 %v2744
  %4029 = vmatpush.bf16.msra.mxu0 %v2742
  %4030 = vmatpush.bf16.msra.mxu0 %v2740
  %4031 = vmatpush.bf16.msra.mxu0 %v2738
  %4032 = vmatpush.bf16.msra.mxu0 %v2736
  %4033 = vmatmul.bf16.gmra.mxu0 %v1360
  %v4034 = vpop.f32.mrf.mxu0
  %v4035 = vadd.f32 %v4016, %v4034
  %v4036 = vpop.f32.mrf.mxu0
  %v4037 = vadd.f32 %v4018, %v4036
  %4038 = vmatmul.bf16.gmra.mxu0 %v1385
  %v4039 = vpop.f32.mrf.mxu0
  %v4040 = vadd.f32 %v4021, %v4039
  %v4041 = vpop.f32.mrf.mxu0
  %v4042 = vadd.f32 %v4023, %v4041
  %4043 = vdwg.mxu0
  %4044 = vmatpush.bf16.msra.mxu0 %v2766
  %4045 = vmatpush.bf16.msra.mxu0 %v2764
  %4046 = vmatpush.bf16.msra.mxu0 %v2762
  %4047 = vmatpush.bf16.msra.mxu0 %v2760
  %4048 = vmatpush.bf16.msra.mxu0 %v2758
  %4049 = vmatpush.bf16.msra.mxu0 %v2756
  %4050 = vmatpush.bf16.msra.mxu0 %v2754
  %4051 = vmatpush.bf16.msra.mxu0 %v2752
  %4052 = vmatmul.bf16.gmra.mxu0 %v1361
  %v4053 = vpop.f32.mrf.mxu0
  %v4054 = vadd.f32 %v4035, %v4053
  %v4055 = vpop.f32.mrf.mxu0
  %v4056 = vadd.f32 %v4037, %v4055
  %4057 = vmatmul.bf16.gmra.mxu0 %v1386
  %v4058 = vpop.f32.mrf.mxu0
  %v4059 = vadd.f32 %v4040, %v4058
  %v4060 = vpop.f32.mrf.mxu0
  %v4061 = vadd.f32 %v4042, %v4060
  %4062 = vdwg.mxu0
  %4063 = vmatpush.bf16.msra.mxu0 %v2782
  %4064 = vmatpush.bf16.msra.mxu0 %v2780
  %4065 = vmatpush.bf16.msra.mxu0 %v2778
  %4066 = vmatpush.bf16.msra.mxu0 %v2776
  %4067 = vmatpush.bf16.msra.mxu0 %v2774
  %4068 = vmatpush.bf16.msra.mxu0 %v2772
  %4069 = vmatpush.bf16.msra.mxu0 %v2770
  %4070 = vmatpush.bf16.msra.mxu0 %v2768
  %4071 = vmatmul.bf16.gmra.mxu0 %v1362
  %v4072 = vpop.f32.mrf.mxu0
  %v4073 = vadd.f32 %v4054, %v4072
  %v4074 = vpop.f32.mrf.mxu0
  %v4075 = vadd.f32 %v4056, %v4074
  %4076 = vmatmul.bf16.gmra.mxu0 %v1387
  %v4077 = vpop.f32.mrf.mxu0
  %v4078 = vadd.f32 %v4059, %v4077
  %v4079 = vpop.f32.mrf.mxu0
  %v4080 = vadd.f32 %v4061, %v4079
  %4081 = vdwg.mxu0
  %4082 = vmatpush.bf16.msra.mxu0 %v2798
  %4083 = vmatpush.bf16.msra.mxu0 %v2796
  %4084 = vmatpush.bf16.msra.mxu0 %v2794
  %4085 = vmatpush.bf16.msra.mxu0 %v2792
  %4086 = vmatpush.bf16.msra.mxu0 %v2790
  %4087 = vmatpush.bf16.msra.mxu0 %v2788
  %4088 = vmatpush.bf16.msra.mxu0 %v2786
  %4089 = vmatpush.bf16.msra.mxu0 %v2784
  %4090 = vmatmul.bf16.gmra.mxu0 %v1363
  %v4091 = vpop.f32.mrf.mxu0
  %v4092 = vadd.f32 %v4073, %v4091
  %v4093 = vpop.f32.mrf.mxu0
  %v4094 = vadd.f32 %v4075, %v4093
  %4095 = vmatmul.bf16.gmra.mxu0 %v1388
  %v4096 = vpop.f32.mrf.mxu0
  %v4097 = vadd.f32 %v4078, %v4096
  %v4098 = vpop.f32.mrf.mxu0
  %v4099 = vadd.f32 %v4080, %v4098
  %4100 = vdwg.mxu0
  %4101 = vmatpush.bf16.msra.mxu0 %v2814
  %4102 = vmatpush.bf16.msra.mxu0 %v2812
  %4103 = vmatpush.bf16.msra.mxu0 %v2810
  %4104 = vmatpush.bf16.msra.mxu0 %v2808
  %4105 = vmatpush.bf16.msra.mxu0 %v2806
  %4106 = vmatpush.bf16.msra.mxu0 %v2804
  %4107 = vmatpush.bf16.msra.mxu0 %v2802
  %4108 = vmatpush.bf16.msra.mxu0 %v2800
  %4109 = vmatmul.bf16.gmra.mxu0 %v1364
  %v4110 = vpop.f32.mrf.mxu0
  %v4111 = vadd.f32 %v4092, %v4110
  %v4112 = vpop.f32.mrf.mxu0
  %v4113 = vadd.f32 %v4094, %v4112
  %4114 = vmatmul.bf16.gmra.mxu0 %v1389
  %v4115 = vpop.f32.mrf.mxu0
  %v4116 = vadd.f32 %v4097, %v4115
  %v4117 = vpop.f32.mrf.mxu0
  %v4118 = vadd.f32 %v4099, %v4117
  %4119 = vdwg.mxu0
  %4120 = vmatpush.bf16.msra.mxu0 %v2830
  %4121 = vmatpush.bf16.msra.mxu0 %v2828
  %4122 = vmatpush.bf16.msra.mxu0 %v2826
  %4123 = vmatpush.bf16.msra.mxu0 %v2824
  %4124 = vmatpush.bf16.msra.mxu0 %v2822
  %4125 = vmatpush.bf16.msra.mxu0 %v2820
  %4126 = vmatpush.bf16.msra.mxu0 %v2818
  %4127 = vmatpush.bf16.msra.mxu0 %v2816
  %4128 = vmatmul.bf16.gmra.mxu0 %v1365
  %v4129 = vpop.f32.mrf.mxu0
  %v4130 = vadd.f32 %v4111, %v4129
  %v4131 = vpop.f32.mrf.mxu0
  %v4132 = vadd.f32 %v4113, %v4131
  %4133 = vmatmul.bf16.gmra.mxu0 %v1390
  %v4134 = vpop.f32.mrf.mxu0
  %v4135 = vadd.f32 %v4116, %v4134
  %v4136 = vpop.f32.mrf.mxu0
  %v4137 = vadd.f32 %v4118, %v4136
  %4138 = vdwg.mxu0
  %4139 = vmatpush.bf16.msra.mxu0 %v2846
  %4140 = vmatpush.bf16.msra.mxu0 %v2844
  %4141 = vmatpush.bf16.msra.mxu0 %v2842
  %4142 = vmatpush.bf16.msra.mxu0 %v2840
  %4143 = vmatpush.bf16.msra.mxu0 %v2838
  %4144 = vmatpush.bf16.msra.mxu0 %v2836
  %4145 = vmatpush.bf16.msra.mxu0 %v2834
  %4146 = vmatpush.bf16.msra.mxu0 %v2832
  %4147 = vmatmul.bf16.gmra.mxu0 %v1366
  %v4148 = vpop.f32.mrf.mxu0
  %v4149 = vadd.f32 %v4130, %v4148
  %v4150 = vpop.f32.mrf.mxu0
  %v4151 = vadd.f32 %v4132, %v4150
  %4152 = vmatmul.bf16.gmra.mxu0 %v1391
  %v4153 = vpop.f32.mrf.mxu0
  %v4154 = vadd.f32 %v4135, %v4153
  %v4155 = vpop.f32.mrf.mxu0
  %v4156 = vadd.f32 %v4137, %v4155
  %4157 = vdwg.mxu0
  %4158 = vmatpush.bf16.msra.mxu0 %v2862
  %4159 = vmatpush.bf16.msra.mxu0 %v2860
  %4160 = vmatpush.bf16.msra.mxu0 %v2858
  %4161 = vmatpush.bf16.msra.mxu0 %v2856
  %4162 = vmatpush.bf16.msra.mxu0 %v2854
  %4163 = vmatpush.bf16.msra.mxu0 %v2852
  %4164 = vmatpush.bf16.msra.mxu0 %v2850
  %4165 = vmatpush.bf16.msra.mxu0 %v2848
  %4166 = vmatmul.bf16.gmra.mxu0 %v1367
  %v4167 = vpop.f32.mrf.mxu0
  %v4168 = vadd.f32 %v4149, %v4167
  %v4169 = vpop.f32.mrf.mxu0
  %v4170 = vadd.f32 %v4151, %v4169
  %4171 = vmatmul.bf16.gmra.mxu0 %v1392
  %v4172 = vpop.f32.mrf.mxu0
  %v4173 = vadd.f32 %v4154, %v4172
  %v4174 = vpop.f32.mrf.mxu0
  %v4175 = vadd.f32 %v4156, %v4174
  %4176 = vdwg.mxu0
  %4177 = vmatpush.bf16.msra.mxu0 %v2878
  %4178 = vmatpush.bf16.msra.mxu0 %v2876
  %4179 = vmatpush.bf16.msra.mxu0 %v2874
  %4180 = vmatpush.bf16.msra.mxu0 %v2872
  %4181 = vmatpush.bf16.msra.mxu0 %v2870
  %4182 = vmatpush.bf16.msra.mxu0 %v2868
  %4183 = vmatpush.bf16.msra.mxu0 %v2866
  %4184 = vmatpush.bf16.msra.mxu0 %v2864
  %4185 = vmatmul.bf16.gmra.mxu0 %v1368
  %v4186 = vpop.f32.mrf.mxu0
  %v4187 = vadd.f32 %v4168, %v4186
  %v4188 = vpop.f32.mrf.mxu0
  %v4189 = vadd.f32 %v4170, %v4188
  %4190 = vmatmul.bf16.gmra.mxu0 %v1393
  %v4191 = vpop.f32.mrf.mxu0
  %v4192 = vadd.f32 %v4173, %v4191
  %v4193 = vpop.f32.mrf.mxu0
  %v4194 = vadd.f32 %v4175, %v4193
  %4195 = vdwg.mxu0
  %4196 = vmatpush.bf16.msra.mxu0 %v2894
  %4197 = vmatpush.bf16.msra.mxu0 %v2892
  %4198 = vmatpush.bf16.msra.mxu0 %v2890
  %4199 = vmatpush.bf16.msra.mxu0 %v2888
  %4200 = vmatpush.bf16.msra.mxu0 %v2886
  %4201 = vmatpush.bf16.msra.mxu0 %v2884
  %4202 = vmatpush.bf16.msra.mxu0 %v2882
  %4203 = vmatpush.bf16.msra.mxu0 %v2880
  %4204 = vmatmul.bf16.gmra.mxu0 %v1369
  %v4205 = vpop.f32.mrf.mxu0
  %v4206 = vadd.f32 %v4187, %v4205
  %v4207 = vpop.f32.mrf.mxu0
  %v4208 = vadd.f32 %v4189, %v4207
  %4209 = vmatmul.bf16.gmra.mxu0 %v1394
  %v4210 = vpop.f32.mrf.mxu0
  %v4211 = vadd.f32 %v4192, %v4210
  %v4212 = vpop.f32.mrf.mxu0
  %v4213 = vadd.f32 %v4194, %v4212
  %4214 = vdwg.mxu0
  %4215 = vmatpush.bf16.msra.mxu0 %v2910
  %4216 = vmatpush.bf16.msra.mxu0 %v2908
  %4217 = vmatpush.bf16.msra.mxu0 %v2906
  %4218 = vmatpush.bf16.msra.mxu0 %v2904
  %4219 = vmatpush.bf16.msra.mxu0 %v2902
  %4220 = vmatpush.bf16.msra.mxu0 %v2900
  %4221 = vmatpush.bf16.msra.mxu0 %v2898
  %4222 = vmatpush.bf16.msra.mxu0 %v2896
  %4223 = vmatmul.bf16.gmra.mxu0 %v1370
  %v4224 = vpop.f32.mrf.mxu0
  %v4225 = vadd.f32 %v4206, %v4224
  %v4226 = vpop.f32.mrf.mxu0
  %v4227 = vadd.f32 %v4208, %v4226
  %4228 = vmatmul.bf16.gmra.mxu0 %v1395
  %v4229 = vpop.f32.mrf.mxu0
  %v4230 = vadd.f32 %v4211, %v4229
  %v4231 = vpop.f32.mrf.mxu0
  %v4232 = vadd.f32 %v4213, %v4231
  %4233 = vdwg.mxu0
  %4234 = vmatpush.bf16.msra.mxu0 %v2926
  %4235 = vmatpush.bf16.msra.mxu0 %v2924
  %4236 = vmatpush.bf16.msra.mxu0 %v2922
  %4237 = vmatpush.bf16.msra.mxu0 %v2920
  %4238 = vmatpush.bf16.msra.mxu0 %v2918
  %4239 = vmatpush.bf16.msra.mxu0 %v2916
  %4240 = vmatpush.bf16.msra.mxu0 %v2914
  %4241 = vmatpush.bf16.msra.mxu0 %v2912
  %4242 = vmatmul.bf16.gmra.mxu0 %v1371
  %v4243 = vpop.f32.mrf.mxu0
  %v4244 = vadd.f32 %v4225, %v4243
  %v4245 = vpop.f32.mrf.mxu0
  %v4246 = vadd.f32 %v4227, %v4245
  %4247 = vmatmul.bf16.gmra.mxu0 %v1396
  %v4248 = vpop.f32.mrf.mxu0
  %v4249 = vadd.f32 %v4230, %v4248
  %v4250 = vpop.f32.mrf.mxu0
  %v4251 = vadd.f32 %v4232, %v4250
  %4252 = vdwg.mxu0
  %4253 = vmatpush.bf16.msra.mxu0 %v2942
  %4254 = vmatpush.bf16.msra.mxu0 %v2940
  %4255 = vmatpush.bf16.msra.mxu0 %v2938
  %4256 = vmatpush.bf16.msra.mxu0 %v2936
  %4257 = vmatpush.bf16.msra.mxu0 %v2934
  %4258 = vmatpush.bf16.msra.mxu0 %v2932
  %4259 = vmatpush.bf16.msra.mxu0 %v2930
  %4260 = vmatpush.bf16.msra.mxu0 %v2928
  %4261 = vmatmul.bf16.gmra.mxu0 %v1372
  %v4262 = vpop.f32.mrf.mxu0
  %v4263 = vadd.f32 %v4244, %v4262
  %v4264 = vpop.f32.mrf.mxu0
  %v4265 = vadd.f32 %v4246, %v4264
  %4266 = vmatmul.bf16.gmra.mxu0 %v1397
  %v4267 = vpop.f32.mrf.mxu0
  %v4268 = vadd.f32 %v4249, %v4267
  %v4269 = vpop.f32.mrf.mxu0
  %v4270 = vadd.f32 %v4251, %v4269
  %4271 = vdwg.mxu0
  %4272 = vmatpush.bf16.msra.mxu0 %v2958
  %4273 = vmatpush.bf16.msra.mxu0 %v2956
  %4274 = vmatpush.bf16.msra.mxu0 %v2954
  %4275 = vmatpush.bf16.msra.mxu0 %v2952
  %4276 = vmatpush.bf16.msra.mxu0 %v2950
  %4277 = vmatpush.bf16.msra.mxu0 %v2948
  %4278 = vmatpush.bf16.msra.mxu0 %v2946
  %4279 = vmatpush.bf16.msra.mxu0 %v2944
  %4280 = vmatmul.bf16.gmra.mxu0 %v1373
  %v4281 = vpop.f32.mrf.mxu0
  %v4282 = vadd.f32 %v4263, %v4281
  %v4283 = vpop.f32.mrf.mxu0
  %v4284 = vadd.f32 %v4265, %v4283
  %4285 = vmatmul.bf16.gmra.mxu0 %v1398
  %v4286 = vpop.f32.mrf.mxu0
  %v4287 = vadd.f32 %v4268, %v4286
  %v4288 = vpop.f32.mrf.mxu0
  %v4289 = vadd.f32 %v4270, %v4288
  %4290 = vdwg.mxu0
  %4291 = vmatpush.bf16.msra.mxu0 %v2974
  %4292 = vmatpush.bf16.msra.mxu0 %v2972
  %4293 = vmatpush.bf16.msra.mxu0 %v2970
  %4294 = vmatpush.bf16.msra.mxu0 %v2968
  %4295 = vmatpush.bf16.msra.mxu0 %v2966
  %4296 = vmatpush.bf16.msra.mxu0 %v2964
  %4297 = vmatpush.bf16.msra.mxu0 %v2962
  %4298 = vmatpush.bf16.msra.mxu0 %v2960
  %4299 = vmatmul.bf16.gmra.mxu0 %v1374
  %v4300 = vpop.f32.mrf.mxu0
  %v4301 = vadd.f32 %v4282, %v4300
  %v4302 = vpop.f32.mrf.mxu0
  %v4303 = vadd.f32 %v4284, %v4302
  %4304 = vmatmul.bf16.gmra.mxu0 %v1399
  %v4305 = vpop.f32.mrf.mxu0
  %v4306 = vadd.f32 %v4287, %v4305
  %v4307 = vpop.f32.mrf.mxu0
  %v4308 = vadd.f32 %v4289, %v4307
  %4309 = vdwg.mxu0
  %4310 = vmatpush.bf16.msra.mxu0 %v2990
  %4311 = vmatpush.bf16.msra.mxu0 %v2988
  %4312 = vmatpush.bf16.msra.mxu0 %v2986
  %4313 = vmatpush.bf16.msra.mxu0 %v2984
  %4314 = vmatpush.bf16.msra.mxu0 %v2982
  %4315 = vmatpush.bf16.msra.mxu0 %v2980
  %4316 = vmatpush.bf16.msra.mxu0 %v2978
  %4317 = vmatpush.bf16.msra.mxu0 %v2976
  %4318 = vmatmul.bf16.gmra.mxu0 %v1375
  %v4319 = vpop.f32.mrf.mxu0
  %v4320 = vadd.f32 %v4301, %v4319
  %v4321 = vpop.f32.mrf.mxu0
  %v4322 = vadd.f32 %v4303, %v4321
  %4323 = vmatmul.bf16.gmra.mxu0 %v1400
  %v4324 = vpop.f32.mrf.mxu0
  %v4325 = vadd.f32 %v4306, %v4324
  %v4326 = vpop.f32.mrf.mxu0
  %v4327 = vadd.f32 %v4308, %v4326
  %4328 = vdwg.mxu0
  %4329 = vmatpush.bf16.msra.mxu0 %v3006
  %4330 = vmatpush.bf16.msra.mxu0 %v3004
  %4331 = vmatpush.bf16.msra.mxu0 %v3002
  %4332 = vmatpush.bf16.msra.mxu0 %v3000
  %4333 = vmatpush.bf16.msra.mxu0 %v2998
  %4334 = vmatpush.bf16.msra.mxu0 %v2996
  %4335 = vmatpush.bf16.msra.mxu0 %v2994
  %4336 = vmatpush.bf16.msra.mxu0 %v2992
  %4337 = vmatmul.bf16.gmra.mxu0 %v1376
  %v4338 = vpop.f32.mrf.mxu0
  %v4339 = vadd.f32 %v4320, %v4338
  %v4340 = vpop.f32.mrf.mxu0
  %v4341 = vadd.f32 %v4322, %v4340
  %4342 = vmatmul.bf16.gmra.mxu0 %v1401
  %v4343 = vpop.f32.mrf.mxu0
  %v4344 = vadd.f32 %v4325, %v4343
  %v4345 = vpop.f32.mrf.mxu0
  %v4346 = vadd.f32 %v4327, %v4345
  %4347 = vdwg.mxu0
  %4348 = vmatpush.bf16.msra.mxu0 %v3022
  %4349 = vmatpush.bf16.msra.mxu0 %v3020
  %4350 = vmatpush.bf16.msra.mxu0 %v3018
  %4351 = vmatpush.bf16.msra.mxu0 %v3016
  %4352 = vmatpush.bf16.msra.mxu0 %v3014
  %4353 = vmatpush.bf16.msra.mxu0 %v3012
  %4354 = vmatpush.bf16.msra.mxu0 %v3010
  %4355 = vmatpush.bf16.msra.mxu0 %v3008
  %4356 = vmatmul.bf16.gmra.mxu0 %v1377
  %v4357 = vpop.f32.mrf.mxu0
  %v4358 = vadd.f32 %v4339, %v4357
  %v4359 = vpop.f32.mrf.mxu0
  %v4360 = vadd.f32 %v4341, %v4359
  %4361 = vmatmul.bf16.gmra.mxu0 %v1402
  %v4362 = vpop.f32.mrf.mxu0
  %v4363 = vadd.f32 %v4344, %v4362
  %v4364 = vpop.f32.mrf.mxu0
  %v4365 = vadd.f32 %v4346, %v4364
  %4366 = vdwg.mxu0
  %4367 = vmatpush.bf16.msra.mxu0 %v3038
  %4368 = vmatpush.bf16.msra.mxu0 %v3036
  %4369 = vmatpush.bf16.msra.mxu0 %v3034
  %4370 = vmatpush.bf16.msra.mxu0 %v3032
  %4371 = vmatpush.bf16.msra.mxu0 %v3030
  %4372 = vmatpush.bf16.msra.mxu0 %v3028
  %4373 = vmatpush.bf16.msra.mxu0 %v3026
  %4374 = vmatpush.bf16.msra.mxu0 %v3024
  %4375 = vmatmul.bf16.gmra.mxu0 %v1378
  %v4376 = vpop.f32.mrf.mxu0
  %v4377 = vadd.f32 %v4358, %v4376
  %v4378 = vpop.f32.mrf.mxu0
  %v4379 = vadd.f32 %v4360, %v4378
  %4380 = vmatmul.bf16.gmra.mxu0 %v1403
  %v4381 = vpop.f32.mrf.mxu0
  %v4382 = vadd.f32 %v4363, %v4381
  %v4383 = vpop.f32.mrf.mxu0
  %v4384 = vadd.f32 %v4365, %v4383
  %4385 = vdwg.mxu0
  %4386 = vmatpush.bf16.msra.mxu0 %v3054
  %4387 = vmatpush.bf16.msra.mxu0 %v3052
  %4388 = vmatpush.bf16.msra.mxu0 %v3050
  %4389 = vmatpush.bf16.msra.mxu0 %v3048
  %4390 = vmatpush.bf16.msra.mxu0 %v3046
  %4391 = vmatpush.bf16.msra.mxu0 %v3044
  %4392 = vmatpush.bf16.msra.mxu0 %v3042
  %4393 = vmatpush.bf16.msra.mxu0 %v3040
  %4394 = vmatmul.bf16.gmra.mxu0 %v1379
  %v4395 = vpop.f32.mrf.mxu0
  %v4396 = vadd.f32 %v4377, %v4395
  %v4397 = vpop.f32.mrf.mxu0
  %v4398 = vadd.f32 %v4379, %v4397
  %4399 = vmatmul.bf16.gmra.mxu0 %v1404
  %v4400 = vpop.f32.mrf.mxu0
  %v4401 = vadd.f32 %v4382, %v4400
  %v4402 = vpop.f32.mrf.mxu0
  %v4403 = vadd.f32 %v4384, %v4402
  %4404 = vdwg.mxu0
  %v4405 = vmax.f32 %v3921, 0.0
  %v4406 = vmax.f32 %v4396, 0.0
  %v4407 = vmax.f32 %v3923, 0.0
  %v4408 = vmax.f32 %v4398, 0.0
  %v4409 = vmax.f32 %v3926, 0.0
  %v4410 = vmax.f32 %v4401, 0.0
  %v4411 = vmax.f32 %v3928, 0.0
  %v4412 = vmax.f32 %v4403, 0.0
  %v4413 = vmax.f32 %v4405, %v4407
  %v4414 = vmax.f32 %v4406, %v4408
  %v4415 = vmax.f32 %v4409, %v4411
  %v4416 = vmax.f32 %v4410, %v4412
  %v4419 = vrot.slane %v4413, 2
  %v4420 = vrot.slane %v4414, 2
  %v4423 = vmax.f32 %v4413, %v4419
  %v4424 = vmax.f32 %v4414, %v4420
  %v4427 = vrot.slane %v4415, 2
  %v4428 = vrot.slane %v4416, 2
  %v4431 = vmax.f32 %v4415, %v4427
  %v4432 = vmax.f32 %v4416, %v4428
  %v4435 = vrot.slane %v4423, 2
  %v4436 = vrot.slane %v4424, 2
  %v4441 = vrot.slane %v4431, 4
  %v4442 = vrot.slane %v4432, 4
  %v4445 = vrot.slane %v4431, 6
  %v4446 = vrot.slane %v4432, 6
  %vm4449 = vcmask 1041408
  %v4450 = vsel %vm4449, %v4423, %v4435
  %v4451 = vsel %vm4449, %v4424, %v4436
  %vm4452 = vcmask 1043456
  %v4453 = vsel %vm4452, %v4450, %v4441
  %v4454 = vsel %vm4452, %v4451, %v4442
  %vm4455 = vcmask 1045504
  %v4456 = vsel %vm4455, %v4453, %v4445
  %v4457 = vsel %vm4455, %v4454, %v4446
  %v4458 = vpack.c.bf16 %v4457, %v4456
  %4459 = vst [vmem:[#allocation3] sm:$0xff] 0
  %4460 = vst [vmem:[#allocation3 + $0x8] sm:$0xff] 0
  %4461 = vst [vmem:[#allocation3 + $0x10] sm:$0xff] 0
  %4462 = vst [vmem:[#allocation3 + $0x18] sm:$0xff] 0
  %4463 = vst [vmem:[#allocation3 + $0x20] sm:$0xff] 0
  %4464 = vst [vmem:[#allocation3 + $0x28] sm:$0xff] 0
  %4465 = vst [vmem:[#allocation3 + $0x30] sm:$0xff] 0
  %4466 = vst [vmem:[#allocation3 + $0x38] sm:$0xff] 0
  %4467 = vst [vmem:[#allocation3 + $0x40] sm:$0xff] 0
  %v4469 = vrot.slane %v4458, 5
  %4471 = vst [vmem:[#allocation3] sm:$0x88] %v4469
  %v4472 = vrot.slane %v4458, 6
  %4474 = vst [vmem:[#allocation3 + $0x8] sm:$0xcc] %v4472
  %v4475 = vrot.slane %v4458, 7
  %4477 = vst [vmem:[#allocation3 + $0x10] sm:$0x44] %v4475
  %4478 = vst [vmem:[#allocation3 + $0x18] sm:$0x22] %v4475
  %4479 = vst [vmem:[#allocation3 + $0x18] sm:$0x88] %v4475
  %4480 = vst [vmem:[#allocation3 + $0x20] sm:$0x33] %v4458
  %4481 = vst [vmem:[#allocation3 + $0x20] sm:$0xcc] %v4458
  %v4482 = vrot.slane %v4469, 4
  %4484 = vst [vmem:[#allocation3 + $0x28] sm:$0x11] %v4482
  %4485 = vst [vmem:[#allocation3 + $0x28] sm:$0x44] %v4482
  %4486 = vst [vmem:[#allocation3 + $0x30] sm:$0x22] %v4482
  %v4487 = vrot.slane %v4472, 4
  %4489 = vst [vmem:[#allocation3 + $0x38] sm:$0x33] %v4487
  %v4490 = vrot.slane %v4475, 4
  %4492 = vst [vmem:[#allocation3 + $0x40] sm:$0x11] %v4490
  %v4493 = vld [vmem:[#allocation3] sm:$0xff]
  %v4494 = vld [vmem:[#allocation3 + $0x8] sm:$0xff]
  %v4495 = vld [vmem:[#allocation3 + $0x10] sm:$0xff]
  %v4496 = vld [vmem:[#allocation3 + $0x18] sm:$0xff]
  %v4497 = vld [vmem:[#allocation3 + $0x20] sm:$0xff]
  %v4498 = vld [vmem:[#allocation3 + $0x28] sm:$0xff]
  %v4499 = vld [vmem:[#allocation3 + $0x30] sm:$0xff]
  %v4500 = vld [vmem:[#allocation3 + $0x38] sm:$0xff]
  %v4501 = vld [vmem:[#allocation3 + $0x40] sm:$0xff]
  %v4502 = vld [vmem:[%s6] sm:$0xff]
  %v4503 = vld [vmem:[%s6 + $0x8] sm:$0xf]
  %v4504 = vld [vmem:[%s6 + $0xc] sm:$0xff]
  %v4505 = vld [vmem:[%s6 + $0x14] sm:$0xf]
  %v4506 = vld [vmem:[%s6 + $0x18] sm:$0xff]
  %v4507 = vld [vmem:[%s6 + $0x20] sm:$0xf]
  %v4508 = vld [vmem:[%s6 + $0x24] sm:$0xff]
  %v4509 = vld [vmem:[%s6 + $0x2c] sm:$0xf]
  %v4510 = vld [vmem:[%s6 + $0x30] sm:$0xff]
  %v4511 = vld [vmem:[%s6 + $0x38] sm:$0xf]
  %v4512 = vld [vmem:[%s6 + $0x3c] sm:$0xff]
  %v4513 = vld [vmem:[%s6 + $0x44] sm:$0xf]
  %v4514 = vld [vmem:[%s6 + $0x48] sm:$0xff]
  %v4515 = vld [vmem:[%s6 + $0x50] sm:$0xf]
  %v4516 = vld [vmem:[%s6 + $0x54] sm:$0xff]
  %v4517 = vld [vmem:[%s6 + $0x5c] sm:$0xf]
  %v4518 = vld [vmem:[%s6 + $0x60] sm:$0xff]
  %v4519 = vld [vmem:[%s6 + $0x68] sm:$0xf]
  %v4520 = vld [vmem:[%s6 + $0x6c] sm:$0xff]
  %v4521 = vld [vmem:[%s6 + $0x74] sm:$0xf]
  %v4522 = vld [vmem:[%s6 + $0x78] sm:$0xff]
  %v4523 = vld [vmem:[%s6 + $0x80] sm:$0xf]
  %v4524 = vld [vmem:[%s6 + $0x84] sm:$0xff]
  %v4525 = vld [vmem:[%s6 + $0x8c] sm:$0xf]
  %v4526 = vld [vmem:[%s6 + $0x90] sm:$0xff]
  %v4527 = vld [vmem:[%s6 + $0x98] sm:$0xf]
  %v4528 = vld [vmem:[%s6 + $0x9c] sm:$0xff]
  %v4529 = vld [vmem:[%s6 + $0xa4] sm:$0xf]
  %v4530 = vld [vmem:[%s6 + $0xa8] sm:$0xff]
  %v4531 = vld [vmem:[%s6 + $0xb0] sm:$0xf]
  %v4532 = vld [vmem:[%s6 + $0xb4] sm:$0xff]
  %v4533 = vld [vmem:[%s6 + $0xbc] sm:$0xf]
  %v4534 = vld [vmem:[%s6 + $0xc0] sm:$0xff]
  %v4535 = vld [vmem:[%s6 + $0xc8] sm:$0xf]
  %v4536 = vld [vmem:[%s6 + $0xcc] sm:$0xff]
  %v4537 = vld [vmem:[%s6 + $0xd4] sm:$0xf]
  %v4538 = vld [vmem:[%s6 + $0xd8] sm:$0xff]
  %v4539 = vld [vmem:[%s6 + $0xe0] sm:$0xf]
  %v4540 = vld [vmem:[%s6 + $0xe4] sm:$0xff]
  %v4541 = vld [vmem:[%s6 + $0xec] sm:$0xf]
  %v4542 = vld [vmem:[%s6 + $0xf0] sm:$0xff]
  %v4543 = vld [vmem:[%s6 + $0xf8] sm:$0xf]
  %v4544 = vld [vmem:[%s6 + $0xfc] sm:$0xff]
  %v4545 = vld [vmem:[%s6 + $0x104] sm:$0xf]
  %v4546 = vld [vmem:[%s6 + $0x108] sm:$0xff]
  %v4547 = vld [vmem:[%s6 + $0x110] sm:$0xf]
  %v4548 = vld [vmem:[%s6 + $0x114] sm:$0xff]
  %v4549 = vld [vmem:[%s6 + $0x11c] sm:$0xf]
  %v4550 = vld [vmem:[%s6 + $0x120] sm:$0xff]
  %v4551 = vld [vmem:[%s6 + $0x128] sm:$0xf]
  %v4552 = vld [vmem:[%s6 + $0x12c] sm:$0xff]
  %v4553 = vld [vmem:[%s6 + $0x134] sm:$0xf]
  %v4554 = vld [vmem:[%s6 + $0x138] sm:$0xff]
  %v4555 = vld [vmem:[%s6 + $0x140] sm:$0xf]
  %v4556 = vld [vmem:[%s6 + $0x144] sm:$0xff]
  %v4557 = vld [vmem:[%s6 + $0x14c] sm:$0xf]
  %v4558 = vld [vmem:[%s6 + $0x150] sm:$0xff]
  %v4559 = vld [vmem:[%s6 + $0x158] sm:$0xf]
  %v4560 = vld [vmem:[%s6 + $0x15c] sm:$0xff]
  %v4561 = vld [vmem:[%s6 + $0x164] sm:$0xf]
  %v4562 = vld [vmem:[%s6 + $0x168] sm:$0xff]
  %v4563 = vld [vmem:[%s6 + $0x170] sm:$0xf]
  %v4564 = vld [vmem:[%s6 + $0x174] sm:$0xff]
  %v4565 = vld [vmem:[%s6 + $0x17c] sm:$0xf]
  %v4566 = vld [vmem:[%s6 + $0x180] sm:$0xff]
  %v4567 = vld [vmem:[%s6 + $0x188] sm:$0xf]
  %v4568 = vld [vmem:[%s6 + $0x18c] sm:$0xff]
  %v4569 = vld [vmem:[%s6 + $0x194] sm:$0xf]
  %v4570 = vld [vmem:[%s6 + $0x198] sm:$0xff]
  %v4571 = vld [vmem:[%s6 + $0x1a0] sm:$0xf]
  %v4572 = vld [vmem:[%s6 + $0x1a4] sm:$0xff]
  %v4573 = vld [vmem:[%s6 + $0x1ac] sm:$0xf]
  %v4574 = vld [vmem:[%s6 + $0x1b0] sm:$0xff]
  %v4575 = vld [vmem:[%s6 + $0x1b8] sm:$0xf]
  %v4576 = vld [vmem:[%s6 + $0x1bc] sm:$0xff]
  %v4577 = vld [vmem:[%s6 + $0x1c4] sm:$0xf]
  %v4578 = vld [vmem:[%s6 + $0x1c8] sm:$0xff]
  %v4579 = vld [vmem:[%s6 + $0x1d0] sm:$0xf]
  %v4580 = vld [vmem:[%s6 + $0x1d4] sm:$0xff]
  %v4581 = vld [vmem:[%s6 + $0x1dc] sm:$0xf]
  %v4582 = vld [vmem:[%s6 + $0x1e0] sm:$0xff]
  %v4583 = vld [vmem:[%s6 + $0x1e8] sm:$0xf]
  %v4584 = vld [vmem:[%s6 + $0x1ec] sm:$0xff]
  %v4585 = vld [vmem:[%s6 + $0x1f4] sm:$0xf]
  %v4586 = vld [vmem:[%s6 + $0x1f8] sm:$0xff]
  %v4587 = vld [vmem:[%s6 + $0x200] sm:$0xf]
  %v4588 = vld [vmem:[%s6 + $0x204] sm:$0xff]
  %v4589 = vld [vmem:[%s6 + $0x20c] sm:$0xf]
  %v4590 = vld [vmem:[%s6 + $0x210] sm:$0xff]
  %v4591 = vld [vmem:[%s6 + $0x218] sm:$0xf]
  %v4592 = vld [vmem:[%s6 + $0x21c] sm:$0xff]
  %v4593 = vld [vmem:[%s6 + $0x224] sm:$0xf]
  %v4594 = vld [vmem:[%s6 + $0x228] sm:$0xff]
  %v4595 = vld [vmem:[%s6 + $0x230] sm:$0xf]
  %v4596 = vld [vmem:[%s6 + $0x234] sm:$0xff]
  %v4597 = vld [vmem:[%s6 + $0x23c] sm:$0xf]
  %v4598 = vld [vmem:[%s6 + $0x240] sm:$0xff]
  %v4599 = vld [vmem:[%s6 + $0x248] sm:$0xf]
  %v4600 = vld [vmem:[%s6 + $0x24c] sm:$0xff]
  %v4601 = vld [vmem:[%s6 + $0x254] sm:$0xf]
  %v4602 = vld [vmem:[%s6 + $0x258] sm:$0xff]
  %v4603 = vld [vmem:[%s6 + $0x260] sm:$0xf]
  %v4604 = vld [vmem:[%s6 + $0x264] sm:$0xff]
  %v4605 = vld [vmem:[%s6 + $0x26c] sm:$0xf]
  %v4606 = vld [vmem:[%s6 + $0x270] sm:$0xff]
  %v4607 = vld [vmem:[%s6 + $0x278] sm:$0xf]
  %v4608 = vld [vmem:[%s6 + $0x27c] sm:$0xff]
  %v4609 = vld [vmem:[%s6 + $0x284] sm:$0xf]
  %v4610 = vld [vmem:[%s6 + $0x288] sm:$0xff]
  %v4611 = vld [vmem:[%s6 + $0x290] sm:$0xf]
  %v4612 = vld [vmem:[%s6 + $0x294] sm:$0xff]
  %v4613 = vld [vmem:[%s6 + $0x29c] sm:$0xf]
  %v4614 = vld [vmem:[%s6 + $0x2a0] sm:$0xff]
  %v4615 = vld [vmem:[%s6 + $0x2a8] sm:$0xf]
  %v4616 = vld [vmem:[%s6 + $0x2ac] sm:$0xff]
  %v4617 = vld [vmem:[%s6 + $0x2b4] sm:$0xf]
  %v4618 = vld [vmem:[%s6 + $0x2b8] sm:$0xff]
  %v4619 = vld [vmem:[%s6 + $0x2c0] sm:$0xf]
  %v4620 = vld [vmem:[%s6 + $0x2c4] sm:$0xff]
  %v4621 = vld [vmem:[%s6 + $0x2cc] sm:$0xf]
  %v4622 = vld [vmem:[%s6 + $0x2d0] sm:$0xff]
  %v4623 = vld [vmem:[%s6 + $0x2d8] sm:$0xf]
  %v4624 = vld [vmem:[%s6 + $0x2dc] sm:$0xff]
  %v4625 = vld [vmem:[%s6 + $0x2e4] sm:$0xf]
  %v4626 = vld [vmem:[%s6 + $0x2e8] sm:$0xff]
  %v4627 = vld [vmem:[%s6 + $0x2f0] sm:$0xf]
  %v4628 = vld [vmem:[%s6 + $0x2f4] sm:$0xff]
  %v4629 = vld [vmem:[%s6 + $0x2fc] sm:$0xf]
  %v4630 = vld [vmem:[%s6 + $0x300] sm:$0xff]
  %v4631 = vld [vmem:[%s6 + $0x308] sm:$0xf]
  %v4632 = vld [vmem:[%s6 + $0x30c] sm:$0xff]
  %v4633 = vld [vmem:[%s6 + $0x314] sm:$0xf]
  %v4634 = vld [vmem:[%s6 + $0x318] sm:$0xff]
  %v4635 = vld [vmem:[%s6 + $0x320] sm:$0xf]
  %v4636 = vld [vmem:[%s6 + $0x324] sm:$0xff]
  %v4637 = vld [vmem:[%s6 + $0x32c] sm:$0xf]
  %v4638 = vld [vmem:[%s6 + $0x330] sm:$0xff]
  %v4639 = vld [vmem:[%s6 + $0x338] sm:$0xf]
  %v4640 = vld [vmem:[%s6 + $0x33c] sm:$0xff]
  %v4641 = vld [vmem:[%s6 + $0x344] sm:$0xf]
  %v4642 = vld [vmem:[%s6 + $0x348] sm:$0xff]
  %v4643 = vld [vmem:[%s6 + $0x350] sm:$0xf]
  %v4644 = vld [vmem:[%s6 + $0x354] sm:$0xff]
  %v4645 = vld [vmem:[%s6 + $0x35c] sm:$0xf]
  %v4646 = vld [vmem:[%s6 + $0x360] sm:$0xff]
  %v4647 = vld [vmem:[%s6 + $0x368] sm:$0xf]
  %v4648 = vld [vmem:[%s6 + $0x36c] sm:$0xff]
  %v4649 = vld [vmem:[%s6 + $0x374] sm:$0xf]
  %v4650 = vld [vmem:[%s6 + $0x378] sm:$0xff]
  %v4651 = vld [vmem:[%s6 + $0x380] sm:$0xf]
  %v4652 = vld [vmem:[%s6 + $0x384] sm:$0xff]
  %v4653 = vld [vmem:[%s6 + $0x38c] sm:$0xf]
  %v4654 = vld [vmem:[%s6 + $0x390] sm:$0xff]
  %v4655 = vld [vmem:[%s6 + $0x398] sm:$0xf]
  %v4656 = vld [vmem:[%s6 + $0x39c] sm:$0xff]
  %v4657 = vld [vmem:[%s6 + $0x3a4] sm:$0xf]
  %v4658 = vld [vmem:[%s6 + $0x3a8] sm:$0xff]
  %v4659 = vld [vmem:[%s6 + $0x3b0] sm:$0xf]
  %v4660 = vld [vmem:[%s6 + $0x3b4] sm:$0xff]
  %v4661 = vld [vmem:[%s6 + $0x3bc] sm:$0xf]
  %v4662 = vld [vmem:[%s6 + $0x3c0] sm:$0xff]
  %v4663 = vld [vmem:[%s6 + $0x3c8] sm:$0xf]
  %v4664 = vld [vmem:[%s6 + $0x3cc] sm:$0xff]
  %v4665 = vld [vmem:[%s6 + $0x3d4] sm:$0xf]
  %v4666 = vld [vmem:[%s6 + $0x3d8] sm:$0xff]
  %v4667 = vld [vmem:[%s6 + $0x3e0] sm:$0xf]
  %v4668 = vld [vmem:[%s6 + $0x3e4] sm:$0xff]
  %v4669 = vld [vmem:[%s6 + $0x3ec] sm:$0xf]
  %v4670 = vld [vmem:[%s6 + $0x3f0] sm:$0xff]
  %v4671 = vld [vmem:[%s6 + $0x3f8] sm:$0xf]
  %v4672 = vld [vmem:[%s6 + $0x3fc] sm:$0xff]
  %v4673 = vld [vmem:[%s6 + $0x404] sm:$0xf]
  %v4674 = vld [vmem:[%s6 + $0x408] sm:$0xff]
  %v4675 = vld [vmem:[%s6 + $0x410] sm:$0xf]
  %v4676 = vld [vmem:[%s6 + $0x414] sm:$0xff]
  %v4677 = vld [vmem:[%s6 + $0x41c] sm:$0xf]
  %v4678 = vld [vmem:[%s6 + $0x420] sm:$0xff]
  %v4679 = vld [vmem:[%s6 + $0x428] sm:$0xf]
  %v4680 = vld [vmem:[%s6 + $0x42c] sm:$0xff]
  %v4681 = vld [vmem:[%s6 + $0x434] sm:$0xf]
  %v4682 = vld [vmem:[%s6 + $0x438] sm:$0xff]
  %v4683 = vld [vmem:[%s6 + $0x440] sm:$0xf]
  %v4684 = vld [vmem:[%s6 + $0x444] sm:$0xff]
  %v4685 = vld [vmem:[%s6 + $0x44c] sm:$0xf]
  %v4686 = vld [vmem:[%s6 + $0x450] sm:$0xff]
  %v4687 = vld [vmem:[%s6 + $0x458] sm:$0xf]
  %v4688 = vld [vmem:[%s6 + $0x45c] sm:$0xff]
  %v4689 = vld [vmem:[%s6 + $0x464] sm:$0xf]
  %v4690 = vld [vmem:[%s6 + $0x468] sm:$0xff]
  %v4691 = vld [vmem:[%s6 + $0x470] sm:$0xf]
  %v4692 = vld [vmem:[%s6 + $0x474] sm:$0xff]
  %v4693 = vld [vmem:[%s6 + $0x47c] sm:$0xf]
  %v4694 = vld [vmem:[%s6 + $0x480] sm:$0xff]
  %v4695 = vld [vmem:[%s6 + $0x488] sm:$0xf]
  %v4696 = vld [vmem:[%s6 + $0x48c] sm:$0xff]
  %v4697 = vld [vmem:[%s6 + $0x494] sm:$0xf]
  %v4698 = vld [vmem:[%s6 + $0x498] sm:$0xff]
  %v4699 = vld [vmem:[%s6 + $0x4a0] sm:$0xf]
  %v4700 = vld [vmem:[%s6 + $0x4a4] sm:$0xff]
  %v4701 = vld [vmem:[%s6 + $0x4ac] sm:$0xf]
  %v4702 = vld [vmem:[%s6 + $0x4b0] sm:$0xff]
  %v4703 = vld [vmem:[%s6 + $0x4b8] sm:$0xf]
  %v4704 = vld [vmem:[%s6 + $0x4bc] sm:$0xff]
  %v4705 = vld [vmem:[%s6 + $0x4c4] sm:$0xf]
  %v4706 = vld [vmem:[%s6 + $0x4c8] sm:$0xff]
  %v4707 = vld [vmem:[%s6 + $0x4d0] sm:$0xf]
  %v4708 = vld [vmem:[%s6 + $0x4d4] sm:$0xff]
  %v4709 = vld [vmem:[%s6 + $0x4dc] sm:$0xf]
  %v4710 = vld [vmem:[%s6 + $0x4e0] sm:$0xff]
  %v4711 = vld [vmem:[%s6 + $0x4e8] sm:$0xf]
  %v4712 = vld [vmem:[%s6 + $0x4ec] sm:$0xff]
  %v4713 = vld [vmem:[%s6 + $0x4f4] sm:$0xf]
  %v4714 = vld [vmem:[%s6 + $0x4f8] sm:$0xff]
  %v4715 = vld [vmem:[%s6 + $0x500] sm:$0xf]
  %v4716 = vld [vmem:[%s6 + $0x504] sm:$0xff]
  %v4717 = vld [vmem:[%s6 + $0x50c] sm:$0xf]
  %v4718 = vld [vmem:[%s6 + $0x510] sm:$0xff]
  %v4719 = vld [vmem:[%s6 + $0x518] sm:$0xf]
  %v4720 = vld [vmem:[%s6 + $0x51c] sm:$0xff]
  %v4721 = vld [vmem:[%s6 + $0x524] sm:$0xf]
  %v4722 = vld [vmem:[%s6 + $0x528] sm:$0xff]
  %v4723 = vld [vmem:[%s6 + $0x530] sm:$0xf]
  %v4724 = vld [vmem:[%s6 + $0x534] sm:$0xff]
  %v4725 = vld [vmem:[%s6 + $0x53c] sm:$0xf]
  %v4726 = vld [vmem:[%s6 + $0x540] sm:$0xff]
  %v4727 = vld [vmem:[%s6 + $0x548] sm:$0xf]
  %v4728 = vld [vmem:[%s6 + $0x54c] sm:$0xff]
  %v4729 = vld [vmem:[%s6 + $0x554] sm:$0xf]
  %v4730 = vld [vmem:[%s6 + $0x558] sm:$0xff]
  %v4731 = vld [vmem:[%s6 + $0x560] sm:$0xf]
  %v4732 = vld [vmem:[%s6 + $0x564] sm:$0xff]
  %v4733 = vld [vmem:[%s6 + $0x56c] sm:$0xf]
  %v4734 = vld [vmem:[%s6 + $0x570] sm:$0xff]
  %v4735 = vld [vmem:[%s6 + $0x578] sm:$0xf]
  %v4736 = vld [vmem:[%s6 + $0x57c] sm:$0xff]
  %v4737 = vld [vmem:[%s6 + $0x584] sm:$0xf]
  %v4738 = vld [vmem:[%s6 + $0x588] sm:$0xff]
  %v4739 = vld [vmem:[%s6 + $0x590] sm:$0xf]
  %v4740 = vld [vmem:[%s6 + $0x594] sm:$0xff]
  %v4741 = vld [vmem:[%s6 + $0x59c] sm:$0xf]
  %v4742 = vld [vmem:[%s6 + $0x5a0] sm:$0xff]
  %v4743 = vld [vmem:[%s6 + $0x5a8] sm:$0xf]
  %v4744 = vld [vmem:[%s6 + $0x5ac] sm:$0xff]
  %v4745 = vld [vmem:[%s6 + $0x5b4] sm:$0xf]
  %v4746 = vld [vmem:[%s6 + $0x5b8] sm:$0xff]
  %v4747 = vld [vmem:[%s6 + $0x5c0] sm:$0xf]
  %v4748 = vld [vmem:[%s6 + $0x5c4] sm:$0xff]
  %v4749 = vld [vmem:[%s6 + $0x5cc] sm:$0xf]
  %v4750 = vld [vmem:[%s6 + $0x5d0] sm:$0xff]
  %v4751 = vld [vmem:[%s6 + $0x5d8] sm:$0xf]
  %v4752 = vld [vmem:[%s6 + $0x5dc] sm:$0xff]
  %v4753 = vld [vmem:[%s6 + $0x5e4] sm:$0xf]
  %v4754 = vld [vmem:[%s6 + $0x5e8] sm:$0xff]
  %v4755 = vld [vmem:[%s6 + $0x5f0] sm:$0xf]
  %v4756 = vld [vmem:[%s6 + $0x5f4] sm:$0xff]
  %v4757 = vld [vmem:[%s6 + $0x5fc] sm:$0xf]
  %v4758 = vld [vmem:[%s6 + $0x600] sm:$0xff]
  %v4759 = vld [vmem:[%s6 + $0x608] sm:$0xf]
  %v4760 = vld [vmem:[%s6 + $0x60c] sm:$0xff]
  %v4761 = vld [vmem:[%s6 + $0x614] sm:$0xf]
  %v4762 = vld [vmem:[%s6 + $0x618] sm:$0xff]
  %v4763 = vld [vmem:[%s6 + $0x620] sm:$0xf]
  %v4764 = vld [vmem:[%s6 + $0x624] sm:$0xff]
  %v4765 = vld [vmem:[%s6 + $0x62c] sm:$0xf]
  %v4766 = vld [vmem:[%s6 + $0x630] sm:$0xff]
  %v4767 = vld [vmem:[%s6 + $0x638] sm:$0xf]
  %v4768 = vld [vmem:[%s6 + $0x63c] sm:$0xff]
  %v4769 = vld [vmem:[%s6 + $0x644] sm:$0xf]
  %v4770 = vld [vmem:[%s6 + $0x648] sm:$0xff]
  %v4771 = vld [vmem:[%s6 + $0x650] sm:$0xf]
  %v4772 = vld [vmem:[%s6 + $0x654] sm:$0xff]
  %v4773 = vld [vmem:[%s6 + $0x65c] sm:$0xf]
  %v4774 = vld [vmem:[%s6 + $0x660] sm:$0xff]
  %v4775 = vld [vmem:[%s6 + $0x668] sm:$0xf]
  %v4776 = vld [vmem:[%s6 + $0x66c] sm:$0xff]
  %v4777 = vld [vmem:[%s6 + $0x674] sm:$0xf]
  %v4778 = vld [vmem:[%s6 + $0x678] sm:$0xff]
  %v4779 = vld [vmem:[%s6 + $0x680] sm:$0xf]
  %v4780 = vld [vmem:[%s6 + $0x684] sm:$0xff]
  %v4781 = vld [vmem:[%s6 + $0x68c] sm:$0xf]
  %v4782 = vld [vmem:[%s6 + $0x690] sm:$0xff]
  %v4783 = vld [vmem:[%s6 + $0x698] sm:$0xf]
  %v4784 = vld [vmem:[%s6 + $0x69c] sm:$0xff]
  %v4785 = vld [vmem:[%s6 + $0x6a4] sm:$0xf]
  %v4786 = vld [vmem:[%s6 + $0x6a8] sm:$0xff]
  %v4787 = vld [vmem:[%s6 + $0x6b0] sm:$0xf]
  %v4788 = vld [vmem:[%s6 + $0x6b4] sm:$0xff]
  %v4789 = vld [vmem:[%s6 + $0x6bc] sm:$0xf]
  %v4790 = vld [vmem:[%s6 + $0x6c0] sm:$0xff]
  %v4791 = vld [vmem:[%s6 + $0x6c8] sm:$0xf]
  %v4792 = vld [vmem:[%s6 + $0x6cc] sm:$0xff]
  %v4793 = vld [vmem:[%s6 + $0x6d4] sm:$0xf]
  %v4794 = vld [vmem:[%s6 + $0x6d8] sm:$0xff]
  %v4795 = vld [vmem:[%s6 + $0x6e0] sm:$0xf]
  %v4796 = vld [vmem:[%s6 + $0x6e4] sm:$0xff]
  %v4797 = vld [vmem:[%s6 + $0x6ec] sm:$0xf]
  %v4798 = vld [vmem:[%s6 + $0x6f0] sm:$0xff]
  %v4799 = vld [vmem:[%s6 + $0x6f8] sm:$0xf]
  %v4800 = vld [vmem:[%s6 + $0x6fc] sm:$0xff]
  %v4801 = vld [vmem:[%s6 + $0x704] sm:$0xf]
  %v4802 = vld [vmem:[%s6 + $0x708] sm:$0xff]
  %v4803 = vld [vmem:[%s6 + $0x710] sm:$0xf]
  %v4804 = vld [vmem:[%s6 + $0x714] sm:$0xff]
  %v4805 = vld [vmem:[%s6 + $0x71c] sm:$0xf]
  %v4806 = vld [vmem:[%s6 + $0x720] sm:$0xff]
  %v4807 = vld [vmem:[%s6 + $0x728] sm:$0xf]
  %v4808 = vld [vmem:[%s6 + $0x72c] sm:$0xff]
  %v4809 = vld [vmem:[%s6 + $0x734] sm:$0xf]
  %v4810 = vld [vmem:[%s6 + $0x738] sm:$0xff]
  %v4811 = vld [vmem:[%s6 + $0x740] sm:$0xf]
  %v4812 = vld [vmem:[%s6 + $0x744] sm:$0xff]
  %v4813 = vld [vmem:[%s6 + $0x74c] sm:$0xf]
  %v4814 = vld [vmem:[%s6 + $0x750] sm:$0xff]
  %v4815 = vld [vmem:[%s6 + $0x758] sm:$0xf]
  %v4816 = vld [vmem:[%s6 + $0x75c] sm:$0xff]
  %v4817 = vld [vmem:[%s6 + $0x764] sm:$0xf]
  %v4818 = vld [vmem:[%s6 + $0x768] sm:$0xff]
  %v4819 = vld [vmem:[%s6 + $0x770] sm:$0xf]
  %v4820 = vld [vmem:[%s6 + $0x774] sm:$0xff]
  %v4821 = vld [vmem:[%s6 + $0x77c] sm:$0xf]
  %v4822 = vld [vmem:[%s6 + $0x780] sm:$0xff]
  %v4823 = vld [vmem:[%s6 + $0x788] sm:$0xf]
  %v4824 = vld [vmem:[%s6 + $0x78c] sm:$0xff]
  %v4825 = vld [vmem:[%s6 + $0x794] sm:$0xf]
  %v4826 = vld [vmem:[%s6 + $0x798] sm:$0xff]
  %v4827 = vld [vmem:[%s6 + $0x7a0] sm:$0xf]
  %v4828 = vld [vmem:[%s6 + $0x7a4] sm:$0xff]
  %v4829 = vld [vmem:[%s6 + $0x7ac] sm:$0xf]
  %v4830 = vld [vmem:[%s6 + $0x7b0] sm:$0xff]
  %v4831 = vld [vmem:[%s6 + $0x7b8] sm:$0xf]
  %v4832 = vld [vmem:[%s6 + $0x7bc] sm:$0xff]
  %v4833 = vld [vmem:[%s6 + $0x7c4] sm:$0xf]
  %v4834 = vld [vmem:[%s6 + $0x7c8] sm:$0xff]
  %v4835 = vld [vmem:[%s6 + $0x7d0] sm:$0xf]
  %v4836 = vld [vmem:[%s6 + $0x7d4] sm:$0xff]
  %v4837 = vld [vmem:[%s6 + $0x7dc] sm:$0xf]
  %v4838 = vld [vmem:[%s6 + $0x7e0] sm:$0xff]
  %v4839 = vld [vmem:[%s6 + $0x7e8] sm:$0xf]
  %v4840 = vld [vmem:[%s6 + $0x7ec] sm:$0xff]
  %v4841 = vld [vmem:[%s6 + $0x7f4] sm:$0xf]
  %v4842 = vld [vmem:[%s6 + $0x7f8] sm:$0xff]
  %v4843 = vld [vmem:[%s6 + $0x800] sm:$0xf]
  %v4844 = vld [vmem:[%s6 + $0x804] sm:$0xff]
  %v4845 = vld [vmem:[%s6 + $0x80c] sm:$0xf]
  %v4846 = vld [vmem:[%s6 + $0x810] sm:$0xff]
  %v4847 = vld [vmem:[%s6 + $0x818] sm:$0xf]
  %v4848 = vld [vmem:[%s6 + $0x81c] sm:$0xff]
  %v4849 = vld [vmem:[%s6 + $0x824] sm:$0xf]
  %v4850 = vld [vmem:[%s6 + $0x828] sm:$0xff]
  %v4851 = vld [vmem:[%s6 + $0x830] sm:$0xf]
  %v4852 = vld [vmem:[%s6 + $0x834] sm:$0xff]
  %v4853 = vld [vmem:[%s6 + $0x83c] sm:$0xf]
  %v4854 = vld [vmem:[%s6 + $0x840] sm:$0xff]
  %v4855 = vld [vmem:[%s6 + $0x848] sm:$0xf]
  %v4856 = vld [vmem:[%s6 + $0x84c] sm:$0xff]
  %v4857 = vld [vmem:[%s6 + $0x854] sm:$0xf]
  %v4858 = vld [vmem:[%s6 + $0x858] sm:$0xff]
  %v4859 = vld [vmem:[%s6 + $0x860] sm:$0xf]
  %v4860 = vld [vmem:[%s6 + $0x864] sm:$0xff]
  %v4861 = vld [vmem:[%s6 + $0x86c] sm:$0xf]
  %v4862 = vld [vmem:[%s6 + $0x870] sm:$0xff]
  %v4863 = vld [vmem:[%s6 + $0x878] sm:$0xf]
  %v4864 = vld [vmem:[%s6 + $0x87c] sm:$0xff]
  %v4865 = vld [vmem:[%s6 + $0x884] sm:$0xf]
  %v4866 = vld [vmem:[%s6 + $0x888] sm:$0xff]
  %v4867 = vld [vmem:[%s6 + $0x890] sm:$0xf]
  %v4868 = vld [vmem:[%s6 + $0x894] sm:$0xff]
  %v4869 = vld [vmem:[%s6 + $0x89c] sm:$0xf]
  %v4870 = vld [vmem:[%s6 + $0x8a0] sm:$0xff]
  %v4871 = vld [vmem:[%s6 + $0x8a8] sm:$0xf]
  %v4872 = vld [vmem:[%s6 + $0x8ac] sm:$0xff]
  %v4873 = vld [vmem:[%s6 + $0x8b4] sm:$0xf]
  %v4874 = vld [vmem:[%s6 + $0x8b8] sm:$0xff]
  %v4875 = vld [vmem:[%s6 + $0x8c0] sm:$0xf]
  %v4876 = vld [vmem:[%s6 + $0x8c4] sm:$0xff]
  %v4877 = vld [vmem:[%s6 + $0x8cc] sm:$0xf]
  %v4878 = vld [vmem:[%s6 + $0x8d0] sm:$0xff]
  %v4879 = vld [vmem:[%s6 + $0x8d8] sm:$0xf]
  %v4880 = vld [vmem:[%s6 + $0x8dc] sm:$0xff]
  %v4881 = vld [vmem:[%s6 + $0x8e4] sm:$0xf]
  %v4882 = vld [vmem:[%s6 + $0x8e8] sm:$0xff]
  %v4883 = vld [vmem:[%s6 + $0x8f0] sm:$0xf]
  %v4884 = vld [vmem:[%s6 + $0x8f4] sm:$0xff]
  %v4885 = vld [vmem:[%s6 + $0x8fc] sm:$0xf]
  %v4886 = vld [vmem:[%s6 + $0x900] sm:$0xff]
  %v4887 = vld [vmem:[%s6 + $0x908] sm:$0xf]
  %v4888 = vld [vmem:[%s6 + $0x90c] sm:$0xff]
  %v4889 = vld [vmem:[%s6 + $0x914] sm:$0xf]
  %v4890 = vld [vmem:[%s6 + $0x918] sm:$0xff]
  %v4891 = vld [vmem:[%s6 + $0x920] sm:$0xf]
  %v4892 = vld [vmem:[%s6 + $0x924] sm:$0xff]
  %v4893 = vld [vmem:[%s6 + $0x92c] sm:$0xf]
  %v4894 = vld [vmem:[%s6 + $0x930] sm:$0xff]
  %v4895 = vld [vmem:[%s6 + $0x938] sm:$0xf]
  %v4896 = vld [vmem:[%s6 + $0x93c] sm:$0xff]
  %v4897 = vld [vmem:[%s6 + $0x944] sm:$0xf]
  %v4898 = vld [vmem:[%s6 + $0x948] sm:$0xff]
  %v4899 = vld [vmem:[%s6 + $0x950] sm:$0xf]
  %v4900 = vld [vmem:[%s6 + $0x954] sm:$0xff]
  %v4901 = vld [vmem:[%s6 + $0x95c] sm:$0xf]
  %v4902 = vld [vmem:[%s6 + $0x960] sm:$0xff]
  %v4903 = vld [vmem:[%s6 + $0x968] sm:$0xf]
  %v4904 = vld [vmem:[%s6 + $0x96c] sm:$0xff]
  %v4905 = vld [vmem:[%s6 + $0x974] sm:$0xf]
  %v4906 = vld [vmem:[%s6 + $0x978] sm:$0xff]
  %v4907 = vld [vmem:[%s6 + $0x980] sm:$0xf]
  %v4908 = vld [vmem:[%s6 + $0x984] sm:$0xff]
  %v4909 = vld [vmem:[%s6 + $0x98c] sm:$0xf]
  %v4910 = vld [vmem:[%s6 + $0x990] sm:$0xff]
  %v4911 = vld [vmem:[%s6 + $0x998] sm:$0xf]
  %v4912 = vld [vmem:[%s6 + $0x99c] sm:$0xff]
  %v4913 = vld [vmem:[%s6 + $0x9a4] sm:$0xf]
  %v4914 = vld [vmem:[%s6 + $0x9a8] sm:$0xff]
  %v4915 = vld [vmem:[%s6 + $0x9b0] sm:$0xf]
  %v4916 = vld [vmem:[%s6 + $0x9b4] sm:$0xff]
  %v4917 = vld [vmem:[%s6 + $0x9bc] sm:$0xf]
  %v4918 = vld [vmem:[%s6 + $0x9c0] sm:$0xff]
  %v4919 = vld [vmem:[%s6 + $0x9c8] sm:$0xf]
  %v4920 = vld [vmem:[%s6 + $0x9cc] sm:$0xff]
  %v4921 = vld [vmem:[%s6 + $0x9d4] sm:$0xf]
  %v4922 = vld [vmem:[%s6 + $0x9d8] sm:$0xff]
  %v4923 = vld [vmem:[%s6 + $0x9e0] sm:$0xf]
  %v4924 = vld [vmem:[%s6 + $0x9e4] sm:$0xff]
  %v4925 = vld [vmem:[%s6 + $0x9ec] sm:$0xf]
  %v4926 = vld [vmem:[%s6 + $0x9f0] sm:$0xff]
  %v4927 = vld [vmem:[%s6 + $0x9f8] sm:$0xf]
  %v4928 = vld [vmem:[%s6 + $0x9fc] sm:$0xff]
  %v4929 = vld [vmem:[%s6 + $0xa04] sm:$0xf]
  %v4930 = vld [vmem:[%s6 + $0xa08] sm:$0xff]
  %v4931 = vld [vmem:[%s6 + $0xa10] sm:$0xf]
  %v4932 = vld [vmem:[%s6 + $0xa14] sm:$0xff]
  %v4933 = vld [vmem:[%s6 + $0xa1c] sm:$0xf]
  %v4934 = vld [vmem:[%s6 + $0xa20] sm:$0xff]
  %v4935 = vld [vmem:[%s6 + $0xa28] sm:$0xf]
  %v4936 = vld [vmem:[%s6 + $0xa2c] sm:$0xff]
  %v4937 = vld [vmem:[%s6 + $0xa34] sm:$0xf]
  %v4938 = vld [vmem:[%s6 + $0xa38] sm:$0xff]
  %v4939 = vld [vmem:[%s6 + $0xa40] sm:$0xf]
  %v4940 = vld [vmem:[%s6 + $0xa44] sm:$0xff]
  %v4941 = vld [vmem:[%s6 + $0xa4c] sm:$0xf]
  %v4942 = vld [vmem:[%s6 + $0xa50] sm:$0xff]
  %v4943 = vld [vmem:[%s6 + $0xa58] sm:$0xf]
  %v4944 = vld [vmem:[%s6 + $0xa5c] sm:$0xff]
  %v4945 = vld [vmem:[%s6 + $0xa64] sm:$0xf]
  %v4946 = vld [vmem:[%s6 + $0xa68] sm:$0xff]
  %v4947 = vld [vmem:[%s6 + $0xa70] sm:$0xf]
  %v4948 = vld [vmem:[%s6 + $0xa74] sm:$0xff]
  %v4949 = vld [vmem:[%s6 + $0xa7c] sm:$0xf]
  %v4950 = vld [vmem:[%s6 + $0xa80] sm:$0xff]
  %v4951 = vld [vmem:[%s6 + $0xa88] sm:$0xf]
  %v4952 = vld [vmem:[%s6 + $0xa8c] sm:$0xff]
  %v4953 = vld [vmem:[%s6 + $0xa94] sm:$0xf]
  %v4954 = vld [vmem:[%s6 + $0xa98] sm:$0xff]
  %v4955 = vld [vmem:[%s6 + $0xaa0] sm:$0xf]
  %v4956 = vld [vmem:[%s6 + $0xaa4] sm:$0xff]
  %v4957 = vld [vmem:[%s6 + $0xaac] sm:$0xf]
  %v4958 = vld [vmem:[%s6 + $0xab0] sm:$0xff]
  %v4959 = vld [vmem:[%s6 + $0xab8] sm:$0xf]
  %v4960 = vld [vmem:[%s6 + $0xabc] sm:$0xff]
  %v4961 = vld [vmem:[%s6 + $0xac4] sm:$0xf]
  %v4962 = vld [vmem:[%s6 + $0xac8] sm:$0xff]
  %v4963 = vld [vmem:[%s6 + $0xad0] sm:$0xf]
  %v4964 = vld [vmem:[%s6 + $0xad4] sm:$0xff]
  %v4965 = vld [vmem:[%s6 + $0xadc] sm:$0xf]
  %v4966 = vld [vmem:[%s6 + $0xae0] sm:$0xff]
  %v4967 = vld [vmem:[%s6 + $0xae8] sm:$0xf]
  %v4968 = vld [vmem:[%s6 + $0xaec] sm:$0xff]
  %v4969 = vld [vmem:[%s6 + $0xaf4] sm:$0xf]
  %v4970 = vld [vmem:[%s6 + $0xaf8] sm:$0xff]
  %v4971 = vld [vmem:[%s6 + $0xb00] sm:$0xf]
  %v4972 = vld [vmem:[%s6 + $0xb04] sm:$0xff]
  %v4973 = vld [vmem:[%s6 + $0xb0c] sm:$0xf]
  %v4974 = vld [vmem:[%s6 + $0xb10] sm:$0xff]
  %v4975 = vld [vmem:[%s6 + $0xb18] sm:$0xf]
  %v4976 = vld [vmem:[%s6 + $0xb1c] sm:$0xff]
  %v4977 = vld [vmem:[%s6 + $0xb24] sm:$0xf]
  %v4978 = vld [vmem:[%s6 + $0xb28] sm:$0xff]
  %v4979 = vld [vmem:[%s6 + $0xb30] sm:$0xf]
  %v4980 = vld [vmem:[%s6 + $0xb34] sm:$0xff]
  %v4981 = vld [vmem:[%s6 + $0xb3c] sm:$0xf]
  %v4982 = vld [vmem:[%s6 + $0xb40] sm:$0xff]
  %v4983 = vld [vmem:[%s6 + $0xb48] sm:$0xf]
  %v4984 = vld [vmem:[%s6 + $0xb4c] sm:$0xff]
  %v4985 = vld [vmem:[%s6 + $0xb54] sm:$0xf]
  %v4986 = vld [vmem:[%s6 + $0xb58] sm:$0xff]
  %v4987 = vld [vmem:[%s6 + $0xb60] sm:$0xf]
  %v4988 = vld [vmem:[%s6 + $0xb64] sm:$0xff]
  %v4989 = vld [vmem:[%s6 + $0xb6c] sm:$0xf]
  %v4990 = vld [vmem:[%s6 + $0xb70] sm:$0xff]
  %v4991 = vld [vmem:[%s6 + $0xb78] sm:$0xf]
  %v4992 = vld [vmem:[%s6 + $0xb7c] sm:$0xff]
  %v4993 = vld [vmem:[%s6 + $0xb84] sm:$0xf]
  %v4994 = vld [vmem:[%s6 + $0xb88] sm:$0xff]
  %v4995 = vld [vmem:[%s6 + $0xb90] sm:$0xf]
  %v4996 = vld [vmem:[%s6 + $0xb94] sm:$0xff]
  %v4997 = vld [vmem:[%s6 + $0xb9c] sm:$0xf]
  %v4998 = vld [vmem:[%s6 + $0xba0] sm:$0xff]
  %v4999 = vld [vmem:[%s6 + $0xba8] sm:$0xf]
  %v5000 = vld [vmem:[%s6 + $0xbac] sm:$0xff]
  %v5001 = vld [vmem:[%s6 + $0xbb4] sm:$0xf]
  %v5002 = vld [vmem:[%s6 + $0xbb8] sm:$0xff]
  %v5003 = vld [vmem:[%s6 + $0xbc0] sm:$0xf]
  %v5004 = vld [vmem:[%s6 + $0xbc4] sm:$0xff]
  %v5005 = vld [vmem:[%s6 + $0xbcc] sm:$0xf]
  %v5006 = vld [vmem:[%s6 + $0xbd0] sm:$0xff]
  %v5007 = vld [vmem:[%s6 + $0xbd8] sm:$0xf]
  %v5008 = vld [vmem:[%s6 + $0xbdc] sm:$0xff]
  %v5009 = vld [vmem:[%s6 + $0xbe4] sm:$0xf]
  %v5010 = vld [vmem:[%s6 + $0xbe8] sm:$0xff]
  %v5011 = vld [vmem:[%s6 + $0xbf0] sm:$0xf]
  %v5012 = vld [vmem:[%s6 + $0xbf4] sm:$0xff]
  %v5013 = vld [vmem:[%s6 + $0xbfc] sm:$0xf]
  %v5014 = vld [vmem:[%s6 + $0xc00] sm:$0xff]
  %v5015 = vld [vmem:[%s6 + $0xc08] sm:$0xf]
  %v5016 = vld [vmem:[%s6 + $0xc0c] sm:$0xff]
  %v5017 = vld [vmem:[%s6 + $0xc14] sm:$0xf]
  %v5018 = vld [vmem:[%s6 + $0xc18] sm:$0xff]
  %v5019 = vld [vmem:[%s6 + $0xc20] sm:$0xf]
  %v5020 = vld [vmem:[%s6 + $0xc24] sm:$0xff]
  %v5021 = vld [vmem:[%s6 + $0xc2c] sm:$0xf]
  %v5022 = vld [vmem:[%s6 + $0xc30] sm:$0xff]
  %v5023 = vld [vmem:[%s6 + $0xc38] sm:$0xf]
  %v5024 = vld [vmem:[%s6 + $0xc3c] sm:$0xff]
  %v5025 = vld [vmem:[%s6 + $0xc44] sm:$0xf]
  %v5026 = vld [vmem:[%s6 + $0xc48] sm:$0xff]
  %v5027 = vld [vmem:[%s6 + $0xc50] sm:$0xf]
  %v5028 = vld [vmem:[%s6 + $0xc54] sm:$0xff]
  %v5029 = vld [vmem:[%s6 + $0xc5c] sm:$0xf]
  %v5030 = vld [vmem:[%s6 + $0xc60] sm:$0xff]
  %v5031 = vld [vmem:[%s6 + $0xc68] sm:$0xf]
  %v5032 = vld [vmem:[%s6 + $0xc6c] sm:$0xff]
  %v5033 = vld [vmem:[%s6 + $0xc74] sm:$0xf]
  %v5034 = vld [vmem:[%s6 + $0xc78] sm:$0xff]
  %v5035 = vld [vmem:[%s6 + $0xc80] sm:$0xf]
  %v5036 = vld [vmem:[%s6 + $0xc84] sm:$0xff]
  %v5037 = vld [vmem:[%s6 + $0xc8c] sm:$0xf]
  %v5038 = vld [vmem:[%s6 + $0xc90] sm:$0xff]
  %v5039 = vld [vmem:[%s6 + $0xc98] sm:$0xf]
  %v5040 = vld [vmem:[%s6 + $0xc9c] sm:$0xff]
  %v5041 = vld [vmem:[%s6 + $0xca4] sm:$0xf]
  %v5042 = vld [vmem:[%s6 + $0xca8] sm:$0xff]
  %v5043 = vld [vmem:[%s6 + $0xcb0] sm:$0xf]
  %v5044 = vld [vmem:[%s6 + $0xcb4] sm:$0xff]
  %v5045 = vld [vmem:[%s6 + $0xcbc] sm:$0xf]
  %v5046 = vld [vmem:[%s6 + $0xcc0] sm:$0xff]
  %v5047 = vld [vmem:[%s6 + $0xcc8] sm:$0xf]
  %v5048 = vld [vmem:[%s6 + $0xccc] sm:$0xff]
  %v5049 = vld [vmem:[%s6 + $0xcd4] sm:$0xf]
  %v5050 = vld [vmem:[%s6 + $0xcd8] sm:$0xff]
  %v5051 = vld [vmem:[%s6 + $0xce0] sm:$0xf]
  %v5052 = vld [vmem:[%s6 + $0xce4] sm:$0xff]
  %v5053 = vld [vmem:[%s6 + $0xcec] sm:$0xf]
  %v5054 = vld [vmem:[%s6 + $0xcf0] sm:$0xff]
  %v5055 = vld [vmem:[%s6 + $0xcf8] sm:$0xf]
  %v5056 = vld [vmem:[%s6 + $0xcfc] sm:$0xff]
  %v5057 = vld [vmem:[%s6 + $0xd04] sm:$0xf]
  %v5058 = vld [vmem:[%s6 + $0xd08] sm:$0xff]
  %v5059 = vld [vmem:[%s6 + $0xd10] sm:$0xf]
  %v5060 = vld [vmem:[%s6 + $0xd14] sm:$0xff]
  %v5061 = vld [vmem:[%s6 + $0xd1c] sm:$0xf]
  %v5062 = vld [vmem:[%s6 + $0xd20] sm:$0xff]
  %v5063 = vld [vmem:[%s6 + $0xd28] sm:$0xf]
  %v5064 = vld [vmem:[%s6 + $0xd2c] sm:$0xff]
  %v5065 = vld [vmem:[%s6 + $0xd34] sm:$0xf]
  %v5066 = vld [vmem:[%s6 + $0xd38] sm:$0xff]
  %v5067 = vld [vmem:[%s6 + $0xd40] sm:$0xf]
  %v5068 = vld [vmem:[%s6 + $0xd44] sm:$0xff]
  %v5069 = vld [vmem:[%s6 + $0xd4c] sm:$0xf]
  %v5070 = vld [vmem:[%s6 + $0xd50] sm:$0xff]
  %v5071 = vld [vmem:[%s6 + $0xd58] sm:$0xf]
  %v5072 = vld [vmem:[%s6 + $0xd5c] sm:$0xff]
  %v5073 = vld [vmem:[%s6 + $0xd64] sm:$0xf]
  %v5074 = vld [vmem:[%s6 + $0xd68] sm:$0xff]
  %v5075 = vld [vmem:[%s6 + $0xd70] sm:$0xf]
  %v5076 = vld [vmem:[%s6 + $0xd74] sm:$0xff]
  %v5077 = vld [vmem:[%s6 + $0xd7c] sm:$0xf]
  %v5078 = vld [vmem:[%s7] sm:$0x7]
  %v5080 = vperm.slane %v5078, 0
  %v5081 = vperm.slane %v5078, 1
  %v5082 = vperm.slane %v5078, 2
  %v5095 = vunpack.c.l.b16 %v4493
  %v5096 = vunpack.c.h.b16 %v4493
  %v5097 = vunpack.c.l.b16 %v4494
  %v5098 = vunpack.c.h.b16 %v4494
  %v5099 = vunpack.c.l.b16 %v4495
  %v5100 = vunpack.c.h.b16 %v4495
  %v5101 = vunpack.c.l.b16 %v4496
  %v5102 = vunpack.c.h.b16 %v4496
  %v5103 = vunpack.c.l.b16 %v4497
  %v5104 = vunpack.c.h.b16 %v4497
  %v5105 = vunpack.c.l.b16 %v4498
  %v5106 = vunpack.c.h.b16 %v4498
  %v5107 = vunpack.c.l.b16 %v4499
  %v5108 = vunpack.c.h.b16 %v4499
  %v5109 = vunpack.c.l.b16 %v4500
  %v5110 = vunpack.c.h.b16 %v4500
  %v5111 = vunpack.c.l.b16 %v4501
  %v5112 = vunpack.c.h.b16 %v4501
  %v5113 = vpack.c.b16 %v5095, %v5095
  %v5114 = vpack.c.b16 %v5096, %v5096
  %v5115 = vpack.c.b16 %v5097, %v5097
  %v5116 = vpack.c.b16 %v5098, %v5098
  %v5117 = vpack.c.b16 %v5099, %v5099
  %v5118 = vpack.c.b16 %v5100, %v5100
  %v5119 = vpack.c.b16 %v5101, %v5101
  %v5120 = vpack.c.b16 %v5102, %v5102
  %v5121 = vpack.c.b16 %v5103, %v5103
  %v5122 = vpack.c.b16 %v5104, %v5104
  %v5123 = vpack.c.b16 %v5105, %v5105
  %v5124 = vpack.c.b16 %v5106, %v5106
  %v5125 = vpack.c.b16 %v5107, %v5107
  %v5126 = vpack.c.b16 %v5108, %v5108
  %v5127 = vpack.c.b16 %v5109, %v5109
  %v5128 = vpack.c.b16 %v5110, %v5110
  %v5129 = vpack.c.b16 %v5111, %v5111
  %v5130 = vpack.c.b16 %v5112, %v5112
  %v5725 = vunpack.c.l.b16 %v4502
  %v5726 = vunpack.c.h.b16 %v4502
  %v5727 = vunpack.c.l.b16 %v4503
  %v5728 = vunpack.c.l.b16 %v4504
  %v5729 = vunpack.c.h.b16 %v4504
  %v5730 = vunpack.c.l.b16 %v4505
  %v5731 = vunpack.c.l.b16 %v4506
  %v5732 = vunpack.c.h.b16 %v4506
  %v5733 = vunpack.c.l.b16 %v4507
  %v5734 = vunpack.c.l.b16 %v4508
  %v5735 = vunpack.c.h.b16 %v4508
  %v5736 = vunpack.c.l.b16 %v4509
  %v5737 = vunpack.c.l.b16 %v4510
  %v5738 = vunpack.c.h.b16 %v4510
  %v5739 = vunpack.c.l.b16 %v4511
  %v5740 = vunpack.c.l.b16 %v4512
  %v5741 = vunpack.c.h.b16 %v4512
  %v5742 = vunpack.c.l.b16 %v4513
  %v5743 = vunpack.c.l.b16 %v4514
  %v5744 = vunpack.c.h.b16 %v4514
  %v5745 = vunpack.c.l.b16 %v4515
  %v5746 = vunpack.c.l.b16 %v4516
  %v5747 = vunpack.c.h.b16 %v4516
  %v5748 = vunpack.c.l.b16 %v4517
  %v5749 = vunpack.c.l.b16 %v4518
  %v5750 = vunpack.c.h.b16 %v4518
  %v5751 = vunpack.c.l.b16 %v4519
  %v5752 = vunpack.c.l.b16 %v4520
  %v5753 = vunpack.c.h.b16 %v4520
  %v5754 = vunpack.c.l.b16 %v4521
  %v5755 = vunpack.c.l.b16 %v4522
  %v5756 = vunpack.c.h.b16 %v4522
  %v5757 = vunpack.c.l.b16 %v4523
  %v5758 = vunpack.c.l.b16 %v4524
  %v5759 = vunpack.c.h.b16 %v4524
  %v5760 = vunpack.c.l.b16 %v4525
  %v5761 = vunpack.c.l.b16 %v4526
  %v5762 = vunpack.c.h.b16 %v4526
  %v5763 = vunpack.c.l.b16 %v4527
  %v5764 = vunpack.c.l.b16 %v4528
  %v5765 = vunpack.c.h.b16 %v4528
  %v5766 = vunpack.c.l.b16 %v4529
  %v5767 = vunpack.c.l.b16 %v4530
  %v5768 = vunpack.c.h.b16 %v4530
  %v5769 = vunpack.c.l.b16 %v4531
  %v5770 = vunpack.c.l.b16 %v4532
  %v5771 = vunpack.c.h.b16 %v4532
  %v5772 = vunpack.c.l.b16 %v4533
  %v5773 = vunpack.c.l.b16 %v4534
  %v5774 = vunpack.c.h.b16 %v4534
  %v5775 = vunpack.c.l.b16 %v4535
  %v5776 = vunpack.c.l.b16 %v4536
  %v5777 = vunpack.c.h.b16 %v4536
  %v5778 = vunpack.c.l.b16 %v4537
  %v5779 = vunpack.c.l.b16 %v4538
  %v5780 = vunpack.c.h.b16 %v4538
  %v5781 = vunpack.c.l.b16 %v4539
  %v5782 = vunpack.c.l.b16 %v4540
  %v5783 = vunpack.c.h.b16 %v4540
  %v5784 = vunpack.c.l.b16 %v4541
  %v5785 = vunpack.c.l.b16 %v4542
  %v5786 = vunpack.c.h.b16 %v4542
  %v5787 = vunpack.c.l.b16 %v4543
  %v5788 = vunpack.c.l.b16 %v4544
  %v5789 = vunpack.c.h.b16 %v4544
  %v5790 = vunpack.c.l.b16 %v4545
  %v5791 = vunpack.c.l.b16 %v4546
  %v5792 = vunpack.c.h.b16 %v4546
  %v5793 = vunpack.c.l.b16 %v4547
  %v5794 = vunpack.c.l.b16 %v4548
  %v5795 = vunpack.c.h.b16 %v4548
  %v5796 = vunpack.c.l.b16 %v4549
  %v5797 = vunpack.c.l.b16 %v4550
  %v5798 = vunpack.c.h.b16 %v4550
  %v5799 = vunpack.c.l.b16 %v4551
  %v5800 = vunpack.c.l.b16 %v4552
  %v5801 = vunpack.c.h.b16 %v4552
  %v5802 = vunpack.c.l.b16 %v4553
  %v5803 = vunpack.c.l.b16 %v4554
  %v5804 = vunpack.c.h.b16 %v4554
  %v5805 = vunpack.c.l.b16 %v4555
  %v5806 = vunpack.c.l.b16 %v4556
  %v5807 = vunpack.c.h.b16 %v4556
  %v5808 = vunpack.c.l.b16 %v4557
  %v5809 = vunpack.c.l.b16 %v4558
  %v5810 = vunpack.c.h.b16 %v4558
  %v5811 = vunpack.c.l.b16 %v4559
  %v5812 = vunpack.c.l.b16 %v4560
  %v5813 = vunpack.c.h.b16 %v4560
  %v5814 = vunpack.c.l.b16 %v4561
  %v5815 = vunpack.c.l.b16 %v4562
  %v5816 = vunpack.c.h.b16 %v4562
  %v5817 = vunpack.c.l.b16 %v4563
  %v5818 = vunpack.c.l.b16 %v4564
  %v5819 = vunpack.c.h.b16 %v4564
  %v5820 = vunpack.c.l.b16 %v4565
  %v5821 = vunpack.c.l.b16 %v4566
  %v5822 = vunpack.c.h.b16 %v4566
  %v5823 = vunpack.c.l.b16 %v4567
  %v5824 = vunpack.c.l.b16 %v4568
  %v5825 = vunpack.c.h.b16 %v4568
  %v5826 = vunpack.c.l.b16 %v4569
  %v5827 = vunpack.c.l.b16 %v4570
  %v5828 = vunpack.c.h.b16 %v4570
  %v5829 = vunpack.c.l.b16 %v4571
  %v5830 = vunpack.c.l.b16 %v4572
  %v5831 = vunpack.c.h.b16 %v4572
  %v5832 = vunpack.c.l.b16 %v4573
  %v5833 = vunpack.c.l.b16 %v4574
  %v5834 = vunpack.c.h.b16 %v4574
  %v5835 = vunpack.c.l.b16 %v4575
  %v5836 = vunpack.c.l.b16 %v4576
  %v5837 = vunpack.c.h.b16 %v4576
  %v5838 = vunpack.c.l.b16 %v4577
  %v5839 = vunpack.c.l.b16 %v4578
  %v5840 = vunpack.c.h.b16 %v4578
  %v5841 = vunpack.c.l.b16 %v4579
  %v5842 = vunpack.c.l.b16 %v4580
  %v5843 = vunpack.c.h.b16 %v4580
  %v5844 = vunpack.c.l.b16 %v4581
  %v5845 = vunpack.c.l.b16 %v4582
  %v5846 = vunpack.c.h.b16 %v4582
  %v5847 = vunpack.c.l.b16 %v4583
  %v5848 = vunpack.c.l.b16 %v4584
  %v5849 = vunpack.c.h.b16 %v4584
  %v5850 = vunpack.c.l.b16 %v4585
  %v5851 = vunpack.c.l.b16 %v4586
  %v5852 = vunpack.c.h.b16 %v4586
  %v5853 = vunpack.c.l.b16 %v4587
  %v5854 = vunpack.c.l.b16 %v4588
  %v5855 = vunpack.c.h.b16 %v4588
  %v5856 = vunpack.c.l.b16 %v4589
  %v5857 = vunpack.c.l.b16 %v4590
  %v5858 = vunpack.c.h.b16 %v4590
  %v5859 = vunpack.c.l.b16 %v4591
  %v5860 = vunpack.c.l.b16 %v4592
  %v5861 = vunpack.c.h.b16 %v4592
  %v5862 = vunpack.c.l.b16 %v4593
  %v5863 = vunpack.c.l.b16 %v4594
  %v5864 = vunpack.c.h.b16 %v4594
  %v5865 = vunpack.c.l.b16 %v4595
  %v5866 = vunpack.c.l.b16 %v4596
  %v5867 = vunpack.c.h.b16 %v4596
  %v5868 = vunpack.c.l.b16 %v4597
  %v5869 = vunpack.c.l.b16 %v4598
  %v5870 = vunpack.c.h.b16 %v4598
  %v5871 = vunpack.c.l.b16 %v4599
  %v5872 = vunpack.c.l.b16 %v4600
  %v5873 = vunpack.c.h.b16 %v4600
  %v5874 = vunpack.c.l.b16 %v4601
  %v5875 = vunpack.c.l.b16 %v4602
  %v5876 = vunpack.c.h.b16 %v4602
  %v5877 = vunpack.c.l.b16 %v4603
  %v5878 = vunpack.c.l.b16 %v4604
  %v5879 = vunpack.c.h.b16 %v4604
  %v5880 = vunpack.c.l.b16 %v4605
  %v5881 = vunpack.c.l.b16 %v4606
  %v5882 = vunpack.c.h.b16 %v4606
  %v5883 = vunpack.c.l.b16 %v4607
  %v5884 = vunpack.c.l.b16 %v4608
  %v5885 = vunpack.c.h.b16 %v4608
  %v5886 = vunpack.c.l.b16 %v4609
  %v5887 = vunpack.c.l.b16 %v4610
  %v5888 = vunpack.c.h.b16 %v4610
  %v5889 = vunpack.c.l.b16 %v4611
  %v5890 = vunpack.c.l.b16 %v4612
  %v5891 = vunpack.c.h.b16 %v4612
  %v5892 = vunpack.c.l.b16 %v4613
  %v5893 = vunpack.c.l.b16 %v4614
  %v5894 = vunpack.c.h.b16 %v4614
  %v5895 = vunpack.c.l.b16 %v4615
  %v5896 = vunpack.c.l.b16 %v4616
  %v5897 = vunpack.c.h.b16 %v4616
  %v5898 = vunpack.c.l.b16 %v4617
  %v5899 = vunpack.c.l.b16 %v4618
  %v5900 = vunpack.c.h.b16 %v4618
  %v5901 = vunpack.c.l.b16 %v4619
  %v5902 = vunpack.c.l.b16 %v4620
  %v5903 = vunpack.c.h.b16 %v4620
  %v5904 = vunpack.c.l.b16 %v4621
  %v5905 = vunpack.c.l.b16 %v4622
  %v5906 = vunpack.c.h.b16 %v4622
  %v5907 = vunpack.c.l.b16 %v4623
  %v5908 = vunpack.c.l.b16 %v4624
  %v5909 = vunpack.c.h.b16 %v4624
  %v5910 = vunpack.c.l.b16 %v4625
  %v5911 = vunpack.c.l.b16 %v4626
  %v5912 = vunpack.c.h.b16 %v4626
  %v5913 = vunpack.c.l.b16 %v4627
  %v5914 = vunpack.c.l.b16 %v4628
  %v5915 = vunpack.c.h.b16 %v4628
  %v5916 = vunpack.c.l.b16 %v4629
  %v5917 = vunpack.c.l.b16 %v4630
  %v5918 = vunpack.c.h.b16 %v4630
  %v5919 = vunpack.c.l.b16 %v4631
  %v5920 = vunpack.c.l.b16 %v4632
  %v5921 = vunpack.c.h.b16 %v4632
  %v5922 = vunpack.c.l.b16 %v4633
  %v5923 = vunpack.c.l.b16 %v4634
  %v5924 = vunpack.c.h.b16 %v4634
  %v5925 = vunpack.c.l.b16 %v4635
  %v5926 = vunpack.c.l.b16 %v4636
  %v5927 = vunpack.c.h.b16 %v4636
  %v5928 = vunpack.c.l.b16 %v4637
  %v5929 = vunpack.c.l.b16 %v4638
  %v5930 = vunpack.c.h.b16 %v4638
  %v5931 = vunpack.c.l.b16 %v4639
  %v5932 = vunpack.c.l.b16 %v4640
  %v5933 = vunpack.c.h.b16 %v4640
  %v5934 = vunpack.c.l.b16 %v4641
  %v5935 = vunpack.c.l.b16 %v4642
  %v5936 = vunpack.c.h.b16 %v4642
  %v5937 = vunpack.c.l.b16 %v4643
  %v5938 = vunpack.c.l.b16 %v4644
  %v5939 = vunpack.c.h.b16 %v4644
  %v5940 = vunpack.c.l.b16 %v4645
  %v5941 = vunpack.c.l.b16 %v4646
  %v5942 = vunpack.c.h.b16 %v4646
  %v5943 = vunpack.c.l.b16 %v4647
  %v5944 = vunpack.c.l.b16 %v4648
  %v5945 = vunpack.c.h.b16 %v4648
  %v5946 = vunpack.c.l.b16 %v4649
  %v5947 = vunpack.c.l.b16 %v4650
  %v5948 = vunpack.c.h.b16 %v4650
  %v5949 = vunpack.c.l.b16 %v4651
  %v5950 = vunpack.c.l.b16 %v4652
  %v5951 = vunpack.c.h.b16 %v4652
  %v5952 = vunpack.c.l.b16 %v4653
  %v5953 = vunpack.c.l.b16 %v4654
  %v5954 = vunpack.c.h.b16 %v4654
  %v5955 = vunpack.c.l.b16 %v4655
  %v5956 = vunpack.c.l.b16 %v4656
  %v5957 = vunpack.c.h.b16 %v4656
  %v5958 = vunpack.c.l.b16 %v4657
  %v5959 = vunpack.c.l.b16 %v4658
  %v5960 = vunpack.c.h.b16 %v4658
  %v5961 = vunpack.c.l.b16 %v4659
  %v5962 = vunpack.c.l.b16 %v4660
  %v5963 = vunpack.c.h.b16 %v4660
  %v5964 = vunpack.c.l.b16 %v4661
  %v5965 = vunpack.c.l.b16 %v4662
  %v5966 = vunpack.c.h.b16 %v4662
  %v5967 = vunpack.c.l.b16 %v4663
  %v5968 = vunpack.c.l.b16 %v4664
  %v5969 = vunpack.c.h.b16 %v4664
  %v5970 = vunpack.c.l.b16 %v4665
  %v5971 = vunpack.c.l.b16 %v4666
  %v5972 = vunpack.c.h.b16 %v4666
  %v5973 = vunpack.c.l.b16 %v4667
  %v5974 = vunpack.c.l.b16 %v4668
  %v5975 = vunpack.c.h.b16 %v4668
  %v5976 = vunpack.c.l.b16 %v4669
  %v5977 = vunpack.c.l.b16 %v4670
  %v5978 = vunpack.c.h.b16 %v4670
  %v5979 = vunpack.c.l.b16 %v4671
  %v5980 = vunpack.c.l.b16 %v4672
  %v5981 = vunpack.c.h.b16 %v4672
  %v5982 = vunpack.c.l.b16 %v4673
  %v5983 = vunpack.c.l.b16 %v4674
  %v5984 = vunpack.c.h.b16 %v4674
  %v5985 = vunpack.c.l.b16 %v4675
  %v5986 = vunpack.c.l.b16 %v4676
  %v5987 = vunpack.c.h.b16 %v4676
  %v5988 = vunpack.c.l.b16 %v4677
  %v5989 = vunpack.c.l.b16 %v4678
  %v5990 = vunpack.c.h.b16 %v4678
  %v5991 = vunpack.c.l.b16 %v4679
  %v5992 = vunpack.c.l.b16 %v4680
  %v5993 = vunpack.c.h.b16 %v4680
  %v5994 = vunpack.c.l.b16 %v4681
  %v5995 = vunpack.c.l.b16 %v4682
  %v5996 = vunpack.c.h.b16 %v4682
  %v5997 = vunpack.c.l.b16 %v4683
  %v5998 = vunpack.c.l.b16 %v4684
  %v5999 = vunpack.c.h.b16 %v4684
  %v6000 = vunpack.c.l.b16 %v4685
  %v6001 = vunpack.c.l.b16 %v4686
  %v6002 = vunpack.c.h.b16 %v4686
  %v6003 = vunpack.c.l.b16 %v4687
  %v6004 = vunpack.c.l.b16 %v4688
  %v6005 = vunpack.c.h.b16 %v4688
  %v6006 = vunpack.c.l.b16 %v4689
  %v6007 = vunpack.c.l.b16 %v4690
  %v6008 = vunpack.c.h.b16 %v4690
  %v6009 = vunpack.c.l.b16 %v4691
  %v6010 = vunpack.c.l.b16 %v4692
  %v6011 = vunpack.c.h.b16 %v4692
  %v6012 = vunpack.c.l.b16 %v4693
  %v6013 = vunpack.c.l.b16 %v4694
  %v6014 = vunpack.c.h.b16 %v4694
  %v6015 = vunpack.c.l.b16 %v4695
  %v6016 = vunpack.c.l.b16 %v4696
  %v6017 = vunpack.c.h.b16 %v4696
  %v6018 = vunpack.c.l.b16 %v4697
  %v6019 = vunpack.c.l.b16 %v4698
  %v6020 = vunpack.c.h.b16 %v4698
  %v6021 = vunpack.c.l.b16 %v4699
  %v6022 = vunpack.c.l.b16 %v4700
  %v6023 = vunpack.c.h.b16 %v4700
  %v6024 = vunpack.c.l.b16 %v4701
  %v6025 = vunpack.c.l.b16 %v4702
  %v6026 = vunpack.c.h.b16 %v4702
  %v6027 = vunpack.c.l.b16 %v4703
  %v6028 = vunpack.c.l.b16 %v4704
  %v6029 = vunpack.c.h.b16 %v4704
  %v6030 = vunpack.c.l.b16 %v4705
  %v6031 = vunpack.c.l.b16 %v4706
  %v6032 = vunpack.c.h.b16 %v4706
  %v6033 = vunpack.c.l.b16 %v4707
  %v6034 = vunpack.c.l.b16 %v4708
  %v6035 = vunpack.c.h.b16 %v4708
  %v6036 = vunpack.c.l.b16 %v4709
  %v6037 = vunpack.c.l.b16 %v4710
  %v6038 = vunpack.c.h.b16 %v4710
  %v6039 = vunpack.c.l.b16 %v4711
  %v6040 = vunpack.c.l.b16 %v4712
  %v6041 = vunpack.c.h.b16 %v4712
  %v6042 = vunpack.c.l.b16 %v4713
  %v6043 = vunpack.c.l.b16 %v4714
  %v6044 = vunpack.c.h.b16 %v4714
  %v6045 = vunpack.c.l.b16 %v4715
  %v6046 = vunpack.c.l.b16 %v4716
  %v6047 = vunpack.c.h.b16 %v4716
  %v6048 = vunpack.c.l.b16 %v4717
  %v6049 = vunpack.c.l.b16 %v4718
  %v6050 = vunpack.c.h.b16 %v4718
  %v6051 = vunpack.c.l.b16 %v4719
  %v6052 = vunpack.c.l.b16 %v4720
  %v6053 = vunpack.c.h.b16 %v4720
  %v6054 = vunpack.c.l.b16 %v4721
  %v6055 = vunpack.c.l.b16 %v4722
  %v6056 = vunpack.c.h.b16 %v4722
  %v6057 = vunpack.c.l.b16 %v4723
  %v6058 = vunpack.c.l.b16 %v4724
  %v6059 = vunpack.c.h.b16 %v4724
  %v6060 = vunpack.c.l.b16 %v4725
  %v6061 = vunpack.c.l.b16 %v4726
  %v6062 = vunpack.c.h.b16 %v4726
  %v6063 = vunpack.c.l.b16 %v4727
  %v6064 = vunpack.c.l.b16 %v4728
  %v6065 = vunpack.c.h.b16 %v4728
  %v6066 = vunpack.c.l.b16 %v4729
  %v6067 = vunpack.c.l.b16 %v4730
  %v6068 = vunpack.c.h.b16 %v4730
  %v6069 = vunpack.c.l.b16 %v4731
  %v6070 = vunpack.c.l.b16 %v4732
  %v6071 = vunpack.c.h.b16 %v4732
  %v6072 = vunpack.c.l.b16 %v4733
  %v6073 = vunpack.c.l.b16 %v4734
  %v6074 = vunpack.c.h.b16 %v4734
  %v6075 = vunpack.c.l.b16 %v4735
  %v6076 = vunpack.c.l.b16 %v4736
  %v6077 = vunpack.c.h.b16 %v4736
  %v6078 = vunpack.c.l.b16 %v4737
  %v6079 = vunpack.c.l.b16 %v4738
  %v6080 = vunpack.c.h.b16 %v4738
  %v6081 = vunpack.c.l.b16 %v4739
  %v6082 = vunpack.c.l.b16 %v4740
  %v6083 = vunpack.c.h.b16 %v4740
  %v6084 = vunpack.c.l.b16 %v4741
  %v6085 = vunpack.c.l.b16 %v4742
  %v6086 = vunpack.c.h.b16 %v4742
  %v6087 = vunpack.c.l.b16 %v4743
  %v6088 = vunpack.c.l.b16 %v4744
  %v6089 = vunpack.c.h.b16 %v4744
  %v6090 = vunpack.c.l.b16 %v4745
  %v6091 = vunpack.c.l.b16 %v4746
  %v6092 = vunpack.c.h.b16 %v4746
  %v6093 = vunpack.c.l.b16 %v4747
  %v6094 = vunpack.c.l.b16 %v4748
  %v6095 = vunpack.c.h.b16 %v4748
  %v6096 = vunpack.c.l.b16 %v4749
  %v6097 = vunpack.c.l.b16 %v4750
  %v6098 = vunpack.c.h.b16 %v4750
  %v6099 = vunpack.c.l.b16 %v4751
  %v6100 = vunpack.c.l.b16 %v4752
  %v6101 = vunpack.c.h.b16 %v4752
  %v6102 = vunpack.c.l.b16 %v4753
  %v6103 = vunpack.c.l.b16 %v4754
  %v6104 = vunpack.c.h.b16 %v4754
  %v6105 = vunpack.c.l.b16 %v4755
  %v6106 = vunpack.c.l.b16 %v4756
  %v6107 = vunpack.c.h.b16 %v4756
  %v6108 = vunpack.c.l.b16 %v4757
  %v6109 = vunpack.c.l.b16 %v4758
  %v6110 = vunpack.c.h.b16 %v4758
  %v6111 = vunpack.c.l.b16 %v4759
  %v6112 = vunpack.c.l.b16 %v4760
  %v6113 = vunpack.c.h.b16 %v4760
  %v6114 = vunpack.c.l.b16 %v4761
  %v6115 = vunpack.c.l.b16 %v4762
  %v6116 = vunpack.c.h.b16 %v4762
  %v6117 = vunpack.c.l.b16 %v4763
  %v6118 = vunpack.c.l.b16 %v4764
  %v6119 = vunpack.c.h.b16 %v4764
  %v6120 = vunpack.c.l.b16 %v4765
  %v6121 = vunpack.c.l.b16 %v4766
  %v6122 = vunpack.c.h.b16 %v4766
  %v6123 = vunpack.c.l.b16 %v4767
  %v6124 = vunpack.c.l.b16 %v4768
  %v6125 = vunpack.c.h.b16 %v4768
  %v6126 = vunpack.c.l.b16 %v4769
  %v6127 = vunpack.c.l.b16 %v4770
  %v6128 = vunpack.c.h.b16 %v4770
  %v6129 = vunpack.c.l.b16 %v4771
  %v6130 = vunpack.c.l.b16 %v4772
  %v6131 = vunpack.c.h.b16 %v4772
  %v6132 = vunpack.c.l.b16 %v4773
  %v6133 = vunpack.c.l.b16 %v4774
  %v6134 = vunpack.c.h.b16 %v4774
  %v6135 = vunpack.c.l.b16 %v4775
  %v6136 = vunpack.c.l.b16 %v4776
  %v6137 = vunpack.c.h.b16 %v4776
  %v6138 = vunpack.c.l.b16 %v4777
  %v6139 = vunpack.c.l.b16 %v4778
  %v6140 = vunpack.c.h.b16 %v4778
  %v6141 = vunpack.c.l.b16 %v4779
  %v6142 = vunpack.c.l.b16 %v4780
  %v6143 = vunpack.c.h.b16 %v4780
  %v6144 = vunpack.c.l.b16 %v4781
  %v6145 = vunpack.c.l.b16 %v4782
  %v6146 = vunpack.c.h.b16 %v4782
  %v6147 = vunpack.c.l.b16 %v4783
  %v6148 = vunpack.c.l.b16 %v4784
  %v6149 = vunpack.c.h.b16 %v4784
  %v6150 = vunpack.c.l.b16 %v4785
  %v6151 = vunpack.c.l.b16 %v4786
  %v6152 = vunpack.c.h.b16 %v4786
  %v6153 = vunpack.c.l.b16 %v4787
  %v6154 = vunpack.c.l.b16 %v4788
  %v6155 = vunpack.c.h.b16 %v4788
  %v6156 = vunpack.c.l.b16 %v4789
  %v6157 = vunpack.c.l.b16 %v4790
  %v6158 = vunpack.c.h.b16 %v4790
  %v6159 = vunpack.c.l.b16 %v4791
  %v6160 = vunpack.c.l.b16 %v4792
  %v6161 = vunpack.c.h.b16 %v4792
  %v6162 = vunpack.c.l.b16 %v4793
  %v6163 = vunpack.c.l.b16 %v4794
  %v6164 = vunpack.c.h.b16 %v4794
  %v6165 = vunpack.c.l.b16 %v4795
  %v6166 = vunpack.c.l.b16 %v4796
  %v6167 = vunpack.c.h.b16 %v4796
  %v6168 = vunpack.c.l.b16 %v4797
  %v6169 = vunpack.c.l.b16 %v4798
  %v6170 = vunpack.c.h.b16 %v4798
  %v6171 = vunpack.c.l.b16 %v4799
  %v6172 = vunpack.c.l.b16 %v4800
  %v6173 = vunpack.c.h.b16 %v4800
  %v6174 = vunpack.c.l.b16 %v4801
  %v6175 = vunpack.c.l.b16 %v4802
  %v6176 = vunpack.c.h.b16 %v4802
  %v6177 = vunpack.c.l.b16 %v4803
  %v6178 = vunpack.c.l.b16 %v4804
  %v6179 = vunpack.c.h.b16 %v4804
  %v6180 = vunpack.c.l.b16 %v4805
  %v6181 = vunpack.c.l.b16 %v4806
  %v6182 = vunpack.c.h.b16 %v4806
  %v6183 = vunpack.c.l.b16 %v4807
  %v6184 = vunpack.c.l.b16 %v4808
  %v6185 = vunpack.c.h.b16 %v4808
  %v6186 = vunpack.c.l.b16 %v4809
  %v6187 = vunpack.c.l.b16 %v4810
  %v6188 = vunpack.c.h.b16 %v4810
  %v6189 = vunpack.c.l.b16 %v4811
  %v6190 = vunpack.c.l.b16 %v4812
  %v6191 = vunpack.c.h.b16 %v4812
  %v6192 = vunpack.c.l.b16 %v4813
  %v6193 = vunpack.c.l.b16 %v4814
  %v6194 = vunpack.c.h.b16 %v4814
  %v6195 = vunpack.c.l.b16 %v4815
  %v6196 = vunpack.c.l.b16 %v4816
  %v6197 = vunpack.c.h.b16 %v4816
  %v6198 = vunpack.c.l.b16 %v4817
  %v6199 = vunpack.c.l.b16 %v4818
  %v6200 = vunpack.c.h.b16 %v4818
  %v6201 = vunpack.c.l.b16 %v4819
  %v6202 = vunpack.c.l.b16 %v4820
  %v6203 = vunpack.c.h.b16 %v4820
  %v6204 = vunpack.c.l.b16 %v4821
  %v6205 = vunpack.c.l.b16 %v4822
  %v6206 = vunpack.c.h.b16 %v4822
  %v6207 = vunpack.c.l.b16 %v4823
  %v6208 = vunpack.c.l.b16 %v4824
  %v6209 = vunpack.c.h.b16 %v4824
  %v6210 = vunpack.c.l.b16 %v4825
  %v6211 = vunpack.c.l.b16 %v4826
  %v6212 = vunpack.c.h.b16 %v4826
  %v6213 = vunpack.c.l.b16 %v4827
  %v6214 = vunpack.c.l.b16 %v4828
  %v6215 = vunpack.c.h.b16 %v4828
  %v6216 = vunpack.c.l.b16 %v4829
  %v6217 = vunpack.c.l.b16 %v4830
  %v6218 = vunpack.c.h.b16 %v4830
  %v6219 = vunpack.c.l.b16 %v4831
  %v6220 = vunpack.c.l.b16 %v4832
  %v6221 = vunpack.c.h.b16 %v4832
  %v6222 = vunpack.c.l.b16 %v4833
  %v6223 = vunpack.c.l.b16 %v4834
  %v6224 = vunpack.c.h.b16 %v4834
  %v6225 = vunpack.c.l.b16 %v4835
  %v6226 = vunpack.c.l.b16 %v4836
  %v6227 = vunpack.c.h.b16 %v4836
  %v6228 = vunpack.c.l.b16 %v4837
  %v6229 = vunpack.c.l.b16 %v4838
  %v6230 = vunpack.c.h.b16 %v4838
  %v6231 = vunpack.c.l.b16 %v4839
  %v6232 = vunpack.c.l.b16 %v4840
  %v6233 = vunpack.c.h.b16 %v4840
  %v6234 = vunpack.c.l.b16 %v4841
  %v6235 = vunpack.c.l.b16 %v4842
  %v6236 = vunpack.c.h.b16 %v4842
  %v6237 = vunpack.c.l.b16 %v4843
  %v6238 = vunpack.c.l.b16 %v4844
  %v6239 = vunpack.c.h.b16 %v4844
  %v6240 = vunpack.c.l.b16 %v4845
  %v6241 = vunpack.c.l.b16 %v4846
  %v6242 = vunpack.c.h.b16 %v4846
  %v6243 = vunpack.c.l.b16 %v4847
  %v6244 = vunpack.c.l.b16 %v4848
  %v6245 = vunpack.c.h.b16 %v4848
  %v6246 = vunpack.c.l.b16 %v4849
  %v6247 = vunpack.c.l.b16 %v4850
  %v6248 = vunpack.c.h.b16 %v4850
  %v6249 = vunpack.c.l.b16 %v4851
  %v6250 = vunpack.c.l.b16 %v4852
  %v6251 = vunpack.c.h.b16 %v4852
  %v6252 = vunpack.c.l.b16 %v4853
  %v6253 = vunpack.c.l.b16 %v4854
  %v6254 = vunpack.c.h.b16 %v4854
  %v6255 = vunpack.c.l.b16 %v4855
  %v6256 = vunpack.c.l.b16 %v4856
  %v6257 = vunpack.c.h.b16 %v4856
  %v6258 = vunpack.c.l.b16 %v4857
  %v6259 = vunpack.c.l.b16 %v4858
  %v6260 = vunpack.c.h.b16 %v4858
  %v6261 = vunpack.c.l.b16 %v4859
  %v6262 = vunpack.c.l.b16 %v4860
  %v6263 = vunpack.c.h.b16 %v4860
  %v6264 = vunpack.c.l.b16 %v4861
  %v6265 = vunpack.c.l.b16 %v4862
  %v6266 = vunpack.c.h.b16 %v4862
  %v6267 = vunpack.c.l.b16 %v4863
  %v6268 = vunpack.c.l.b16 %v4864
  %v6269 = vunpack.c.h.b16 %v4864
  %v6270 = vunpack.c.l.b16 %v4865
  %v6271 = vunpack.c.l.b16 %v4866
  %v6272 = vunpack.c.h.b16 %v4866
  %v6273 = vunpack.c.l.b16 %v4867
  %v6274 = vunpack.c.l.b16 %v4868
  %v6275 = vunpack.c.h.b16 %v4868
  %v6276 = vunpack.c.l.b16 %v4869
  %v6277 = vunpack.c.l.b16 %v4870
  %v6278 = vunpack.c.h.b16 %v4870
  %v6279 = vunpack.c.l.b16 %v4871
  %v6280 = vunpack.c.l.b16 %v4872
  %v6281 = vunpack.c.h.b16 %v4872
  %v6282 = vunpack.c.l.b16 %v4873
  %v6283 = vunpack.c.l.b16 %v4874
  %v6284 = vunpack.c.h.b16 %v4874
  %v6285 = vunpack.c.l.b16 %v4875
  %v6286 = vunpack.c.l.b16 %v4876
  %v6287 = vunpack.c.h.b16 %v4876
  %v6288 = vunpack.c.l.b16 %v4877
  %v6289 = vunpack.c.l.b16 %v4878
  %v6290 = vunpack.c.h.b16 %v4878
  %v6291 = vunpack.c.l.b16 %v4879
  %v6292 = vunpack.c.l.b16 %v4880
  %v6293 = vunpack.c.h.b16 %v4880
  %v6294 = vunpack.c.l.b16 %v4881
  %v6295 = vunpack.c.l.b16 %v4882
  %v6296 = vunpack.c.h.b16 %v4882
  %v6297 = vunpack.c.l.b16 %v4883
  %v6298 = vunpack.c.l.b16 %v4884
  %v6299 = vunpack.c.h.b16 %v4884
  %v6300 = vunpack.c.l.b16 %v4885
  %v6301 = vunpack.c.l.b16 %v4886
  %v6302 = vunpack.c.h.b16 %v4886
  %v6303 = vunpack.c.l.b16 %v4887
  %v6304 = vunpack.c.l.b16 %v4888
  %v6305 = vunpack.c.h.b16 %v4888
  %v6306 = vunpack.c.l.b16 %v4889
  %v6307 = vunpack.c.l.b16 %v4890
  %v6308 = vunpack.c.h.b16 %v4890
  %v6309 = vunpack.c.l.b16 %v4891
  %v6310 = vunpack.c.l.b16 %v4892
  %v6311 = vunpack.c.h.b16 %v4892
  %v6312 = vunpack.c.l.b16 %v4893
  %v6313 = vunpack.c.l.b16 %v4894
  %v6314 = vunpack.c.h.b16 %v4894
  %v6315 = vunpack.c.l.b16 %v4895
  %v6316 = vunpack.c.l.b16 %v4896
  %v6317 = vunpack.c.h.b16 %v4896
  %v6318 = vunpack.c.l.b16 %v4897
  %v6319 = vunpack.c.l.b16 %v4898
  %v6320 = vunpack.c.h.b16 %v4898
  %v6321 = vunpack.c.l.b16 %v4899
  %v6322 = vunpack.c.l.b16 %v4900
  %v6323 = vunpack.c.h.b16 %v4900
  %v6324 = vunpack.c.l.b16 %v4901
  %v6325 = vunpack.c.l.b16 %v4902
  %v6326 = vunpack.c.h.b16 %v4902
  %v6327 = vunpack.c.l.b16 %v4903
  %v6328 = vunpack.c.l.b16 %v4904
  %v6329 = vunpack.c.h.b16 %v4904
  %v6330 = vunpack.c.l.b16 %v4905
  %v6331 = vunpack.c.l.b16 %v4906
  %v6332 = vunpack.c.h.b16 %v4906
  %v6333 = vunpack.c.l.b16 %v4907
  %v6334 = vunpack.c.l.b16 %v4908
  %v6335 = vunpack.c.h.b16 %v4908
  %v6336 = vunpack.c.l.b16 %v4909
  %v6337 = vunpack.c.l.b16 %v4910
  %v6338 = vunpack.c.h.b16 %v4910
  %v6339 = vunpack.c.l.b16 %v4911
  %v6340 = vunpack.c.l.b16 %v4912
  %v6341 = vunpack.c.h.b16 %v4912
  %v6342 = vunpack.c.l.b16 %v4913
  %v6343 = vunpack.c.l.b16 %v4914
  %v6344 = vunpack.c.h.b16 %v4914
  %v6345 = vunpack.c.l.b16 %v4915
  %v6346 = vunpack.c.l.b16 %v4916
  %v6347 = vunpack.c.h.b16 %v4916
  %v6348 = vunpack.c.l.b16 %v4917
  %v6349 = vunpack.c.l.b16 %v4918
  %v6350 = vunpack.c.h.b16 %v4918
  %v6351 = vunpack.c.l.b16 %v4919
  %v6352 = vunpack.c.l.b16 %v4920
  %v6353 = vunpack.c.h.b16 %v4920
  %v6354 = vunpack.c.l.b16 %v4921
  %v6355 = vunpack.c.l.b16 %v4922
  %v6356 = vunpack.c.h.b16 %v4922
  %v6357 = vunpack.c.l.b16 %v4923
  %v6358 = vunpack.c.l.b16 %v4924
  %v6359 = vunpack.c.h.b16 %v4924
  %v6360 = vunpack.c.l.b16 %v4925
  %v6361 = vunpack.c.l.b16 %v4926
  %v6362 = vunpack.c.h.b16 %v4926
  %v6363 = vunpack.c.l.b16 %v4927
  %v6364 = vunpack.c.l.b16 %v4928
  %v6365 = vunpack.c.h.b16 %v4928
  %v6366 = vunpack.c.l.b16 %v4929
  %v6367 = vunpack.c.l.b16 %v4930
  %v6368 = vunpack.c.h.b16 %v4930
  %v6369 = vunpack.c.l.b16 %v4931
  %v6370 = vunpack.c.l.b16 %v4932
  %v6371 = vunpack.c.h.b16 %v4932
  %v6372 = vunpack.c.l.b16 %v4933
  %v6373 = vunpack.c.l.b16 %v4934
  %v6374 = vunpack.c.h.b16 %v4934
  %v6375 = vunpack.c.l.b16 %v4935
  %v6376 = vunpack.c.l.b16 %v4936
  %v6377 = vunpack.c.h.b16 %v4936
  %v6378 = vunpack.c.l.b16 %v4937
  %v6379 = vunpack.c.l.b16 %v4938
  %v6380 = vunpack.c.h.b16 %v4938
  %v6381 = vunpack.c.l.b16 %v4939
  %v6382 = vunpack.c.l.b16 %v4940
  %v6383 = vunpack.c.h.b16 %v4940
  %v6384 = vunpack.c.l.b16 %v4941
  %v6385 = vunpack.c.l.b16 %v4942
  %v6386 = vunpack.c.h.b16 %v4942
  %v6387 = vunpack.c.l.b16 %v4943
  %v6388 = vunpack.c.l.b16 %v4944
  %v6389 = vunpack.c.h.b16 %v4944
  %v6390 = vunpack.c.l.b16 %v4945
  %v6391 = vunpack.c.l.b16 %v4946
  %v6392 = vunpack.c.h.b16 %v4946
  %v6393 = vunpack.c.l.b16 %v4947
  %v6394 = vunpack.c.l.b16 %v4948
  %v6395 = vunpack.c.h.b16 %v4948
  %v6396 = vunpack.c.l.b16 %v4949
  %v6397 = vunpack.c.l.b16 %v4950
  %v6398 = vunpack.c.h.b16 %v4950
  %v6399 = vunpack.c.l.b16 %v4951
  %v6400 = vunpack.c.l.b16 %v4952
  %v6401 = vunpack.c.h.b16 %v4952
  %v6402 = vunpack.c.l.b16 %v4953
  %v6403 = vunpack.c.l.b16 %v4954
  %v6404 = vunpack.c.h.b16 %v4954
  %v6405 = vunpack.c.l.b16 %v4955
  %v6406 = vunpack.c.l.b16 %v4956
  %v6407 = vunpack.c.h.b16 %v4956
  %v6408 = vunpack.c.l.b16 %v4957
  %v6409 = vunpack.c.l.b16 %v4958
  %v6410 = vunpack.c.h.b16 %v4958
  %v6411 = vunpack.c.l.b16 %v4959
  %v6412 = vunpack.c.l.b16 %v4960
  %v6413 = vunpack.c.h.b16 %v4960
  %v6414 = vunpack.c.l.b16 %v4961
  %v6415 = vunpack.c.l.b16 %v4962
  %v6416 = vunpack.c.h.b16 %v4962
  %v6417 = vunpack.c.l.b16 %v4963
  %v6418 = vunpack.c.l.b16 %v4964
  %v6419 = vunpack.c.h.b16 %v4964
  %v6420 = vunpack.c.l.b16 %v4965
  %v6421 = vunpack.c.l.b16 %v4966
  %v6422 = vunpack.c.h.b16 %v4966
  %v6423 = vunpack.c.l.b16 %v4967
  %v6424 = vunpack.c.l.b16 %v4968
  %v6425 = vunpack.c.h.b16 %v4968
  %v6426 = vunpack.c.l.b16 %v4969
  %v6427 = vunpack.c.l.b16 %v4970
  %v6428 = vunpack.c.h.b16 %v4970
  %v6429 = vunpack.c.l.b16 %v4971
  %v6430 = vunpack.c.l.b16 %v4972
  %v6431 = vunpack.c.h.b16 %v4972
  %v6432 = vunpack.c.l.b16 %v4973
  %v6433 = vunpack.c.l.b16 %v4974
  %v6434 = vunpack.c.h.b16 %v4974
  %v6435 = vunpack.c.l.b16 %v4975
  %v6436 = vunpack.c.l.b16 %v4976
  %v6437 = vunpack.c.h.b16 %v4976
  %v6438 = vunpack.c.l.b16 %v4977
  %v6439 = vunpack.c.l.b16 %v4978
  %v6440 = vunpack.c.h.b16 %v4978
  %v6441 = vunpack.c.l.b16 %v4979
  %v6442 = vunpack.c.l.b16 %v4980
  %v6443 = vunpack.c.h.b16 %v4980
  %v6444 = vunpack.c.l.b16 %v4981
  %v6445 = vunpack.c.l.b16 %v4982
  %v6446 = vunpack.c.h.b16 %v4982
  %v6447 = vunpack.c.l.b16 %v4983
  %v6448 = vunpack.c.l.b16 %v4984
  %v6449 = vunpack.c.h.b16 %v4984
  %v6450 = vunpack.c.l.b16 %v4985
  %v6451 = vunpack.c.l.b16 %v4986
  %v6452 = vunpack.c.h.b16 %v4986
  %v6453 = vunpack.c.l.b16 %v4987
  %v6454 = vunpack.c.l.b16 %v4988
  %v6455 = vunpack.c.h.b16 %v4988
  %v6456 = vunpack.c.l.b16 %v4989
  %v6457 = vunpack.c.l.b16 %v4990
  %v6458 = vunpack.c.h.b16 %v4990
  %v6459 = vunpack.c.l.b16 %v4991
  %v6460 = vunpack.c.l.b16 %v4992
  %v6461 = vunpack.c.h.b16 %v4992
  %v6462 = vunpack.c.l.b16 %v4993
  %v6463 = vunpack.c.l.b16 %v4994
  %v6464 = vunpack.c.h.b16 %v4994
  %v6465 = vunpack.c.l.b16 %v4995
  %v6466 = vunpack.c.l.b16 %v4996
  %v6467 = vunpack.c.h.b16 %v4996
  %v6468 = vunpack.c.l.b16 %v4997
  %v6469 = vunpack.c.l.b16 %v4998
  %v6470 = vunpack.c.h.b16 %v4998
  %v6471 = vunpack.c.l.b16 %v4999
  %v6472 = vunpack.c.l.b16 %v5000
  %v6473 = vunpack.c.h.b16 %v5000
  %v6474 = vunpack.c.l.b16 %v5001
  %v6475 = vunpack.c.l.b16 %v5002
  %v6476 = vunpack.c.h.b16 %v5002
  %v6477 = vunpack.c.l.b16 %v5003
  %v6478 = vunpack.c.l.b16 %v5004
  %v6479 = vunpack.c.h.b16 %v5004
  %v6480 = vunpack.c.l.b16 %v5005
  %v6481 = vunpack.c.l.b16 %v5006
  %v6482 = vunpack.c.h.b16 %v5006
  %v6483 = vunpack.c.l.b16 %v5007
  %v6484 = vunpack.c.l.b16 %v5008
  %v6485 = vunpack.c.h.b16 %v5008
  %v6486 = vunpack.c.l.b16 %v5009
  %v6487 = vunpack.c.l.b16 %v5010
  %v6488 = vunpack.c.h.b16 %v5010
  %v6489 = vunpack.c.l.b16 %v5011
  %v6490 = vunpack.c.l.b16 %v5012
  %v6491 = vunpack.c.h.b16 %v5012
  %v6492 = vunpack.c.l.b16 %v5013
  %v6493 = vunpack.c.l.b16 %v5014
  %v6494 = vunpack.c.h.b16 %v5014
  %v6495 = vunpack.c.l.b16 %v5015
  %v6496 = vunpack.c.l.b16 %v5016
  %v6497 = vunpack.c.h.b16 %v5016
  %v6498 = vunpack.c.l.b16 %v5017
  %v6499 = vunpack.c.l.b16 %v5018
  %v6500 = vunpack.c.h.b16 %v5018
  %v6501 = vunpack.c.l.b16 %v5019
  %v6502 = vunpack.c.l.b16 %v5020
  %v6503 = vunpack.c.h.b16 %v5020
  %v6504 = vunpack.c.l.b16 %v5021
  %v6505 = vunpack.c.l.b16 %v5022
  %v6506 = vunpack.c.h.b16 %v5022
  %v6507 = vunpack.c.l.b16 %v5023
  %v6508 = vunpack.c.l.b16 %v5024
  %v6509 = vunpack.c.h.b16 %v5024
  %v6510 = vunpack.c.l.b16 %v5025
  %v6511 = vunpack.c.l.b16 %v5026
  %v6512 = vunpack.c.h.b16 %v5026
  %v6513 = vunpack.c.l.b16 %v5027
  %v6514 = vunpack.c.l.b16 %v5028
  %v6515 = vunpack.c.h.b16 %v5028
  %v6516 = vunpack.c.l.b16 %v5029
  %v6517 = vunpack.c.l.b16 %v5030
  %v6518 = vunpack.c.h.b16 %v5030
  %v6519 = vunpack.c.l.b16 %v5031
  %v6520 = vunpack.c.l.b16 %v5032
  %v6521 = vunpack.c.h.b16 %v5032
  %v6522 = vunpack.c.l.b16 %v5033
  %v6523 = vunpack.c.l.b16 %v5034
  %v6524 = vunpack.c.h.b16 %v5034
  %v6525 = vunpack.c.l.b16 %v5035
  %v6526 = vunpack.c.l.b16 %v5036
  %v6527 = vunpack.c.h.b16 %v5036
  %v6528 = vunpack.c.l.b16 %v5037
  %v6529 = vunpack.c.l.b16 %v5038
  %v6530 = vunpack.c.h.b16 %v5038
  %v6531 = vunpack.c.l.b16 %v5039
  %v6532 = vunpack.c.l.b16 %v5040
  %v6533 = vunpack.c.h.b16 %v5040
  %v6534 = vunpack.c.l.b16 %v5041
  %v6535 = vunpack.c.l.b16 %v5042
  %v6536 = vunpack.c.h.b16 %v5042
  %v6537 = vunpack.c.l.b16 %v5043
  %v6538 = vunpack.c.l.b16 %v5044
  %v6539 = vunpack.c.h.b16 %v5044
  %v6540 = vunpack.c.l.b16 %v5045
  %v6541 = vunpack.c.l.b16 %v5046
  %v6542 = vunpack.c.h.b16 %v5046
  %v6543 = vunpack.c.l.b16 %v5047
  %v6544 = vunpack.c.l.b16 %v5048
  %v6545 = vunpack.c.h.b16 %v5048
  %v6546 = vunpack.c.l.b16 %v5049
  %v6547 = vunpack.c.l.b16 %v5050
  %v6548 = vunpack.c.h.b16 %v5050
  %v6549 = vunpack.c.l.b16 %v5051
  %v6550 = vunpack.c.l.b16 %v5052
  %v6551 = vunpack.c.h.b16 %v5052
  %v6552 = vunpack.c.l.b16 %v5053
  %v6553 = vunpack.c.l.b16 %v5054
  %v6554 = vunpack.c.h.b16 %v5054
  %v6555 = vunpack.c.l.b16 %v5055
  %v6556 = vunpack.c.l.b16 %v5056
  %v6557 = vunpack.c.h.b16 %v5056
  %v6558 = vunpack.c.l.b16 %v5057
  %v6559 = vunpack.c.l.b16 %v5058
  %v6560 = vunpack.c.h.b16 %v5058
  %v6561 = vunpack.c.l.b16 %v5059
  %v6562 = vunpack.c.l.b16 %v5060
  %v6563 = vunpack.c.h.b16 %v5060
  %v6564 = vunpack.c.l.b16 %v5061
  %v6565 = vunpack.c.l.b16 %v5062
  %v6566 = vunpack.c.h.b16 %v5062
  %v6567 = vunpack.c.l.b16 %v5063
  %v6568 = vunpack.c.l.b16 %v5064
  %v6569 = vunpack.c.h.b16 %v5064
  %v6570 = vunpack.c.l.b16 %v5065
  %v6571 = vunpack.c.l.b16 %v5066
  %v6572 = vunpack.c.h.b16 %v5066
  %v6573 = vunpack.c.l.b16 %v5067
  %v6574 = vunpack.c.l.b16 %v5068
  %v6575 = vunpack.c.h.b16 %v5068
  %v6576 = vunpack.c.l.b16 %v5069
  %v6577 = vunpack.c.l.b16 %v5070
  %v6578 = vunpack.c.h.b16 %v5070
  %v6579 = vunpack.c.l.b16 %v5071
  %v6580 = vunpack.c.l.b16 %v5072
  %v6581 = vunpack.c.h.b16 %v5072
  %v6582 = vunpack.c.l.b16 %v5073
  %v6583 = vunpack.c.l.b16 %v5074
  %v6584 = vunpack.c.h.b16 %v5074
  %v6585 = vunpack.c.l.b16 %v5075
  %v6586 = vunpack.c.l.b16 %v5076
  %v6587 = vunpack.c.h.b16 %v5076
  %v6588 = vunpack.c.l.b16 %v5077
  %v6589 = vpack.c.b16 %v5728, %v5725
  %v6590 = vpack.c.b16 %v5729, %v5726
  %v6591 = vpack.c.b16 %v5730, %v5727
  %v6592 = vpack.c.b16 %v5734, %v5731
  %v6593 = vpack.c.b16 %v5735, %v5732
  %v6594 = vpack.c.b16 %v5736, %v5733
  %v6595 = vpack.c.b16 %v5740, %v5737
  %v6596 = vpack.c.b16 %v5741, %v5738
  %v6597 = vpack.c.b16 %v5742, %v5739
  %v6598 = vpack.c.b16 %v5746, %v5743
  %v6599 = vpack.c.b16 %v5747, %v5744
  %v6600 = vpack.c.b16 %v5748, %v5745
  %v6601 = vpack.c.b16 %v5752, %v5749
  %v6602 = vpack.c.b16 %v5753, %v5750
  %v6603 = vpack.c.b16 %v5754, %v5751
  %v6604 = vpack.c.b16 %v5758, %v5755
  %v6605 = vpack.c.b16 %v5759, %v5756
  %v6606 = vpack.c.b16 %v5760, %v5757
  %v6607 = vpack.c.b16 %v5764, %v5761
  %v6608 = vpack.c.b16 %v5765, %v5762
  %v6609 = vpack.c.b16 %v5766, %v5763
  %v6610 = vpack.c.b16 %v5770, %v5767
  %v6611 = vpack.c.b16 %v5771, %v5768
  %v6612 = vpack.c.b16 %v5772, %v5769
  %v6613 = vpack.c.b16 %v5776, %v5773
  %v6614 = vpack.c.b16 %v5777, %v5774
  %v6615 = vpack.c.b16 %v5778, %v5775
  %v6616 = vpack.c.b16 %v5782, %v5779
  %v6617 = vpack.c.b16 %v5783, %v5780
  %v6618 = vpack.c.b16 %v5784, %v5781
  %v6619 = vpack.c.b16 %v5788, %v5785
  %v6620 = vpack.c.b16 %v5789, %v5786
  %v6621 = vpack.c.b16 %v5790, %v5787
  %v6622 = vpack.c.b16 %v5794, %v5791
  %v6623 = vpack.c.b16 %v5795, %v5792
  %v6624 = vpack.c.b16 %v5796, %v5793
  %v6625 = vpack.c.b16 %v5800, %v5797
  %v6626 = vpack.c.b16 %v5801, %v5798
  %v6627 = vpack.c.b16 %v5802, %v5799
  %v6628 = vpack.c.b16 %v5806, %v5803
  %v6629 = vpack.c.b16 %v5807, %v5804
  %v6630 = vpack.c.b16 %v5808, %v5805
  %v6631 = vpack.c.b16 %v5812, %v5809
  %v6632 = vpack.c.b16 %v5813, %v5810
  %v6633 = vpack.c.b16 %v5814, %v5811
  %v6634 = vpack.c.b16 %v5818, %v5815
  %v6635 = vpack.c.b16 %v5819, %v5816
  %v6636 = vpack.c.b16 %v5820, %v5817
  %v6637 = vpack.c.b16 %v5824, %v5821
  %v6638 = vpack.c.b16 %v5825, %v5822
  %v6639 = vpack.c.b16 %v5826, %v5823
  %v6640 = vpack.c.b16 %v5830, %v5827
  %v6641 = vpack.c.b16 %v5831, %v5828
  %v6642 = vpack.c.b16 %v5832, %v5829
  %v6643 = vpack.c.b16 %v5836, %v5833
  %v6644 = vpack.c.b16 %v5837, %v5834
  %v6645 = vpack.c.b16 %v5838, %v5835
  %v6646 = vpack.c.b16 %v5842, %v5839
  %v6647 = vpack.c.b16 %v5843, %v5840
  %v6648 = vpack.c.b16 %v5844, %v5841
  %v6649 = vpack.c.b16 %v5848, %v5845
  %v6650 = vpack.c.b16 %v5849, %v5846
  %v6651 = vpack.c.b16 %v5850, %v5847
  %v6652 = vpack.c.b16 %v5854, %v5851
  %v6653 = vpack.c.b16 %v5855, %v5852
  %v6654 = vpack.c.b16 %v5856, %v5853
  %v6655 = vpack.c.b16 %v5860, %v5857
  %v6656 = vpack.c.b16 %v5861, %v5858
  %v6657 = vpack.c.b16 %v5862, %v5859
  %v6658 = vpack.c.b16 %v5866, %v5863
  %v6659 = vpack.c.b16 %v5867, %v5864
  %v6660 = vpack.c.b16 %v5868, %v5865
  %v6661 = vpack.c.b16 %v5872, %v5869
  %v6662 = vpack.c.b16 %v5873, %v5870
  %v6663 = vpack.c.b16 %v5874, %v5871
  %v6664 = vpack.c.b16 %v5878, %v5875
  %v6665 = vpack.c.b16 %v5879, %v5876
  %v6666 = vpack.c.b16 %v5880, %v5877
  %v6667 = vpack.c.b16 %v5884, %v5881
  %v6668 = vpack.c.b16 %v5885, %v5882
  %v6669 = vpack.c.b16 %v5886, %v5883
  %v6670 = vpack.c.b16 %v5890, %v5887
  %v6671 = vpack.c.b16 %v5891, %v5888
  %v6672 = vpack.c.b16 %v5892, %v5889
  %v6673 = vpack.c.b16 %v5896, %v5893
  %v6674 = vpack.c.b16 %v5897, %v5894
  %v6675 = vpack.c.b16 %v5898, %v5895
  %v6676 = vpack.c.b16 %v5902, %v5899
  %v6677 = vpack.c.b16 %v5903, %v5900
  %v6678 = vpack.c.b16 %v5904, %v5901
  %v6679 = vpack.c.b16 %v5908, %v5905
  %v6680 = vpack.c.b16 %v5909, %v5906
  %v6681 = vpack.c.b16 %v5910, %v5907
  %v6682 = vpack.c.b16 %v5914, %v5911
  %v6683 = vpack.c.b16 %v5915, %v5912
  %v6684 = vpack.c.b16 %v5916, %v5913
  %v6685 = vpack.c.b16 %v5920, %v5917
  %v6686 = vpack.c.b16 %v5921, %v5918
  %v6687 = vpack.c.b16 %v5922, %v5919
  %v6688 = vpack.c.b16 %v5926, %v5923
  %v6689 = vpack.c.b16 %v5927, %v5924
  %v6690 = vpack.c.b16 %v5928, %v5925
  %v6691 = vpack.c.b16 %v5932, %v5929
  %v6692 = vpack.c.b16 %v5933, %v5930
  %v6693 = vpack.c.b16 %v5934, %v5931
  %v6694 = vpack.c.b16 %v5938, %v5935
  %v6695 = vpack.c.b16 %v5939, %v5936
  %v6696 = vpack.c.b16 %v5940, %v5937
  %v6697 = vpack.c.b16 %v5944, %v5941
  %v6698 = vpack.c.b16 %v5945, %v5942
  %v6699 = vpack.c.b16 %v5946, %v5943
  %v6700 = vpack.c.b16 %v5950, %v5947
  %v6701 = vpack.c.b16 %v5951, %v5948
  %v6702 = vpack.c.b16 %v5952, %v5949
  %v6703 = vpack.c.b16 %v5956, %v5953
  %v6704 = vpack.c.b16 %v5957, %v5954
  %v6705 = vpack.c.b16 %v5958, %v5955
  %v6706 = vpack.c.b16 %v5962, %v5959
  %v6707 = vpack.c.b16 %v5963, %v5960
  %v6708 = vpack.c.b16 %v5964, %v5961
  %v6709 = vpack.c.b16 %v5968, %v5965
  %v6710 = vpack.c.b16 %v5969, %v5966
  %v6711 = vpack.c.b16 %v5970, %v5967
  %v6712 = vpack.c.b16 %v5974, %v5971
  %v6713 = vpack.c.b16 %v5975, %v5972
  %v6714 = vpack.c.b16 %v5976, %v5973
  %v6715 = vpack.c.b16 %v5980, %v5977
  %v6716 = vpack.c.b16 %v5981, %v5978
  %v6717 = vpack.c.b16 %v5982, %v5979
  %v6718 = vpack.c.b16 %v5986, %v5983
  %v6719 = vpack.c.b16 %v5987, %v5984
  %v6720 = vpack.c.b16 %v5988, %v5985
  %v6721 = vpack.c.b16 %v5992, %v5989
  %v6722 = vpack.c.b16 %v5993, %v5990
  %v6723 = vpack.c.b16 %v5994, %v5991
  %v6724 = vpack.c.b16 %v5998, %v5995
  %v6725 = vpack.c.b16 %v5999, %v5996
  %v6726 = vpack.c.b16 %v6000, %v5997
  %v6727 = vpack.c.b16 %v6004, %v6001
  %v6728 = vpack.c.b16 %v6005, %v6002
  %v6729 = vpack.c.b16 %v6006, %v6003
  %v6730 = vpack.c.b16 %v6010, %v6007
  %v6731 = vpack.c.b16 %v6011, %v6008
  %v6732 = vpack.c.b16 %v6012, %v6009
  %v6733 = vpack.c.b16 %v6016, %v6013
  %v6734 = vpack.c.b16 %v6017, %v6014
  %v6735 = vpack.c.b16 %v6018, %v6015
  %v6736 = vpack.c.b16 %v6022, %v6019
  %v6737 = vpack.c.b16 %v6023, %v6020
  %v6738 = vpack.c.b16 %v6024, %v6021
  %v6739 = vpack.c.b16 %v6028, %v6025
  %v6740 = vpack.c.b16 %v6029, %v6026
  %v6741 = vpack.c.b16 %v6030, %v6027
  %v6742 = vpack.c.b16 %v6034, %v6031
  %v6743 = vpack.c.b16 %v6035, %v6032
  %v6744 = vpack.c.b16 %v6036, %v6033
  %v6745 = vpack.c.b16 %v6040, %v6037
  %v6746 = vpack.c.b16 %v6041, %v6038
  %v6747 = vpack.c.b16 %v6042, %v6039
  %v6748 = vpack.c.b16 %v6046, %v6043
  %v6749 = vpack.c.b16 %v6047, %v6044
  %v6750 = vpack.c.b16 %v6048, %v6045
  %v6751 = vpack.c.b16 %v6052, %v6049
  %v6752 = vpack.c.b16 %v6053, %v6050
  %v6753 = vpack.c.b16 %v6054, %v6051
  %v6754 = vpack.c.b16 %v6058, %v6055
  %v6755 = vpack.c.b16 %v6059, %v6056
  %v6756 = vpack.c.b16 %v6060, %v6057
  %v6757 = vpack.c.b16 %v6064, %v6061
  %v6758 = vpack.c.b16 %v6065, %v6062
  %v6759 = vpack.c.b16 %v6066, %v6063
  %v6760 = vpack.c.b16 %v6070, %v6067
  %v6761 = vpack.c.b16 %v6071, %v6068
  %v6762 = vpack.c.b16 %v6072, %v6069
  %v6763 = vpack.c.b16 %v6076, %v6073
  %v6764 = vpack.c.b16 %v6077, %v6074
  %v6765 = vpack.c.b16 %v6078, %v6075
  %v6766 = vpack.c.b16 %v6082, %v6079
  %v6767 = vpack.c.b16 %v6083, %v6080
  %v6768 = vpack.c.b16 %v6084, %v6081
  %v6769 = vpack.c.b16 %v6088, %v6085
  %v6770 = vpack.c.b16 %v6089, %v6086
  %v6771 = vpack.c.b16 %v6090, %v6087
  %v6772 = vpack.c.b16 %v6094, %v6091
  %v6773 = vpack.c.b16 %v6095, %v6092
  %v6774 = vpack.c.b16 %v6096, %v6093
  %v6775 = vpack.c.b16 %v6100, %v6097
  %v6776 = vpack.c.b16 %v6101, %v6098
  %v6777 = vpack.c.b16 %v6102, %v6099
  %v6778 = vpack.c.b16 %v6106, %v6103
  %v6779 = vpack.c.b16 %v6107, %v6104
  %v6780 = vpack.c.b16 %v6108, %v6105
  %v6781 = vpack.c.b16 %v6112, %v6109
  %v6782 = vpack.c.b16 %v6113, %v6110
  %v6783 = vpack.c.b16 %v6114, %v6111
  %v6784 = vpack.c.b16 %v6118, %v6115
  %v6785 = vpack.c.b16 %v6119, %v6116
  %v6786 = vpack.c.b16 %v6120, %v6117
  %v6787 = vpack.c.b16 %v6124, %v6121
  %v6788 = vpack.c.b16 %v6125, %v6122
  %v6789 = vpack.c.b16 %v6126, %v6123
  %v6790 = vpack.c.b16 %v6130, %v6127
  %v6791 = vpack.c.b16 %v6131, %v6128
  %v6792 = vpack.c.b16 %v6132, %v6129
  %v6793 = vpack.c.b16 %v6136, %v6133
  %v6794 = vpack.c.b16 %v6137, %v6134
  %v6795 = vpack.c.b16 %v6138, %v6135
  %v6796 = vpack.c.b16 %v6142, %v6139
  %v6797 = vpack.c.b16 %v6143, %v6140
  %v6798 = vpack.c.b16 %v6144, %v6141
  %v6799 = vpack.c.b16 %v6148, %v6145
  %v6800 = vpack.c.b16 %v6149, %v6146
  %v6801 = vpack.c.b16 %v6150, %v6147
  %v6802 = vpack.c.b16 %v6154, %v6151
  %v6803 = vpack.c.b16 %v6155, %v6152
  %v6804 = vpack.c.b16 %v6156, %v6153
  %v6805 = vpack.c.b16 %v6160, %v6157
  %v6806 = vpack.c.b16 %v6161, %v6158
  %v6807 = vpack.c.b16 %v6162, %v6159
  %v6808 = vpack.c.b16 %v6166, %v6163
  %v6809 = vpack.c.b16 %v6167, %v6164
  %v6810 = vpack.c.b16 %v6168, %v6165
  %v6811 = vpack.c.b16 %v6172, %v6169
  %v6812 = vpack.c.b16 %v6173, %v6170
  %v6813 = vpack.c.b16 %v6174, %v6171
  %v6814 = vpack.c.b16 %v6178, %v6175
  %v6815 = vpack.c.b16 %v6179, %v6176
  %v6816 = vpack.c.b16 %v6180, %v6177
  %v6817 = vpack.c.b16 %v6184, %v6181
  %v6818 = vpack.c.b16 %v6185, %v6182
  %v6819 = vpack.c.b16 %v6186, %v6183
  %v6820 = vpack.c.b16 %v6190, %v6187
  %v6821 = vpack.c.b16 %v6191, %v6188
  %v6822 = vpack.c.b16 %v6192, %v6189
  %v6823 = vpack.c.b16 %v6196, %v6193
  %v6824 = vpack.c.b16 %v6197, %v6194
  %v6825 = vpack.c.b16 %v6198, %v6195
  %v6826 = vpack.c.b16 %v6202, %v6199
  %v6827 = vpack.c.b16 %v6203, %v6200
  %v6828 = vpack.c.b16 %v6204, %v6201
  %v6829 = vpack.c.b16 %v6208, %v6205
  %v6830 = vpack.c.b16 %v6209, %v6206
  %v6831 = vpack.c.b16 %v6210, %v6207
  %v6832 = vpack.c.b16 %v6214, %v6211
  %v6833 = vpack.c.b16 %v6215, %v6212
  %v6834 = vpack.c.b16 %v6216, %v6213
  %v6835 = vpack.c.b16 %v6220, %v6217
  %v6836 = vpack.c.b16 %v6221, %v6218
  %v6837 = vpack.c.b16 %v6222, %v6219
  %v6838 = vpack.c.b16 %v6226, %v6223
  %v6839 = vpack.c.b16 %v6227, %v6224
  %v6840 = vpack.c.b16 %v6228, %v6225
  %v6841 = vpack.c.b16 %v6232, %v6229
  %v6842 = vpack.c.b16 %v6233, %v6230
  %v6843 = vpack.c.b16 %v6234, %v6231
  %v6844 = vpack.c.b16 %v6238, %v6235
  %v6845 = vpack.c.b16 %v6239, %v6236
  %v6846 = vpack.c.b16 %v6240, %v6237
  %v6847 = vpack.c.b16 %v6244, %v6241
  %v6848 = vpack.c.b16 %v6245, %v6242
  %v6849 = vpack.c.b16 %v6246, %v6243
  %v6850 = vpack.c.b16 %v6250, %v6247
  %v6851 = vpack.c.b16 %v6251, %v6248
  %v6852 = vpack.c.b16 %v6252, %v6249
  %v6853 = vpack.c.b16 %v6256, %v6253
  %v6854 = vpack.c.b16 %v6257, %v6254
  %v6855 = vpack.c.b16 %v6258, %v6255
  %v6856 = vpack.c.b16 %v6262, %v6259
  %v6857 = vpack.c.b16 %v6263, %v6260
  %v6858 = vpack.c.b16 %v6264, %v6261
  %v6859 = vpack.c.b16 %v6268, %v6265
  %v6860 = vpack.c.b16 %v6269, %v6266
  %v6861 = vpack.c.b16 %v6270, %v6267
  %v6862 = vpack.c.b16 %v6274, %v6271
  %v6863 = vpack.c.b16 %v6275, %v6272
  %v6864 = vpack.c.b16 %v6276, %v6273
  %v6865 = vpack.c.b16 %v6280, %v6277
  %v6866 = vpack.c.b16 %v6281, %v6278
  %v6867 = vpack.c.b16 %v6282, %v6279
  %v6868 = vpack.c.b16 %v6286, %v6283
  %v6869 = vpack.c.b16 %v6287, %v6284
  %v6870 = vpack.c.b16 %v6288, %v6285
  %v6871 = vpack.c.b16 %v6292, %v6289
  %v6872 = vpack.c.b16 %v6293, %v6290
  %v6873 = vpack.c.b16 %v6294, %v6291
  %v6874 = vpack.c.b16 %v6298, %v6295
  %v6875 = vpack.c.b16 %v6299, %v6296
  %v6876 = vpack.c.b16 %v6300, %v6297
  %v6877 = vpack.c.b16 %v6304, %v6301
  %v6878 = vpack.c.b16 %v6305, %v6302
  %v6879 = vpack.c.b16 %v6306, %v6303
  %v6880 = vpack.c.b16 %v6310, %v6307
  %v6881 = vpack.c.b16 %v6311, %v6308
  %v6882 = vpack.c.b16 %v6312, %v6309
  %v6883 = vpack.c.b16 %v6316, %v6313
  %v6884 = vpack.c.b16 %v6317, %v6314
  %v6885 = vpack.c.b16 %v6318, %v6315
  %v6886 = vpack.c.b16 %v6322, %v6319
  %v6887 = vpack.c.b16 %v6323, %v6320
  %v6888 = vpack.c.b16 %v6324, %v6321
  %v6889 = vpack.c.b16 %v6328, %v6325
  %v6890 = vpack.c.b16 %v6329, %v6326
  %v6891 = vpack.c.b16 %v6330, %v6327
  %v6892 = vpack.c.b16 %v6334, %v6331
  %v6893 = vpack.c.b16 %v6335, %v6332
  %v6894 = vpack.c.b16 %v6336, %v6333
  %v6895 = vpack.c.b16 %v6340, %v6337
  %v6896 = vpack.c.b16 %v6341, %v6338
  %v6897 = vpack.c.b16 %v6342, %v6339
  %v6898 = vpack.c.b16 %v6346, %v6343
  %v6899 = vpack.c.b16 %v6347, %v6344
  %v6900 = vpack.c.b16 %v6348, %v6345
  %v6901 = vpack.c.b16 %v6352, %v6349
  %v6902 = vpack.c.b16 %v6353, %v6350
  %v6903 = vpack.c.b16 %v6354, %v6351
  %v6904 = vpack.c.b16 %v6358, %v6355
  %v6905 = vpack.c.b16 %v6359, %v6356
  %v6906 = vpack.c.b16 %v6360, %v6357
  %v6907 = vpack.c.b16 %v6364, %v6361
  %v6908 = vpack.c.b16 %v6365, %v6362
  %v6909 = vpack.c.b16 %v6366, %v6363
  %v6910 = vpack.c.b16 %v6370, %v6367
  %v6911 = vpack.c.b16 %v6371, %v6368
  %v6912 = vpack.c.b16 %v6372, %v6369
  %v6913 = vpack.c.b16 %v6376, %v6373
  %v6914 = vpack.c.b16 %v6377, %v6374
  %v6915 = vpack.c.b16 %v6378, %v6375
  %v6916 = vpack.c.b16 %v6382, %v6379
  %v6917 = vpack.c.b16 %v6383, %v6380
  %v6918 = vpack.c.b16 %v6384, %v6381
  %v6919 = vpack.c.b16 %v6388, %v6385
  %v6920 = vpack.c.b16 %v6389, %v6386
  %v6921 = vpack.c.b16 %v6390, %v6387
  %v6922 = vpack.c.b16 %v6394, %v6391
  %v6923 = vpack.c.b16 %v6395, %v6392
  %v6924 = vpack.c.b16 %v6396, %v6393
  %v6925 = vpack.c.b16 %v6400, %v6397
  %v6926 = vpack.c.b16 %v6401, %v6398
  %v6927 = vpack.c.b16 %v6402, %v6399
  %v6928 = vpack.c.b16 %v6406, %v6403
  %v6929 = vpack.c.b16 %v6407, %v6404
  %v6930 = vpack.c.b16 %v6408, %v6405
  %v6931 = vpack.c.b16 %v6412, %v6409
  %v6932 = vpack.c.b16 %v6413, %v6410
  %v6933 = vpack.c.b16 %v6414, %v6411
  %v6934 = vpack.c.b16 %v6418, %v6415
  %v6935 = vpack.c.b16 %v6419, %v6416
  %v6936 = vpack.c.b16 %v6420, %v6417
  %v6937 = vpack.c.b16 %v6424, %v6421
  %v6938 = vpack.c.b16 %v6425, %v6422
  %v6939 = vpack.c.b16 %v6426, %v6423
  %v6940 = vpack.c.b16 %v6430, %v6427
  %v6941 = vpack.c.b16 %v6431, %v6428
  %v6942 = vpack.c.b16 %v6432, %v6429
  %v6943 = vpack.c.b16 %v6436, %v6433
  %v6944 = vpack.c.b16 %v6437, %v6434
  %v6945 = vpack.c.b16 %v6438, %v6435
  %v6946 = vpack.c.b16 %v6442, %v6439
  %v6947 = vpack.c.b16 %v6443, %v6440
  %v6948 = vpack.c.b16 %v6444, %v6441
  %v6949 = vpack.c.b16 %v6448, %v6445
  %v6950 = vpack.c.b16 %v6449, %v6446
  %v6951 = vpack.c.b16 %v6450, %v6447
  %v6952 = vpack.c.b16 %v6454, %v6451
  %v6953 = vpack.c.b16 %v6455, %v6452
  %v6954 = vpack.c.b16 %v6456, %v6453
  %v6955 = vpack.c.b16 %v6460, %v6457
  %v6956 = vpack.c.b16 %v6461, %v6458
  %v6957 = vpack.c.b16 %v6462, %v6459
  %v6958 = vpack.c.b16 %v6466, %v6463
  %v6959 = vpack.c.b16 %v6467, %v6464
  %v6960 = vpack.c.b16 %v6468, %v6465
  %v6961 = vpack.c.b16 %v6472, %v6469
  %v6962 = vpack.c.b16 %v6473, %v6470
  %v6963 = vpack.c.b16 %v6474, %v6471
  %v6964 = vpack.c.b16 %v6478, %v6475
  %v6965 = vpack.c.b16 %v6479, %v6476
  %v6966 = vpack.c.b16 %v6480, %v6477
  %v6967 = vpack.c.b16 %v6484, %v6481
  %v6968 = vpack.c.b16 %v6485, %v6482
  %v6969 = vpack.c.b16 %v6486, %v6483
  %v6970 = vpack.c.b16 %v6490, %v6487
  %v6971 = vpack.c.b16 %v6491, %v6488
  %v6972 = vpack.c.b16 %v6492, %v6489
  %v6973 = vpack.c.b16 %v6496, %v6493
  %v6974 = vpack.c.b16 %v6497, %v6494
  %v6975 = vpack.c.b16 %v6498, %v6495
  %v6976 = vpack.c.b16 %v6502, %v6499
  %v6977 = vpack.c.b16 %v6503, %v6500
  %v6978 = vpack.c.b16 %v6504, %v6501
  %v6979 = vpack.c.b16 %v6508, %v6505
  %v6980 = vpack.c.b16 %v6509, %v6506
  %v6981 = vpack.c.b16 %v6510, %v6507
  %v6982 = vpack.c.b16 %v6514, %v6511
  %v6983 = vpack.c.b16 %v6515, %v6512
  %v6984 = vpack.c.b16 %v6516, %v6513
  %v6985 = vpack.c.b16 %v6520, %v6517
  %v6986 = vpack.c.b16 %v6521, %v6518
  %v6987 = vpack.c.b16 %v6522, %v6519
  %v6988 = vpack.c.b16 %v6526, %v6523
  %v6989 = vpack.c.b16 %v6527, %v6524
  %v6990 = vpack.c.b16 %v6528, %v6525
  %v6991 = vpack.c.b16 %v6532, %v6529
  %v6992 = vpack.c.b16 %v6533, %v6530
  %v6993 = vpack.c.b16 %v6534, %v6531
  %v6994 = vpack.c.b16 %v6538, %v6535
  %v6995 = vpack.c.b16 %v6539, %v6536
  %v6996 = vpack.c.b16 %v6540, %v6537
  %v6997 = vpack.c.b16 %v6544, %v6541
  %v6998 = vpack.c.b16 %v6545, %v6542
  %v6999 = vpack.c.b16 %v6546, %v6543
  %v7000 = vpack.c.b16 %v6550, %v6547
  %v7001 = vpack.c.b16 %v6551, %v6548
  %v7002 = vpack.c.b16 %v6552, %v6549
  %v7003 = vpack.c.b16 %v6556, %v6553
  %v7004 = vpack.c.b16 %v6557, %v6554
  %v7005 = vpack.c.b16 %v6558, %v6555
  %v7006 = vpack.c.b16 %v6562, %v6559
  %v7007 = vpack.c.b16 %v6563, %v6560
  %v7008 = vpack.c.b16 %v6564, %v6561
  %v7009 = vpack.c.b16 %v6568, %v6565
  %v7010 = vpack.c.b16 %v6569, %v6566
  %v7011 = vpack.c.b16 %v6570, %v6567
  %v7012 = vpack.c.b16 %v6574, %v6571
  %v7013 = vpack.c.b16 %v6575, %v6572
  %v7014 = vpack.c.b16 %v6576, %v6573
  %v7015 = vpack.c.b16 %v6580, %v6577
  %v7016 = vpack.c.b16 %v6581, %v6578
  %v7017 = vpack.c.b16 %v6582, %v6579
  %v7018 = vpack.c.b16 %v6586, %v6583
  %v7019 = vpack.c.b16 %v6587, %v6584
  %v7020 = vpack.c.b16 %v6588, %v6585
  %7453 = vmatpush.bf16.msra.mxu0 %v6610
  %7454 = vmatpush.bf16.msra.mxu0 %v6607
  %7455 = vmatpush.bf16.msra.mxu0 %v6604
  %7456 = vmatpush.bf16.msra.mxu0 %v6601
  %7457 = vmatpush.bf16.msra.mxu0 %v6598
  %7458 = vmatpush.bf16.msra.mxu0 %v6595
  %7459 = vmatpush.bf16.msra.mxu0 %v6592
  %7460 = vmatpush.bf16.msra.mxu0 %v6589
  %7461 = vmatmul.bf16.gmra.mxu0 %v5113
  %v7462 = vpop.f32.mrf.mxu0
  %v7463 = vadd.f32 %v5080, %v7462
  %v7464 = vpop.f32.mrf.mxu0
  %7465 = vdwg.mxu0
  %7466 = vmatpush.bf16.msra.mxu0 %v6634
  %7467 = vmatpush.bf16.msra.mxu0 %v6631
  %7468 = vmatpush.bf16.msra.mxu0 %v6628
  %7469 = vmatpush.bf16.msra.mxu0 %v6625
  %7470 = vmatpush.bf16.msra.mxu0 %v6622
  %7471 = vmatpush.bf16.msra.mxu0 %v6619
  %7472 = vmatpush.bf16.msra.mxu0 %v6616
  %7473 = vmatpush.bf16.msra.mxu0 %v6613
  %7474 = vmatmul.bf16.gmra.mxu0 %v5114
  %v7475 = vpop.f32.mrf.mxu0
  %v7476 = vadd.f32 %v7463, %v7475
  %v7477 = vpop.f32.mrf.mxu0
  %7478 = vdwg.mxu0
  %7479 = vmatpush.bf16.msra.mxu0 %v6658
  %7480 = vmatpush.bf16.msra.mxu0 %v6655
  %7481 = vmatpush.bf16.msra.mxu0 %v6652
  %7482 = vmatpush.bf16.msra.mxu0 %v6649
  %7483 = vmatpush.bf16.msra.mxu0 %v6646
  %7484 = vmatpush.bf16.msra.mxu0 %v6643
  %7485 = vmatpush.bf16.msra.mxu0 %v6640
  %7486 = vmatpush.bf16.msra.mxu0 %v6637
  %7487 = vmatmul.bf16.gmra.mxu0 %v5115
  %v7488 = vpop.f32.mrf.mxu0
  %v7489 = vadd.f32 %v7476, %v7488
  %v7490 = vpop.f32.mrf.mxu0
  %7491 = vdwg.mxu0
  %7492 = vmatpush.bf16.msra.mxu0 %v6682
  %7493 = vmatpush.bf16.msra.mxu0 %v6679
  %7494 = vmatpush.bf16.msra.mxu0 %v6676
  %7495 = vmatpush.bf16.msra.mxu0 %v6673
  %7496 = vmatpush.bf16.msra.mxu0 %v6670
  %7497 = vmatpush.bf16.msra.mxu0 %v6667
  %7498 = vmatpush.bf16.msra.mxu0 %v6664
  %7499 = vmatpush.bf16.msra.mxu0 %v6661
  %7500 = vmatmul.bf16.gmra.mxu0 %v5116
  %v7501 = vpop.f32.mrf.mxu0
  %v7502 = vadd.f32 %v7489, %v7501
  %v7503 = vpop.f32.mrf.mxu0
  %7504 = vdwg.mxu0
  %7505 = vmatpush.bf16.msra.mxu0 %v6706
  %7506 = vmatpush.bf16.msra.mxu0 %v6703
  %7507 = vmatpush.bf16.msra.mxu0 %v6700
  %7508 = vmatpush.bf16.msra.mxu0 %v6697
  %7509 = vmatpush.bf16.msra.mxu0 %v6694
  %7510 = vmatpush.bf16.msra.mxu0 %v6691
  %7511 = vmatpush.bf16.msra.mxu0 %v6688
  %7512 = vmatpush.bf16.msra.mxu0 %v6685
  %7513 = vmatmul.bf16.gmra.mxu0 %v5117
  %v7514 = vpop.f32.mrf.mxu0
  %v7515 = vadd.f32 %v7502, %v7514
  %v7516 = vpop.f32.mrf.mxu0
  %7517 = vdwg.mxu0
  %7518 = vmatpush.bf16.msra.mxu0 %v6730
  %7519 = vmatpush.bf16.msra.mxu0 %v6727
  %7520 = vmatpush.bf16.msra.mxu0 %v6724
  %7521 = vmatpush.bf16.msra.mxu0 %v6721
  %7522 = vmatpush.bf16.msra.mxu0 %v6718
  %7523 = vmatpush.bf16.msra.mxu0 %v6715
  %7524 = vmatpush.bf16.msra.mxu0 %v6712
  %7525 = vmatpush.bf16.msra.mxu0 %v6709
  %7526 = vmatmul.bf16.gmra.mxu0 %v5118
  %v7527 = vpop.f32.mrf.mxu0
  %v7528 = vadd.f32 %v7515, %v7527
  %v7529 = vpop.f32.mrf.mxu0
  %7530 = vdwg.mxu0
  %7531 = vmatpush.bf16.msra.mxu0 %v6754
  %7532 = vmatpush.bf16.msra.mxu0 %v6751
  %7533 = vmatpush.bf16.msra.mxu0 %v6748
  %7534 = vmatpush.bf16.msra.mxu0 %v6745
  %7535 = vmatpush.bf16.msra.mxu0 %v6742
  %7536 = vmatpush.bf16.msra.mxu0 %v6739
  %7537 = vmatpush.bf16.msra.mxu0 %v6736
  %7538 = vmatpush.bf16.msra.mxu0 %v6733
  %7539 = vmatmul.bf16.gmra.mxu0 %v5119
  %v7540 = vpop.f32.mrf.mxu0
  %v7541 = vadd.f32 %v7528, %v7540
  %v7542 = vpop.f32.mrf.mxu0
  %7543 = vdwg.mxu0
  %7544 = vmatpush.bf16.msra.mxu0 %v6778
  %7545 = vmatpush.bf16.msra.mxu0 %v6775
  %7546 = vmatpush.bf16.msra.mxu0 %v6772
  %7547 = vmatpush.bf16.msra.mxu0 %v6769
  %7548 = vmatpush.bf16.msra.mxu0 %v6766
  %7549 = vmatpush.bf16.msra.mxu0 %v6763
  %7550 = vmatpush.bf16.msra.mxu0 %v6760
  %7551 = vmatpush.bf16.msra.mxu0 %v6757
  %7552 = vmatmul.bf16.gmra.mxu0 %v5120
  %v7553 = vpop.f32.mrf.mxu0
  %v7554 = vadd.f32 %v7541, %v7553
  %v7555 = vpop.f32.mrf.mxu0
  %7556 = vdwg.mxu0
  %7557 = vmatpush.bf16.msra.mxu0 %v6802
  %7558 = vmatpush.bf16.msra.mxu0 %v6799
  %7559 = vmatpush.bf16.msra.mxu0 %v6796
  %7560 = vmatpush.bf16.msra.mxu0 %v6793
  %7561 = vmatpush.bf16.msra.mxu0 %v6790
  %7562 = vmatpush.bf16.msra.mxu0 %v6787
  %7563 = vmatpush.bf16.msra.mxu0 %v6784
  %7564 = vmatpush.bf16.msra.mxu0 %v6781
  %7565 = vmatmul.bf16.gmra.mxu0 %v5121
  %v7566 = vpop.f32.mrf.mxu0
  %v7567 = vadd.f32 %v7554, %v7566
  %v7568 = vpop.f32.mrf.mxu0
  %7569 = vdwg.mxu0
  %7570 = vmatpush.bf16.msra.mxu0 %v6826
  %7571 = vmatpush.bf16.msra.mxu0 %v6823
  %7572 = vmatpush.bf16.msra.mxu0 %v6820
  %7573 = vmatpush.bf16.msra.mxu0 %v6817
  %7574 = vmatpush.bf16.msra.mxu0 %v6814
  %7575 = vmatpush.bf16.msra.mxu0 %v6811
  %7576 = vmatpush.bf16.msra.mxu0 %v6808
  %7577 = vmatpush.bf16.msra.mxu0 %v6805
  %7578 = vmatmul.bf16.gmra.mxu0 %v5122
  %v7579 = vpop.f32.mrf.mxu0
  %v7580 = vadd.f32 %v7567, %v7579
  %v7581 = vpop.f32.mrf.mxu0
  %7582 = vdwg.mxu0
  %7583 = vmatpush.bf16.msra.mxu0 %v6850
  %7584 = vmatpush.bf16.msra.mxu0 %v6847
  %7585 = vmatpush.bf16.msra.mxu0 %v6844
  %7586 = vmatpush.bf16.msra.mxu0 %v6841
  %7587 = vmatpush.bf16.msra.mxu0 %v6838
  %7588 = vmatpush.bf16.msra.mxu0 %v6835
  %7589 = vmatpush.bf16.msra.mxu0 %v6832
  %7590 = vmatpush.bf16.msra.mxu0 %v6829
  %7591 = vmatmul.bf16.gmra.mxu0 %v5123
  %v7592 = vpop.f32.mrf.mxu0
  %v7593 = vadd.f32 %v7580, %v7592
  %v7594 = vpop.f32.mrf.mxu0
  %7595 = vdwg.mxu0
  %7596 = vmatpush.bf16.msra.mxu0 %v6874
  %7597 = vmatpush.bf16.msra.mxu0 %v6871
  %7598 = vmatpush.bf16.msra.mxu0 %v6868
  %7599 = vmatpush.bf16.msra.mxu0 %v6865
  %7600 = vmatpush.bf16.msra.mxu0 %v6862
  %7601 = vmatpush.bf16.msra.mxu0 %v6859
  %7602 = vmatpush.bf16.msra.mxu0 %v6856
  %7603 = vmatpush.bf16.msra.mxu0 %v6853
  %7604 = vmatmul.bf16.gmra.mxu0 %v5124
  %v7605 = vpop.f32.mrf.mxu0
  %v7606 = vadd.f32 %v7593, %v7605
  %v7607 = vpop.f32.mrf.mxu0
  %7608 = vdwg.mxu0
  %7609 = vmatpush.bf16.msra.mxu0 %v6898
  %7610 = vmatpush.bf16.msra.mxu0 %v6895
  %7611 = vmatpush.bf16.msra.mxu0 %v6892
  %7612 = vmatpush.bf16.msra.mxu0 %v6889
  %7613 = vmatpush.bf16.msra.mxu0 %v6886
  %7614 = vmatpush.bf16.msra.mxu0 %v6883
  %7615 = vmatpush.bf16.msra.mxu0 %v6880
  %7616 = vmatpush.bf16.msra.mxu0 %v6877
  %7617 = vmatmul.bf16.gmra.mxu0 %v5125
  %v7618 = vpop.f32.mrf.mxu0
  %v7619 = vadd.f32 %v7606, %v7618
  %v7620 = vpop.f32.mrf.mxu0
  %7621 = vdwg.mxu0
  %7622 = vmatpush.bf16.msra.mxu0 %v6922
  %7623 = vmatpush.bf16.msra.mxu0 %v6919
  %7624 = vmatpush.bf16.msra.mxu0 %v6916
  %7625 = vmatpush.bf16.msra.mxu0 %v6913
  %7626 = vmatpush.bf16.msra.mxu0 %v6910
  %7627 = vmatpush.bf16.msra.mxu0 %v6907
  %7628 = vmatpush.bf16.msra.mxu0 %v6904
  %7629 = vmatpush.bf16.msra.mxu0 %v6901
  %7630 = vmatmul.bf16.gmra.mxu0 %v5126
  %v7631 = vpop.f32.mrf.mxu0
  %v7632 = vadd.f32 %v7619, %v7631
  %v7633 = vpop.f32.mrf.mxu0
  %7634 = vdwg.mxu0
  %7635 = vmatpush.bf16.msra.mxu0 %v6946
  %7636 = vmatpush.bf16.msra.mxu0 %v6943
  %7637 = vmatpush.bf16.msra.mxu0 %v6940
  %7638 = vmatpush.bf16.msra.mxu0 %v6937
  %7639 = vmatpush.bf16.msra.mxu0 %v6934
  %7640 = vmatpush.bf16.msra.mxu0 %v6931
  %7641 = vmatpush.bf16.msra.mxu0 %v6928
  %7642 = vmatpush.bf16.msra.mxu0 %v6925
  %7643 = vmatmul.bf16.gmra.mxu0 %v5127
  %v7644 = vpop.f32.mrf.mxu0
  %v7645 = vadd.f32 %v7632, %v7644
  %v7646 = vpop.f32.mrf.mxu0
  %7647 = vdwg.mxu0
  %7648 = vmatpush.bf16.msra.mxu0 %v6970
  %7649 = vmatpush.bf16.msra.mxu0 %v6967
  %7650 = vmatpush.bf16.msra.mxu0 %v6964
  %7651 = vmatpush.bf16.msra.mxu0 %v6961
  %7652 = vmatpush.bf16.msra.mxu0 %v6958
  %7653 = vmatpush.bf16.msra.mxu0 %v6955
  %7654 = vmatpush.bf16.msra.mxu0 %v6952
  %7655 = vmatpush.bf16.msra.mxu0 %v6949
  %7656 = vmatmul.bf16.gmra.mxu0 %v5128
  %v7657 = vpop.f32.mrf.mxu0
  %v7658 = vadd.f32 %v7645, %v7657
  %v7659 = vpop.f32.mrf.mxu0
  %7660 = vdwg.mxu0
  %7661 = vmatpush.bf16.msra.mxu0 %v6994
  %7662 = vmatpush.bf16.msra.mxu0 %v6991
  %7663 = vmatpush.bf16.msra.mxu0 %v6988
  %7664 = vmatpush.bf16.msra.mxu0 %v6985
  %7665 = vmatpush.bf16.msra.mxu0 %v6982
  %7666 = vmatpush.bf16.msra.mxu0 %v6979
  %7667 = vmatpush.bf16.msra.mxu0 %v6976
  %7668 = vmatpush.bf16.msra.mxu0 %v6973
  %7669 = vmatmul.bf16.gmra.mxu0 %v5129
  %v7670 = vpop.f32.mrf.mxu0
  %v7671 = vadd.f32 %v7658, %v7670
  %v7672 = vpop.f32.mrf.mxu0
  %7673 = vdwg.mxu0
  %7674 = vmatpush.bf16.msra.mxu0 %v7018
  %7675 = vmatpush.bf16.msra.mxu0 %v7015
  %7676 = vmatpush.bf16.msra.mxu0 %v7012
  %7677 = vmatpush.bf16.msra.mxu0 %v7009
  %7678 = vmatpush.bf16.msra.mxu0 %v7006
  %7679 = vmatpush.bf16.msra.mxu0 %v7003
  %7680 = vmatpush.bf16.msra.mxu0 %v7000
  %7681 = vmatpush.bf16.msra.mxu0 %v6997
  %7682 = vmatmul.bf16.gmra.mxu0 %v5130
  %v7683 = vpop.f32.mrf.mxu0
  %v7684 = vadd.f32 %v7671, %v7683
  %v7685 = vpop.f32.mrf.mxu0
  %7686 = vdwg.mxu0
  %7687 = vmatpush.bf16.msra.mxu0 %v6611
  %7688 = vmatpush.bf16.msra.mxu0 %v6608
  %7689 = vmatpush.bf16.msra.mxu0 %v6605
  %7690 = vmatpush.bf16.msra.mxu0 %v6602
  %7691 = vmatpush.bf16.msra.mxu0 %v6599
  %7692 = vmatpush.bf16.msra.mxu0 %v6596
  %7693 = vmatpush.bf16.msra.mxu0 %v6593
  %7694 = vmatpush.bf16.msra.mxu0 %v6590
  %7695 = vmatmul.bf16.gmra.mxu0 %v5113
  %v7696 = vpop.f32.mrf.mxu0
  %v7697 = vadd.f32 %v5081, %v7696
  %v7698 = vpop.f32.mrf.mxu0
  %7699 = vdwg.mxu0
  %7700 = vmatpush.bf16.msra.mxu0 %v6635
  %7701 = vmatpush.bf16.msra.mxu0 %v6632
  %7702 = vmatpush.bf16.msra.mxu0 %v6629
  %7703 = vmatpush.bf16.msra.mxu0 %v6626
  %7704 = vmatpush.bf16.msra.mxu0 %v6623
  %7705 = vmatpush.bf16.msra.mxu0 %v6620
  %7706 = vmatpush.bf16.msra.mxu0 %v6617
  %7707 = vmatpush.bf16.msra.mxu0 %v6614
  %7708 = vmatmul.bf16.gmra.mxu0 %v5114
  %v7709 = vpop.f32.mrf.mxu0
  %v7710 = vadd.f32 %v7697, %v7709
  %v7711 = vpop.f32.mrf.mxu0
  %7712 = vdwg.mxu0
  %7713 = vmatpush.bf16.msra.mxu0 %v6659
  %7714 = vmatpush.bf16.msra.mxu0 %v6656
  %7715 = vmatpush.bf16.msra.mxu0 %v6653
  %7716 = vmatpush.bf16.msra.mxu0 %v6650
  %7717 = vmatpush.bf16.msra.mxu0 %v6647
  %7718 = vmatpush.bf16.msra.mxu0 %v6644
  %7719 = vmatpush.bf16.msra.mxu0 %v6641
  %7720 = vmatpush.bf16.msra.mxu0 %v6638
  %7721 = vmatmul.bf16.gmra.mxu0 %v5115
  %v7722 = vpop.f32.mrf.mxu0
  %v7723 = vadd.f32 %v7710, %v7722
  %v7724 = vpop.f32.mrf.mxu0
  %7725 = vdwg.mxu0
  %7726 = vmatpush.bf16.msra.mxu0 %v6683
  %7727 = vmatpush.bf16.msra.mxu0 %v6680
  %7728 = vmatpush.bf16.msra.mxu0 %v6677
  %7729 = vmatpush.bf16.msra.mxu0 %v6674
  %7730 = vmatpush.bf16.msra.mxu0 %v6671
  %7731 = vmatpush.bf16.msra.mxu0 %v6668
  %7732 = vmatpush.bf16.msra.mxu0 %v6665
  %7733 = vmatpush.bf16.msra.mxu0 %v6662
  %7734 = vmatmul.bf16.gmra.mxu0 %v5116
  %v7735 = vpop.f32.mrf.mxu0
  %v7736 = vadd.f32 %v7723, %v7735
  %v7737 = vpop.f32.mrf.mxu0
  %7738 = vdwg.mxu0
  %7739 = vmatpush.bf16.msra.mxu0 %v6707
  %7740 = vmatpush.bf16.msra.mxu0 %v6704
  %7741 = vmatpush.bf16.msra.mxu0 %v6701
  %7742 = vmatpush.bf16.msra.mxu0 %v6698
  %7743 = vmatpush.bf16.msra.mxu0 %v6695
  %7744 = vmatpush.bf16.msra.mxu0 %v6692
  %7745 = vmatpush.bf16.msra.mxu0 %v6689
  %7746 = vmatpush.bf16.msra.mxu0 %v6686
  %7747 = vmatmul.bf16.gmra.mxu0 %v5117
  %v7748 = vpop.f32.mrf.mxu0
  %v7749 = vadd.f32 %v7736, %v7748
  %v7750 = vpop.f32.mrf.mxu0
  %7751 = vdwg.mxu0
  %7752 = vmatpush.bf16.msra.mxu0 %v6731
  %7753 = vmatpush.bf16.msra.mxu0 %v6728
  %7754 = vmatpush.bf16.msra.mxu0 %v6725
  %7755 = vmatpush.bf16.msra.mxu0 %v6722
  %7756 = vmatpush.bf16.msra.mxu0 %v6719
  %7757 = vmatpush.bf16.msra.mxu0 %v6716
  %7758 = vmatpush.bf16.msra.mxu0 %v6713
  %7759 = vmatpush.bf16.msra.mxu0 %v6710
  %7760 = vmatmul.bf16.gmra.mxu0 %v5118
  %v7761 = vpop.f32.mrf.mxu0
  %v7762 = vadd.f32 %v7749, %v7761
  %v7763 = vpop.f32.mrf.mxu0
  %7764 = vdwg.mxu0
  %7765 = vmatpush.bf16.msra.mxu0 %v6755
  %7766 = vmatpush.bf16.msra.mxu0 %v6752
  %7767 = vmatpush.bf16.msra.mxu0 %v6749
  %7768 = vmatpush.bf16.msra.mxu0 %v6746
  %7769 = vmatpush.bf16.msra.mxu0 %v6743
  %7770 = vmatpush.bf16.msra.mxu0 %v6740
  %7771 = vmatpush.bf16.msra.mxu0 %v6737
  %7772 = vmatpush.bf16.msra.mxu0 %v6734
  %7773 = vmatmul.bf16.gmra.mxu0 %v5119
  %v7774 = vpop.f32.mrf.mxu0
  %v7775 = vadd.f32 %v7762, %v7774
  %v7776 = vpop.f32.mrf.mxu0
  %7777 = vdwg.mxu0
  %7778 = vmatpush.bf16.msra.mxu0 %v6779
  %7779 = vmatpush.bf16.msra.mxu0 %v6776
  %7780 = vmatpush.bf16.msra.mxu0 %v6773
  %7781 = vmatpush.bf16.msra.mxu0 %v6770
  %7782 = vmatpush.bf16.msra.mxu0 %v6767
  %7783 = vmatpush.bf16.msra.mxu0 %v6764
  %7784 = vmatpush.bf16.msra.mxu0 %v6761
  %7785 = vmatpush.bf16.msra.mxu0 %v6758
  %7786 = vmatmul.bf16.gmra.mxu0 %v5120
  %v7787 = vpop.f32.mrf.mxu0
  %v7788 = vadd.f32 %v7775, %v7787
  %v7789 = vpop.f32.mrf.mxu0
  %7790 = vdwg.mxu0
  %7791 = vmatpush.bf16.msra.mxu0 %v6803
  %7792 = vmatpush.bf16.msra.mxu0 %v6800
  %7793 = vmatpush.bf16.msra.mxu0 %v6797
  %7794 = vmatpush.bf16.msra.mxu0 %v6794
  %7795 = vmatpush.bf16.msra.mxu0 %v6791
  %7796 = vmatpush.bf16.msra.mxu0 %v6788
  %7797 = vmatpush.bf16.msra.mxu0 %v6785
  %7798 = vmatpush.bf16.msra.mxu0 %v6782
  %7799 = vmatmul.bf16.gmra.mxu0 %v5121
  %v7800 = vpop.f32.mrf.mxu0
  %v7801 = vadd.f32 %v7788, %v7800
  %v7802 = vpop.f32.mrf.mxu0
  %7803 = vdwg.mxu0
  %7804 = vmatpush.bf16.msra.mxu0 %v6827
  %7805 = vmatpush.bf16.msra.mxu0 %v6824
  %7806 = vmatpush.bf16.msra.mxu0 %v6821
  %7807 = vmatpush.bf16.msra.mxu0 %v6818
  %7808 = vmatpush.bf16.msra.mxu0 %v6815
  %7809 = vmatpush.bf16.msra.mxu0 %v6812
  %7810 = vmatpush.bf16.msra.mxu0 %v6809
  %7811 = vmatpush.bf16.msra.mxu0 %v6806
  %7812 = vmatmul.bf16.gmra.mxu0 %v5122
  %v7813 = vpop.f32.mrf.mxu0
  %v7814 = vadd.f32 %v7801, %v7813
  %v7815 = vpop.f32.mrf.mxu0
  %7816 = vdwg.mxu0
  %7817 = vmatpush.bf16.msra.mxu0 %v6851
  %7818 = vmatpush.bf16.msra.mxu0 %v6848
  %7819 = vmatpush.bf16.msra.mxu0 %v6845
  %7820 = vmatpush.bf16.msra.mxu0 %v6842
  %7821 = vmatpush.bf16.msra.mxu0 %v6839
  %7822 = vmatpush.bf16.msra.mxu0 %v6836
  %7823 = vmatpush.bf16.msra.mxu0 %v6833
  %7824 = vmatpush.bf16.msra.mxu0 %v6830
  %7825 = vmatmul.bf16.gmra.mxu0 %v5123
  %v7826 = vpop.f32.mrf.mxu0
  %v7827 = vadd.f32 %v7814, %v7826
  %v7828 = vpop.f32.mrf.mxu0
  %7829 = vdwg.mxu0
  %7830 = vmatpush.bf16.msra.mxu0 %v6875
  %7831 = vmatpush.bf16.msra.mxu0 %v6872
  %7832 = vmatpush.bf16.msra.mxu0 %v6869
  %7833 = vmatpush.bf16.msra.mxu0 %v6866
  %7834 = vmatpush.bf16.msra.mxu0 %v6863
  %7835 = vmatpush.bf16.msra.mxu0 %v6860
  %7836 = vmatpush.bf16.msra.mxu0 %v6857
  %7837 = vmatpush.bf16.msra.mxu0 %v6854
  %7838 = vmatmul.bf16.gmra.mxu0 %v5124
  %v7839 = vpop.f32.mrf.mxu0
  %v7840 = vadd.f32 %v7827, %v7839
  %v7841 = vpop.f32.mrf.mxu0
  %7842 = vdwg.mxu0
  %7843 = vmatpush.bf16.msra.mxu0 %v6899
  %7844 = vmatpush.bf16.msra.mxu0 %v6896
  %7845 = vmatpush.bf16.msra.mxu0 %v6893
  %7846 = vmatpush.bf16.msra.mxu0 %v6890
  %7847 = vmatpush.bf16.msra.mxu0 %v6887
  %7848 = vmatpush.bf16.msra.mxu0 %v6884
  %7849 = vmatpush.bf16.msra.mxu0 %v6881
  %7850 = vmatpush.bf16.msra.mxu0 %v6878
  %7851 = vmatmul.bf16.gmra.mxu0 %v5125
  %v7852 = vpop.f32.mrf.mxu0
  %v7853 = vadd.f32 %v7840, %v7852
  %v7854 = vpop.f32.mrf.mxu0
  %7855 = vdwg.mxu0
  %7856 = vmatpush.bf16.msra.mxu0 %v6923
  %7857 = vmatpush.bf16.msra.mxu0 %v6920
  %7858 = vmatpush.bf16.msra.mxu0 %v6917
  %7859 = vmatpush.bf16.msra.mxu0 %v6914
  %7860 = vmatpush.bf16.msra.mxu0 %v6911
  %7861 = vmatpush.bf16.msra.mxu0 %v6908
  %7862 = vmatpush.bf16.msra.mxu0 %v6905
  %7863 = vmatpush.bf16.msra.mxu0 %v6902
  %7864 = vmatmul.bf16.gmra.mxu0 %v5126
  %v7865 = vpop.f32.mrf.mxu0
  %v7866 = vadd.f32 %v7853, %v7865
  %v7867 = vpop.f32.mrf.mxu0
  %7868 = vdwg.mxu0
  %7869 = vmatpush.bf16.msra.mxu0 %v6947
  %7870 = vmatpush.bf16.msra.mxu0 %v6944
  %7871 = vmatpush.bf16.msra.mxu0 %v6941
  %7872 = vmatpush.bf16.msra.mxu0 %v6938
  %7873 = vmatpush.bf16.msra.mxu0 %v6935
  %7874 = vmatpush.bf16.msra.mxu0 %v6932
  %7875 = vmatpush.bf16.msra.mxu0 %v6929
  %7876 = vmatpush.bf16.msra.mxu0 %v6926
  %7877 = vmatmul.bf16.gmra.mxu0 %v5127
  %v7878 = vpop.f32.mrf.mxu0
  %v7879 = vadd.f32 %v7866, %v7878
  %v7880 = vpop.f32.mrf.mxu0
  %7881 = vdwg.mxu0
  %7882 = vmatpush.bf16.msra.mxu0 %v6971
  %7883 = vmatpush.bf16.msra.mxu0 %v6968
  %7884 = vmatpush.bf16.msra.mxu0 %v6965
  %7885 = vmatpush.bf16.msra.mxu0 %v6962
  %7886 = vmatpush.bf16.msra.mxu0 %v6959
  %7887 = vmatpush.bf16.msra.mxu0 %v6956
  %7888 = vmatpush.bf16.msra.mxu0 %v6953
  %7889 = vmatpush.bf16.msra.mxu0 %v6950
  %7890 = vmatmul.bf16.gmra.mxu0 %v5128
  %v7891 = vpop.f32.mrf.mxu0
  %v7892 = vadd.f32 %v7879, %v7891
  %v7893 = vpop.f32.mrf.mxu0
  %7894 = vdwg.mxu0
  %7895 = vmatpush.bf16.msra.mxu0 %v6995
  %7896 = vmatpush.bf16.msra.mxu0 %v6992
  %7897 = vmatpush.bf16.msra.mxu0 %v6989
  %7898 = vmatpush.bf16.msra.mxu0 %v6986
  %7899 = vmatpush.bf16.msra.mxu0 %v6983
  %7900 = vmatpush.bf16.msra.mxu0 %v6980
  %7901 = vmatpush.bf16.msra.mxu0 %v6977
  %7902 = vmatpush.bf16.msra.mxu0 %v6974
  %7903 = vmatmul.bf16.gmra.mxu0 %v5129
  %v7904 = vpop.f32.mrf.mxu0
  %v7905 = vadd.f32 %v7892, %v7904
  %v7906 = vpop.f32.mrf.mxu0
  %7907 = vdwg.mxu0
  %7908 = vmatpush.bf16.msra.mxu0 %v7019
  %7909 = vmatpush.bf16.msra.mxu0 %v7016
  %7910 = vmatpush.bf16.msra.mxu0 %v7013
  %7911 = vmatpush.bf16.msra.mxu0 %v7010
  %7912 = vmatpush.bf16.msra.mxu0 %v7007
  %7913 = vmatpush.bf16.msra.mxu0 %v7004
  %7914 = vmatpush.bf16.msra.mxu0 %v7001
  %7915 = vmatpush.bf16.msra.mxu0 %v6998
  %7916 = vmatmul.bf16.gmra.mxu0 %v5130
  %v7917 = vpop.f32.mrf.mxu0
  %v7918 = vadd.f32 %v7905, %v7917
  %v7919 = vpop.f32.mrf.mxu0
  %7920 = vdwg.mxu0
  %7921 = vmatpush.bf16.msra.mxu0 %v6612
  %7922 = vmatpush.bf16.msra.mxu0 %v6609
  %7923 = vmatpush.bf16.msra.mxu0 %v6606
  %7924 = vmatpush.bf16.msra.mxu0 %v6603
  %7925 = vmatpush.bf16.msra.mxu0 %v6600
  %7926 = vmatpush.bf16.msra.mxu0 %v6597
  %7927 = vmatpush.bf16.msra.mxu0 %v6594
  %7928 = vmatpush.bf16.msra.mxu0 %v6591
  %7929 = vmatmul.bf16.gmra.mxu0 %v5113
  %v7930 = vpop.f32.mrf.mxu0
  %v7931 = vadd.f32 %v5082, %v7930
  %v7932 = vpop.f32.mrf.mxu0
  %7933 = vdwg.mxu0
  %7934 = vmatpush.bf16.msra.mxu0 %v6636
  %7935 = vmatpush.bf16.msra.mxu0 %v6633
  %7936 = vmatpush.bf16.msra.mxu0 %v6630
  %7937 = vmatpush.bf16.msra.mxu0 %v6627
  %7938 = vmatpush.bf16.msra.mxu0 %v6624
  %7939 = vmatpush.bf16.msra.mxu0 %v6621
  %7940 = vmatpush.bf16.msra.mxu0 %v6618
  %7941 = vmatpush.bf16.msra.mxu0 %v6615
  %7942 = vmatmul.bf16.gmra.mxu0 %v5114
  %v7943 = vpop.f32.mrf.mxu0
  %v7944 = vadd.f32 %v7931, %v7943
  %v7945 = vpop.f32.mrf.mxu0
  %7946 = vdwg.mxu0
  %7947 = vmatpush.bf16.msra.mxu0 %v6660
  %7948 = vmatpush.bf16.msra.mxu0 %v6657
  %7949 = vmatpush.bf16.msra.mxu0 %v6654
  %7950 = vmatpush.bf16.msra.mxu0 %v6651
  %7951 = vmatpush.bf16.msra.mxu0 %v6648
  %7952 = vmatpush.bf16.msra.mxu0 %v6645
  %7953 = vmatpush.bf16.msra.mxu0 %v6642
  %7954 = vmatpush.bf16.msra.mxu0 %v6639
  %7955 = vmatmul.bf16.gmra.mxu0 %v5115
  %v7956 = vpop.f32.mrf.mxu0
  %v7957 = vadd.f32 %v7944, %v7956
  %v7958 = vpop.f32.mrf.mxu0
  %7959 = vdwg.mxu0
  %7960 = vmatpush.bf16.msra.mxu0 %v6684
  %7961 = vmatpush.bf16.msra.mxu0 %v6681
  %7962 = vmatpush.bf16.msra.mxu0 %v6678
  %7963 = vmatpush.bf16.msra.mxu0 %v6675
  %7964 = vmatpush.bf16.msra.mxu0 %v6672
  %7965 = vmatpush.bf16.msra.mxu0 %v6669
  %7966 = vmatpush.bf16.msra.mxu0 %v6666
  %7967 = vmatpush.bf16.msra.mxu0 %v6663
  %7968 = vmatmul.bf16.gmra.mxu0 %v5116
  %v7969 = vpop.f32.mrf.mxu0
  %v7970 = vadd.f32 %v7957, %v7969
  %v7971 = vpop.f32.mrf.mxu0
  %7972 = vdwg.mxu0
  %7973 = vmatpush.bf16.msra.mxu0 %v6708
  %7974 = vmatpush.bf16.msra.mxu0 %v6705
  %7975 = vmatpush.bf16.msra.mxu0 %v6702
  %7976 = vmatpush.bf16.msra.mxu0 %v6699
  %7977 = vmatpush.bf16.msra.mxu0 %v6696
  %7978 = vmatpush.bf16.msra.mxu0 %v6693
  %7979 = vmatpush.bf16.msra.mxu0 %v6690
  %7980 = vmatpush.bf16.msra.mxu0 %v6687
  %7981 = vmatmul.bf16.gmra.mxu0 %v5117
  %v7982 = vpop.f32.mrf.mxu0
  %v7983 = vadd.f32 %v7970, %v7982
  %v7984 = vpop.f32.mrf.mxu0
  %7985 = vdwg.mxu0
  %7986 = vmatpush.bf16.msra.mxu0 %v6732
  %7987 = vmatpush.bf16.msra.mxu0 %v6729
  %7988 = vmatpush.bf16.msra.mxu0 %v6726
  %7989 = vmatpush.bf16.msra.mxu0 %v6723
  %7990 = vmatpush.bf16.msra.mxu0 %v6720
  %7991 = vmatpush.bf16.msra.mxu0 %v6717
  %7992 = vmatpush.bf16.msra.mxu0 %v6714
  %7993 = vmatpush.bf16.msra.mxu0 %v6711
  %7994 = vmatmul.bf16.gmra.mxu0 %v5118
  %v7995 = vpop.f32.mrf.mxu0
  %v7996 = vadd.f32 %v7983, %v7995
  %v7997 = vpop.f32.mrf.mxu0
  %7998 = vdwg.mxu0
  %7999 = vmatpush.bf16.msra.mxu0 %v6756
  %8000 = vmatpush.bf16.msra.mxu0 %v6753
  %8001 = vmatpush.bf16.msra.mxu0 %v6750
  %8002 = vmatpush.bf16.msra.mxu0 %v6747
  %8003 = vmatpush.bf16.msra.mxu0 %v6744
  %8004 = vmatpush.bf16.msra.mxu0 %v6741
  %8005 = vmatpush.bf16.msra.mxu0 %v6738
  %8006 = vmatpush.bf16.msra.mxu0 %v6735
  %8007 = vmatmul.bf16.gmra.mxu0 %v5119
  %v8008 = vpop.f32.mrf.mxu0
  %v8009 = vadd.f32 %v7996, %v8008
  %v8010 = vpop.f32.mrf.mxu0
  %8011 = vdwg.mxu0
  %8012 = vmatpush.bf16.msra.mxu0 %v6780
  %8013 = vmatpush.bf16.msra.mxu0 %v6777
  %8014 = vmatpush.bf16.msra.mxu0 %v6774
  %8015 = vmatpush.bf16.msra.mxu0 %v6771
  %8016 = vmatpush.bf16.msra.mxu0 %v6768
  %8017 = vmatpush.bf16.msra.mxu0 %v6765
  %8018 = vmatpush.bf16.msra.mxu0 %v6762
  %8019 = vmatpush.bf16.msra.mxu0 %v6759
  %8020 = vmatmul.bf16.gmra.mxu0 %v5120
  %v8021 = vpop.f32.mrf.mxu0
  %v8022 = vadd.f32 %v8009, %v8021
  %v8023 = vpop.f32.mrf.mxu0
  %8024 = vdwg.mxu0
  %8025 = vmatpush.bf16.msra.mxu0 %v6804
  %8026 = vmatpush.bf16.msra.mxu0 %v6801
  %8027 = vmatpush.bf16.msra.mxu0 %v6798
  %8028 = vmatpush.bf16.msra.mxu0 %v6795
  %8029 = vmatpush.bf16.msra.mxu0 %v6792
  %8030 = vmatpush.bf16.msra.mxu0 %v6789
  %8031 = vmatpush.bf16.msra.mxu0 %v6786
  %8032 = vmatpush.bf16.msra.mxu0 %v6783
  %8033 = vmatmul.bf16.gmra.mxu0 %v5121
  %v8034 = vpop.f32.mrf.mxu0
  %v8035 = vadd.f32 %v8022, %v8034
  %v8036 = vpop.f32.mrf.mxu0
  %8037 = vdwg.mxu0
  %8038 = vmatpush.bf16.msra.mxu0 %v6828
  %8039 = vmatpush.bf16.msra.mxu0 %v6825
  %8040 = vmatpush.bf16.msra.mxu0 %v6822
  %8041 = vmatpush.bf16.msra.mxu0 %v6819
  %8042 = vmatpush.bf16.msra.mxu0 %v6816
  %8043 = vmatpush.bf16.msra.mxu0 %v6813
  %8044 = vmatpush.bf16.msra.mxu0 %v6810
  %8045 = vmatpush.bf16.msra.mxu0 %v6807
  %8046 = vmatmul.bf16.gmra.mxu0 %v5122
  %v8047 = vpop.f32.mrf.mxu0
  %v8048 = vadd.f32 %v8035, %v8047
  %v8049 = vpop.f32.mrf.mxu0
  %8050 = vdwg.mxu0
  %8051 = vmatpush.bf16.msra.mxu0 %v6852
  %8052 = vmatpush.bf16.msra.mxu0 %v6849
  %8053 = vmatpush.bf16.msra.mxu0 %v6846
  %8054 = vmatpush.bf16.msra.mxu0 %v6843
  %8055 = vmatpush.bf16.msra.mxu0 %v6840
  %8056 = vmatpush.bf16.msra.mxu0 %v6837
  %8057 = vmatpush.bf16.msra.mxu0 %v6834
  %8058 = vmatpush.bf16.msra.mxu0 %v6831
  %8059 = vmatmul.bf16.gmra.mxu0 %v5123
  %v8060 = vpop.f32.mrf.mxu0
  %v8061 = vadd.f32 %v8048, %v8060
  %v8062 = vpop.f32.mrf.mxu0
  %8063 = vdwg.mxu0
  %8064 = vmatpush.bf16.msra.mxu0 %v6876
  %8065 = vmatpush.bf16.msra.mxu0 %v6873
  %8066 = vmatpush.bf16.msra.mxu0 %v6870
  %8067 = vmatpush.bf16.msra.mxu0 %v6867
  %8068 = vmatpush.bf16.msra.mxu0 %v6864
  %8069 = vmatpush.bf16.msra.mxu0 %v6861
  %8070 = vmatpush.bf16.msra.mxu0 %v6858
  %8071 = vmatpush.bf16.msra.mxu0 %v6855
  %8072 = vmatmul.bf16.gmra.mxu0 %v5124
  %v8073 = vpop.f32.mrf.mxu0
  %v8074 = vadd.f32 %v8061, %v8073
  %v8075 = vpop.f32.mrf.mxu0
  %8076 = vdwg.mxu0
  %8077 = vmatpush.bf16.msra.mxu0 %v6900
  %8078 = vmatpush.bf16.msra.mxu0 %v6897
  %8079 = vmatpush.bf16.msra.mxu0 %v6894
  %8080 = vmatpush.bf16.msra.mxu0 %v6891
  %8081 = vmatpush.bf16.msra.mxu0 %v6888
  %8082 = vmatpush.bf16.msra.mxu0 %v6885
  %8083 = vmatpush.bf16.msra.mxu0 %v6882
  %8084 = vmatpush.bf16.msra.mxu0 %v6879
  %8085 = vmatmul.bf16.gmra.mxu0 %v5125
  %v8086 = vpop.f32.mrf.mxu0
  %v8087 = vadd.f32 %v8074, %v8086
  %v8088 = vpop.f32.mrf.mxu0
  %8089 = vdwg.mxu0
  %8090 = vmatpush.bf16.msra.mxu0 %v6924
  %8091 = vmatpush.bf16.msra.mxu0 %v6921
  %8092 = vmatpush.bf16.msra.mxu0 %v6918
  %8093 = vmatpush.bf16.msra.mxu0 %v6915
  %8094 = vmatpush.bf16.msra.mxu0 %v6912
  %8095 = vmatpush.bf16.msra.mxu0 %v6909
  %8096 = vmatpush.bf16.msra.mxu0 %v6906
  %8097 = vmatpush.bf16.msra.mxu0 %v6903
  %8098 = vmatmul.bf16.gmra.mxu0 %v5126
  %v8099 = vpop.f32.mrf.mxu0
  %v8100 = vadd.f32 %v8087, %v8099
  %v8101 = vpop.f32.mrf.mxu0
  %8102 = vdwg.mxu0
  %8103 = vmatpush.bf16.msra.mxu0 %v6948
  %8104 = vmatpush.bf16.msra.mxu0 %v6945
  %8105 = vmatpush.bf16.msra.mxu0 %v6942
  %8106 = vmatpush.bf16.msra.mxu0 %v6939
  %8107 = vmatpush.bf16.msra.mxu0 %v6936
  %8108 = vmatpush.bf16.msra.mxu0 %v6933
  %8109 = vmatpush.bf16.msra.mxu0 %v6930
  %8110 = vmatpush.bf16.msra.mxu0 %v6927
  %8111 = vmatmul.bf16.gmra.mxu0 %v5127
  %v8112 = vpop.f32.mrf.mxu0
  %v8113 = vadd.f32 %v8100, %v8112
  %v8114 = vpop.f32.mrf.mxu0
  %8115 = vdwg.mxu0
  %8116 = vmatpush.bf16.msra.mxu0 %v6972
  %8117 = vmatpush.bf16.msra.mxu0 %v6969
  %8118 = vmatpush.bf16.msra.mxu0 %v6966
  %8119 = vmatpush.bf16.msra.mxu0 %v6963
  %8120 = vmatpush.bf16.msra.mxu0 %v6960
  %8121 = vmatpush.bf16.msra.mxu0 %v6957
  %8122 = vmatpush.bf16.msra.mxu0 %v6954
  %8123 = vmatpush.bf16.msra.mxu0 %v6951
  %8124 = vmatmul.bf16.gmra.mxu0 %v5128
  %v8125 = vpop.f32.mrf.mxu0
  %v8126 = vadd.f32 %v8113, %v8125
  %v8127 = vpop.f32.mrf.mxu0
  %8128 = vdwg.mxu0
  %8129 = vmatpush.bf16.msra.mxu0 %v6996
  %8130 = vmatpush.bf16.msra.mxu0 %v6993
  %8131 = vmatpush.bf16.msra.mxu0 %v6990
  %8132 = vmatpush.bf16.msra.mxu0 %v6987
  %8133 = vmatpush.bf16.msra.mxu0 %v6984
  %8134 = vmatpush.bf16.msra.mxu0 %v6981
  %8135 = vmatpush.bf16.msra.mxu0 %v6978
  %8136 = vmatpush.bf16.msra.mxu0 %v6975
  %8137 = vmatmul.bf16.gmra.mxu0 %v5129
  %v8138 = vpop.f32.mrf.mxu0
  %v8139 = vadd.f32 %v8126, %v8138
  %v8140 = vpop.f32.mrf.mxu0
  %8141 = vdwg.mxu0
  %8142 = vmatpush.bf16.msra.mxu0 %v7020
  %8143 = vmatpush.bf16.msra.mxu0 %v7017
  %8144 = vmatpush.bf16.msra.mxu0 %v7014
  %8145 = vmatpush.bf16.msra.mxu0 %v7011
  %8146 = vmatpush.bf16.msra.mxu0 %v7008
  %8147 = vmatpush.bf16.msra.mxu0 %v7005
  %8148 = vmatpush.bf16.msra.mxu0 %v7002
  %8149 = vmatpush.bf16.msra.mxu0 %v6999
  %8150 = vmatmul.bf16.gmra.mxu0 %v5130
  %v8151 = vpop.f32.mrf.mxu0
  %v8152 = vadd.f32 %v8139, %v8151
  %v8153 = vpop.f32.mrf.mxu0
  %8154 = vdwg.mxu0
  %v8155 = vmax.f32 %v7684, 0.0
  %v8156 = vmax.f32 %v7918, 0.0
  %v8157 = vmax.f32 %v8152, 0.0
  %v8158 = vpack.c.bf16 %v8156, %v8155
  %v8159 = vpack.c.bf16 %v8157, %v8157
  %8160 = vst [vmem:[#allocation4] sm:$0xff] 0
  %8161 = vst [vmem:[#allocation4 + $0x8] sm:$0xff] 0
  %8162 = vst [vmem:[#allocation4 + $0x10] sm:$0xff] 0
  %8163 = vst [vmem:[#allocation4 + $0x18] sm:$0xff] 0
  %8164 = vst [vmem:[#allocation4 + $0x20] sm:$0xff] 0
  %8165 = vst [vmem:[#allocation4 + $0x28] sm:$0xff] 0
  %8166 = vst [vmem:[#allocation4 + $0x30] sm:$0xff] 0
  %8167 = vst [vmem:[#allocation4 + $0x38] sm:$0xff] 0
  %8168 = vst [vmem:[#allocation4 + $0x40] sm:$0xff] 0
  %8169 = vst [vmem:[#allocation4 + $0x48] sm:$0xff] 0
  %8170 = vst [vmem:[#allocation4 + $0x50] sm:$0xff] 0
  %8171 = vst [vmem:[#allocation4 + $0x58] sm:$0xff] 0
  %8172 = vst [vmem:[#allocation4 + $0x60] sm:$0xff] 0
  %8173 = vst [vmem:[#allocation4 + $0x68] sm:$0xf] 0
  %v8176 = vrot.slane %v8158, 5
  %v8177 = vrot.slane %v8159, 5
  %8180 = vst [vmem:[#allocation4] sm:$0x88] %v8176
  %8181 = vst [vmem:[#allocation4 + $0x8] sm:$0x8] %v8177
  %v8182 = vrot.slane %v8158, 6
  %v8183 = vrot.slane %v8159, 6
  %8186 = vst [vmem:[#allocation4 + $0xc] sm:$0xcc] %v8182
  %8187 = vst [vmem:[#allocation4 + $0x14] sm:$0xc] %v8183
  %v8188 = vrot.slane %v8158, 7
  %v8189 = vrot.slane %v8159, 7
  %8192 = vst [vmem:[#allocation4 + $0x18] sm:$0x44] %v8188
  %8193 = vst [vmem:[#allocation4 + $0x20] sm:$0x4] %v8189
  %8194 = vst [vmem:[#allocation4 + $0x24] sm:$0x22] %v8188
  %8195 = vst [vmem:[#allocation4 + $0x2c] sm:$0x2] %v8189
  %8196 = vst [vmem:[#allocation4 + $0x24] sm:$0x88] %v8188
  %8197 = vst [vmem:[#allocation4 + $0x2c] sm:$0x8] %v8189
  %8198 = vst [vmem:[#allocation4 + $0x30] sm:$0x33] %v8158
  %8199 = vst [vmem:[#allocation4 + $0x38] sm:$0x3] %v8159
  %8200 = vst [vmem:[#allocation4 + $0x30] sm:$0xcc] %v8158
  %8201 = vst [vmem:[#allocation4 + $0x38] sm:$0xc] %v8159
  %v8202 = vrot.slane %v8176, 4
  %v8203 = vrot.slane %v8177, 4
  %8206 = vst [vmem:[#allocation4 + $0x3c] sm:$0x11] %v8202
  %8207 = vst [vmem:[#allocation4 + $0x44] sm:$0x1] %v8203
  %8208 = vst [vmem:[#allocation4 + $0x3c] sm:$0x44] %v8202
  %8209 = vst [vmem:[#allocation4 + $0x44] sm:$0x4] %v8203
  %8210 = vst [vmem:[#allocation4 + $0x48] sm:$0x22] %v8202
  %8211 = vst [vmem:[#allocation4 + $0x50] sm:$0x2] %v8203
  %v8212 = vrot.slane %v8182, 4
  %v8213 = vrot.slane %v8183, 4
  %8216 = vst [vmem:[#allocation4 + $0x54] sm:$0x33] %v8212
  %8217 = vst [vmem:[#allocation4 + $0x5c] sm:$0x3] %v8213
  %v8218 = vrot.slane %v8188, 4
  %v8219 = vrot.slane %v8189, 4
  %8222 = vst [vmem:[#allocation4 + $0x60] sm:$0x11] %v8218
  %8223 = vst [vmem:[#allocation4 + $0x68] sm:$0x1] %v8219
  %v8224 = vld [vmem:[#allocation4] sm:$0xff]
  %v8225 = vld [vmem:[#allocation4 + $0x8] sm:$0xff]
  %v8226 = vld [vmem:[#allocation4 + $0x10] sm:$0xff]
  %v8227 = vld [vmem:[#allocation4 + $0x18] sm:$0xff]
  %v8228 = vld [vmem:[#allocation4 + $0x20] sm:$0xff]
  %v8229 = vld [vmem:[#allocation4 + $0x28] sm:$0xff]
  %v8230 = vld [vmem:[#allocation4 + $0x30] sm:$0xff]
  %v8231 = vld [vmem:[#allocation4 + $0x38] sm:$0xff]
  %v8232 = vld [vmem:[#allocation4 + $0x40] sm:$0xff]
  %v8233 = vld [vmem:[#allocation4 + $0x48] sm:$0xff]
  %v8234 = vld [vmem:[#allocation4 + $0x50] sm:$0xff]
  %v8235 = vld [vmem:[#allocation4 + $0x58] sm:$0xff]
  %v8236 = vld [vmem:[#allocation4 + $0x60] sm:$0xff]
  %v8237 = vld [vmem:[#allocation4 + $0x68] sm:$0xf]
  %v8238 = vld [vmem:[%s8] sm:$0xff]
  %v8239 = vld [vmem:[%s8 + $0x8] sm:$0xff]
  %v8240 = vld [vmem:[%s8 + $0x10] sm:$0xff]
  %v8241 = vld [vmem:[%s8 + $0x18] sm:$0xff]
  %v8242 = vld [vmem:[%s8 + $0x20] sm:$0xff]
  %v8243 = vld [vmem:[%s8 + $0x28] sm:$0xff]
  %v8244 = vld [vmem:[%s8 + $0x30] sm:$0xff]
  %v8245 = vld [vmem:[%s8 + $0x38] sm:$0xff]
  %v8246 = vld [vmem:[%s8 + $0x40] sm:$0xff]
  %v8247 = vld [vmem:[%s8 + $0x48] sm:$0xff]
  %v8248 = vld [vmem:[%s8 + $0x50] sm:$0xff]
  %v8249 = vld [vmem:[%s8 + $0x58] sm:$0xff]
  %v8250 = vld [vmem:[%s8 + $0x60] sm:$0xff]
  %v8251 = vld [vmem:[%s8 + $0x68] sm:$0xff]
  %v8252 = vld [vmem:[%s8 + $0x70] sm:$0xff]
  %v8253 = vld [vmem:[%s8 + $0x78] sm:$0xff]
  %v8254 = vld [vmem:[%s8 + $0x80] sm:$0xff]
  %v8255 = vld [vmem:[%s8 + $0x88] sm:$0xff]
  %v8256 = vld [vmem:[%s8 + $0x90] sm:$0xff]
  %v8257 = vld [vmem:[%s8 + $0x98] sm:$0xff]
  %v8258 = vld [vmem:[%s8 + $0xa0] sm:$0xff]
  %v8259 = vld [vmem:[%s8 + $0xa8] sm:$0xff]
  %v8260 = vld [vmem:[%s8 + $0xb0] sm:$0xff]
  %v8261 = vld [vmem:[%s8 + $0xb8] sm:$0xff]
  %v8262 = vld [vmem:[%s8 + $0xc0] sm:$0xff]
  %v8263 = vld [vmem:[%s8 + $0xc8] sm:$0xff]
  %v8264 = vld [vmem:[%s8 + $0xd0] sm:$0xff]
  %v8265 = vld [vmem:[%s8 + $0xd8] sm:$0xff]
  %v8266 = vld [vmem:[%s8 + $0xe0] sm:$0xff]
  %v8267 = vld [vmem:[%s8 + $0xe8] sm:$0xff]
  %v8268 = vld [vmem:[%s8 + $0xf0] sm:$0xff]
  %v8269 = vld [vmem:[%s8 + $0xf8] sm:$0xff]
  %v8270 = vld [vmem:[%s8 + $0x100] sm:$0xff]
  %v8271 = vld [vmem:[%s8 + $0x108] sm:$0xff]
  %v8272 = vld [vmem:[%s8 + $0x110] sm:$0xff]
  %v8273 = vld [vmem:[%s8 + $0x118] sm:$0xff]
  %v8274 = vld [vmem:[%s8 + $0x120] sm:$0xff]
  %v8275 = vld [vmem:[%s8 + $0x128] sm:$0xff]
  %v8276 = vld [vmem:[%s8 + $0x130] sm:$0xff]
  %v8277 = vld [vmem:[%s8 + $0x138] sm:$0xff]
  %v8278 = vld [vmem:[%s8 + $0x140] sm:$0xff]
  %v8279 = vld [vmem:[%s8 + $0x148] sm:$0xff]
  %v8280 = vld [vmem:[%s8 + $0x150] sm:$0xff]
  %v8281 = vld [vmem:[%s8 + $0x158] sm:$0xff]
  %v8282 = vld [vmem:[%s8 + $0x160] sm:$0xff]
  %v8283 = vld [vmem:[%s8 + $0x168] sm:$0xff]
  %v8284 = vld [vmem:[%s8 + $0x170] sm:$0xff]
  %v8285 = vld [vmem:[%s8 + $0x178] sm:$0xff]
  %v8286 = vld [vmem:[%s8 + $0x180] sm:$0xff]
  %v8287 = vld [vmem:[%s8 + $0x188] sm:$0xff]
  %v8288 = vld [vmem:[%s8 + $0x190] sm:$0xff]
  %v8289 = vld [vmem:[%s8 + $0x198] sm:$0xff]
  %v8290 = vld [vmem:[%s8 + $0x1a0] sm:$0xff]
  %v8291 = vld [vmem:[%s8 + $0x1a8] sm:$0xff]
  %v8292 = vld [vmem:[%s8 + $0x1b0] sm:$0xff]
  %v8293 = vld [vmem:[%s8 + $0x1b8] sm:$0xff]
  %v8294 = vld [vmem:[%s8 + $0x1c0] sm:$0xff]
  %v8295 = vld [vmem:[%s8 + $0x1c8] sm:$0xff]
  %v8296 = vld [vmem:[%s8 + $0x1d0] sm:$0xff]
  %v8297 = vld [vmem:[%s8 + $0x1d8] sm:$0xff]
  %v8298 = vld [vmem:[%s8 + $0x1e0] sm:$0xff]
  %v8299 = vld [vmem:[%s8 + $0x1e8] sm:$0xff]
  %v8300 = vld [vmem:[%s8 + $0x1f0] sm:$0xff]
  %v8301 = vld [vmem:[%s8 + $0x1f8] sm:$0xff]
  %v8302 = vld [vmem:[%s8 + $0x200] sm:$0xff]
  %v8303 = vld [vmem:[%s8 + $0x208] sm:$0xff]
  %v8304 = vld [vmem:[%s8 + $0x210] sm:$0xff]
  %v8305 = vld [vmem:[%s8 + $0x218] sm:$0xff]
  %v8306 = vld [vmem:[%s8 + $0x220] sm:$0xff]
  %v8307 = vld [vmem:[%s8 + $0x228] sm:$0xff]
  %v8308 = vld [vmem:[%s8 + $0x230] sm:$0xff]
  %v8309 = vld [vmem:[%s8 + $0x238] sm:$0xff]
  %v8310 = vld [vmem:[%s8 + $0x240] sm:$0xff]
  %v8311 = vld [vmem:[%s8 + $0x248] sm:$0xff]
  %v8312 = vld [vmem:[%s8 + $0x250] sm:$0xff]
  %v8313 = vld [vmem:[%s8 + $0x258] sm:$0xff]
  %v8314 = vld [vmem:[%s8 + $0x260] sm:$0xff]
  %v8315 = vld [vmem:[%s8 + $0x268] sm:$0xff]
  %v8316 = vld [vmem:[%s8 + $0x270] sm:$0xff]
  %v8317 = vld [vmem:[%s8 + $0x278] sm:$0xff]
  %v8318 = vld [vmem:[%s8 + $0x280] sm:$0xff]
  %v8319 = vld [vmem:[%s8 + $0x288] sm:$0xff]
  %v8320 = vld [vmem:[%s8 + $0x290] sm:$0xff]
  %v8321 = vld [vmem:[%s8 + $0x298] sm:$0xff]
  %v8322 = vld [vmem:[%s8 + $0x2a0] sm:$0xff]
  %v8323 = vld [vmem:[%s8 + $0x2a8] sm:$0xff]
  %v8324 = vld [vmem:[%s8 + $0x2b0] sm:$0xff]
  %v8325 = vld [vmem:[%s8 + $0x2b8] sm:$0xff]
  %v8326 = vld [vmem:[%s8 + $0x2c0] sm:$0xff]
  %v8327 = vld [vmem:[%s8 + $0x2c8] sm:$0xff]
  %v8328 = vld [vmem:[%s8 + $0x2d0] sm:$0xff]
  %v8329 = vld [vmem:[%s8 + $0x2d8] sm:$0xff]
  %v8330 = vld [vmem:[%s8 + $0x2e0] sm:$0xff]
  %v8331 = vld [vmem:[%s8 + $0x2e8] sm:$0xff]
  %v8332 = vld [vmem:[%s8 + $0x2f0] sm:$0xff]
  %v8333 = vld [vmem:[%s8 + $0x2f8] sm:$0xff]
  %v8334 = vld [vmem:[%s8 + $0x300] sm:$0xff]
  %v8335 = vld [vmem:[%s8 + $0x308] sm:$0xff]
  %v8336 = vld [vmem:[%s8 + $0x310] sm:$0xff]
  %v8337 = vld [vmem:[%s8 + $0x318] sm:$0xff]
  %v8338 = vld [vmem:[%s8 + $0x320] sm:$0xff]
  %v8339 = vld [vmem:[%s8 + $0x328] sm:$0xff]
  %v8340 = vld [vmem:[%s8 + $0x330] sm:$0xff]
  %v8341 = vld [vmem:[%s8 + $0x338] sm:$0xff]
  %v8342 = vld [vmem:[%s8 + $0x340] sm:$0xff]
  %v8343 = vld [vmem:[%s8 + $0x348] sm:$0xff]
  %v8344 = vld [vmem:[%s8 + $0x350] sm:$0xff]
  %v8345 = vld [vmem:[%s8 + $0x358] sm:$0xff]
  %v8346 = vld [vmem:[%s8 + $0x360] sm:$0xff]
  %v8347 = vld [vmem:[%s8 + $0x368] sm:$0xff]
  %v8348 = vld [vmem:[%s8 + $0x370] sm:$0xff]
  %v8349 = vld [vmem:[%s8 + $0x378] sm:$0xff]
  %v8350 = vld [vmem:[%s8 + $0x380] sm:$0xff]
  %v8351 = vld [vmem:[%s8 + $0x388] sm:$0xff]
  %v8352 = vld [vmem:[%s8 + $0x390] sm:$0xff]
  %v8353 = vld [vmem:[%s8 + $0x398] sm:$0xff]
  %v8354 = vld [vmem:[%s8 + $0x3a0] sm:$0xff]
  %v8355 = vld [vmem:[%s8 + $0x3a8] sm:$0xff]
  %v8356 = vld [vmem:[%s8 + $0x3b0] sm:$0xff]
  %v8357 = vld [vmem:[%s8 + $0x3b8] sm:$0xff]
  %v8358 = vld [vmem:[%s8 + $0x3c0] sm:$0xff]
  %v8359 = vld [vmem:[%s8 + $0x3c8] sm:$0xff]
  %v8360 = vld [vmem:[%s8 + $0x3d0] sm:$0xff]
  %v8361 = vld [vmem:[%s8 + $0x3d8] sm:$0xff]
  %v8362 = vld [vmem:[%s8 + $0x3e0] sm:$0xff]
  %v8363 = vld [vmem:[%s8 + $0x3e8] sm:$0xff]
  %v8364 = vld [vmem:[%s8 + $0x3f0] sm:$0xff]
  %v8365 = vld [vmem:[%s8 + $0x3f8] sm:$0xff]
  %v8366 = vld [vmem:[%s8 + $0x400] sm:$0xff]
  %v8367 = vld [vmem:[%s8 + $0x408] sm:$0xff]
  %v8368 = vld [vmem:[%s8 + $0x410] sm:$0xff]
  %v8369 = vld [vmem:[%s8 + $0x418] sm:$0xff]
  %v8370 = vld [vmem:[%s8 + $0x420] sm:$0xff]
  %v8371 = vld [vmem:[%s8 + $0x428] sm:$0xff]
  %v8372 = vld [vmem:[%s8 + $0x430] sm:$0xff]
  %v8373 = vld [vmem:[%s8 + $0x438] sm:$0xff]
  %v8374 = vld [vmem:[%s8 + $0x440] sm:$0xff]
  %v8375 = vld [vmem:[%s8 + $0x448] sm:$0xff]
  %v8376 = vld [vmem:[%s8 + $0x450] sm:$0xff]
  %v8377 = vld [vmem:[%s8 + $0x458] sm:$0xff]
  %v8378 = vld [vmem:[%s8 + $0x460] sm:$0xff]
  %v8379 = vld [vmem:[%s8 + $0x468] sm:$0xff]
  %v8380 = vld [vmem:[%s8 + $0x470] sm:$0xff]
  %v8381 = vld [vmem:[%s8 + $0x478] sm:$0xff]
  %v8382 = vld [vmem:[%s8 + $0x480] sm:$0xff]
  %v8383 = vld [vmem:[%s8 + $0x488] sm:$0xff]
  %v8384 = vld [vmem:[%s8 + $0x490] sm:$0xff]
  %v8385 = vld [vmem:[%s8 + $0x498] sm:$0xff]
  %v8386 = vld [vmem:[%s8 + $0x4a0] sm:$0xff]
  %v8387 = vld [vmem:[%s8 + $0x4a8] sm:$0xff]
  %v8388 = vld [vmem:[%s8 + $0x4b0] sm:$0xff]
  %v8389 = vld [vmem:[%s8 + $0x4b8] sm:$0xff]
  %v8390 = vld [vmem:[%s8 + $0x4c0] sm:$0xff]
  %v8391 = vld [vmem:[%s8 + $0x4c8] sm:$0xff]
  %v8392 = vld [vmem:[%s8 + $0x4d0] sm:$0xff]
  %v8393 = vld [vmem:[%s8 + $0x4d8] sm:$0xff]
  %v8394 = vld [vmem:[%s8 + $0x4e0] sm:$0xff]
  %v8395 = vld [vmem:[%s8 + $0x4e8] sm:$0xff]
  %v8396 = vld [vmem:[%s8 + $0x4f0] sm:$0xff]
  %v8397 = vld [vmem:[%s8 + $0x4f8] sm:$0xff]
  %v8398 = vld [vmem:[%s8 + $0x500] sm:$0xff]
  %v8399 = vld [vmem:[%s8 + $0x508] sm:$0xff]
  %v8400 = vld [vmem:[%s8 + $0x510] sm:$0xff]
  %v8401 = vld [vmem:[%s8 + $0x518] sm:$0xff]
  %v8402 = vld [vmem:[%s8 + $0x520] sm:$0xff]
  %v8403 = vld [vmem:[%s8 + $0x528] sm:$0xff]
  %v8404 = vld [vmem:[%s8 + $0x530] sm:$0xff]
  %v8405 = vld [vmem:[%s8 + $0x538] sm:$0xff]
  %v8406 = vld [vmem:[%s8 + $0x540] sm:$0xff]
  %v8407 = vld [vmem:[%s8 + $0x548] sm:$0xff]
  %v8408 = vld [vmem:[%s8 + $0x550] sm:$0xff]
  %v8409 = vld [vmem:[%s8 + $0x558] sm:$0xff]
  %v8410 = vld [vmem:[%s8 + $0x560] sm:$0xff]
  %v8411 = vld [vmem:[%s8 + $0x568] sm:$0xff]
  %v8412 = vld [vmem:[%s8 + $0x570] sm:$0xff]
  %v8413 = vld [vmem:[%s8 + $0x578] sm:$0xff]
  %v8414 = vld [vmem:[%s8 + $0x580] sm:$0xff]
  %v8415 = vld [vmem:[%s8 + $0x588] sm:$0xff]
  %v8416 = vld [vmem:[%s8 + $0x590] sm:$0xff]
  %v8417 = vld [vmem:[%s8 + $0x598] sm:$0xff]
  %v8418 = vld [vmem:[%s8 + $0x5a0] sm:$0xff]
  %v8419 = vld [vmem:[%s8 + $0x5a8] sm:$0xff]
  %v8420 = vld [vmem:[%s8 + $0x5b0] sm:$0xff]
  %v8421 = vld [vmem:[%s8 + $0x5b8] sm:$0xff]
  %v8422 = vld [vmem:[%s8 + $0x5c0] sm:$0xff]
  %v8423 = vld [vmem:[%s8 + $0x5c8] sm:$0xff]
  %v8424 = vld [vmem:[%s8 + $0x5d0] sm:$0xff]
  %v8425 = vld [vmem:[%s8 + $0x5d8] sm:$0xff]
  %v8426 = vld [vmem:[%s8 + $0x5e0] sm:$0xff]
  %v8427 = vld [vmem:[%s8 + $0x5e8] sm:$0xff]
  %v8428 = vld [vmem:[%s8 + $0x5f0] sm:$0xff]
  %v8429 = vld [vmem:[%s8 + $0x5f8] sm:$0xff]
  %v8430 = vld [vmem:[%s8 + $0x600] sm:$0xff]
  %v8431 = vld [vmem:[%s8 + $0x608] sm:$0xff]
  %v8432 = vld [vmem:[%s8 + $0x610] sm:$0xff]
  %v8433 = vld [vmem:[%s8 + $0x618] sm:$0xff]
  %v8434 = vld [vmem:[%s8 + $0x620] sm:$0xff]
  %v8435 = vld [vmem:[%s8 + $0x628] sm:$0xff]
  %v8436 = vld [vmem:[%s8 + $0x630] sm:$0xff]
  %v8437 = vld [vmem:[%s8 + $0x638] sm:$0xff]
  %v8438 = vld [vmem:[%s8 + $0x640] sm:$0xff]
  %v8439 = vld [vmem:[%s8 + $0x648] sm:$0xff]
  %v8440 = vld [vmem:[%s8 + $0x650] sm:$0xff]
  %v8441 = vld [vmem:[%s8 + $0x658] sm:$0xff]
  %v8442 = vld [vmem:[%s8 + $0x660] sm:$0xff]
  %v8443 = vld [vmem:[%s8 + $0x668] sm:$0xff]
  %v8444 = vld [vmem:[%s8 + $0x670] sm:$0xff]
  %v8445 = vld [vmem:[%s8 + $0x678] sm:$0xff]
  %v8446 = vld [vmem:[%s8 + $0x680] sm:$0xff]
  %v8447 = vld [vmem:[%s8 + $0x688] sm:$0xff]
  %v8448 = vld [vmem:[%s8 + $0x690] sm:$0xff]
  %v8449 = vld [vmem:[%s8 + $0x698] sm:$0xff]
  %v8450 = vld [vmem:[%s8 + $0x6a0] sm:$0xff]
  %v8451 = vld [vmem:[%s8 + $0x6a8] sm:$0xff]
  %v8452 = vld [vmem:[%s8 + $0x6b0] sm:$0xff]
  %v8453 = vld [vmem:[%s8 + $0x6b8] sm:$0xff]
  %v8454 = vld [vmem:[%s8 + $0x6c0] sm:$0xff]
  %v8455 = vld [vmem:[%s8 + $0x6c8] sm:$0xff]
  %v8456 = vld [vmem:[%s8 + $0x6d0] sm:$0xff]
  %v8457 = vld [vmem:[%s8 + $0x6d8] sm:$0xff]
  %v8458 = vld [vmem:[%s8 + $0x6e0] sm:$0xff]
  %v8459 = vld [vmem:[%s8 + $0x6e8] sm:$0xff]
  %v8460 = vld [vmem:[%s8 + $0x6f0] sm:$0xff]
  %v8461 = vld [vmem:[%s8 + $0x6f8] sm:$0xff]
  %v8462 = vld [vmem:[%s8 + $0x700] sm:$0xff]
  %v8463 = vld [vmem:[%s8 + $0x708] sm:$0xff]
  %v8464 = vld [vmem:[%s8 + $0x710] sm:$0xff]
  %v8465 = vld [vmem:[%s8 + $0x718] sm:$0xff]
  %v8466 = vld [vmem:[%s8 + $0x720] sm:$0xff]
  %v8467 = vld [vmem:[%s8 + $0x728] sm:$0xff]
  %v8468 = vld [vmem:[%s8 + $0x730] sm:$0xff]
  %v8469 = vld [vmem:[%s8 + $0x738] sm:$0xff]
  %v8470 = vld [vmem:[%s8 + $0x740] sm:$0xff]
  %v8471 = vld [vmem:[%s8 + $0x748] sm:$0xff]
  %v8472 = vld [vmem:[%s8 + $0x750] sm:$0xff]
  %v8473 = vld [vmem:[%s8 + $0x758] sm:$0xff]
  %v8474 = vld [vmem:[%s8 + $0x760] sm:$0xff]
  %v8475 = vld [vmem:[%s8 + $0x768] sm:$0xff]
  %v8476 = vld [vmem:[%s8 + $0x770] sm:$0xff]
  %v8477 = vld [vmem:[%s8 + $0x778] sm:$0xff]
  %v8478 = vld [vmem:[%s8 + $0x780] sm:$0xff]
  %v8479 = vld [vmem:[%s8 + $0x788] sm:$0xff]
  %v8480 = vld [vmem:[%s8 + $0x790] sm:$0xff]
  %v8481 = vld [vmem:[%s8 + $0x798] sm:$0xff]
  %v8482 = vld [vmem:[%s8 + $0x7a0] sm:$0xff]
  %v8483 = vld [vmem:[%s8 + $0x7a8] sm:$0xff]
  %v8484 = vld [vmem:[%s8 + $0x7b0] sm:$0xff]
  %v8485 = vld [vmem:[%s8 + $0x7b8] sm:$0xff]
  %v8486 = vld [vmem:[%s8 + $0x7c0] sm:$0xff]
  %v8487 = vld [vmem:[%s8 + $0x7c8] sm:$0xff]
  %v8488 = vld [vmem:[%s8 + $0x7d0] sm:$0xff]
  %v8489 = vld [vmem:[%s8 + $0x7d8] sm:$0xff]
  %v8490 = vld [vmem:[%s8 + $0x7e0] sm:$0xff]
  %v8491 = vld [vmem:[%s8 + $0x7e8] sm:$0xff]
  %v8492 = vld [vmem:[%s8 + $0x7f0] sm:$0xff]
  %v8493 = vld [vmem:[%s8 + $0x7f8] sm:$0xff]
  %v8494 = vld [vmem:[%s8 + $0x800] sm:$0xff]
  %v8495 = vld [vmem:[%s8 + $0x808] sm:$0xff]
  %v8496 = vld [vmem:[%s8 + $0x810] sm:$0xff]
  %v8497 = vld [vmem:[%s8 + $0x818] sm:$0xff]
  %v8498 = vld [vmem:[%s8 + $0x820] sm:$0xff]
  %v8499 = vld [vmem:[%s8 + $0x828] sm:$0xff]
  %v8500 = vld [vmem:[%s8 + $0x830] sm:$0xff]
  %v8501 = vld [vmem:[%s8 + $0x838] sm:$0xff]
  %v8502 = vld [vmem:[%s8 + $0x840] sm:$0xff]
  %v8503 = vld [vmem:[%s8 + $0x848] sm:$0xff]
  %v8504 = vld [vmem:[%s8 + $0x850] sm:$0xff]
  %v8505 = vld [vmem:[%s8 + $0x858] sm:$0xff]
  %v8506 = vld [vmem:[%s8 + $0x860] sm:$0xff]
  %v8507 = vld [vmem:[%s8 + $0x868] sm:$0xff]
  %v8508 = vld [vmem:[%s8 + $0x870] sm:$0xff]
  %v8509 = vld [vmem:[%s8 + $0x878] sm:$0xff]
  %v8510 = vld [vmem:[%s8 + $0x880] sm:$0xff]
  %v8511 = vld [vmem:[%s8 + $0x888] sm:$0xff]
  %v8512 = vld [vmem:[%s8 + $0x890] sm:$0xff]
  %v8513 = vld [vmem:[%s8 + $0x898] sm:$0xff]
  %v8514 = vld [vmem:[%s8 + $0x8a0] sm:$0xff]
  %v8515 = vld [vmem:[%s8 + $0x8a8] sm:$0xff]
  %v8516 = vld [vmem:[%s8 + $0x8b0] sm:$0xff]
  %v8517 = vld [vmem:[%s8 + $0x8b8] sm:$0xff]
  %v8518 = vld [vmem:[%s8 + $0x8c0] sm:$0xff]
  %v8519 = vld [vmem:[%s8 + $0x8c8] sm:$0xff]
  %v8520 = vld [vmem:[%s8 + $0x8d0] sm:$0xff]
  %v8521 = vld [vmem:[%s8 + $0x8d8] sm:$0xff]
  %v8522 = vld [vmem:[%s8 + $0x8e0] sm:$0xff]
  %v8523 = vld [vmem:[%s8 + $0x8e8] sm:$0xff]
  %v8524 = vld [vmem:[%s8 + $0x8f0] sm:$0xff]
  %v8525 = vld [vmem:[%s8 + $0x8f8] sm:$0xff]
  %v8526 = vld [vmem:[%s8 + $0x900] sm:$0xff]
  %v8527 = vld [vmem:[%s8 + $0x908] sm:$0xff]
  %v8528 = vld [vmem:[%s8 + $0x910] sm:$0xff]
  %v8529 = vld [vmem:[%s8 + $0x918] sm:$0xff]
  %v8530 = vld [vmem:[%s8 + $0x920] sm:$0xff]
  %v8531 = vld [vmem:[%s8 + $0x928] sm:$0xff]
  %v8532 = vld [vmem:[%s8 + $0x930] sm:$0xff]
  %v8533 = vld [vmem:[%s8 + $0x938] sm:$0xff]
  %v8534 = vld [vmem:[%s8 + $0x940] sm:$0xff]
  %v8535 = vld [vmem:[%s8 + $0x948] sm:$0xff]
  %v8536 = vld [vmem:[%s8 + $0x950] sm:$0xff]
  %v8537 = vld [vmem:[%s8 + $0x958] sm:$0xff]
  %v8538 = vld [vmem:[%s8 + $0x960] sm:$0xff]
  %v8539 = vld [vmem:[%s8 + $0x968] sm:$0xff]
  %v8540 = vld [vmem:[%s8 + $0x970] sm:$0xff]
  %v8541 = vld [vmem:[%s8 + $0x978] sm:$0xff]
  %v8542 = vld [vmem:[%s8 + $0x980] sm:$0xff]
  %v8543 = vld [vmem:[%s8 + $0x988] sm:$0xff]
  %v8544 = vld [vmem:[%s8 + $0x990] sm:$0xff]
  %v8545 = vld [vmem:[%s8 + $0x998] sm:$0xff]
  %v8546 = vld [vmem:[%s8 + $0x9a0] sm:$0xff]
  %v8547 = vld [vmem:[%s8 + $0x9a8] sm:$0xff]
  %v8548 = vld [vmem:[%s8 + $0x9b0] sm:$0xff]
  %v8549 = vld [vmem:[%s8 + $0x9b8] sm:$0xff]
  %v8550 = vld [vmem:[%s8 + $0x9c0] sm:$0xff]
  %v8551 = vld [vmem:[%s8 + $0x9c8] sm:$0xff]
  %v8552 = vld [vmem:[%s8 + $0x9d0] sm:$0xff]
  %v8553 = vld [vmem:[%s8 + $0x9d8] sm:$0xff]
  %v8554 = vld [vmem:[%s8 + $0x9e0] sm:$0xff]
  %v8555 = vld [vmem:[%s8 + $0x9e8] sm:$0xff]
  %v8556 = vld [vmem:[%s8 + $0x9f0] sm:$0xff]
  %v8557 = vld [vmem:[%s8 + $0x9f8] sm:$0xff]
  %v8558 = vld [vmem:[%s8 + $0xa00] sm:$0xff]
  %v8559 = vld [vmem:[%s8 + $0xa08] sm:$0xff]
  %v8560 = vld [vmem:[%s8 + $0xa10] sm:$0xff]
  %v8561 = vld [vmem:[%s8 + $0xa18] sm:$0xff]
  %v8562 = vld [vmem:[%s8 + $0xa20] sm:$0xff]
  %v8563 = vld [vmem:[%s8 + $0xa28] sm:$0xff]
  %v8564 = vld [vmem:[%s8 + $0xa30] sm:$0xff]
  %v8565 = vld [vmem:[%s8 + $0xa38] sm:$0xff]
  %v8566 = vld [vmem:[%s8 + $0xa40] sm:$0xff]
  %v8567 = vld [vmem:[%s8 + $0xa48] sm:$0xff]
  %v8568 = vld [vmem:[%s8 + $0xa50] sm:$0xff]
  %v8569 = vld [vmem:[%s8 + $0xa58] sm:$0xff]
  %v8570 = vld [vmem:[%s8 + $0xa60] sm:$0xff]
  %v8571 = vld [vmem:[%s8 + $0xa68] sm:$0xff]
  %v8572 = vld [vmem:[%s8 + $0xa70] sm:$0xff]
  %v8573 = vld [vmem:[%s8 + $0xa78] sm:$0xff]
  %v8574 = vld [vmem:[%s8 + $0xa80] sm:$0xff]
  %v8575 = vld [vmem:[%s8 + $0xa88] sm:$0xff]
  %v8576 = vld [vmem:[%s8 + $0xa90] sm:$0xff]
  %v8577 = vld [vmem:[%s8 + $0xa98] sm:$0xff]
  %v8578 = vld [vmem:[%s8 + $0xaa0] sm:$0xff]
  %v8579 = vld [vmem:[%s8 + $0xaa8] sm:$0xff]
  %v8580 = vld [vmem:[%s8 + $0xab0] sm:$0xff]
  %v8581 = vld [vmem:[%s8 + $0xab8] sm:$0xff]
  %v8582 = vld [vmem:[%s8 + $0xac0] sm:$0xff]
  %v8583 = vld [vmem:[%s8 + $0xac8] sm:$0xff]
  %v8584 = vld [vmem:[%s8 + $0xad0] sm:$0xff]
  %v8585 = vld [vmem:[%s8 + $0xad8] sm:$0xff]
  %v8586 = vld [vmem:[%s8 + $0xae0] sm:$0xff]
  %v8587 = vld [vmem:[%s8 + $0xae8] sm:$0xff]
  %v8588 = vld [vmem:[%s8 + $0xaf0] sm:$0xff]
  %v8589 = vld [vmem:[%s8 + $0xaf8] sm:$0xff]
  %v8590 = vld [vmem:[%s8 + $0xb00] sm:$0xff]
  %v8591 = vld [vmem:[%s8 + $0xb08] sm:$0xff]
  %v8592 = vld [vmem:[%s8 + $0xb10] sm:$0xff]
  %v8593 = vld [vmem:[%s8 + $0xb18] sm:$0xff]
  %v8594 = vld [vmem:[%s8 + $0xb20] sm:$0xff]
  %v8595 = vld [vmem:[%s8 + $0xb28] sm:$0xff]
  %v8596 = vld [vmem:[%s8 + $0xb30] sm:$0xff]
  %v8597 = vld [vmem:[%s8 + $0xb38] sm:$0xff]
  %v8598 = vld [vmem:[%s8 + $0xb40] sm:$0xff]
  %v8599 = vld [vmem:[%s8 + $0xb48] sm:$0xff]
  %v8600 = vld [vmem:[%s8 + $0xb50] sm:$0xff]
  %v8601 = vld [vmem:[%s8 + $0xb58] sm:$0xff]
  %v8602 = vld [vmem:[%s8 + $0xb60] sm:$0xff]
  %v8603 = vld [vmem:[%s8 + $0xb68] sm:$0xff]
  %v8604 = vld [vmem:[%s8 + $0xb70] sm:$0xff]
  %v8605 = vld [vmem:[%s8 + $0xb78] sm:$0xff]
  %v8606 = vld [vmem:[%s8 + $0xb80] sm:$0xff]
  %v8607 = vld [vmem:[%s8 + $0xb88] sm:$0xff]
  %v8608 = vld [vmem:[%s8 + $0xb90] sm:$0xff]
  %v8609 = vld [vmem:[%s8 + $0xb98] sm:$0xff]
  %v8610 = vld [vmem:[%s8 + $0xba0] sm:$0xff]
  %v8611 = vld [vmem:[%s8 + $0xba8] sm:$0xff]
  %v8612 = vld [vmem:[%s8 + $0xbb0] sm:$0xff]
  %v8613 = vld [vmem:[%s8 + $0xbb8] sm:$0xff]
  %v8614 = vld [vmem:[%s8 + $0xbc0] sm:$0xff]
  %v8615 = vld [vmem:[%s8 + $0xbc8] sm:$0xff]
  %v8616 = vld [vmem:[%s8 + $0xbd0] sm:$0xff]
  %v8617 = vld [vmem:[%s8 + $0xbd8] sm:$0xff]
  %v8618 = vld [vmem:[%s8 + $0xbe0] sm:$0xff]
  %v8619 = vld [vmem:[%s8 + $0xbe8] sm:$0xff]
  %v8620 = vld [vmem:[%s8 + $0xbf0] sm:$0xff]
  %v8621 = vld [vmem:[%s8 + $0xbf8] sm:$0xff]
  %v8622 = vld [vmem:[%s8 + $0xc00] sm:$0xff]
  %v8623 = vld [vmem:[%s8 + $0xc08] sm:$0xff]
  %v8624 = vld [vmem:[%s8 + $0xc10] sm:$0xff]
  %v8625 = vld [vmem:[%s8 + $0xc18] sm:$0xff]
  %v8626 = vld [vmem:[%s8 + $0xc20] sm:$0xff]
  %v8627 = vld [vmem:[%s8 + $0xc28] sm:$0xff]
  %v8628 = vld [vmem:[%s8 + $0xc30] sm:$0xff]
  %v8629 = vld [vmem:[%s8 + $0xc38] sm:$0xff]
  %v8630 = vld [vmem:[%s8 + $0xc40] sm:$0xff]
  %v8631 = vld [vmem:[%s8 + $0xc48] sm:$0xff]
  %v8632 = vld [vmem:[%s8 + $0xc50] sm:$0xff]
  %v8633 = vld [vmem:[%s8 + $0xc58] sm:$0xff]
  %v8634 = vld [vmem:[%s8 + $0xc60] sm:$0xff]
  %v8635 = vld [vmem:[%s8 + $0xc68] sm:$0xff]
  %v8636 = vld [vmem:[%s8 + $0xc70] sm:$0xff]
  %v8637 = vld [vmem:[%s8 + $0xc78] sm:$0xff]
  %v8638 = vld [vmem:[%s8 + $0xc80] sm:$0xff]
  %v8639 = vld [vmem:[%s8 + $0xc88] sm:$0xff]
  %v8640 = vld [vmem:[%s8 + $0xc90] sm:$0xff]
  %v8641 = vld [vmem:[%s8 + $0xc98] sm:$0xff]
  %v8642 = vld [vmem:[%s8 + $0xca0] sm:$0xff]
  %v8643 = vld [vmem:[%s8 + $0xca8] sm:$0xff]
  %v8644 = vld [vmem:[%s8 + $0xcb0] sm:$0xff]
  %v8645 = vld [vmem:[%s8 + $0xcb8] sm:$0xff]
  %v8646 = vld [vmem:[%s8 + $0xcc0] sm:$0xff]
  %v8647 = vld [vmem:[%s8 + $0xcc8] sm:$0xff]
  %v8648 = vld [vmem:[%s8 + $0xcd0] sm:$0xff]
  %v8649 = vld [vmem:[%s8 + $0xcd8] sm:$0xff]
  %v8650 = vld [vmem:[%s8 + $0xce0] sm:$0xff]
  %v8651 = vld [vmem:[%s8 + $0xce8] sm:$0xff]
  %v8652 = vld [vmem:[%s8 + $0xcf0] sm:$0xff]
  %v8653 = vld [vmem:[%s8 + $0xcf8] sm:$0xff]
  %v8654 = vld [vmem:[%s8 + $0xd00] sm:$0xff]
  %v8655 = vld [vmem:[%s8 + $0xd08] sm:$0xff]
  %v8656 = vld [vmem:[%s8 + $0xd10] sm:$0xff]
  %v8657 = vld [vmem:[%s8 + $0xd18] sm:$0xff]
  %v8658 = vld [vmem:[%s8 + $0xd20] sm:$0xff]
  %v8659 = vld [vmem:[%s8 + $0xd28] sm:$0xff]
  %v8660 = vld [vmem:[%s8 + $0xd30] sm:$0xff]
  %v8661 = vld [vmem:[%s8 + $0xd38] sm:$0xff]
  %v8662 = vld [vmem:[%s8 + $0xd40] sm:$0xff]
  %v8663 = vld [vmem:[%s8 + $0xd48] sm:$0xff]
  %v8664 = vld [vmem:[%s8 + $0xd50] sm:$0xff]
  %v8665 = vld [vmem:[%s8 + $0xd58] sm:$0xff]
  %v8666 = vld [vmem:[%s8 + $0xd60] sm:$0xff]
  %v8667 = vld [vmem:[%s8 + $0xd68] sm:$0xff]
  %v8668 = vld [vmem:[%s8 + $0xd70] sm:$0xff]
  %v8669 = vld [vmem:[%s8 + $0xd78] sm:$0xff]
  %v8670 = vld [vmem:[%s9] sm:$0x3]
  %v8672 = vperm.slane %v8670, 0
  %v8673 = vperm.slane %v8670, 1
  %v8690 = vunpack.c.l.b16 %v8224
  %v8691 = vunpack.c.h.b16 %v8224
  %v8692 = vunpack.c.l.b16 %v8225
  %v8693 = vunpack.c.h.b16 %v8225
  %v8694 = vunpack.c.l.b16 %v8226
  %v8695 = vunpack.c.h.b16 %v8226
  %v8696 = vunpack.c.l.b16 %v8227
  %v8697 = vunpack.c.h.b16 %v8227
  %v8698 = vunpack.c.l.b16 %v8228
  %v8699 = vunpack.c.h.b16 %v8228
  %v8700 = vunpack.c.l.b16 %v8229
  %v8701 = vunpack.c.h.b16 %v8229
  %v8702 = vunpack.c.l.b16 %v8230
  %v8703 = vunpack.c.h.b16 %v8230
  %v8704 = vunpack.c.l.b16 %v8231
  %v8705 = vunpack.c.h.b16 %v8231
  %v8706 = vunpack.c.l.b16 %v8232
  %v8707 = vunpack.c.h.b16 %v8232
  %v8708 = vunpack.c.l.b16 %v8233
  %v8709 = vunpack.c.h.b16 %v8233
  %v8710 = vunpack.c.l.b16 %v8234
  %v8711 = vunpack.c.h.b16 %v8234
  %v8712 = vunpack.c.l.b16 %v8235
  %v8713 = vunpack.c.h.b16 %v8235
  %v8714 = vunpack.c.l.b16 %v8236
  %v8715 = vunpack.c.h.b16 %v8236
  %v8716 = vunpack.c.l.b16 %v8237
  %v8717 = vpack.c.b16 %v8690, %v8690
  %v8718 = vpack.c.b16 %v8691, %v8691
  %v8719 = vpack.c.b16 %v8692, %v8692
  %v8720 = vpack.c.b16 %v8693, %v8693
  %v8721 = vpack.c.b16 %v8694, %v8694
  %v8722 = vpack.c.b16 %v8695, %v8695
  %v8723 = vpack.c.b16 %v8696, %v8696
  %v8724 = vpack.c.b16 %v8697, %v8697
  %v8725 = vpack.c.b16 %v8698, %v8698
  %v8726 = vpack.c.b16 %v8699, %v8699
  %v8727 = vpack.c.b16 %v8700, %v8700
  %v8728 = vpack.c.b16 %v8701, %v8701
  %v8729 = vpack.c.b16 %v8702, %v8702
  %v8730 = vpack.c.b16 %v8703, %v8703
  %v8731 = vpack.c.b16 %v8704, %v8704
  %v8732 = vpack.c.b16 %v8705, %v8705
  %v8733 = vpack.c.b16 %v8706, %v8706
  %v8734 = vpack.c.b16 %v8707, %v8707
  %v8735 = vpack.c.b16 %v8708, %v8708
  %v8736 = vpack.c.b16 %v8709, %v8709
  %v8737 = vpack.c.b16 %v8710, %v8710
  %v8738 = vpack.c.b16 %v8711, %v8711
  %v8739 = vpack.c.b16 %v8712, %v8712
  %v8740 = vpack.c.b16 %v8713, %v8713
  %v8741 = vpack.c.b16 %v8714, %v8714
  %v8742 = vpack.c.b16 %v8715, %v8715
  %v8743 = vpack.c.b16 %v8716, %v8716
  %v9203 = vunpack.c.l.b16 %v8238
  %v9204 = vunpack.c.h.b16 %v8238
  %v9205 = vunpack.c.l.b16 %v8239
  %v9206 = vunpack.c.h.b16 %v8239
  %v9207 = vunpack.c.l.b16 %v8240
  %v9208 = vunpack.c.h.b16 %v8240
  %v9209 = vunpack.c.l.b16 %v8241
  %v9210 = vunpack.c.h.b16 %v8241
  %v9211 = vunpack.c.l.b16 %v8242
  %v9212 = vunpack.c.h.b16 %v8242
  %v9213 = vunpack.c.l.b16 %v8243
  %v9214 = vunpack.c.h.b16 %v8243
  %v9215 = vunpack.c.l.b16 %v8244
  %v9216 = vunpack.c.h.b16 %v8244
  %v9217 = vunpack.c.l.b16 %v8245
  %v9218 = vunpack.c.h.b16 %v8245
  %v9219 = vunpack.c.l.b16 %v8246
  %v9220 = vunpack.c.h.b16 %v8246
  %v9221 = vunpack.c.l.b16 %v8247
  %v9222 = vunpack.c.h.b16 %v8247
  %v9223 = vunpack.c.l.b16 %v8248
  %v9224 = vunpack.c.h.b16 %v8248
  %v9225 = vunpack.c.l.b16 %v8249
  %v9226 = vunpack.c.h.b16 %v8249
  %v9227 = vunpack.c.l.b16 %v8250
  %v9228 = vunpack.c.h.b16 %v8250
  %v9229 = vunpack.c.l.b16 %v8251
  %v9230 = vunpack.c.h.b16 %v8251
  %v9231 = vunpack.c.l.b16 %v8252
  %v9232 = vunpack.c.h.b16 %v8252
  %v9233 = vunpack.c.l.b16 %v8253
  %v9234 = vunpack.c.h.b16 %v8253
  %v9235 = vunpack.c.l.b16 %v8254
  %v9236 = vunpack.c.h.b16 %v8254
  %v9237 = vunpack.c.l.b16 %v8255
  %v9238 = vunpack.c.h.b16 %v8255
  %v9239 = vunpack.c.l.b16 %v8256
  %v9240 = vunpack.c.h.b16 %v8256
  %v9241 = vunpack.c.l.b16 %v8257
  %v9242 = vunpack.c.h.b16 %v8257
  %v9243 = vunpack.c.l.b16 %v8258
  %v9244 = vunpack.c.h.b16 %v8258
  %v9245 = vunpack.c.l.b16 %v8259
  %v9246 = vunpack.c.h.b16 %v8259
  %v9247 = vunpack.c.l.b16 %v8260
  %v9248 = vunpack.c.h.b16 %v8260
  %v9249 = vunpack.c.l.b16 %v8261
  %v9250 = vunpack.c.h.b16 %v8261
  %v9251 = vunpack.c.l.b16 %v8262
  %v9252 = vunpack.c.h.b16 %v8262
  %v9253 = vunpack.c.l.b16 %v8263
  %v9254 = vunpack.c.h.b16 %v8263
  %v9255 = vunpack.c.l.b16 %v8264
  %v9256 = vunpack.c.h.b16 %v8264
  %v9257 = vunpack.c.l.b16 %v8265
  %v9258 = vunpack.c.h.b16 %v8265
  %v9259 = vunpack.c.l.b16 %v8266
  %v9260 = vunpack.c.h.b16 %v8266
  %v9261 = vunpack.c.l.b16 %v8267
  %v9262 = vunpack.c.h.b16 %v8267
  %v9263 = vunpack.c.l.b16 %v8268
  %v9264 = vunpack.c.h.b16 %v8268
  %v9265 = vunpack.c.l.b16 %v8269
  %v9266 = vunpack.c.h.b16 %v8269
  %v9267 = vunpack.c.l.b16 %v8270
  %v9268 = vunpack.c.h.b16 %v8270
  %v9269 = vunpack.c.l.b16 %v8271
  %v9270 = vunpack.c.h.b16 %v8271
  %v9271 = vunpack.c.l.b16 %v8272
  %v9272 = vunpack.c.h.b16 %v8272
  %v9273 = vunpack.c.l.b16 %v8273
  %v9274 = vunpack.c.h.b16 %v8273
  %v9275 = vunpack.c.l.b16 %v8274
  %v9276 = vunpack.c.h.b16 %v8274
  %v9277 = vunpack.c.l.b16 %v8275
  %v9278 = vunpack.c.h.b16 %v8275
  %v9279 = vunpack.c.l.b16 %v8276
  %v9280 = vunpack.c.h.b16 %v8276
  %v9281 = vunpack.c.l.b16 %v8277
  %v9282 = vunpack.c.h.b16 %v8277
  %v9283 = vunpack.c.l.b16 %v8278
  %v9284 = vunpack.c.h.b16 %v8278
  %v9285 = vunpack.c.l.b16 %v8279
  %v9286 = vunpack.c.h.b16 %v8279
  %v9287 = vunpack.c.l.b16 %v8280
  %v9288 = vunpack.c.h.b16 %v8280
  %v9289 = vunpack.c.l.b16 %v8281
  %v9290 = vunpack.c.h.b16 %v8281
  %v9291 = vunpack.c.l.b16 %v8282
  %v9292 = vunpack.c.h.b16 %v8282
  %v9293 = vunpack.c.l.b16 %v8283
  %v9294 = vunpack.c.h.b16 %v8283
  %v9295 = vunpack.c.l.b16 %v8284
  %v9296 = vunpack.c.h.b16 %v8284
  %v9297 = vunpack.c.l.b16 %v8285
  %v9298 = vunpack.c.h.b16 %v8285
  %v9299 = vunpack.c.l.b16 %v8286
  %v9300 = vunpack.c.h.b16 %v8286
  %v9301 = vunpack.c.l.b16 %v8287
  %v9302 = vunpack.c.h.b16 %v8287
  %v9303 = vunpack.c.l.b16 %v8288
  %v9304 = vunpack.c.h.b16 %v8288
  %v9305 = vunpack.c.l.b16 %v8289
  %v9306 = vunpack.c.h.b16 %v8289
  %v9307 = vunpack.c.l.b16 %v8290
  %v9308 = vunpack.c.h.b16 %v8290
  %v9309 = vunpack.c.l.b16 %v8291
  %v9310 = vunpack.c.h.b16 %v8291
  %v9311 = vunpack.c.l.b16 %v8292
  %v9312 = vunpack.c.h.b16 %v8292
  %v9313 = vunpack.c.l.b16 %v8293
  %v9314 = vunpack.c.h.b16 %v8293
  %v9315 = vunpack.c.l.b16 %v8294
  %v9316 = vunpack.c.h.b16 %v8294
  %v9317 = vunpack.c.l.b16 %v8295
  %v9318 = vunpack.c.h.b16 %v8295
  %v9319 = vunpack.c.l.b16 %v8296
  %v9320 = vunpack.c.h.b16 %v8296
  %v9321 = vunpack.c.l.b16 %v8297
  %v9322 = vunpack.c.h.b16 %v8297
  %v9323 = vunpack.c.l.b16 %v8298
  %v9324 = vunpack.c.h.b16 %v8298
  %v9325 = vunpack.c.l.b16 %v8299
  %v9326 = vunpack.c.h.b16 %v8299
  %v9327 = vunpack.c.l.b16 %v8300
  %v9328 = vunpack.c.h.b16 %v8300
  %v9329 = vunpack.c.l.b16 %v8301
  %v9330 = vunpack.c.h.b16 %v8301
  %v9331 = vunpack.c.l.b16 %v8302
  %v9332 = vunpack.c.h.b16 %v8302
  %v9333 = vunpack.c.l.b16 %v8303
  %v9334 = vunpack.c.h.b16 %v8303
  %v9335 = vunpack.c.l.b16 %v8304
  %v9336 = vunpack.c.h.b16 %v8304
  %v9337 = vunpack.c.l.b16 %v8305
  %v9338 = vunpack.c.h.b16 %v8305
  %v9339 = vunpack.c.l.b16 %v8306
  %v9340 = vunpack.c.h.b16 %v8306
  %v9341 = vunpack.c.l.b16 %v8307
  %v9342 = vunpack.c.h.b16 %v8307
  %v9343 = vunpack.c.l.b16 %v8308
  %v9344 = vunpack.c.h.b16 %v8308
  %v9345 = vunpack.c.l.b16 %v8309
  %v9346 = vunpack.c.h.b16 %v8309
  %v9347 = vunpack.c.l.b16 %v8310
  %v9348 = vunpack.c.h.b16 %v8310
  %v9349 = vunpack.c.l.b16 %v8311
  %v9350 = vunpack.c.h.b16 %v8311
  %v9351 = vunpack.c.l.b16 %v8312
  %v9352 = vunpack.c.h.b16 %v8312
  %v9353 = vunpack.c.l.b16 %v8313
  %v9354 = vunpack.c.h.b16 %v8313
  %v9355 = vunpack.c.l.b16 %v8314
  %v9356 = vunpack.c.h.b16 %v8314
  %v9357 = vunpack.c.l.b16 %v8315
  %v9358 = vunpack.c.h.b16 %v8315
  %v9359 = vunpack.c.l.b16 %v8316
  %v9360 = vunpack.c.h.b16 %v8316
  %v9361 = vunpack.c.l.b16 %v8317
  %v9362 = vunpack.c.h.b16 %v8317
  %v9363 = vunpack.c.l.b16 %v8318
  %v9364 = vunpack.c.h.b16 %v8318
  %v9365 = vunpack.c.l.b16 %v8319
  %v9366 = vunpack.c.h.b16 %v8319
  %v9367 = vunpack.c.l.b16 %v8320
  %v9368 = vunpack.c.h.b16 %v8320
  %v9369 = vunpack.c.l.b16 %v8321
  %v9370 = vunpack.c.h.b16 %v8321
  %v9371 = vunpack.c.l.b16 %v8322
  %v9372 = vunpack.c.h.b16 %v8322
  %v9373 = vunpack.c.l.b16 %v8323
  %v9374 = vunpack.c.h.b16 %v8323
  %v9375 = vunpack.c.l.b16 %v8324
  %v9376 = vunpack.c.h.b16 %v8324
  %v9377 = vunpack.c.l.b16 %v8325
  %v9378 = vunpack.c.h.b16 %v8325
  %v9379 = vunpack.c.l.b16 %v8326
  %v9380 = vunpack.c.h.b16 %v8326
  %v9381 = vunpack.c.l.b16 %v8327
  %v9382 = vunpack.c.h.b16 %v8327
  %v9383 = vunpack.c.l.b16 %v8328
  %v9384 = vunpack.c.h.b16 %v8328
  %v9385 = vunpack.c.l.b16 %v8329
  %v9386 = vunpack.c.h.b16 %v8329
  %v9387 = vunpack.c.l.b16 %v8330
  %v9388 = vunpack.c.h.b16 %v8330
  %v9389 = vunpack.c.l.b16 %v8331
  %v9390 = vunpack.c.h.b16 %v8331
  %v9391 = vunpack.c.l.b16 %v8332
  %v9392 = vunpack.c.h.b16 %v8332
  %v9393 = vunpack.c.l.b16 %v8333
  %v9394 = vunpack.c.h.b16 %v8333
  %v9395 = vunpack.c.l.b16 %v8334
  %v9396 = vunpack.c.h.b16 %v8334
  %v9397 = vunpack.c.l.b16 %v8335
  %v9398 = vunpack.c.h.b16 %v8335
  %v9399 = vunpack.c.l.b16 %v8336
  %v9400 = vunpack.c.h.b16 %v8336
  %v9401 = vunpack.c.l.b16 %v8337
  %v9402 = vunpack.c.h.b16 %v8337
  %v9403 = vunpack.c.l.b16 %v8338
  %v9404 = vunpack.c.h.b16 %v8338
  %v9405 = vunpack.c.l.b16 %v8339
  %v9406 = vunpack.c.h.b16 %v8339
  %v9407 = vunpack.c.l.b16 %v8340
  %v9408 = vunpack.c.h.b16 %v8340
  %v9409 = vunpack.c.l.b16 %v8341
  %v9410 = vunpack.c.h.b16 %v8341
  %v9411 = vunpack.c.l.b16 %v8342
  %v9412 = vunpack.c.h.b16 %v8342
  %v9413 = vunpack.c.l.b16 %v8343
  %v9414 = vunpack.c.h.b16 %v8343
  %v9415 = vunpack.c.l.b16 %v8344
  %v9416 = vunpack.c.h.b16 %v8344
  %v9417 = vunpack.c.l.b16 %v8345
  %v9418 = vunpack.c.h.b16 %v8345
  %v9419 = vunpack.c.l.b16 %v8346
  %v9420 = vunpack.c.h.b16 %v8346
  %v9421 = vunpack.c.l.b16 %v8347
  %v9422 = vunpack.c.h.b16 %v8347
  %v9423 = vunpack.c.l.b16 %v8348
  %v9424 = vunpack.c.h.b16 %v8348
  %v9425 = vunpack.c.l.b16 %v8349
  %v9426 = vunpack.c.h.b16 %v8349
  %v9427 = vunpack.c.l.b16 %v8350
  %v9428 = vunpack.c.h.b16 %v8350
  %v9429 = vunpack.c.l.b16 %v8351
  %v9430 = vunpack.c.h.b16 %v8351
  %v9431 = vunpack.c.l.b16 %v8352
  %v9432 = vunpack.c.h.b16 %v8352
  %v9433 = vunpack.c.l.b16 %v8353
  %v9434 = vunpack.c.h.b16 %v8353
  %v9435 = vunpack.c.l.b16 %v8354
  %v9436 = vunpack.c.h.b16 %v8354
  %v9437 = vunpack.c.l.b16 %v8355
  %v9438 = vunpack.c.h.b16 %v8355
  %v9439 = vunpack.c.l.b16 %v8356
  %v9440 = vunpack.c.h.b16 %v8356
  %v9441 = vunpack.c.l.b16 %v8357
  %v9442 = vunpack.c.h.b16 %v8357
  %v9443 = vunpack.c.l.b16 %v8358
  %v9444 = vunpack.c.h.b16 %v8358
  %v9445 = vunpack.c.l.b16 %v8359
  %v9446 = vunpack.c.h.b16 %v8359
  %v9447 = vunpack.c.l.b16 %v8360
  %v9448 = vunpack.c.h.b16 %v8360
  %v9449 = vunpack.c.l.b16 %v8361
  %v9450 = vunpack.c.h.b16 %v8361
  %v9451 = vunpack.c.l.b16 %v8362
  %v9452 = vunpack.c.h.b16 %v8362
  %v9453 = vunpack.c.l.b16 %v8363
  %v9454 = vunpack.c.h.b16 %v8363
  %v9455 = vunpack.c.l.b16 %v8364
  %v9456 = vunpack.c.h.b16 %v8364
  %v9457 = vunpack.c.l.b16 %v8365
  %v9458 = vunpack.c.h.b16 %v8365
  %v9459 = vunpack.c.l.b16 %v8366
  %v9460 = vunpack.c.h.b16 %v8366
  %v9461 = vunpack.c.l.b16 %v8367
  %v9462 = vunpack.c.h.b16 %v8367
  %v9463 = vunpack.c.l.b16 %v8368
  %v9464 = vunpack.c.h.b16 %v8368
  %v9465 = vunpack.c.l.b16 %v8369
  %v9466 = vunpack.c.h.b16 %v8369
  %v9467 = vunpack.c.l.b16 %v8370
  %v9468 = vunpack.c.h.b16 %v8370
  %v9469 = vunpack.c.l.b16 %v8371
  %v9470 = vunpack.c.h.b16 %v8371
  %v9471 = vunpack.c.l.b16 %v8372
  %v9472 = vunpack.c.h.b16 %v8372
  %v9473 = vunpack.c.l.b16 %v8373
  %v9474 = vunpack.c.h.b16 %v8373
  %v9475 = vunpack.c.l.b16 %v8374
  %v9476 = vunpack.c.h.b16 %v8374
  %v9477 = vunpack.c.l.b16 %v8375
  %v9478 = vunpack.c.h.b16 %v8375
  %v9479 = vunpack.c.l.b16 %v8376
  %v9480 = vunpack.c.h.b16 %v8376
  %v9481 = vunpack.c.l.b16 %v8377
  %v9482 = vunpack.c.h.b16 %v8377
  %v9483 = vunpack.c.l.b16 %v8378
  %v9484 = vunpack.c.h.b16 %v8378
  %v9485 = vunpack.c.l.b16 %v8379
  %v9486 = vunpack.c.h.b16 %v8379
  %v9487 = vunpack.c.l.b16 %v8380
  %v9488 = vunpack.c.h.b16 %v8380
  %v9489 = vunpack.c.l.b16 %v8381
  %v9490 = vunpack.c.h.b16 %v8381
  %v9491 = vunpack.c.l.b16 %v8382
  %v9492 = vunpack.c.h.b16 %v8382
  %v9493 = vunpack.c.l.b16 %v8383
  %v9494 = vunpack.c.h.b16 %v8383
  %v9495 = vunpack.c.l.b16 %v8384
  %v9496 = vunpack.c.h.b16 %v8384
  %v9497 = vunpack.c.l.b16 %v8385
  %v9498 = vunpack.c.h.b16 %v8385
  %v9499 = vunpack.c.l.b16 %v8386
  %v9500 = vunpack.c.h.b16 %v8386
  %v9501 = vunpack.c.l.b16 %v8387
  %v9502 = vunpack.c.h.b16 %v8387
  %v9503 = vunpack.c.l.b16 %v8388
  %v9504 = vunpack.c.h.b16 %v8388
  %v9505 = vunpack.c.l.b16 %v8389
  %v9506 = vunpack.c.h.b16 %v8389
  %v9507 = vunpack.c.l.b16 %v8390
  %v9508 = vunpack.c.h.b16 %v8390
  %v9509 = vunpack.c.l.b16 %v8391
  %v9510 = vunpack.c.h.b16 %v8391
  %v9511 = vunpack.c.l.b16 %v8392
  %v9512 = vunpack.c.h.b16 %v8392
  %v9513 = vunpack.c.l.b16 %v8393
  %v9514 = vunpack.c.h.b16 %v8393
  %v9515 = vunpack.c.l.b16 %v8394
  %v9516 = vunpack.c.h.b16 %v8394
  %v9517 = vunpack.c.l.b16 %v8395
  %v9518 = vunpack.c.h.b16 %v8395
  %v9519 = vunpack.c.l.b16 %v8396
  %v9520 = vunpack.c.h.b16 %v8396
  %v9521 = vunpack.c.l.b16 %v8397
  %v9522 = vunpack.c.h.b16 %v8397
  %v9523 = vunpack.c.l.b16 %v8398
  %v9524 = vunpack.c.h.b16 %v8398
  %v9525 = vunpack.c.l.b16 %v8399
  %v9526 = vunpack.c.h.b16 %v8399
  %v9527 = vunpack.c.l.b16 %v8400
  %v9528 = vunpack.c.h.b16 %v8400
  %v9529 = vunpack.c.l.b16 %v8401
  %v9530 = vunpack.c.h.b16 %v8401
  %v9531 = vunpack.c.l.b16 %v8402
  %v9532 = vunpack.c.h.b16 %v8402
  %v9533 = vunpack.c.l.b16 %v8403
  %v9534 = vunpack.c.h.b16 %v8403
  %v9535 = vunpack.c.l.b16 %v8404
  %v9536 = vunpack.c.h.b16 %v8404
  %v9537 = vunpack.c.l.b16 %v8405
  %v9538 = vunpack.c.h.b16 %v8405
  %v9539 = vunpack.c.l.b16 %v8406
  %v9540 = vunpack.c.h.b16 %v8406
  %v9541 = vunpack.c.l.b16 %v8407
  %v9542 = vunpack.c.h.b16 %v8407
  %v9543 = vunpack.c.l.b16 %v8408
  %v9544 = vunpack.c.h.b16 %v8408
  %v9545 = vunpack.c.l.b16 %v8409
  %v9546 = vunpack.c.h.b16 %v8409
  %v9547 = vunpack.c.l.b16 %v8410
  %v9548 = vunpack.c.h.b16 %v8410
  %v9549 = vunpack.c.l.b16 %v8411
  %v9550 = vunpack.c.h.b16 %v8411
  %v9551 = vunpack.c.l.b16 %v8412
  %v9552 = vunpack.c.h.b16 %v8412
  %v9553 = vunpack.c.l.b16 %v8413
  %v9554 = vunpack.c.h.b16 %v8413
  %v9555 = vunpack.c.l.b16 %v8414
  %v9556 = vunpack.c.h.b16 %v8414
  %v9557 = vunpack.c.l.b16 %v8415
  %v9558 = vunpack.c.h.b16 %v8415
  %v9559 = vunpack.c.l.b16 %v8416
  %v9560 = vunpack.c.h.b16 %v8416
  %v9561 = vunpack.c.l.b16 %v8417
  %v9562 = vunpack.c.h.b16 %v8417
  %v9563 = vunpack.c.l.b16 %v8418
  %v9564 = vunpack.c.h.b16 %v8418
  %v9565 = vunpack.c.l.b16 %v8419
  %v9566 = vunpack.c.h.b16 %v8419
  %v9567 = vunpack.c.l.b16 %v8420
  %v9568 = vunpack.c.h.b16 %v8420
  %v9569 = vunpack.c.l.b16 %v8421
  %v9570 = vunpack.c.h.b16 %v8421
  %v9571 = vunpack.c.l.b16 %v8422
  %v9572 = vunpack.c.h.b16 %v8422
  %v9573 = vunpack.c.l.b16 %v8423
  %v9574 = vunpack.c.h.b16 %v8423
  %v9575 = vunpack.c.l.b16 %v8424
  %v9576 = vunpack.c.h.b16 %v8424
  %v9577 = vunpack.c.l.b16 %v8425
  %v9578 = vunpack.c.h.b16 %v8425
  %v9579 = vunpack.c.l.b16 %v8426
  %v9580 = vunpack.c.h.b16 %v8426
  %v9581 = vunpack.c.l.b16 %v8427
  %v9582 = vunpack.c.h.b16 %v8427
  %v9583 = vunpack.c.l.b16 %v8428
  %v9584 = vunpack.c.h.b16 %v8428
  %v9585 = vunpack.c.l.b16 %v8429
  %v9586 = vunpack.c.h.b16 %v8429
  %v9587 = vunpack.c.l.b16 %v8430
  %v9588 = vunpack.c.h.b16 %v8430
  %v9589 = vunpack.c.l.b16 %v8431
  %v9590 = vunpack.c.h.b16 %v8431
  %v9591 = vunpack.c.l.b16 %v8432
  %v9592 = vunpack.c.h.b16 %v8432
  %v9593 = vunpack.c.l.b16 %v8433
  %v9594 = vunpack.c.h.b16 %v8433
  %v9595 = vunpack.c.l.b16 %v8434
  %v9596 = vunpack.c.h.b16 %v8434
  %v9597 = vunpack.c.l.b16 %v8435
  %v9598 = vunpack.c.h.b16 %v8435
  %v9599 = vunpack.c.l.b16 %v8436
  %v9600 = vunpack.c.h.b16 %v8436
  %v9601 = vunpack.c.l.b16 %v8437
  %v9602 = vunpack.c.h.b16 %v8437
  %v9603 = vunpack.c.l.b16 %v8438
  %v9604 = vunpack.c.h.b16 %v8438
  %v9605 = vunpack.c.l.b16 %v8439
  %v9606 = vunpack.c.h.b16 %v8439
  %v9607 = vunpack.c.l.b16 %v8440
  %v9608 = vunpack.c.h.b16 %v8440
  %v9609 = vunpack.c.l.b16 %v8441
  %v9610 = vunpack.c.h.b16 %v8441
  %v9611 = vunpack.c.l.b16 %v8442
  %v9612 = vunpack.c.h.b16 %v8442
  %v9613 = vunpack.c.l.b16 %v8443
  %v9614 = vunpack.c.h.b16 %v8443
  %v9615 = vunpack.c.l.b16 %v8444
  %v9616 = vunpack.c.h.b16 %v8444
  %v9617 = vunpack.c.l.b16 %v8445
  %v9618 = vunpack.c.h.b16 %v8445
  %v9619 = vunpack.c.l.b16 %v8446
  %v9620 = vunpack.c.h.b16 %v8446
  %v9621 = vunpack.c.l.b16 %v8447
  %v9622 = vunpack.c.h.b16 %v8447
  %v9623 = vunpack.c.l.b16 %v8448
  %v9624 = vunpack.c.h.b16 %v8448
  %v9625 = vunpack.c.l.b16 %v8449
  %v9626 = vunpack.c.h.b16 %v8449
  %v9627 = vunpack.c.l.b16 %v8450
  %v9628 = vunpack.c.h.b16 %v8450
  %v9629 = vunpack.c.l.b16 %v8451
  %v9630 = vunpack.c.h.b16 %v8451
  %v9631 = vunpack.c.l.b16 %v8452
  %v9632 = vunpack.c.h.b16 %v8452
  %v9633 = vunpack.c.l.b16 %v8453
  %v9634 = vunpack.c.h.b16 %v8453
  %v9635 = vunpack.c.l.b16 %v8454
  %v9636 = vunpack.c.h.b16 %v8454
  %v9637 = vunpack.c.l.b16 %v8455
  %v9638 = vunpack.c.h.b16 %v8455
  %v9639 = vunpack.c.l.b16 %v8456
  %v9640 = vunpack.c.h.b16 %v8456
  %v9641 = vunpack.c.l.b16 %v8457
  %v9642 = vunpack.c.h.b16 %v8457
  %v9643 = vunpack.c.l.b16 %v8458
  %v9644 = vunpack.c.h.b16 %v8458
  %v9645 = vunpack.c.l.b16 %v8459
  %v9646 = vunpack.c.h.b16 %v8459
  %v9647 = vunpack.c.l.b16 %v8460
  %v9648 = vunpack.c.h.b16 %v8460
  %v9649 = vunpack.c.l.b16 %v8461
  %v9650 = vunpack.c.h.b16 %v8461
  %v9651 = vunpack.c.l.b16 %v8462
  %v9652 = vunpack.c.h.b16 %v8462
  %v9653 = vunpack.c.l.b16 %v8463
  %v9654 = vunpack.c.h.b16 %v8463
  %v9655 = vunpack.c.l.b16 %v8464
  %v9656 = vunpack.c.h.b16 %v8464
  %v9657 = vunpack.c.l.b16 %v8465
  %v9658 = vunpack.c.h.b16 %v8465
  %v9659 = vunpack.c.l.b16 %v8466
  %v9660 = vunpack.c.h.b16 %v8466
  %v9661 = vunpack.c.l.b16 %v8467
  %v9662 = vunpack.c.h.b16 %v8467
  %v9663 = vunpack.c.l.b16 %v8468
  %v9664 = vunpack.c.h.b16 %v8468
  %v9665 = vunpack.c.l.b16 %v8469
  %v9666 = vunpack.c.h.b16 %v8469
  %v9667 = vunpack.c.l.b16 %v8470
  %v9668 = vunpack.c.h.b16 %v8470
  %v9669 = vunpack.c.l.b16 %v8471
  %v9670 = vunpack.c.h.b16 %v8471
  %v9671 = vunpack.c.l.b16 %v8472
  %v9672 = vunpack.c.h.b16 %v8472
  %v9673 = vunpack.c.l.b16 %v8473
  %v9674 = vunpack.c.h.b16 %v8473
  %v9675 = vunpack.c.l.b16 %v8474
  %v9676 = vunpack.c.h.b16 %v8474
  %v9677 = vunpack.c.l.b16 %v8475
  %v9678 = vunpack.c.h.b16 %v8475
  %v9679 = vunpack.c.l.b16 %v8476
  %v9680 = vunpack.c.h.b16 %v8476
  %v9681 = vunpack.c.l.b16 %v8477
  %v9682 = vunpack.c.h.b16 %v8477
  %v9683 = vunpack.c.l.b16 %v8478
  %v9684 = vunpack.c.h.b16 %v8478
  %v9685 = vunpack.c.l.b16 %v8479
  %v9686 = vunpack.c.h.b16 %v8479
  %v9687 = vunpack.c.l.b16 %v8480
  %v9688 = vunpack.c.h.b16 %v8480
  %v9689 = vunpack.c.l.b16 %v8481
  %v9690 = vunpack.c.h.b16 %v8481
  %v9691 = vunpack.c.l.b16 %v8482
  %v9692 = vunpack.c.h.b16 %v8482
  %v9693 = vunpack.c.l.b16 %v8483
  %v9694 = vunpack.c.h.b16 %v8483
  %v9695 = vunpack.c.l.b16 %v8484
  %v9696 = vunpack.c.h.b16 %v8484
  %v9697 = vunpack.c.l.b16 %v8485
  %v9698 = vunpack.c.h.b16 %v8485
  %v9699 = vunpack.c.l.b16 %v8486
  %v9700 = vunpack.c.h.b16 %v8486
  %v9701 = vunpack.c.l.b16 %v8487
  %v9702 = vunpack.c.h.b16 %v8487
  %v9703 = vunpack.c.l.b16 %v8488
  %v9704 = vunpack.c.h.b16 %v8488
  %v9705 = vunpack.c.l.b16 %v8489
  %v9706 = vunpack.c.h.b16 %v8489
  %v9707 = vunpack.c.l.b16 %v8490
  %v9708 = vunpack.c.h.b16 %v8490
  %v9709 = vunpack.c.l.b16 %v8491
  %v9710 = vunpack.c.h.b16 %v8491
  %v9711 = vunpack.c.l.b16 %v8492
  %v9712 = vunpack.c.h.b16 %v8492
  %v9713 = vunpack.c.l.b16 %v8493
  %v9714 = vunpack.c.h.b16 %v8493
  %v9715 = vunpack.c.l.b16 %v8494
  %v9716 = vunpack.c.h.b16 %v8494
  %v9717 = vunpack.c.l.b16 %v8495
  %v9718 = vunpack.c.h.b16 %v8495
  %v9719 = vunpack.c.l.b16 %v8496
  %v9720 = vunpack.c.h.b16 %v8496
  %v9721 = vunpack.c.l.b16 %v8497
  %v9722 = vunpack.c.h.b16 %v8497
  %v9723 = vunpack.c.l.b16 %v8498
  %v9724 = vunpack.c.h.b16 %v8498
  %v9725 = vunpack.c.l.b16 %v8499
  %v9726 = vunpack.c.h.b16 %v8499
  %v9727 = vunpack.c.l.b16 %v8500
  %v9728 = vunpack.c.h.b16 %v8500
  %v9729 = vunpack.c.l.b16 %v8501
  %v9730 = vunpack.c.h.b16 %v8501
  %v9731 = vunpack.c.l.b16 %v8502
  %v9732 = vunpack.c.h.b16 %v8502
  %v9733 = vunpack.c.l.b16 %v8503
  %v9734 = vunpack.c.h.b16 %v8503
  %v9735 = vunpack.c.l.b16 %v8504
  %v9736 = vunpack.c.h.b16 %v8504
  %v9737 = vunpack.c.l.b16 %v8505
  %v9738 = vunpack.c.h.b16 %v8505
  %v9739 = vunpack.c.l.b16 %v8506
  %v9740 = vunpack.c.h.b16 %v8506
  %v9741 = vunpack.c.l.b16 %v8507
  %v9742 = vunpack.c.h.b16 %v8507
  %v9743 = vunpack.c.l.b16 %v8508
  %v9744 = vunpack.c.h.b16 %v8508
  %v9745 = vunpack.c.l.b16 %v8509
  %v9746 = vunpack.c.h.b16 %v8509
  %v9747 = vunpack.c.l.b16 %v8510
  %v9748 = vunpack.c.h.b16 %v8510
  %v9749 = vunpack.c.l.b16 %v8511
  %v9750 = vunpack.c.h.b16 %v8511
  %v9751 = vunpack.c.l.b16 %v8512
  %v9752 = vunpack.c.h.b16 %v8512
  %v9753 = vunpack.c.l.b16 %v8513
  %v9754 = vunpack.c.h.b16 %v8513
  %v9755 = vunpack.c.l.b16 %v8514
  %v9756 = vunpack.c.h.b16 %v8514
  %v9757 = vunpack.c.l.b16 %v8515
  %v9758 = vunpack.c.h.b16 %v8515
  %v9759 = vunpack.c.l.b16 %v8516
  %v9760 = vunpack.c.h.b16 %v8516
  %v9761 = vunpack.c.l.b16 %v8517
  %v9762 = vunpack.c.h.b16 %v8517
  %v9763 = vunpack.c.l.b16 %v8518
  %v9764 = vunpack.c.h.b16 %v8518
  %v9765 = vunpack.c.l.b16 %v8519
  %v9766 = vunpack.c.h.b16 %v8519
  %v9767 = vunpack.c.l.b16 %v8520
  %v9768 = vunpack.c.h.b16 %v8520
  %v9769 = vunpack.c.l.b16 %v8521
  %v9770 = vunpack.c.h.b16 %v8521
  %v9771 = vunpack.c.l.b16 %v8522
  %v9772 = vunpack.c.h.b16 %v8522
  %v9773 = vunpack.c.l.b16 %v8523
  %v9774 = vunpack.c.h.b16 %v8523
  %v9775 = vunpack.c.l.b16 %v8524
  %v9776 = vunpack.c.h.b16 %v8524
  %v9777 = vunpack.c.l.b16 %v8525
  %v9778 = vunpack.c.h.b16 %v8525
  %v9779 = vunpack.c.l.b16 %v8526
  %v9780 = vunpack.c.h.b16 %v8526
  %v9781 = vunpack.c.l.b16 %v8527
  %v9782 = vunpack.c.h.b16 %v8527
  %v9783 = vunpack.c.l.b16 %v8528
  %v9784 = vunpack.c.h.b16 %v8528
  %v9785 = vunpack.c.l.b16 %v8529
  %v9786 = vunpack.c.h.b16 %v8529
  %v9787 = vunpack.c.l.b16 %v8530
  %v9788 = vunpack.c.h.b16 %v8530
  %v9789 = vunpack.c.l.b16 %v8531
  %v9790 = vunpack.c.h.b16 %v8531
  %v9791 = vunpack.c.l.b16 %v8532
  %v9792 = vunpack.c.h.b16 %v8532
  %v9793 = vunpack.c.l.b16 %v8533
  %v9794 = vunpack.c.h.b16 %v8533
  %v9795 = vunpack.c.l.b16 %v8534
  %v9796 = vunpack.c.h.b16 %v8534
  %v9797 = vunpack.c.l.b16 %v8535
  %v9798 = vunpack.c.h.b16 %v8535
  %v9799 = vunpack.c.l.b16 %v8536
  %v9800 = vunpack.c.h.b16 %v8536
  %v9801 = vunpack.c.l.b16 %v8537
  %v9802 = vunpack.c.h.b16 %v8537
  %v9803 = vunpack.c.l.b16 %v8538
  %v9804 = vunpack.c.h.b16 %v8538
  %v9805 = vunpack.c.l.b16 %v8539
  %v9806 = vunpack.c.h.b16 %v8539
  %v9807 = vunpack.c.l.b16 %v8540
  %v9808 = vunpack.c.h.b16 %v8540
  %v9809 = vunpack.c.l.b16 %v8541
  %v9810 = vunpack.c.h.b16 %v8541
  %v9811 = vunpack.c.l.b16 %v8542
  %v9812 = vunpack.c.h.b16 %v8542
  %v9813 = vunpack.c.l.b16 %v8543
  %v9814 = vunpack.c.h.b16 %v8543
  %v9815 = vunpack.c.l.b16 %v8544
  %v9816 = vunpack.c.h.b16 %v8544
  %v9817 = vunpack.c.l.b16 %v8545
  %v9818 = vunpack.c.h.b16 %v8545
  %v9819 = vunpack.c.l.b16 %v8546
  %v9820 = vunpack.c.h.b16 %v8546
  %v9821 = vunpack.c.l.b16 %v8547
  %v9822 = vunpack.c.h.b16 %v8547
  %v9823 = vunpack.c.l.b16 %v8548
  %v9824 = vunpack.c.h.b16 %v8548
  %v9825 = vunpack.c.l.b16 %v8549
  %v9826 = vunpack.c.h.b16 %v8549
  %v9827 = vunpack.c.l.b16 %v8550
  %v9828 = vunpack.c.h.b16 %v8550
  %v9829 = vunpack.c.l.b16 %v8551
  %v9830 = vunpack.c.h.b16 %v8551
  %v9831 = vunpack.c.l.b16 %v8552
  %v9832 = vunpack.c.h.b16 %v8552
  %v9833 = vunpack.c.l.b16 %v8553
  %v9834 = vunpack.c.h.b16 %v8553
  %v9835 = vunpack.c.l.b16 %v8554
  %v9836 = vunpack.c.h.b16 %v8554
  %v9837 = vunpack.c.l.b16 %v8555
  %v9838 = vunpack.c.h.b16 %v8555
  %v9839 = vunpack.c.l.b16 %v8556
  %v9840 = vunpack.c.h.b16 %v8556
  %v9841 = vunpack.c.l.b16 %v8557
  %v9842 = vunpack.c.h.b16 %v8557
  %v9843 = vunpack.c.l.b16 %v8558
  %v9844 = vunpack.c.h.b16 %v8558
  %v9845 = vunpack.c.l.b16 %v8559
  %v9846 = vunpack.c.h.b16 %v8559
  %v9847 = vunpack.c.l.b16 %v8560
  %v9848 = vunpack.c.h.b16 %v8560
  %v9849 = vunpack.c.l.b16 %v8561
  %v9850 = vunpack.c.h.b16 %v8561
  %v9851 = vunpack.c.l.b16 %v8562
  %v9852 = vunpack.c.h.b16 %v8562
  %v9853 = vunpack.c.l.b16 %v8563
  %v9854 = vunpack.c.h.b16 %v8563
  %v9855 = vunpack.c.l.b16 %v8564
  %v9856 = vunpack.c.h.b16 %v8564
  %v9857 = vunpack.c.l.b16 %v8565
  %v9858 = vunpack.c.h.b16 %v8565
  %v9859 = vunpack.c.l.b16 %v8566
  %v9860 = vunpack.c.h.b16 %v8566
  %v9861 = vunpack.c.l.b16 %v8567
  %v9862 = vunpack.c.h.b16 %v8567
  %v9863 = vunpack.c.l.b16 %v8568
  %v9864 = vunpack.c.h.b16 %v8568
  %v9865 = vunpack.c.l.b16 %v8569
  %v9866 = vunpack.c.h.b16 %v8569
  %v9867 = vunpack.c.l.b16 %v8570
  %v9868 = vunpack.c.h.b16 %v8570
  %v9869 = vunpack.c.l.b16 %v8571
  %v9870 = vunpack.c.h.b16 %v8571
  %v9871 = vunpack.c.l.b16 %v8572
  %v9872 = vunpack.c.h.b16 %v8572
  %v9873 = vunpack.c.l.b16 %v8573
  %v9874 = vunpack.c.h.b16 %v8573
  %v9875 = vunpack.c.l.b16 %v8574
  %v9876 = vunpack.c.h.b16 %v8574
  %v9877 = vunpack.c.l.b16 %v8575
  %v9878 = vunpack.c.h.b16 %v8575
  %v9879 = vunpack.c.l.b16 %v8576
  %v9880 = vunpack.c.h.b16 %v8576
  %v9881 = vunpack.c.l.b16 %v8577
  %v9882 = vunpack.c.h.b16 %v8577
  %v9883 = vunpack.c.l.b16 %v8578
  %v9884 = vunpack.c.h.b16 %v8578
  %v9885 = vunpack.c.l.b16 %v8579
  %v9886 = vunpack.c.h.b16 %v8579
  %v9887 = vunpack.c.l.b16 %v8580
  %v9888 = vunpack.c.h.b16 %v8580
  %v9889 = vunpack.c.l.b16 %v8581
  %v9890 = vunpack.c.h.b16 %v8581
  %v9891 = vunpack.c.l.b16 %v8582
  %v9892 = vunpack.c.h.b16 %v8582
  %v9893 = vunpack.c.l.b16 %v8583
  %v9894 = vunpack.c.h.b16 %v8583
  %v9895 = vunpack.c.l.b16 %v8584
  %v9896 = vunpack.c.h.b16 %v8584
  %v9897 = vunpack.c.l.b16 %v8585
  %v9898 = vunpack.c.h.b16 %v8585
  %v9899 = vunpack.c.l.b16 %v8586
  %v9900 = vunpack.c.h.b16 %v8586
  %v9901 = vunpack.c.l.b16 %v8587
  %v9902 = vunpack.c.h.b16 %v8587
  %v9903 = vunpack.c.l.b16 %v8588
  %v9904 = vunpack.c.h.b16 %v8588
  %v9905 = vunpack.c.l.b16 %v8589
  %v9906 = vunpack.c.h.b16 %v8589
  %v9907 = vunpack.c.l.b16 %v8590
  %v9908 = vunpack.c.h.b16 %v8590
  %v9909 = vunpack.c.l.b16 %v8591
  %v9910 = vunpack.c.h.b16 %v8591
  %v9911 = vunpack.c.l.b16 %v8592
  %v9912 = vunpack.c.h.b16 %v8592
  %v9913 = vunpack.c.l.b16 %v8593
  %v9914 = vunpack.c.h.b16 %v8593
  %v9915 = vunpack.c.l.b16 %v8594
  %v9916 = vunpack.c.h.b16 %v8594
  %v9917 = vunpack.c.l.b16 %v8595
  %v9918 = vunpack.c.h.b16 %v8595
  %v9919 = vunpack.c.l.b16 %v8596
  %v9920 = vunpack.c.h.b16 %v8596
  %v9921 = vunpack.c.l.b16 %v8597
  %v9922 = vunpack.c.h.b16 %v8597
  %v9923 = vunpack.c.l.b16 %v8598
  %v9924 = vunpack.c.h.b16 %v8598
  %v9925 = vunpack.c.l.b16 %v8599
  %v9926 = vunpack.c.h.b16 %v8599
  %v9927 = vunpack.c.l.b16 %v8600
  %v9928 = vunpack.c.h.b16 %v8600
  %v9929 = vunpack.c.l.b16 %v8601
  %v9930 = vunpack.c.h.b16 %v8601
  %v9931 = vunpack.c.l.b16 %v8602
  %v9932 = vunpack.c.h.b16 %v8602
  %v9933 = vunpack.c.l.b16 %v8603
  %v9934 = vunpack.c.h.b16 %v8603
  %v9935 = vunpack.c.l.b16 %v8604
  %v9936 = vunpack.c.h.b16 %v8604
  %v9937 = vunpack.c.l.b16 %v8605
  %v9938 = vunpack.c.h.b16 %v8605
  %v9939 = vunpack.c.l.b16 %v8606
  %v9940 = vunpack.c.h.b16 %v8606
  %v9941 = vunpack.c.l.b16 %v8607
  %v9942 = vunpack.c.h.b16 %v8607
  %v9943 = vunpack.c.l.b16 %v8608
  %v9944 = vunpack.c.h.b16 %v8608
  %v9945 = vunpack.c.l.b16 %v8609
  %v9946 = vunpack.c.h.b16 %v8609
  %v9947 = vunpack.c.l.b16 %v8610
  %v9948 = vunpack.c.h.b16 %v8610
  %v9949 = vunpack.c.l.b16 %v8611
  %v9950 = vunpack.c.h.b16 %v8611
  %v9951 = vunpack.c.l.b16 %v8612
  %v9952 = vunpack.c.h.b16 %v8612
  %v9953 = vunpack.c.l.b16 %v8613
  %v9954 = vunpack.c.h.b16 %v8613
  %v9955 = vunpack.c.l.b16 %v8614
  %v9956 = vunpack.c.h.b16 %v8614
  %v9957 = vunpack.c.l.b16 %v8615
  %v9958 = vunpack.c.h.b16 %v8615
  %v9959 = vunpack.c.l.b16 %v8616
  %v9960 = vunpack.c.h.b16 %v8616
  %v9961 = vunpack.c.l.b16 %v8617
  %v9962 = vunpack.c.h.b16 %v8617
  %v9963 = vunpack.c.l.b16 %v8618
  %v9964 = vunpack.c.h.b16 %v8618
  %v9965 = vunpack.c.l.b16 %v8619
  %v9966 = vunpack.c.h.b16 %v8619
  %v9967 = vunpack.c.l.b16 %v8620
  %v9968 = vunpack.c.h.b16 %v8620
  %v9969 = vunpack.c.l.b16 %v8621
  %v9970 = vunpack.c.h.b16 %v8621
  %v9971 = vunpack.c.l.b16 %v8622
  %v9972 = vunpack.c.h.b16 %v8622
  %v9973 = vunpack.c.l.b16 %v8623
  %v9974 = vunpack.c.h.b16 %v8623
  %v9975 = vunpack.c.l.b16 %v8624
  %v9976 = vunpack.c.h.b16 %v8624
  %v9977 = vunpack.c.l.b16 %v8625
  %v9978 = vunpack.c.h.b16 %v8625
  %v9979 = vunpack.c.l.b16 %v8626
  %v9980 = vunpack.c.h.b16 %v8626
  %v9981 = vunpack.c.l.b16 %v8627
  %v9982 = vunpack.c.h.b16 %v8627
  %v9983 = vunpack.c.l.b16 %v8628
  %v9984 = vunpack.c.h.b16 %v8628
  %v9985 = vunpack.c.l.b16 %v8629
  %v9986 = vunpack.c.h.b16 %v8629
  %v9987 = vunpack.c.l.b16 %v8630
  %v9988 = vunpack.c.h.b16 %v8630
  %v9989 = vunpack.c.l.b16 %v8631
  %v9990 = vunpack.c.h.b16 %v8631
  %v9991 = vunpack.c.l.b16 %v8632
  %v9992 = vunpack.c.h.b16 %v8632
  %v9993 = vunpack.c.l.b16 %v8633
  %v9994 = vunpack.c.h.b16 %v8633
  %v9995 = vunpack.c.l.b16 %v8634
  %v9996 = vunpack.c.h.b16 %v8634
  %v9997 = vunpack.c.l.b16 %v8635
  %v9998 = vunpack.c.h.b16 %v8635
  %v9999 = vunpack.c.l.b16 %v8636
  %v10000 = vunpack.c.h.b16 %v8636
  %v10001 = vunpack.c.l.b16 %v8637
  %v10002 = vunpack.c.h.b16 %v8637
  %v10003 = vunpack.c.l.b16 %v8638
  %v10004 = vunpack.c.h.b16 %v8638
  %v10005 = vunpack.c.l.b16 %v8639
  %v10006 = vunpack.c.h.b16 %v8639
  %v10007 = vunpack.c.l.b16 %v8640
  %v10008 = vunpack.c.h.b16 %v8640
  %v10009 = vunpack.c.l.b16 %v8641
  %v10010 = vunpack.c.h.b16 %v8641
  %v10011 = vunpack.c.l.b16 %v8642
  %v10012 = vunpack.c.h.b16 %v8642
  %v10013 = vunpack.c.l.b16 %v8643
  %v10014 = vunpack.c.h.b16 %v8643
  %v10015 = vunpack.c.l.b16 %v8644
  %v10016 = vunpack.c.h.b16 %v8644
  %v10017 = vunpack.c.l.b16 %v8645
  %v10018 = vunpack.c.h.b16 %v8645
  %v10019 = vunpack.c.l.b16 %v8646
  %v10020 = vunpack.c.h.b16 %v8646
  %v10021 = vunpack.c.l.b16 %v8647
  %v10022 = vunpack.c.h.b16 %v8647
  %v10023 = vunpack.c.l.b16 %v8648
  %v10024 = vunpack.c.h.b16 %v8648
  %v10025 = vunpack.c.l.b16 %v8649
  %v10026 = vunpack.c.h.b16 %v8649
  %v10027 = vunpack.c.l.b16 %v8650
  %v10028 = vunpack.c.h.b16 %v8650
  %v10029 = vunpack.c.l.b16 %v8651
  %v10030 = vunpack.c.h.b16 %v8651
  %v10031 = vunpack.c.l.b16 %v8652
  %v10032 = vunpack.c.h.b16 %v8652
  %v10033 = vunpack.c.l.b16 %v8653
  %v10034 = vunpack.c.h.b16 %v8653
  %v10035 = vunpack.c.l.b16 %v8654
  %v10036 = vunpack.c.h.b16 %v8654
  %v10037 = vunpack.c.l.b16 %v8655
  %v10038 = vunpack.c.h.b16 %v8655
  %v10039 = vunpack.c.l.b16 %v8656
  %v10040 = vunpack.c.h.b16 %v8656
  %v10041 = vunpack.c.l.b16 %v8657
  %v10042 = vunpack.c.h.b16 %v8657
  %v10043 = vunpack.c.l.b16 %v8658
  %v10044 = vunpack.c.h.b16 %v8658
  %v10045 = vunpack.c.l.b16 %v8659
  %v10046 = vunpack.c.h.b16 %v8659
  %v10047 = vunpack.c.l.b16 %v8660
  %v10048 = vunpack.c.h.b16 %v8660
  %v10049 = vunpack.c.l.b16 %v8661
  %v10050 = vunpack.c.h.b16 %v8661
  %v10051 = vunpack.c.l.b16 %v8662
  %v10052 = vunpack.c.h.b16 %v8662
  %v10053 = vunpack.c.l.b16 %v8663
  %v10054 = vunpack.c.h.b16 %v8663
  %v10055 = vunpack.c.l.b16 %v8664
  %v10056 = vunpack.c.h.b16 %v8664
  %v10057 = vunpack.c.l.b16 %v8665
  %v10058 = vunpack.c.h.b16 %v8665
  %v10059 = vunpack.c.l.b16 %v8666
  %v10060 = vunpack.c.h.b16 %v8666
  %v10061 = vunpack.c.l.b16 %v8667
  %v10062 = vunpack.c.h.b16 %v8667
  %v10063 = vunpack.c.l.b16 %v8668
  %v10064 = vunpack.c.h.b16 %v8668
  %v10065 = vunpack.c.l.b16 %v8669
  %v10066 = vunpack.c.h.b16 %v8669
  %v10067 = vpack.c.b16 %v9205, %v9203
  %v10068 = vpack.c.b16 %v9206, %v9204
  %v10069 = vpack.c.b16 %v9209, %v9207
  %v10070 = vpack.c.b16 %v9210, %v9208
  %v10071 = vpack.c.b16 %v9213, %v9211
  %v10072 = vpack.c.b16 %v9214, %v9212
  %v10073 = vpack.c.b16 %v9217, %v9215
  %v10074 = vpack.c.b16 %v9218, %v9216
  %v10075 = vpack.c.b16 %v9221, %v9219
  %v10076 = vpack.c.b16 %v9222, %v9220
  %v10077 = vpack.c.b16 %v9225, %v9223
  %v10078 = vpack.c.b16 %v9226, %v9224
  %v10079 = vpack.c.b16 %v9229, %v9227
  %v10080 = vpack.c.b16 %v9230, %v9228
  %v10081 = vpack.c.b16 %v9233, %v9231
  %v10082 = vpack.c.b16 %v9234, %v9232
  %v10083 = vpack.c.b16 %v9237, %v9235
  %v10084 = vpack.c.b16 %v9238, %v9236
  %v10085 = vpack.c.b16 %v9241, %v9239
  %v10086 = vpack.c.b16 %v9242, %v9240
  %v10087 = vpack.c.b16 %v9245, %v9243
  %v10088 = vpack.c.b16 %v9246, %v9244
  %v10089 = vpack.c.b16 %v9249, %v9247
  %v10090 = vpack.c.b16 %v9250, %v9248
  %v10091 = vpack.c.b16 %v9253, %v9251
  %v10092 = vpack.c.b16 %v9254, %v9252
  %v10093 = vpack.c.b16 %v9257, %v9255
  %v10094 = vpack.c.b16 %v9258, %v9256
  %v10095 = vpack.c.b16 %v9261, %v9259
  %v10096 = vpack.c.b16 %v9262, %v9260
  %v10097 = vpack.c.b16 %v9265, %v9263
  %v10098 = vpack.c.b16 %v9266, %v9264
  %v10099 = vpack.c.b16 %v9269, %v9267
  %v10100 = vpack.c.b16 %v9270, %v9268
  %v10101 = vpack.c.b16 %v9273, %v9271
  %v10102 = vpack.c.b16 %v9274, %v9272
  %v10103 = vpack.c.b16 %v9277, %v9275
  %v10104 = vpack.c.b16 %v9278, %v9276
  %v10105 = vpack.c.b16 %v9281, %v9279
  %v10106 = vpack.c.b16 %v9282, %v9280
  %v10107 = vpack.c.b16 %v9285, %v9283
  %v10108 = vpack.c.b16 %v9286, %v9284
  %v10109 = vpack.c.b16 %v9289, %v9287
  %v10110 = vpack.c.b16 %v9290, %v9288
  %v10111 = vpack.c.b16 %v9293, %v9291
  %v10112 = vpack.c.b16 %v9294, %v9292
  %v10113 = vpack.c.b16 %v9297, %v9295
  %v10114 = vpack.c.b16 %v9298, %v9296
  %v10115 = vpack.c.b16 %v9301, %v9299
  %v10116 = vpack.c.b16 %v9302, %v9300
  %v10117 = vpack.c.b16 %v9305, %v9303
  %v10118 = vpack.c.b16 %v9306, %v9304
  %v10119 = vpack.c.b16 %v9309, %v9307
  %v10120 = vpack.c.b16 %v9310, %v9308
  %v10121 = vpack.c.b16 %v9313, %v9311
  %v10122 = vpack.c.b16 %v9314, %v9312
  %v10123 = vpack.c.b16 %v9317, %v9315
  %v10124 = vpack.c.b16 %v9318, %v9316
  %v10125 = vpack.c.b16 %v9321, %v9319
  %v10126 = vpack.c.b16 %v9322, %v9320
  %v10127 = vpack.c.b16 %v9325, %v9323
  %v10128 = vpack.c.b16 %v9326, %v9324
  %v10129 = vpack.c.b16 %v9329, %v9327
  %v10130 = vpack.c.b16 %v9330, %v9328
  %v10131 = vpack.c.b16 %v9333, %v9331
  %v10132 = vpack.c.b16 %v9334, %v9332
  %v10133 = vpack.c.b16 %v9337, %v9335
  %v10134 = vpack.c.b16 %v9338, %v9336
  %v10135 = vpack.c.b16 %v9341, %v9339
  %v10136 = vpack.c.b16 %v9342, %v9340
  %v10137 = vpack.c.b16 %v9345, %v9343
  %v10138 = vpack.c.b16 %v9346, %v9344
  %v10139 = vpack.c.b16 %v9349, %v9347
  %v10140 = vpack.c.b16 %v9350, %v9348
  %v10141 = vpack.c.b16 %v9353, %v9351
  %v10142 = vpack.c.b16 %v9354, %v9352
  %v10143 = vpack.c.b16 %v9357, %v9355
  %v10144 = vpack.c.b16 %v9358, %v9356
  %v10145 = vpack.c.b16 %v9361, %v9359
  %v10146 = vpack.c.b16 %v9362, %v9360
  %v10147 = vpack.c.b16 %v9365, %v9363
  %v10148 = vpack.c.b16 %v9366, %v9364
  %v10149 = vpack.c.b16 %v9369, %v9367
  %v10150 = vpack.c.b16 %v9370, %v9368
  %v10151 = vpack.c.b16 %v9373, %v9371
  %v10152 = vpack.c.b16 %v9374, %v9372
  %v10153 = vpack.c.b16 %v9377, %v9375
  %v10154 = vpack.c.b16 %v9378, %v9376
  %v10155 = vpack.c.b16 %v9381, %v9379
  %v10156 = vpack.c.b16 %v9382, %v9380
  %v10157 = vpack.c.b16 %v9385, %v9383
  %v10158 = vpack.c.b16 %v9386, %v9384
  %v10159 = vpack.c.b16 %v9389, %v9387
  %v10160 = vpack.c.b16 %v9390, %v9388
  %v10161 = vpack.c.b16 %v9393, %v9391
  %v10162 = vpack.c.b16 %v9394, %v9392
  %v10163 = vpack.c.b16 %v9397, %v9395
  %v10164 = vpack.c.b16 %v9398, %v9396
  %v10165 = vpack.c.b16 %v9401, %v9399
  %v10166 = vpack.c.b16 %v9402, %v9400
  %v10167 = vpack.c.b16 %v9405, %v9403
  %v10168 = vpack.c.b16 %v9406, %v9404
  %v10169 = vpack.c.b16 %v9409, %v9407
  %v10170 = vpack.c.b16 %v9410, %v9408
  %v10171 = vpack.c.b16 %v9413, %v9411
  %v10172 = vpack.c.b16 %v9414, %v9412
  %v10173 = vpack.c.b16 %v9417, %v9415
  %v10174 = vpack.c.b16 %v9418, %v9416
  %v10175 = vpack.c.b16 %v9421, %v9419
  %v10176 = vpack.c.b16 %v9422, %v9420
  %v10177 = vpack.c.b16 %v9425, %v9423
  %v10178 = vpack.c.b16 %v9426, %v9424
  %v10179 = vpack.c.b16 %v9429, %v9427
  %v10180 = vpack.c.b16 %v9430, %v9428
  %v10181 = vpack.c.b16 %v9433, %v9431
  %v10182 = vpack.c.b16 %v9434, %v9432
  %v10183 = vpack.c.b16 %v9437, %v9435
  %v10184 = vpack.c.b16 %v9438, %v9436
  %v10185 = vpack.c.b16 %v9441, %v9439
  %v10186 = vpack.c.b16 %v9442, %v9440
  %v10187 = vpack.c.b16 %v9445, %v9443
  %v10188 = vpack.c.b16 %v9446, %v9444
  %v10189 = vpack.c.b16 %v9449, %v9447
  %v10190 = vpack.c.b16 %v9450, %v9448
  %v10191 = vpack.c.b16 %v9453, %v9451
  %v10192 = vpack.c.b16 %v9454, %v9452
  %v10193 = vpack.c.b16 %v9457, %v9455
  %v10194 = vpack.c.b16 %v9458, %v9456
  %v10195 = vpack.c.b16 %v9461, %v9459
  %v10196 = vpack.c.b16 %v9462, %v9460
  %v10197 = vpack.c.b16 %v9465, %v9463
  %v10198 = vpack.c.b16 %v9466, %v9464
  %v10199 = vpack.c.b16 %v9469, %v9467
  %v10200 = vpack.c.b16 %v9470, %v9468
  %v10201 = vpack.c.b16 %v9473, %v9471
  %v10202 = vpack.c.b16 %v9474, %v9472
  %v10203 = vpack.c.b16 %v9477, %v9475
  %v10204 = vpack.c.b16 %v9478, %v9476
  %v10205 = vpack.c.b16 %v9481, %v9479
  %v10206 = vpack.c.b16 %v9482, %v9480
  %v10207 = vpack.c.b16 %v9485, %v9483
  %v10208 = vpack.c.b16 %v9486, %v9484
  %v10209 = vpack.c.b16 %v9489, %v9487
  %v10210 = vpack.c.b16 %v9490, %v9488
  %v10211 = vpack.c.b16 %v9493, %v9491
  %v10212 = vpack.c.b16 %v9494, %v9492
  %v10213 = vpack.c.b16 %v9497, %v9495
  %v10214 = vpack.c.b16 %v9498, %v9496
  %v10215 = vpack.c.b16 %v9501, %v9499
  %v10216 = vpack.c.b16 %v9502, %v9500
  %v10217 = vpack.c.b16 %v9505, %v9503
  %v10218 = vpack.c.b16 %v9506, %v9504
  %v10219 = vpack.c.b16 %v9509, %v9507
  %v10220 = vpack.c.b16 %v9510, %v9508
  %v10221 = vpack.c.b16 %v9513, %v9511
  %v10222 = vpack.c.b16 %v9514, %v9512
  %v10223 = vpack.c.b16 %v9517, %v9515
  %v10224 = vpack.c.b16 %v9518, %v9516
  %v10225 = vpack.c.b16 %v9521, %v9519
  %v10226 = vpack.c.b16 %v9522, %v9520
  %v10227 = vpack.c.b16 %v9525, %v9523
  %v10228 = vpack.c.b16 %v9526, %v9524
  %v10229 = vpack.c.b16 %v9529, %v9527
  %v10230 = vpack.c.b16 %v9530, %v9528
  %v10231 = vpack.c.b16 %v9533, %v9531
  %v10232 = vpack.c.b16 %v9534, %v9532
  %v10233 = vpack.c.b16 %v9537, %v9535
  %v10234 = vpack.c.b16 %v9538, %v9536
  %v10235 = vpack.c.b16 %v9541, %v9539
  %v10236 = vpack.c.b16 %v9542, %v9540
  %v10237 = vpack.c.b16 %v9545, %v9543
  %v10238 = vpack.c.b16 %v9546, %v9544
  %v10239 = vpack.c.b16 %v9549, %v9547
  %v10240 = vpack.c.b16 %v9550, %v9548
  %v10241 = vpack.c.b16 %v9553, %v9551
  %v10242 = vpack.c.b16 %v9554, %v9552
  %v10243 = vpack.c.b16 %v9557, %v9555
  %v10244 = vpack.c.b16 %v9558, %v9556
  %v10245 = vpack.c.b16 %v9561, %v9559
  %v10246 = vpack.c.b16 %v9562, %v9560
  %v10247 = vpack.c.b16 %v9565, %v9563
  %v10248 = vpack.c.b16 %v9566, %v9564
  %v10249 = vpack.c.b16 %v9569, %v9567
  %v10250 = vpack.c.b16 %v9570, %v9568
  %v10251 = vpack.c.b16 %v9573, %v9571
  %v10252 = vpack.c.b16 %v9574, %v9572
  %v10253 = vpack.c.b16 %v9577, %v9575
  %v10254 = vpack.c.b16 %v9578, %v9576
  %v10255 = vpack.c.b16 %v9581, %v9579
  %v10256 = vpack.c.b16 %v9582, %v9580
  %v10257 = vpack.c.b16 %v9585, %v9583
  %v10258 = vpack.c.b16 %v9586, %v9584
  %v10259 = vpack.c.b16 %v9589, %v9587
  %v10260 = vpack.c.b16 %v9590, %v9588
  %v10261 = vpack.c.b16 %v9593, %v9591
  %v10262 = vpack.c.b16 %v9594, %v9592
  %v10263 = vpack.c.b16 %v9597, %v9595
  %v10264 = vpack.c.b16 %v9598, %v9596
  %v10265 = vpack.c.b16 %v9601, %v9599
  %v10266 = vpack.c.b16 %v9602, %v9600
  %v10267 = vpack.c.b16 %v9605, %v9603
  %v10268 = vpack.c.b16 %v9606, %v9604
  %v10269 = vpack.c.b16 %v9609, %v9607
  %v10270 = vpack.c.b16 %v9610, %v9608
  %v10271 = vpack.c.b16 %v9613, %v9611
  %v10272 = vpack.c.b16 %v9614, %v9612
  %v10273 = vpack.c.b16 %v9617, %v9615
  %v10274 = vpack.c.b16 %v9618, %v9616
  %v10275 = vpack.c.b16 %v9621, %v9619
  %v10276 = vpack.c.b16 %v9622, %v9620
  %v10277 = vpack.c.b16 %v9625, %v9623
  %v10278 = vpack.c.b16 %v9626, %v9624
  %v10279 = vpack.c.b16 %v9629, %v9627
  %v10280 = vpack.c.b16 %v9630, %v9628
  %v10281 = vpack.c.b16 %v9633, %v9631
  %v10282 = vpack.c.b16 %v9634, %v9632
  %v10283 = vpack.c.b16 %v9637, %v9635
  %v10284 = vpack.c.b16 %v9638, %v9636
  %v10285 = vpack.c.b16 %v9641, %v9639
  %v10286 = vpack.c.b16 %v9642, %v9640
  %v10287 = vpack.c.b16 %v9645, %v9643
  %v10288 = vpack.c.b16 %v9646, %v9644
  %v10289 = vpack.c.b16 %v9649, %v9647
  %v10290 = vpack.c.b16 %v9650, %v9648
  %v10291 = vpack.c.b16 %v9653, %v9651
  %v10292 = vpack.c.b16 %v9654, %v9652
  %v10293 = vpack.c.b16 %v9657, %v9655
  %v10294 = vpack.c.b16 %v9658, %v9656
  %v10295 = vpack.c.b16 %v9661, %v9659
  %v10296 = vpack.c.b16 %v9662, %v9660
  %v10297 = vpack.c.b16 %v9665, %v9663
  %v10298 = vpack.c.b16 %v9666, %v9664
  %v10299 = vpack.c.b16 %v9669, %v9667
  %v10300 = vpack.c.b16 %v9670, %v9668
  %v10301 = vpack.c.b16 %v9673, %v9671
  %v10302 = vpack.c.b16 %v9674, %v9672
  %v10303 = vpack.c.b16 %v9677, %v9675
  %v10304 = vpack.c.b16 %v9678, %v9676
  %v10305 = vpack.c.b16 %v9681, %v9679
  %v10306 = vpack.c.b16 %v9682, %v9680
  %v10307 = vpack.c.b16 %v9685, %v9683
  %v10308 = vpack.c.b16 %v9686, %v9684
  %v10309 = vpack.c.b16 %v9689, %v9687
  %v10310 = vpack.c.b16 %v9690, %v9688
  %v10311 = vpack.c.b16 %v9693, %v9691
  %v10312 = vpack.c.b16 %v9694, %v9692
  %v10313 = vpack.c.b16 %v9697, %v9695
  %v10314 = vpack.c.b16 %v9698, %v9696
  %v10315 = vpack.c.b16 %v9701, %v9699
  %v10316 = vpack.c.b16 %v9702, %v9700
  %v10317 = vpack.c.b16 %v9705, %v9703
  %v10318 = vpack.c.b16 %v9706, %v9704
  %v10319 = vpack.c.b16 %v9709, %v9707
  %v10320 = vpack.c.b16 %v9710, %v9708
  %v10321 = vpack.c.b16 %v9713, %v9711
  %v10322 = vpack.c.b16 %v9714, %v9712
  %v10323 = vpack.c.b16 %v9717, %v9715
  %v10324 = vpack.c.b16 %v9718, %v9716
  %v10325 = vpack.c.b16 %v9721, %v9719
  %v10326 = vpack.c.b16 %v9722, %v9720
  %v10327 = vpack.c.b16 %v9725, %v9723
  %v10328 = vpack.c.b16 %v9726, %v9724
  %v10329 = vpack.c.b16 %v9729, %v9727
  %v10330 = vpack.c.b16 %v9730, %v9728
  %v10331 = vpack.c.b16 %v9733, %v9731
  %v10332 = vpack.c.b16 %v9734, %v9732
  %v10333 = vpack.c.b16 %v9737, %v9735
  %v10334 = vpack.c.b16 %v9738, %v9736
  %v10335 = vpack.c.b16 %v9741, %v9739
  %v10336 = vpack.c.b16 %v9742, %v9740
  %v10337 = vpack.c.b16 %v9745, %v9743
  %v10338 = vpack.c.b16 %v9746, %v9744
  %v10339 = vpack.c.b16 %v9749, %v9747
  %v10340 = vpack.c.b16 %v9750, %v9748
  %v10341 = vpack.c.b16 %v9753, %v9751
  %v10342 = vpack.c.b16 %v9754, %v9752
  %v10343 = vpack.c.b16 %v9757, %v9755
  %v10344 = vpack.c.b16 %v9758, %v9756
  %v10345 = vpack.c.b16 %v9761, %v9759
  %v10346 = vpack.c.b16 %v9762, %v9760
  %v10347 = vpack.c.b16 %v9765, %v9763
  %v10348 = vpack.c.b16 %v9766, %v9764
  %v10349 = vpack.c.b16 %v9769, %v9767
  %v10350 = vpack.c.b16 %v9770, %v9768
  %v10351 = vpack.c.b16 %v9773, %v9771
  %v10352 = vpack.c.b16 %v9774, %v9772
  %v10353 = vpack.c.b16 %v9777, %v9775
  %v10354 = vpack.c.b16 %v9778, %v9776
  %v10355 = vpack.c.b16 %v9781, %v9779
  %v10356 = vpack.c.b16 %v9782, %v9780
  %v10357 = vpack.c.b16 %v9785, %v9783
  %v10358 = vpack.c.b16 %v9786, %v9784
  %v10359 = vpack.c.b16 %v9789, %v9787
  %v10360 = vpack.c.b16 %v9790, %v9788
  %v10361 = vpack.c.b16 %v9793, %v9791
  %v10362 = vpack.c.b16 %v9794, %v9792
  %v10363 = vpack.c.b16 %v9797, %v9795
  %v10364 = vpack.c.b16 %v9798, %v9796
  %v10365 = vpack.c.b16 %v9801, %v9799
  %v10366 = vpack.c.b16 %v9802, %v9800
  %v10367 = vpack.c.b16 %v9805, %v9803
  %v10368 = vpack.c.b16 %v9806, %v9804
  %v10369 = vpack.c.b16 %v9809, %v9807
  %v10370 = vpack.c.b16 %v9810, %v9808
  %v10371 = vpack.c.b16 %v9813, %v9811
  %v10372 = vpack.c.b16 %v9814, %v9812
  %v10373 = vpack.c.b16 %v9817, %v9815
  %v10374 = vpack.c.b16 %v9818, %v9816
  %v10375 = vpack.c.b16 %v9821, %v9819
  %v10376 = vpack.c.b16 %v9822, %v9820
  %v10377 = vpack.c.b16 %v9825, %v9823
  %v10378 = vpack.c.b16 %v9826, %v9824
  %v10379 = vpack.c.b16 %v9829, %v9827
  %v10380 = vpack.c.b16 %v9830, %v9828
  %v10381 = vpack.c.b16 %v9833, %v9831
  %v10382 = vpack.c.b16 %v9834, %v9832
  %v10383 = vpack.c.b16 %v9837, %v9835
  %v10384 = vpack.c.b16 %v9838, %v9836
  %v10385 = vpack.c.b16 %v9841, %v9839
  %v10386 = vpack.c.b16 %v9842, %v9840
  %v10387 = vpack.c.b16 %v9845, %v9843
  %v10388 = vpack.c.b16 %v9846, %v9844
  %v10389 = vpack.c.b16 %v9849, %v9847
  %v10390 = vpack.c.b16 %v9850, %v9848
  %v10391 = vpack.c.b16 %v9853, %v9851
  %v10392 = vpack.c.b16 %v9854, %v9852
  %v10393 = vpack.c.b16 %v9857, %v9855
  %v10394 = vpack.c.b16 %v9858, %v9856
  %v10395 = vpack.c.b16 %v9861, %v9859
  %v10396 = vpack.c.b16 %v9862, %v9860
  %v10397 = vpack.c.b16 %v9865, %v9863
  %v10398 = vpack.c.b16 %v9866, %v9864
  %v10399 = vpack.c.b16 %v9869, %v9867
  %v10400 = vpack.c.b16 %v9870, %v9868
  %v10401 = vpack.c.b16 %v9873, %v9871
  %v10402 = vpack.c.b16 %v9874, %v9872
  %v10403 = vpack.c.b16 %v9877, %v9875
  %v10404 = vpack.c.b16 %v9878, %v9876
  %v10405 = vpack.c.b16 %v9881, %v9879
  %v10406 = vpack.c.b16 %v9882, %v9880
  %v10407 = vpack.c.b16 %v9885, %v9883
  %v10408 = vpack.c.b16 %v9886, %v9884
  %v10409 = vpack.c.b16 %v9889, %v9887
  %v10410 = vpack.c.b16 %v9890, %v9888
  %v10411 = vpack.c.b16 %v9893, %v9891
  %v10412 = vpack.c.b16 %v9894, %v9892
  %v10413 = vpack.c.b16 %v9897, %v9895
  %v10414 = vpack.c.b16 %v9898, %v9896
  %v10415 = vpack.c.b16 %v9901, %v9899
  %v10416 = vpack.c.b16 %v9902, %v9900
  %v10417 = vpack.c.b16 %v9905, %v9903
  %v10418 = vpack.c.b16 %v9906, %v9904
  %v10419 = vpack.c.b16 %v9909, %v9907
  %v10420 = vpack.c.b16 %v9910, %v9908
  %v10421 = vpack.c.b16 %v9913, %v9911
  %v10422 = vpack.c.b16 %v9914, %v9912
  %v10423 = vpack.c.b16 %v9917, %v9915
  %v10424 = vpack.c.b16 %v9918, %v9916
  %v10425 = vpack.c.b16 %v9921, %v9919
  %v10426 = vpack.c.b16 %v9922, %v9920
  %v10427 = vpack.c.b16 %v9925, %v9923
  %v10428 = vpack.c.b16 %v9926, %v9924
  %v10429 = vpack.c.b16 %v9929, %v9927
  %v10430 = vpack.c.b16 %v9930, %v9928
  %v10431 = vpack.c.b16 %v9933, %v9931
  %v10432 = vpack.c.b16 %v9934, %v9932
  %v10433 = vpack.c.b16 %v9937, %v9935
  %v10434 = vpack.c.b16 %v9938, %v9936
  %v10435 = vpack.c.b16 %v9941, %v9939
  %v10436 = vpack.c.b16 %v9942, %v9940
  %v10437 = vpack.c.b16 %v9945, %v9943
  %v10438 = vpack.c.b16 %v9946, %v9944
  %v10439 = vpack.c.b16 %v9949, %v9947
  %v10440 = vpack.c.b16 %v9950, %v9948
  %v10441 = vpack.c.b16 %v9953, %v9951
  %v10442 = vpack.c.b16 %v9954, %v9952
  %v10443 = vpack.c.b16 %v9957, %v9955
  %v10444 = vpack.c.b16 %v9958, %v9956
  %v10445 = vpack.c.b16 %v9961, %v9959
  %v10446 = vpack.c.b16 %v9962, %v9960
  %v10447 = vpack.c.b16 %v9965, %v9963
  %v10448 = vpack.c.b16 %v9966, %v9964
  %v10449 = vpack.c.b16 %v9969, %v9967
  %v10450 = vpack.c.b16 %v9970, %v9968
  %v10451 = vpack.c.b16 %v9973, %v9971
  %v10452 = vpack.c.b16 %v9974, %v9972
  %v10453 = vpack.c.b16 %v9977, %v9975
  %v10454 = vpack.c.b16 %v9978, %v9976
  %v10455 = vpack.c.b16 %v9981, %v9979
  %v10456 = vpack.c.b16 %v9982, %v9980
  %v10457 = vpack.c.b16 %v9985, %v9983
  %v10458 = vpack.c.b16 %v9986, %v9984
  %v10459 = vpack.c.b16 %v9989, %v9987
  %v10460 = vpack.c.b16 %v9990, %v9988
  %v10461 = vpack.c.b16 %v9993, %v9991
  %v10462 = vpack.c.b16 %v9994, %v9992
  %v10463 = vpack.c.b16 %v9997, %v9995
  %v10464 = vpack.c.b16 %v9998, %v9996
  %v10465 = vpack.c.b16 %v10001, %v9999
  %v10466 = vpack.c.b16 %v10002, %v10000
  %v10467 = vpack.c.b16 %v10005, %v10003
  %v10468 = vpack.c.b16 %v10006, %v10004
  %v10469 = vpack.c.b16 %v10009, %v10007
  %v10470 = vpack.c.b16 %v10010, %v10008
  %v10471 = vpack.c.b16 %v10013, %v10011
  %v10472 = vpack.c.b16 %v10014, %v10012
  %v10473 = vpack.c.b16 %v10017, %v10015
  %v10474 = vpack.c.b16 %v10018, %v10016
  %v10475 = vpack.c.b16 %v10021, %v10019
  %v10476 = vpack.c.b16 %v10022, %v10020
  %v10477 = vpack.c.b16 %v10025, %v10023
  %v10478 = vpack.c.b16 %v10026, %v10024
  %v10479 = vpack.c.b16 %v10029, %v10027
  %v10480 = vpack.c.b16 %v10030, %v10028
  %v10481 = vpack.c.b16 %v10033, %v10031
  %v10482 = vpack.c.b16 %v10034, %v10032
  %v10483 = vpack.c.b16 %v10037, %v10035
  %v10484 = vpack.c.b16 %v10038, %v10036
  %v10485 = vpack.c.b16 %v10041, %v10039
  %v10486 = vpack.c.b16 %v10042, %v10040
  %v10487 = vpack.c.b16 %v10045, %v10043
  %v10488 = vpack.c.b16 %v10046, %v10044
  %v10489 = vpack.c.b16 %v10049, %v10047
  %v10490 = vpack.c.b16 %v10050, %v10048
  %v10491 = vpack.c.b16 %v10053, %v10051
  %v10492 = vpack.c.b16 %v10054, %v10052
  %v10493 = vpack.c.b16 %v10057, %v10055
  %v10494 = vpack.c.b16 %v10058, %v10056
  %v10495 = vpack.c.b16 %v10061, %v10059
  %v10496 = vpack.c.b16 %v10062, %v10060
  %v10497 = vpack.c.b16 %v10065, %v10063
  %v10498 = vpack.c.b16 %v10066, %v10064
  %10931 = vmatpush.bf16.msra.mxu0 %v10081
  %10932 = vmatpush.bf16.msra.mxu0 %v10079
  %10933 = vmatpush.bf16.msra.mxu0 %v10077
  %10934 = vmatpush.bf16.msra.mxu0 %v10075
  %10935 = vmatpush.bf16.msra.mxu0 %v10073
  %10936 = vmatpush.bf16.msra.mxu0 %v10071
  %10937 = vmatpush.bf16.msra.mxu0 %v10069
  %10938 = vmatpush.bf16.msra.mxu0 %v10067
  %10939 = vmatmul.bf16.gmra.mxu0 %v8717
  %v10940 = vpop.f32.mrf.mxu0
  %v10941 = vadd.f32 %v8672, %v10940
  %v10942 = vpop.f32.mrf.mxu0
  %10943 = vdwg.mxu0
  %10944 = vmatpush.bf16.msra.mxu0 %v10097
  %10945 = vmatpush.bf16.msra.mxu0 %v10095
  %10946 = vmatpush.bf16.msra.mxu0 %v10093
  %10947 = vmatpush.bf16.msra.mxu0 %v10091
  %10948 = vmatpush.bf16.msra.mxu0 %v10089
  %10949 = vmatpush.bf16.msra.mxu0 %v10087
  %10950 = vmatpush.bf16.msra.mxu0 %v10085
  %10951 = vmatpush.bf16.msra.mxu0 %v10083
  %10952 = vmatmul.bf16.gmra.mxu0 %v8718
  %v10953 = vpop.f32.mrf.mxu0
  %v10954 = vadd.f32 %v10941, %v10953
  %v10955 = vpop.f32.mrf.mxu0
  %10956 = vdwg.mxu0
  %10957 = vmatpush.bf16.msra.mxu0 %v10113
  %10958 = vmatpush.bf16.msra.mxu0 %v10111
  %10959 = vmatpush.bf16.msra.mxu0 %v10109
  %10960 = vmatpush.bf16.msra.mxu0 %v10107
  %10961 = vmatpush.bf16.msra.mxu0 %v10105
  %10962 = vmatpush.bf16.msra.mxu0 %v10103
  %10963 = vmatpush.bf16.msra.mxu0 %v10101
  %10964 = vmatpush.bf16.msra.mxu0 %v10099
  %10965 = vmatmul.bf16.gmra.mxu0 %v8719
  %v10966 = vpop.f32.mrf.mxu0
  %v10967 = vadd.f32 %v10954, %v10966
  %v10968 = vpop.f32.mrf.mxu0
  %10969 = vdwg.mxu0
  %10970 = vmatpush.bf16.msra.mxu0 %v10129
  %10971 = vmatpush.bf16.msra.mxu0 %v10127
  %10972 = vmatpush.bf16.msra.mxu0 %v10125
  %10973 = vmatpush.bf16.msra.mxu0 %v10123
  %10974 = vmatpush.bf16.msra.mxu0 %v10121
  %10975 = vmatpush.bf16.msra.mxu0 %v10119
  %10976 = vmatpush.bf16.msra.mxu0 %v10117
  %10977 = vmatpush.bf16.msra.mxu0 %v10115
  %10978 = vmatmul.bf16.gmra.mxu0 %v8720
  %v10979 = vpop.f32.mrf.mxu0
  %v10980 = vadd.f32 %v10967, %v10979
  %v10981 = vpop.f32.mrf.mxu0
  %10982 = vdwg.mxu0
  %10983 = vmatpush.bf16.msra.mxu0 %v10145
  %10984 = vmatpush.bf16.msra.mxu0 %v10143
  %10985 = vmatpush.bf16.msra.mxu0 %v10141
  %10986 = vmatpush.bf16.msra.mxu0 %v10139
  %10987 = vmatpush.bf16.msra.mxu0 %v10137
  %10988 = vmatpush.bf16.msra.mxu0 %v10135
  %10989 = vmatpush.bf16.msra.mxu0 %v10133
  %10990 = vmatpush.bf16.msra.mxu0 %v10131
  %10991 = vmatmul.bf16.gmra.mxu0 %v8721
  %v10992 = vpop.f32.mrf.mxu0
  %v10993 = vadd.f32 %v10980, %v10992
  %v10994 = vpop.f32.mrf.mxu0
  %10995 = vdwg.mxu0
  %10996 = vmatpush.bf16.msra.mxu0 %v10161
  %10997 = vmatpush.bf16.msra.mxu0 %v10159
  %10998 = vmatpush.bf16.msra.mxu0 %v10157
  %10999 = vmatpush.bf16.msra.mxu0 %v10155
  %11000 = vmatpush.bf16.msra.mxu0 %v10153
  %11001 = vmatpush.bf16.msra.mxu0 %v10151
  %11002 = vmatpush.bf16.msra.mxu0 %v10149
  %11003 = vmatpush.bf16.msra.mxu0 %v10147
  %11004 = vmatmul.bf16.gmra.mxu0 %v8722
  %v11005 = vpop.f32.mrf.mxu0
  %v11006 = vadd.f32 %v10993, %v11005
  %v11007 = vpop.f32.mrf.mxu0
  %11008 = vdwg.mxu0
  %11009 = vmatpush.bf16.msra.mxu0 %v10177
  %11010 = vmatpush.bf16.msra.mxu0 %v10175
  %11011 = vmatpush.bf16.msra.mxu0 %v10173
  %11012 = vmatpush.bf16.msra.mxu0 %v10171
  %11013 = vmatpush.bf16.msra.mxu0 %v10169
  %11014 = vmatpush.bf16.msra.mxu0 %v10167
  %11015 = vmatpush.bf16.msra.mxu0 %v10165
  %11016 = vmatpush.bf16.msra.mxu0 %v10163
  %11017 = vmatmul.bf16.gmra.mxu0 %v8723
  %v11018 = vpop.f32.mrf.mxu0
  %v11019 = vadd.f32 %v11006, %v11018
  %v11020 = vpop.f32.mrf.mxu0
  %11021 = vdwg.mxu0
  %11022 = vmatpush.bf16.msra.mxu0 %v10193
  %11023 = vmatpush.bf16.msra.mxu0 %v10191
  %11024 = vmatpush.bf16.msra.mxu0 %v10189
  %11025 = vmatpush.bf16.msra.mxu0 %v10187
  %11026 = vmatpush.bf16.msra.mxu0 %v10185
  %11027 = vmatpush.bf16.msra.mxu0 %v10183
  %11028 = vmatpush.bf16.msra.mxu0 %v10181
  %11029 = vmatpush.bf16.msra.mxu0 %v10179
  %11030 = vmatmul.bf16.gmra.mxu0 %v8724
  %v11031 = vpop.f32.mrf.mxu0
  %v11032 = vadd.f32 %v11019, %v11031
  %v11033 = vpop.f32.mrf.mxu0
  %11034 = vdwg.mxu0
  %11035 = vmatpush.bf16.msra.mxu0 %v10209
  %11036 = vmatpush.bf16.msra.mxu0 %v10207
  %11037 = vmatpush.bf16.msra.mxu0 %v10205
  %11038 = vmatpush.bf16.msra.mxu0 %v10203
  %11039 = vmatpush.bf16.msra.mxu0 %v10201
  %11040 = vmatpush.bf16.msra.mxu0 %v10199
  %11041 = vmatpush.bf16.msra.mxu0 %v10197
  %11042 = vmatpush.bf16.msra.mxu0 %v10195
  %11043 = vmatmul.bf16.gmra.mxu0 %v8725
  %v11044 = vpop.f32.mrf.mxu0
  %v11045 = vadd.f32 %v11032, %v11044
  %v11046 = vpop.f32.mrf.mxu0
  %11047 = vdwg.mxu0
  %11048 = vmatpush.bf16.msra.mxu0 %v10225
  %11049 = vmatpush.bf16.msra.mxu0 %v10223
  %11050 = vmatpush.bf16.msra.mxu0 %v10221
  %11051 = vmatpush.bf16.msra.mxu0 %v10219
  %11052 = vmatpush.bf16.msra.mxu0 %v10217
  %11053 = vmatpush.bf16.msra.mxu0 %v10215
  %11054 = vmatpush.bf16.msra.mxu0 %v10213
  %11055 = vmatpush.bf16.msra.mxu0 %v10211
  %11056 = vmatmul.bf16.gmra.mxu0 %v8726
  %v11057 = vpop.f32.mrf.mxu0
  %v11058 = vadd.f32 %v11045, %v11057
  %v11059 = vpop.f32.mrf.mxu0
  %11060 = vdwg.mxu0
  %11061 = vmatpush.bf16.msra.mxu0 %v10241
  %11062 = vmatpush.bf16.msra.mxu0 %v10239
  %11063 = vmatpush.bf16.msra.mxu0 %v10237
  %11064 = vmatpush.bf16.msra.mxu0 %v10235
  %11065 = vmatpush.bf16.msra.mxu0 %v10233
  %11066 = vmatpush.bf16.msra.mxu0 %v10231
  %11067 = vmatpush.bf16.msra.mxu0 %v10229
  %11068 = vmatpush.bf16.msra.mxu0 %v10227
  %11069 = vmatmul.bf16.gmra.mxu0 %v8727
  %v11070 = vpop.f32.mrf.mxu0
  %v11071 = vadd.f32 %v11058, %v11070
  %v11072 = vpop.f32.mrf.mxu0
  %11073 = vdwg.mxu0
  %11074 = vmatpush.bf16.msra.mxu0 %v10257
  %11075 = vmatpush.bf16.msra.mxu0 %v10255
  %11076 = vmatpush.bf16.msra.mxu0 %v10253
  %11077 = vmatpush.bf16.msra.mxu0 %v10251
  %11078 = vmatpush.bf16.msra.mxu0 %v10249
  %11079 = vmatpush.bf16.msra.mxu0 %v10247
  %11080 = vmatpush.bf16.msra.mxu0 %v10245
  %11081 = vmatpush.bf16.msra.mxu0 %v10243
  %11082 = vmatmul.bf16.gmra.mxu0 %v8728
  %v11083 = vpop.f32.mrf.mxu0
  %v11084 = vadd.f32 %v11071, %v11083
  %v11085 = vpop.f32.mrf.mxu0
  %11086 = vdwg.mxu0
  %11087 = vmatpush.bf16.msra.mxu0 %v10273
  %11088 = vmatpush.bf16.msra.mxu0 %v10271
  %11089 = vmatpush.bf16.msra.mxu0 %v10269
  %11090 = vmatpush.bf16.msra.mxu0 %v10267
  %11091 = vmatpush.bf16.msra.mxu0 %v10265
  %11092 = vmatpush.bf16.msra.mxu0 %v10263
  %11093 = vmatpush.bf16.msra.mxu0 %v10261
  %11094 = vmatpush.bf16.msra.mxu0 %v10259
  %11095 = vmatmul.bf16.gmra.mxu0 %v8729
  %v11096 = vpop.f32.mrf.mxu0
  %v11097 = vadd.f32 %v11084, %v11096
  %v11098 = vpop.f32.mrf.mxu0
  %11099 = vdwg.mxu0
  %11100 = vmatpush.bf16.msra.mxu0 %v10289
  %11101 = vmatpush.bf16.msra.mxu0 %v10287
  %11102 = vmatpush.bf16.msra.mxu0 %v10285
  %11103 = vmatpush.bf16.msra.mxu0 %v10283
  %11104 = vmatpush.bf16.msra.mxu0 %v10281
  %11105 = vmatpush.bf16.msra.mxu0 %v10279
  %11106 = vmatpush.bf16.msra.mxu0 %v10277
  %11107 = vmatpush.bf16.msra.mxu0 %v10275
  %11108 = vmatmul.bf16.gmra.mxu0 %v8730
  %v11109 = vpop.f32.mrf.mxu0
  %v11110 = vadd.f32 %v11097, %v11109
  %v11111 = vpop.f32.mrf.mxu0
  %11112 = vdwg.mxu0
  %11113 = vmatpush.bf16.msra.mxu0 %v10305
  %11114 = vmatpush.bf16.msra.mxu0 %v10303
  %11115 = vmatpush.bf16.msra.mxu0 %v10301
  %11116 = vmatpush.bf16.msra.mxu0 %v10299
  %11117 = vmatpush.bf16.msra.mxu0 %v10297
  %11118 = vmatpush.bf16.msra.mxu0 %v10295
  %11119 = vmatpush.bf16.msra.mxu0 %v10293
  %11120 = vmatpush.bf16.msra.mxu0 %v10291
  %11121 = vmatmul.bf16.gmra.mxu0 %v8731
  %v11122 = vpop.f32.mrf.mxu0
  %v11123 = vadd.f32 %v11110, %v11122
  %v11124 = vpop.f32.mrf.mxu0
  %11125 = vdwg.mxu0
  %11126 = vmatpush.bf16.msra.mxu0 %v10321
  %11127 = vmatpush.bf16.msra.mxu0 %v10319
  %11128 = vmatpush.bf16.msra.mxu0 %v10317
  %11129 = vmatpush.bf16.msra.mxu0 %v10315
  %11130 = vmatpush.bf16.msra.mxu0 %v10313
  %11131 = vmatpush.bf16.msra.mxu0 %v10311
  %11132 = vmatpush.bf16.msra.mxu0 %v10309
  %11133 = vmatpush.bf16.msra.mxu0 %v10307
  %11134 = vmatmul.bf16.gmra.mxu0 %v8732
  %v11135 = vpop.f32.mrf.mxu0
  %v11136 = vadd.f32 %v11123, %v11135
  %v11137 = vpop.f32.mrf.mxu0
  %11138 = vdwg.mxu0
  %11139 = vmatpush.bf16.msra.mxu0 %v10337
  %11140 = vmatpush.bf16.msra.mxu0 %v10335
  %11141 = vmatpush.bf16.msra.mxu0 %v10333
  %11142 = vmatpush.bf16.msra.mxu0 %v10331
  %11143 = vmatpush.bf16.msra.mxu0 %v10329
  %11144 = vmatpush.bf16.msra.mxu0 %v10327
  %11145 = vmatpush.bf16.msra.mxu0 %v10325
  %11146 = vmatpush.bf16.msra.mxu0 %v10323
  %11147 = vmatmul.bf16.gmra.mxu0 %v8733
  %v11148 = vpop.f32.mrf.mxu0
  %v11149 = vadd.f32 %v11136, %v11148
  %v11150 = vpop.f32.mrf.mxu0
  %11151 = vdwg.mxu0
  %11152 = vmatpush.bf16.msra.mxu0 %v10353
  %11153 = vmatpush.bf16.msra.mxu0 %v10351
  %11154 = vmatpush.bf16.msra.mxu0 %v10349
  %11155 = vmatpush.bf16.msra.mxu0 %v10347
  %11156 = vmatpush.bf16.msra.mxu0 %v10345
  %11157 = vmatpush.bf16.msra.mxu0 %v10343
  %11158 = vmatpush.bf16.msra.mxu0 %v10341
  %11159 = vmatpush.bf16.msra.mxu0 %v10339
  %11160 = vmatmul.bf16.gmra.mxu0 %v8734
  %v11161 = vpop.f32.mrf.mxu0
  %v11162 = vadd.f32 %v11149, %v11161
  %v11163 = vpop.f32.mrf.mxu0
  %11164 = vdwg.mxu0
  %11165 = vmatpush.bf16.msra.mxu0 %v10369
  %11166 = vmatpush.bf16.msra.mxu0 %v10367
  %11167 = vmatpush.bf16.msra.mxu0 %v10365
  %11168 = vmatpush.bf16.msra.mxu0 %v10363
  %11169 = vmatpush.bf16.msra.mxu0 %v10361
  %11170 = vmatpush.bf16.msra.mxu0 %v10359
  %11171 = vmatpush.bf16.msra.mxu0 %v10357
  %11172 = vmatpush.bf16.msra.mxu0 %v10355
  %11173 = vmatmul.bf16.gmra.mxu0 %v8735
  %v11174 = vpop.f32.mrf.mxu0
  %v11175 = vadd.f32 %v11162, %v11174
  %v11176 = vpop.f32.mrf.mxu0
  %11177 = vdwg.mxu0
  %11178 = vmatpush.bf16.msra.mxu0 %v10385
  %11179 = vmatpush.bf16.msra.mxu0 %v10383
  %11180 = vmatpush.bf16.msra.mxu0 %v10381
  %11181 = vmatpush.bf16.msra.mxu0 %v10379
  %11182 = vmatpush.bf16.msra.mxu0 %v10377
  %11183 = vmatpush.bf16.msra.mxu0 %v10375
  %11184 = vmatpush.bf16.msra.mxu0 %v10373
  %11185 = vmatpush.bf16.msra.mxu0 %v10371
  %11186 = vmatmul.bf16.gmra.mxu0 %v8736
  %v11187 = vpop.f32.mrf.mxu0
  %v11188 = vadd.f32 %v11175, %v11187
  %v11189 = vpop.f32.mrf.mxu0
  %11190 = vdwg.mxu0
  %11191 = vmatpush.bf16.msra.mxu0 %v10401
  %11192 = vmatpush.bf16.msra.mxu0 %v10399
  %11193 = vmatpush.bf16.msra.mxu0 %v10397
  %11194 = vmatpush.bf16.msra.mxu0 %v10395
  %11195 = vmatpush.bf16.msra.mxu0 %v10393
  %11196 = vmatpush.bf16.msra.mxu0 %v10391
  %11197 = vmatpush.bf16.msra.mxu0 %v10389
  %11198 = vmatpush.bf16.msra.mxu0 %v10387
  %11199 = vmatmul.bf16.gmra.mxu0 %v8737
  %v11200 = vpop.f32.mrf.mxu0
  %v11201 = vadd.f32 %v11188, %v11200
  %v11202 = vpop.f32.mrf.mxu0
  %11203 = vdwg.mxu0
  %11204 = vmatpush.bf16.msra.mxu0 %v10417
  %11205 = vmatpush.bf16.msra.mxu0 %v10415
  %11206 = vmatpush.bf16.msra.mxu0 %v10413
  %11207 = vmatpush.bf16.msra.mxu0 %v10411
  %11208 = vmatpush.bf16.msra.mxu0 %v10409
  %11209 = vmatpush.bf16.msra.mxu0 %v10407
  %11210 = vmatpush.bf16.msra.mxu0 %v10405
  %11211 = vmatpush.bf16.msra.mxu0 %v10403
  %11212 = vmatmul.bf16.gmra.mxu0 %v8738
  %v11213 = vpop.f32.mrf.mxu0
  %v11214 = vadd.f32 %v11201, %v11213
  %v11215 = vpop.f32.mrf.mxu0
  %11216 = vdwg.mxu0
  %11217 = vmatpush.bf16.msra.mxu0 %v10433
  %11218 = vmatpush.bf16.msra.mxu0 %v10431
  %11219 = vmatpush.bf16.msra.mxu0 %v10429
  %11220 = vmatpush.bf16.msra.mxu0 %v10427
  %11221 = vmatpush.bf16.msra.mxu0 %v10425
  %11222 = vmatpush.bf16.msra.mxu0 %v10423
  %11223 = vmatpush.bf16.msra.mxu0 %v10421
  %11224 = vmatpush.bf16.msra.mxu0 %v10419
  %11225 = vmatmul.bf16.gmra.mxu0 %v8739
  %v11226 = vpop.f32.mrf.mxu0
  %v11227 = vadd.f32 %v11214, %v11226
  %v11228 = vpop.f32.mrf.mxu0
  %11229 = vdwg.mxu0
  %11230 = vmatpush.bf16.msra.mxu0 %v10449
  %11231 = vmatpush.bf16.msra.mxu0 %v10447
  %11232 = vmatpush.bf16.msra.mxu0 %v10445
  %11233 = vmatpush.bf16.msra.mxu0 %v10443
  %11234 = vmatpush.bf16.msra.mxu0 %v10441
  %11235 = vmatpush.bf16.msra.mxu0 %v10439
  %11236 = vmatpush.bf16.msra.mxu0 %v10437
  %11237 = vmatpush.bf16.msra.mxu0 %v10435
  %11238 = vmatmul.bf16.gmra.mxu0 %v8740
  %v11239 = vpop.f32.mrf.mxu0
  %v11240 = vadd.f32 %v11227, %v11239
  %v11241 = vpop.f32.mrf.mxu0
  %11242 = vdwg.mxu0
  %11243 = vmatpush.bf16.msra.mxu0 %v10465
  %11244 = vmatpush.bf16.msra.mxu0 %v10463
  %11245 = vmatpush.bf16.msra.mxu0 %v10461
  %11246 = vmatpush.bf16.msra.mxu0 %v10459
  %11247 = vmatpush.bf16.msra.mxu0 %v10457
  %11248 = vmatpush.bf16.msra.mxu0 %v10455
  %11249 = vmatpush.bf16.msra.mxu0 %v10453
  %11250 = vmatpush.bf16.msra.mxu0 %v10451
  %11251 = vmatmul.bf16.gmra.mxu0 %v8741
  %v11252 = vpop.f32.mrf.mxu0
  %v11253 = vadd.f32 %v11240, %v11252
  %v11254 = vpop.f32.mrf.mxu0
  %11255 = vdwg.mxu0
  %11256 = vmatpush.bf16.msra.mxu0 %v10481
  %11257 = vmatpush.bf16.msra.mxu0 %v10479
  %11258 = vmatpush.bf16.msra.mxu0 %v10477
  %11259 = vmatpush.bf16.msra.mxu0 %v10475
  %11260 = vmatpush.bf16.msra.mxu0 %v10473
  %11261 = vmatpush.bf16.msra.mxu0 %v10471
  %11262 = vmatpush.bf16.msra.mxu0 %v10469
  %11263 = vmatpush.bf16.msra.mxu0 %v10467
  %11264 = vmatmul.bf16.gmra.mxu0 %v8742
  %v11265 = vpop.f32.mrf.mxu0
  %v11266 = vadd.f32 %v11253, %v11265
  %v11267 = vpop.f32.mrf.mxu0
  %11268 = vdwg.mxu0
  %11269 = vmatpush.bf16.msra.mxu0 %v10497
  %11270 = vmatpush.bf16.msra.mxu0 %v10495
  %11271 = vmatpush.bf16.msra.mxu0 %v10493
  %11272 = vmatpush.bf16.msra.mxu0 %v10491
  %11273 = vmatpush.bf16.msra.mxu0 %v10489
  %11274 = vmatpush.bf16.msra.mxu0 %v10487
  %11275 = vmatpush.bf16.msra.mxu0 %v10485
  %11276 = vmatpush.bf16.msra.mxu0 %v10483
  %11277 = vmatmul.bf16.gmra.mxu0 %v8743
  %v11278 = vpop.f32.mrf.mxu0
  %v11279 = vadd.f32 %v11266, %v11278
  %v11280 = vpop.f32.mrf.mxu0
  %11281 = vdwg.mxu0
  %11282 = vmatpush.bf16.msra.mxu0 %v10082
  %11283 = vmatpush.bf16.msra.mxu0 %v10080
  %11284 = vmatpush.bf16.msra.mxu0 %v10078
  %11285 = vmatpush.bf16.msra.mxu0 %v10076
  %11286 = vmatpush.bf16.msra.mxu0 %v10074
  %11287 = vmatpush.bf16.msra.mxu0 %v10072
  %11288 = vmatpush.bf16.msra.mxu0 %v10070
  %11289 = vmatpush.bf16.msra.mxu0 %v10068
  %11290 = vmatmul.bf16.gmra.mxu0 %v8717
  %v11291 = vpop.f32.mrf.mxu0
  %v11292 = vadd.f32 %v8673, %v11291
  %v11293 = vpop.f32.mrf.mxu0
  %11294 = vdwg.mxu0
  %11295 = vmatpush.bf16.msra.mxu0 %v10098
  %11296 = vmatpush.bf16.msra.mxu0 %v10096
  %11297 = vmatpush.bf16.msra.mxu0 %v10094
  %11298 = vmatpush.bf16.msra.mxu0 %v10092
  %11299 = vmatpush.bf16.msra.mxu0 %v10090
  %11300 = vmatpush.bf16.msra.mxu0 %v10088
  %11301 = vmatpush.bf16.msra.mxu0 %v10086
  %11302 = vmatpush.bf16.msra.mxu0 %v10084
  %11303 = vmatmul.bf16.gmra.mxu0 %v8718
  %v11304 = vpop.f32.mrf.mxu0
  %v11305 = vadd.f32 %v11292, %v11304
  %v11306 = vpop.f32.mrf.mxu0
  %11307 = vdwg.mxu0
  %11308 = vmatpush.bf16.msra.mxu0 %v10114
  %11309 = vmatpush.bf16.msra.mxu0 %v10112
  %11310 = vmatpush.bf16.msra.mxu0 %v10110
  %11311 = vmatpush.bf16.msra.mxu0 %v10108
  %11312 = vmatpush.bf16.msra.mxu0 %v10106
  %11313 = vmatpush.bf16.msra.mxu0 %v10104
  %11314 = vmatpush.bf16.msra.mxu0 %v10102
  %11315 = vmatpush.bf16.msra.mxu0 %v10100
  %11316 = vmatmul.bf16.gmra.mxu0 %v8719
  %v11317 = vpop.f32.mrf.mxu0
  %v11318 = vadd.f32 %v11305, %v11317
  %v11319 = vpop.f32.mrf.mxu0
  %11320 = vdwg.mxu0
  %11321 = vmatpush.bf16.msra.mxu0 %v10130
  %11322 = vmatpush.bf16.msra.mxu0 %v10128
  %11323 = vmatpush.bf16.msra.mxu0 %v10126
  %11324 = vmatpush.bf16.msra.mxu0 %v10124
  %11325 = vmatpush.bf16.msra.mxu0 %v10122
  %11326 = vmatpush.bf16.msra.mxu0 %v10120
  %11327 = vmatpush.bf16.msra.mxu0 %v10118
  %11328 = vmatpush.bf16.msra.mxu0 %v10116
  %11329 = vmatmul.bf16.gmra.mxu0 %v8720
  %v11330 = vpop.f32.mrf.mxu0
  %v11331 = vadd.f32 %v11318, %v11330
  %v11332 = vpop.f32.mrf.mxu0
  %11333 = vdwg.mxu0
  %11334 = vmatpush.bf16.msra.mxu0 %v10146
  %11335 = vmatpush.bf16.msra.mxu0 %v10144
  %11336 = vmatpush.bf16.msra.mxu0 %v10142
  %11337 = vmatpush.bf16.msra.mxu0 %v10140
  %11338 = vmatpush.bf16.msra.mxu0 %v10138
  %11339 = vmatpush.bf16.msra.mxu0 %v10136
  %11340 = vmatpush.bf16.msra.mxu0 %v10134
  %11341 = vmatpush.bf16.msra.mxu0 %v10132
  %11342 = vmatmul.bf16.gmra.mxu0 %v8721
  %v11343 = vpop.f32.mrf.mxu0
  %v11344 = vadd.f32 %v11331, %v11343
  %v11345 = vpop.f32.mrf.mxu0
  %11346 = vdwg.mxu0
  %11347 = vmatpush.bf16.msra.mxu0 %v10162
  %11348 = vmatpush.bf16.msra.mxu0 %v10160
  %11349 = vmatpush.bf16.msra.mxu0 %v10158
  %11350 = vmatpush.bf16.msra.mxu0 %v10156
  %11351 = vmatpush.bf16.msra.mxu0 %v10154
  %11352 = vmatpush.bf16.msra.mxu0 %v10152
  %11353 = vmatpush.bf16.msra.mxu0 %v10150
  %11354 = vmatpush.bf16.msra.mxu0 %v10148
  %11355 = vmatmul.bf16.gmra.mxu0 %v8722
  %v11356 = vpop.f32.mrf.mxu0
  %v11357 = vadd.f32 %v11344, %v11356
  %v11358 = vpop.f32.mrf.mxu0
  %11359 = vdwg.mxu0
  %11360 = vmatpush.bf16.msra.mxu0 %v10178
  %11361 = vmatpush.bf16.msra.mxu0 %v10176
  %11362 = vmatpush.bf16.msra.mxu0 %v10174
  %11363 = vmatpush.bf16.msra.mxu0 %v10172
  %11364 = vmatpush.bf16.msra.mxu0 %v10170
  %11365 = vmatpush.bf16.msra.mxu0 %v10168
  %11366 = vmatpush.bf16.msra.mxu0 %v10166
  %11367 = vmatpush.bf16.msra.mxu0 %v10164
  %11368 = vmatmul.bf16.gmra.mxu0 %v8723
  %v11369 = vpop.f32.mrf.mxu0
  %v11370 = vadd.f32 %v11357, %v11369
  %v11371 = vpop.f32.mrf.mxu0
  %11372 = vdwg.mxu0
  %11373 = vmatpush.bf16.msra.mxu0 %v10194
  %11374 = vmatpush.bf16.msra.mxu0 %v10192
  %11375 = vmatpush.bf16.msra.mxu0 %v10190
  %11376 = vmatpush.bf16.msra.mxu0 %v10188
  %11377 = vmatpush.bf16.msra.mxu0 %v10186
  %11378 = vmatpush.bf16.msra.mxu0 %v10184
  %11379 = vmatpush.bf16.msra.mxu0 %v10182
  %11380 = vmatpush.bf16.msra.mxu0 %v10180
  %11381 = vmatmul.bf16.gmra.mxu0 %v8724
  %v11382 = vpop.f32.mrf.mxu0
  %v11383 = vadd.f32 %v11370, %v11382
  %v11384 = vpop.f32.mrf.mxu0
  %11385 = vdwg.mxu0
  %11386 = vmatpush.bf16.msra.mxu0 %v10210
  %11387 = vmatpush.bf16.msra.mxu0 %v10208
  %11388 = vmatpush.bf16.msra.mxu0 %v10206
  %11389 = vmatpush.bf16.msra.mxu0 %v10204
  %11390 = vmatpush.bf16.msra.mxu0 %v10202
  %11391 = vmatpush.bf16.msra.mxu0 %v10200
  %11392 = vmatpush.bf16.msra.mxu0 %v10198
  %11393 = vmatpush.bf16.msra.mxu0 %v10196
  %11394 = vmatmul.bf16.gmra.mxu0 %v8725
  %v11395 = vpop.f32.mrf.mxu0
  %v11396 = vadd.f32 %v11383, %v11395
  %v11397 = vpop.f32.mrf.mxu0
  %11398 = vdwg.mxu0
  %11399 = vmatpush.bf16.msra.mxu0 %v10226
  %11400 = vmatpush.bf16.msra.mxu0 %v10224
  %11401 = vmatpush.bf16.msra.mxu0 %v10222
  %11402 = vmatpush.bf16.msra.mxu0 %v10220
  %11403 = vmatpush.bf16.msra.mxu0 %v10218
  %11404 = vmatpush.bf16.msra.mxu0 %v10216
  %11405 = vmatpush.bf16.msra.mxu0 %v10214
  %11406 = vmatpush.bf16.msra.mxu0 %v10212
  %11407 = vmatmul.bf16.gmra.mxu0 %v8726
  %v11408 = vpop.f32.mrf.mxu0
  %v11409 = vadd.f32 %v11396, %v11408
  %v11410 = vpop.f32.mrf.mxu0
  %11411 = vdwg.mxu0
  %11412 = vmatpush.bf16.msra.mxu0 %v10242
  %11413 = vmatpush.bf16.msra.mxu0 %v10240
  %11414 = vmatpush.bf16.msra.mxu0 %v10238
  %11415 = vmatpush.bf16.msra.mxu0 %v10236
  %11416 = vmatpush.bf16.msra.mxu0 %v10234
  %11417 = vmatpush.bf16.msra.mxu0 %v10232
  %11418 = vmatpush.bf16.msra.mxu0 %v10230
  %11419 = vmatpush.bf16.msra.mxu0 %v10228
  %11420 = vmatmul.bf16.gmra.mxu0 %v8727
  %v11421 = vpop.f32.mrf.mxu0
  %v11422 = vadd.f32 %v11409, %v11421
  %v11423 = vpop.f32.mrf.mxu0
  %11424 = vdwg.mxu0
  %11425 = vmatpush.bf16.msra.mxu0 %v10258
  %11426 = vmatpush.bf16.msra.mxu0 %v10256
  %11427 = vmatpush.bf16.msra.mxu0 %v10254
  %11428 = vmatpush.bf16.msra.mxu0 %v10252
  %11429 = vmatpush.bf16.msra.mxu0 %v10250
  %11430 = vmatpush.bf16.msra.mxu0 %v10248
  %11431 = vmatpush.bf16.msra.mxu0 %v10246
  %11432 = vmatpush.bf16.msra.mxu0 %v10244
  %11433 = vmatmul.bf16.gmra.mxu0 %v8728
  %v11434 = vpop.f32.mrf.mxu0
  %v11435 = vadd.f32 %v11422, %v11434
  %v11436 = vpop.f32.mrf.mxu0
  %11437 = vdwg.mxu0
  %11438 = vmatpush.bf16.msra.mxu0 %v10274
  %11439 = vmatpush.bf16.msra.mxu0 %v10272
  %11440 = vmatpush.bf16.msra.mxu0 %v10270
  %11441 = vmatpush.bf16.msra.mxu0 %v10268
  %11442 = vmatpush.bf16.msra.mxu0 %v10266
  %11443 = vmatpush.bf16.msra.mxu0 %v10264
  %11444 = vmatpush.bf16.msra.mxu0 %v10262
  %11445 = vmatpush.bf16.msra.mxu0 %v10260
  %11446 = vmatmul.bf16.gmra.mxu0 %v8729
  %v11447 = vpop.f32.mrf.mxu0
  %v11448 = vadd.f32 %v11435, %v11447
  %v11449 = vpop.f32.mrf.mxu0
  %11450 = vdwg.mxu0
  %11451 = vmatpush.bf16.msra.mxu0 %v10290
  %11452 = vmatpush.bf16.msra.mxu0 %v10288
  %11453 = vmatpush.bf16.msra.mxu0 %v10286
  %11454 = vmatpush.bf16.msra.mxu0 %v10284
  %11455 = vmatpush.bf16.msra.mxu0 %v10282
  %11456 = vmatpush.bf16.msra.mxu0 %v10280
  %11457 = vmatpush.bf16.msra.mxu0 %v10278
  %11458 = vmatpush.bf16.msra.mxu0 %v10276
  %11459 = vmatmul.bf16.gmra.mxu0 %v8730
  %v11460 = vpop.f32.mrf.mxu0
  %v11461 = vadd.f32 %v11448, %v11460
  %v11462 = vpop.f32.mrf.mxu0
  %11463 = vdwg.mxu0
  %11464 = vmatpush.bf16.msra.mxu0 %v10306
  %11465 = vmatpush.bf16.msra.mxu0 %v10304
  %11466 = vmatpush.bf16.msra.mxu0 %v10302
  %11467 = vmatpush.bf16.msra.mxu0 %v10300
  %11468 = vmatpush.bf16.msra.mxu0 %v10298
  %11469 = vmatpush.bf16.msra.mxu0 %v10296
  %11470 = vmatpush.bf16.msra.mxu0 %v10294
  %11471 = vmatpush.bf16.msra.mxu0 %v10292
  %11472 = vmatmul.bf16.gmra.mxu0 %v8731
  %v11473 = vpop.f32.mrf.mxu0
  %v11474 = vadd.f32 %v11461, %v11473
  %v11475 = vpop.f32.mrf.mxu0
  %11476 = vdwg.mxu0
  %11477 = vmatpush.bf16.msra.mxu0 %v10322
  %11478 = vmatpush.bf16.msra.mxu0 %v10320
  %11479 = vmatpush.bf16.msra.mxu0 %v10318
  %11480 = vmatpush.bf16.msra.mxu0 %v10316
  %11481 = vmatpush.bf16.msra.mxu0 %v10314
  %11482 = vmatpush.bf16.msra.mxu0 %v10312
  %11483 = vmatpush.bf16.msra.mxu0 %v10310
  %11484 = vmatpush.bf16.msra.mxu0 %v10308
  %11485 = vmatmul.bf16.gmra.mxu0 %v8732
  %v11486 = vpop.f32.mrf.mxu0
  %v11487 = vadd.f32 %v11474, %v11486
  %v11488 = vpop.f32.mrf.mxu0
  %11489 = vdwg.mxu0
  %11490 = vmatpush.bf16.msra.mxu0 %v10338
  %11491 = vmatpush.bf16.msra.mxu0 %v10336
  %11492 = vmatpush.bf16.msra.mxu0 %v10334
  %11493 = vmatpush.bf16.msra.mxu0 %v10332
  %11494 = vmatpush.bf16.msra.mxu0 %v10330
  %11495 = vmatpush.bf16.msra.mxu0 %v10328
  %11496 = vmatpush.bf16.msra.mxu0 %v10326
  %11497 = vmatpush.bf16.msra.mxu0 %v10324
  %11498 = vmatmul.bf16.gmra.mxu0 %v8733
  %v11499 = vpop.f32.mrf.mxu0
  %v11500 = vadd.f32 %v11487, %v11499
  %v11501 = vpop.f32.mrf.mxu0
  %11502 = vdwg.mxu0
  %11503 = vmatpush.bf16.msra.mxu0 %v10354
  %11504 = vmatpush.bf16.msra.mxu0 %v10352
  %11505 = vmatpush.bf16.msra.mxu0 %v10350
  %11506 = vmatpush.bf16.msra.mxu0 %v10348
  %11507 = vmatpush.bf16.msra.mxu0 %v10346
  %11508 = vmatpush.bf16.msra.mxu0 %v10344
  %11509 = vmatpush.bf16.msra.mxu0 %v10342
  %11510 = vmatpush.bf16.msra.mxu0 %v10340
  %11511 = vmatmul.bf16.gmra.mxu0 %v8734
  %v11512 = vpop.f32.mrf.mxu0
  %v11513 = vadd.f32 %v11500, %v11512
  %v11514 = vpop.f32.mrf.mxu0
  %11515 = vdwg.mxu0
  %11516 = vmatpush.bf16.msra.mxu0 %v10370
  %11517 = vmatpush.bf16.msra.mxu0 %v10368
  %11518 = vmatpush.bf16.msra.mxu0 %v10366
  %11519 = vmatpush.bf16.msra.mxu0 %v10364
  %11520 = vmatpush.bf16.msra.mxu0 %v10362
  %11521 = vmatpush.bf16.msra.mxu0 %v10360
  %11522 = vmatpush.bf16.msra.mxu0 %v10358
  %11523 = vmatpush.bf16.msra.mxu0 %v10356
  %11524 = vmatmul.bf16.gmra.mxu0 %v8735
  %v11525 = vpop.f32.mrf.mxu0
  %v11526 = vadd.f32 %v11513, %v11525
  %v11527 = vpop.f32.mrf.mxu0
  %11528 = vdwg.mxu0
  %11529 = vmatpush.bf16.msra.mxu0 %v10386
  %11530 = vmatpush.bf16.msra.mxu0 %v10384
  %11531 = vmatpush.bf16.msra.mxu0 %v10382
  %11532 = vmatpush.bf16.msra.mxu0 %v10380
  %11533 = vmatpush.bf16.msra.mxu0 %v10378
  %11534 = vmatpush.bf16.msra.mxu0 %v10376
  %11535 = vmatpush.bf16.msra.mxu0 %v10374
  %11536 = vmatpush.bf16.msra.mxu0 %v10372
  %11537 = vmatmul.bf16.gmra.mxu0 %v8736
  %v11538 = vpop.f32.mrf.mxu0
  %v11539 = vadd.f32 %v11526, %v11538
  %v11540 = vpop.f32.mrf.mxu0
  %11541 = vdwg.mxu0
  %11542 = vmatpush.bf16.msra.mxu0 %v10402
  %11543 = vmatpush.bf16.msra.mxu0 %v10400
  %11544 = vmatpush.bf16.msra.mxu0 %v10398
  %11545 = vmatpush.bf16.msra.mxu0 %v10396
  %11546 = vmatpush.bf16.msra.mxu0 %v10394
  %11547 = vmatpush.bf16.msra.mxu0 %v10392
  %11548 = vmatpush.bf16.msra.mxu0 %v10390
  %11549 = vmatpush.bf16.msra.mxu0 %v10388
  %11550 = vmatmul.bf16.gmra.mxu0 %v8737
  %v11551 = vpop.f32.mrf.mxu0
  %v11552 = vadd.f32 %v11539, %v11551
  %v11553 = vpop.f32.mrf.mxu0
  %11554 = vdwg.mxu0
  %11555 = vmatpush.bf16.msra.mxu0 %v10418
  %11556 = vmatpush.bf16.msra.mxu0 %v10416
  %11557 = vmatpush.bf16.msra.mxu0 %v10414
  %11558 = vmatpush.bf16.msra.mxu0 %v10412
  %11559 = vmatpush.bf16.msra.mxu0 %v10410
  %11560 = vmatpush.bf16.msra.mxu0 %v10408
  %11561 = vmatpush.bf16.msra.mxu0 %v10406
  %11562 = vmatpush.bf16.msra.mxu0 %v10404
  %11563 = vmatmul.bf16.gmra.mxu0 %v8738
  %v11564 = vpop.f32.mrf.mxu0
  %v11565 = vadd.f32 %v11552, %v11564
  %v11566 = vpop.f32.mrf.mxu0
  %11567 = vdwg.mxu0
  %11568 = vmatpush.bf16.msra.mxu0 %v10434
  %11569 = vmatpush.bf16.msra.mxu0 %v10432
  %11570 = vmatpush.bf16.msra.mxu0 %v10430
  %11571 = vmatpush.bf16.msra.mxu0 %v10428
  %11572 = vmatpush.bf16.msra.mxu0 %v10426
  %11573 = vmatpush.bf16.msra.mxu0 %v10424
  %11574 = vmatpush.bf16.msra.mxu0 %v10422
  %11575 = vmatpush.bf16.msra.mxu0 %v10420
  %11576 = vmatmul.bf16.gmra.mxu0 %v8739
  %v11577 = vpop.f32.mrf.mxu0
  %v11578 = vadd.f32 %v11565, %v11577
  %v11579 = vpop.f32.mrf.mxu0
  %11580 = vdwg.mxu0
  %11581 = vmatpush.bf16.msra.mxu0 %v10450
  %11582 = vmatpush.bf16.msra.mxu0 %v10448
  %11583 = vmatpush.bf16.msra.mxu0 %v10446
  %11584 = vmatpush.bf16.msra.mxu0 %v10444
  %11585 = vmatpush.bf16.msra.mxu0 %v10442
  %11586 = vmatpush.bf16.msra.mxu0 %v10440
  %11587 = vmatpush.bf16.msra.mxu0 %v10438
  %11588 = vmatpush.bf16.msra.mxu0 %v10436
  %11589 = vmatmul.bf16.gmra.mxu0 %v8740
  %v11590 = vpop.f32.mrf.mxu0
  %v11591 = vadd.f32 %v11578, %v11590
  %v11592 = vpop.f32.mrf.mxu0
  %11593 = vdwg.mxu0
  %11594 = vmatpush.bf16.msra.mxu0 %v10466
  %11595 = vmatpush.bf16.msra.mxu0 %v10464
  %11596 = vmatpush.bf16.msra.mxu0 %v10462
  %11597 = vmatpush.bf16.msra.mxu0 %v10460
  %11598 = vmatpush.bf16.msra.mxu0 %v10458
  %11599 = vmatpush.bf16.msra.mxu0 %v10456
  %11600 = vmatpush.bf16.msra.mxu0 %v10454
  %11601 = vmatpush.bf16.msra.mxu0 %v10452
  %11602 = vmatmul.bf16.gmra.mxu0 %v8741
  %v11603 = vpop.f32.mrf.mxu0
  %v11604 = vadd.f32 %v11591, %v11603
  %v11605 = vpop.f32.mrf.mxu0
  %11606 = vdwg.mxu0
  %11607 = vmatpush.bf16.msra.mxu0 %v10482
  %11608 = vmatpush.bf16.msra.mxu0 %v10480
  %11609 = vmatpush.bf16.msra.mxu0 %v10478
  %11610 = vmatpush.bf16.msra.mxu0 %v10476
  %11611 = vmatpush.bf16.msra.mxu0 %v10474
  %11612 = vmatpush.bf16.msra.mxu0 %v10472
  %11613 = vmatpush.bf16.msra.mxu0 %v10470
  %11614 = vmatpush.bf16.msra.mxu0 %v10468
  %11615 = vmatmul.bf16.gmra.mxu0 %v8742
  %v11616 = vpop.f32.mrf.mxu0
  %v11617 = vadd.f32 %v11604, %v11616
  %v11618 = vpop.f32.mrf.mxu0
  %11619 = vdwg.mxu0
  %11620 = vmatpush.bf16.msra.mxu0 %v10498
  %11621 = vmatpush.bf16.msra.mxu0 %v10496
  %11622 = vmatpush.bf16.msra.mxu0 %v10494
  %11623 = vmatpush.bf16.msra.mxu0 %v10492
  %11624 = vmatpush.bf16.msra.mxu0 %v10490
  %11625 = vmatpush.bf16.msra.mxu0 %v10488
  %11626 = vmatpush.bf16.msra.mxu0 %v10486
  %11627 = vmatpush.bf16.msra.mxu0 %v10484
  %11628 = vmatmul.bf16.gmra.mxu0 %v8743
  %v11629 = vpop.f32.mrf.mxu0
  %v11630 = vadd.f32 %v11617, %v11629
  %v11631 = vpop.f32.mrf.mxu0
  %11632 = vdwg.mxu0
  %v11633 = vmax.f32 %v11279, 0.0
  %v11634 = vmax.f32 %v11630, 0.0
  %v11635 = vpack.c.bf16 %v11634, %v11633
  %11636 = vst [vmem:[#allocation5] sm:$0xff] 0
  %11637 = vst [vmem:[#allocation5 + $0x8] sm:$0xff] 0
  %11638 = vst [vmem:[#allocation5 + $0x10] sm:$0xff] 0
  %11639 = vst [vmem:[#allocation5 + $0x18] sm:$0xff] 0
  %11640 = vst [vmem:[#allocation5 + $0x20] sm:$0xff] 0
  %11641 = vst [vmem:[#allocation5 + $0x28] sm:$0xff] 0
  %11642 = vst [vmem:[#allocation5 + $0x30] sm:$0xff] 0
  %11643 = vst [vmem:[#allocation5 + $0x38] sm:$0xff] 0
  %11644 = vst [vmem:[#allocation5 + $0x40] sm:$0xff] 0
  %v11646 = vrot.slane %v11635, 5
  %11648 = vst [vmem:[#allocation5] sm:$0x88] %v11646
  %v11649 = vrot.slane %v11635, 6
  %11651 = vst [vmem:[#allocation5 + $0x8] sm:$0xcc] %v11649
  %v11652 = vrot.slane %v11635, 7
  %11654 = vst [vmem:[#allocation5 + $0x10] sm:$0x44] %v11652
  %11655 = vst [vmem:[#allocation5 + $0x18] sm:$0x22] %v11652
  %11656 = vst [vmem:[#allocation5 + $0x18] sm:$0x88] %v11652
  %11657 = vst [vmem:[#allocation5 + $0x20] sm:$0x33] %v11635
  %11658 = vst [vmem:[#allocation5 + $0x20] sm:$0xcc] %v11635
  %v11659 = vrot.slane %v11646, 4
  %11661 = vst [vmem:[#allocation5 + $0x28] sm:$0x11] %v11659
  %11662 = vst [vmem:[#allocation5 + $0x28] sm:$0x44] %v11659
  %11663 = vst [vmem:[#allocation5 + $0x30] sm:$0x22] %v11659
  %v11664 = vrot.slane %v11649, 4
  %11666 = vst [vmem:[#allocation5 + $0x38] sm:$0x33] %v11664
  %v11667 = vrot.slane %v11652, 4
  %11669 = vst [vmem:[#allocation5 + $0x40] sm:$0x11] %v11667
  %v11670 = vld [vmem:[#allocation5] sm:$0xff]
  %v11671 = vld [vmem:[#allocation5 + $0x8] sm:$0xff]
  %v11672 = vld [vmem:[#allocation5 + $0x10] sm:$0xff]
  %v11673 = vld [vmem:[#allocation5 + $0x18] sm:$0xff]
  %v11674 = vld [vmem:[#allocation5 + $0x20] sm:$0xff]
  %v11675 = vld [vmem:[#allocation5 + $0x28] sm:$0xff]
  %v11676 = vld [vmem:[#allocation5 + $0x30] sm:$0xff]
  %v11677 = vld [vmem:[#allocation5 + $0x38] sm:$0xff]
  %v11678 = vld [vmem:[#allocation5 + $0x40] sm:$0xff]
  %v11679 = vld [vmem:[%s10] sm:$0xff]
  %v11680 = vld [vmem:[%s10 + $0x8] sm:$0xff]
  %v11681 = vld [vmem:[%s10 + $0x10] sm:$0xff]
  %v11682 = vld [vmem:[%s10 + $0x18] sm:$0xff]
  %v11683 = vld [vmem:[%s10 + $0x20] sm:$0xff]
  %v11684 = vld [vmem:[%s10 + $0x28] sm:$0xff]
  %v11685 = vld [vmem:[%s10 + $0x30] sm:$0xff]
  %v11686 = vld [vmem:[%s10 + $0x38] sm:$0xff]
  %v11687 = vld [vmem:[%s10 + $0x40] sm:$0xff]
  %v11688 = vld [vmem:[%s10 + $0x48] sm:$0xff]
  %v11689 = vld [vmem:[%s10 + $0x50] sm:$0xff]
  %v11690 = vld [vmem:[%s10 + $0x58] sm:$0xff]
  %v11691 = vld [vmem:[%s10 + $0x60] sm:$0xff]
  %v11692 = vld [vmem:[%s10 + $0x68] sm:$0xff]
  %v11693 = vld [vmem:[%s10 + $0x70] sm:$0xff]
  %v11694 = vld [vmem:[%s10 + $0x78] sm:$0xff]
  %v11695 = vld [vmem:[%s10 + $0x80] sm:$0xff]
  %v11696 = vld [vmem:[%s10 + $0x88] sm:$0xff]
  %v11697 = vld [vmem:[%s10 + $0x90] sm:$0xff]
  %v11698 = vld [vmem:[%s10 + $0x98] sm:$0xff]
  %v11699 = vld [vmem:[%s10 + $0xa0] sm:$0xff]
  %v11700 = vld [vmem:[%s10 + $0xa8] sm:$0xff]
  %v11701 = vld [vmem:[%s10 + $0xb0] sm:$0xff]
  %v11702 = vld [vmem:[%s10 + $0xb8] sm:$0xff]
  %v11703 = vld [vmem:[%s10 + $0xc0] sm:$0xff]
  %v11704 = vld [vmem:[%s10 + $0xc8] sm:$0xff]
  %v11705 = vld [vmem:[%s10 + $0xd0] sm:$0xff]
  %v11706 = vld [vmem:[%s10 + $0xd8] sm:$0xff]
  %v11707 = vld [vmem:[%s10 + $0xe0] sm:$0xff]
  %v11708 = vld [vmem:[%s10 + $0xe8] sm:$0xff]
  %v11709 = vld [vmem:[%s10 + $0xf0] sm:$0xff]
  %v11710 = vld [vmem:[%s10 + $0xf8] sm:$0xff]
  %v11711 = vld [vmem:[%s10 + $0x100] sm:$0xff]
  %v11712 = vld [vmem:[%s10 + $0x108] sm:$0xff]
  %v11713 = vld [vmem:[%s10 + $0x110] sm:$0xff]
  %v11714 = vld [vmem:[%s10 + $0x118] sm:$0xff]
  %v11715 = vld [vmem:[%s10 + $0x120] sm:$0xff]
  %v11716 = vld [vmem:[%s10 + $0x128] sm:$0xff]
  %v11717 = vld [vmem:[%s10 + $0x130] sm:$0xff]
  %v11718 = vld [vmem:[%s10 + $0x138] sm:$0xff]
  %v11719 = vld [vmem:[%s10 + $0x140] sm:$0xff]
  %v11720 = vld [vmem:[%s10 + $0x148] sm:$0xff]
  %v11721 = vld [vmem:[%s10 + $0x150] sm:$0xff]
  %v11722 = vld [vmem:[%s10 + $0x158] sm:$0xff]
  %v11723 = vld [vmem:[%s10 + $0x160] sm:$0xff]
  %v11724 = vld [vmem:[%s10 + $0x168] sm:$0xff]
  %v11725 = vld [vmem:[%s10 + $0x170] sm:$0xff]
  %v11726 = vld [vmem:[%s10 + $0x178] sm:$0xff]
  %v11727 = vld [vmem:[%s10 + $0x180] sm:$0xff]
  %v11728 = vld [vmem:[%s10 + $0x188] sm:$0xff]
  %v11729 = vld [vmem:[%s10 + $0x190] sm:$0xff]
  %v11730 = vld [vmem:[%s10 + $0x198] sm:$0xff]
  %v11731 = vld [vmem:[%s10 + $0x1a0] sm:$0xff]
  %v11732 = vld [vmem:[%s10 + $0x1a8] sm:$0xff]
  %v11733 = vld [vmem:[%s10 + $0x1b0] sm:$0xff]
  %v11734 = vld [vmem:[%s10 + $0x1b8] sm:$0xff]
  %v11735 = vld [vmem:[%s10 + $0x1c0] sm:$0xff]
  %v11736 = vld [vmem:[%s10 + $0x1c8] sm:$0xff]
  %v11737 = vld [vmem:[%s10 + $0x1d0] sm:$0xff]
  %v11738 = vld [vmem:[%s10 + $0x1d8] sm:$0xff]
  %v11739 = vld [vmem:[%s10 + $0x1e0] sm:$0xff]
  %v11740 = vld [vmem:[%s10 + $0x1e8] sm:$0xff]
  %v11741 = vld [vmem:[%s10 + $0x1f0] sm:$0xff]
  %v11742 = vld [vmem:[%s10 + $0x1f8] sm:$0xff]
  %v11743 = vld [vmem:[%s10 + $0x200] sm:$0xff]
  %v11744 = vld [vmem:[%s10 + $0x208] sm:$0xff]
  %v11745 = vld [vmem:[%s10 + $0x210] sm:$0xff]
  %v11746 = vld [vmem:[%s10 + $0x218] sm:$0xff]
  %v11747 = vld [vmem:[%s10 + $0x220] sm:$0xff]
  %v11748 = vld [vmem:[%s10 + $0x228] sm:$0xff]
  %v11749 = vld [vmem:[%s10 + $0x230] sm:$0xff]
  %v11750 = vld [vmem:[%s10 + $0x238] sm:$0xff]
  %v11751 = vld [vmem:[%s10 + $0x240] sm:$0xff]
  %v11752 = vld [vmem:[%s10 + $0x248] sm:$0xff]
  %v11753 = vld [vmem:[%s10 + $0x250] sm:$0xff]
  %v11754 = vld [vmem:[%s10 + $0x258] sm:$0xff]
  %v11755 = vld [vmem:[%s10 + $0x260] sm:$0xff]
  %v11756 = vld [vmem:[%s10 + $0x268] sm:$0xff]
  %v11757 = vld [vmem:[%s10 + $0x270] sm:$0xff]
  %v11758 = vld [vmem:[%s10 + $0x278] sm:$0xff]
  %v11759 = vld [vmem:[%s10 + $0x280] sm:$0xff]
  %v11760 = vld [vmem:[%s10 + $0x288] sm:$0xff]
  %v11761 = vld [vmem:[%s10 + $0x290] sm:$0xff]
  %v11762 = vld [vmem:[%s10 + $0x298] sm:$0xff]
  %v11763 = vld [vmem:[%s10 + $0x2a0] sm:$0xff]
  %v11764 = vld [vmem:[%s10 + $0x2a8] sm:$0xff]
  %v11765 = vld [vmem:[%s10 + $0x2b0] sm:$0xff]
  %v11766 = vld [vmem:[%s10 + $0x2b8] sm:$0xff]
  %v11767 = vld [vmem:[%s10 + $0x2c0] sm:$0xff]
  %v11768 = vld [vmem:[%s10 + $0x2c8] sm:$0xff]
  %v11769 = vld [vmem:[%s10 + $0x2d0] sm:$0xff]
  %v11770 = vld [vmem:[%s10 + $0x2d8] sm:$0xff]
  %v11771 = vld [vmem:[%s10 + $0x2e0] sm:$0xff]
  %v11772 = vld [vmem:[%s10 + $0x2e8] sm:$0xff]
  %v11773 = vld [vmem:[%s10 + $0x2f0] sm:$0xff]
  %v11774 = vld [vmem:[%s10 + $0x2f8] sm:$0xff]
  %v11775 = vld [vmem:[%s10 + $0x300] sm:$0xff]
  %v11776 = vld [vmem:[%s10 + $0x308] sm:$0xff]
  %v11777 = vld [vmem:[%s10 + $0x310] sm:$0xff]
  %v11778 = vld [vmem:[%s10 + $0x318] sm:$0xff]
  %v11779 = vld [vmem:[%s10 + $0x320] sm:$0xff]
  %v11780 = vld [vmem:[%s10 + $0x328] sm:$0xff]
  %v11781 = vld [vmem:[%s10 + $0x330] sm:$0xff]
  %v11782 = vld [vmem:[%s10 + $0x338] sm:$0xff]
  %v11783 = vld [vmem:[%s10 + $0x340] sm:$0xff]
  %v11784 = vld [vmem:[%s10 + $0x348] sm:$0xff]
  %v11785 = vld [vmem:[%s10 + $0x350] sm:$0xff]
  %v11786 = vld [vmem:[%s10 + $0x358] sm:$0xff]
  %v11787 = vld [vmem:[%s10 + $0x360] sm:$0xff]
  %v11788 = vld [vmem:[%s10 + $0x368] sm:$0xff]
  %v11789 = vld [vmem:[%s10 + $0x370] sm:$0xff]
  %v11790 = vld [vmem:[%s10 + $0x378] sm:$0xff]
  %v11791 = vld [vmem:[%s10 + $0x380] sm:$0xff]
  %v11792 = vld [vmem:[%s10 + $0x388] sm:$0xff]
  %v11793 = vld [vmem:[%s10 + $0x390] sm:$0xff]
  %v11794 = vld [vmem:[%s10 + $0x398] sm:$0xff]
  %v11795 = vld [vmem:[%s10 + $0x3a0] sm:$0xff]
  %v11796 = vld [vmem:[%s10 + $0x3a8] sm:$0xff]
  %v11797 = vld [vmem:[%s10 + $0x3b0] sm:$0xff]
  %v11798 = vld [vmem:[%s10 + $0x3b8] sm:$0xff]
  %v11799 = vld [vmem:[%s10 + $0x3c0] sm:$0xff]
  %v11800 = vld [vmem:[%s10 + $0x3c8] sm:$0xff]
  %v11801 = vld [vmem:[%s10 + $0x3d0] sm:$0xff]
  %v11802 = vld [vmem:[%s10 + $0x3d8] sm:$0xff]
  %v11803 = vld [vmem:[%s10 + $0x3e0] sm:$0xff]
  %v11804 = vld [vmem:[%s10 + $0x3e8] sm:$0xff]
  %v11805 = vld [vmem:[%s10 + $0x3f0] sm:$0xff]
  %v11806 = vld [vmem:[%s10 + $0x3f8] sm:$0xff]
  %v11807 = vld [vmem:[%s10 + $0x400] sm:$0xff]
  %v11808 = vld [vmem:[%s10 + $0x408] sm:$0xff]
  %v11809 = vld [vmem:[%s10 + $0x410] sm:$0xff]
  %v11810 = vld [vmem:[%s10 + $0x418] sm:$0xff]
  %v11811 = vld [vmem:[%s10 + $0x420] sm:$0xff]
  %v11812 = vld [vmem:[%s10 + $0x428] sm:$0xff]
  %v11813 = vld [vmem:[%s10 + $0x430] sm:$0xff]
  %v11814 = vld [vmem:[%s10 + $0x438] sm:$0xff]
  %v11815 = vld [vmem:[%s10 + $0x440] sm:$0xff]
  %v11816 = vld [vmem:[%s10 + $0x448] sm:$0xff]
  %v11817 = vld [vmem:[%s10 + $0x450] sm:$0xff]
  %v11818 = vld [vmem:[%s10 + $0x458] sm:$0xff]
  %v11819 = vld [vmem:[%s10 + $0x460] sm:$0xff]
  %v11820 = vld [vmem:[%s10 + $0x468] sm:$0xff]
  %v11821 = vld [vmem:[%s10 + $0x470] sm:$0xff]
  %v11822 = vld [vmem:[%s10 + $0x478] sm:$0xff]
  %v11823 = vld [vmem:[%s10 + $0x480] sm:$0xff]
  %v11824 = vld [vmem:[%s10 + $0x488] sm:$0xff]
  %v11825 = vld [vmem:[%s10 + $0x490] sm:$0xff]
  %v11826 = vld [vmem:[%s10 + $0x498] sm:$0xff]
  %v11827 = vld [vmem:[%s10 + $0x4a0] sm:$0xff]
  %v11828 = vld [vmem:[%s10 + $0x4a8] sm:$0xff]
  %v11829 = vld [vmem:[%s10 + $0x4b0] sm:$0xff]
  %v11830 = vld [vmem:[%s10 + $0x4b8] sm:$0xff]
  %v11831 = vld [vmem:[%s10 + $0x4c0] sm:$0xff]
  %v11832 = vld [vmem:[%s10 + $0x4c8] sm:$0xff]
  %v11833 = vld [vmem:[%s10 + $0x4d0] sm:$0xff]
  %v11834 = vld [vmem:[%s10 + $0x4d8] sm:$0xff]
  %v11835 = vld [vmem:[%s10 + $0x4e0] sm:$0xff]
  %v11836 = vld [vmem:[%s10 + $0x4e8] sm:$0xff]
  %v11837 = vld [vmem:[%s10 + $0x4f0] sm:$0xff]
  %v11838 = vld [vmem:[%s10 + $0x4f8] sm:$0xff]
  %v11839 = vld [vmem:[%s10 + $0x500] sm:$0xff]
  %v11840 = vld [vmem:[%s10 + $0x508] sm:$0xff]
  %v11841 = vld [vmem:[%s10 + $0x510] sm:$0xff]
  %v11842 = vld [vmem:[%s10 + $0x518] sm:$0xff]
  %v11843 = vld [vmem:[%s10 + $0x520] sm:$0xff]
  %v11844 = vld [vmem:[%s10 + $0x528] sm:$0xff]
  %v11845 = vld [vmem:[%s10 + $0x530] sm:$0xff]
  %v11846 = vld [vmem:[%s10 + $0x538] sm:$0xff]
  %v11847 = vld [vmem:[%s10 + $0x540] sm:$0xff]
  %v11848 = vld [vmem:[%s10 + $0x548] sm:$0xff]
  %v11849 = vld [vmem:[%s10 + $0x550] sm:$0xff]
  %v11850 = vld [vmem:[%s10 + $0x558] sm:$0xff]
  %v11851 = vld [vmem:[%s10 + $0x560] sm:$0xff]
  %v11852 = vld [vmem:[%s10 + $0x568] sm:$0xff]
  %v11853 = vld [vmem:[%s10 + $0x570] sm:$0xff]
  %v11854 = vld [vmem:[%s10 + $0x578] sm:$0xff]
  %v11855 = vld [vmem:[%s10 + $0x580] sm:$0xff]
  %v11856 = vld [vmem:[%s10 + $0x588] sm:$0xff]
  %v11857 = vld [vmem:[%s10 + $0x590] sm:$0xff]
  %v11858 = vld [vmem:[%s10 + $0x598] sm:$0xff]
  %v11859 = vld [vmem:[%s10 + $0x5a0] sm:$0xff]
  %v11860 = vld [vmem:[%s10 + $0x5a8] sm:$0xff]
  %v11861 = vld [vmem:[%s10 + $0x5b0] sm:$0xff]
  %v11862 = vld [vmem:[%s10 + $0x5b8] sm:$0xff]
  %v11863 = vld [vmem:[%s10 + $0x5c0] sm:$0xff]
  %v11864 = vld [vmem:[%s10 + $0x5c8] sm:$0xff]
  %v11865 = vld [vmem:[%s10 + $0x5d0] sm:$0xff]
  %v11866 = vld [vmem:[%s10 + $0x5d8] sm:$0xff]
  %v11867 = vld [vmem:[%s10 + $0x5e0] sm:$0xff]
  %v11868 = vld [vmem:[%s10 + $0x5e8] sm:$0xff]
  %v11869 = vld [vmem:[%s10 + $0x5f0] sm:$0xff]
  %v11870 = vld [vmem:[%s10 + $0x5f8] sm:$0xff]
  %v11871 = vld [vmem:[%s10 + $0x600] sm:$0xff]
  %v11872 = vld [vmem:[%s10 + $0x608] sm:$0xff]
  %v11873 = vld [vmem:[%s10 + $0x610] sm:$0xff]
  %v11874 = vld [vmem:[%s10 + $0x618] sm:$0xff]
  %v11875 = vld [vmem:[%s10 + $0x620] sm:$0xff]
  %v11876 = vld [vmem:[%s10 + $0x628] sm:$0xff]
  %v11877 = vld [vmem:[%s10 + $0x630] sm:$0xff]
  %v11878 = vld [vmem:[%s10 + $0x638] sm:$0xff]
  %v11879 = vld [vmem:[%s10 + $0x640] sm:$0xff]
  %v11880 = vld [vmem:[%s10 + $0x648] sm:$0xff]
  %v11881 = vld [vmem:[%s10 + $0x650] sm:$0xff]
  %v11882 = vld [vmem:[%s10 + $0x658] sm:$0xff]
  %v11883 = vld [vmem:[%s10 + $0x660] sm:$0xff]
  %v11884 = vld [vmem:[%s10 + $0x668] sm:$0xff]
  %v11885 = vld [vmem:[%s10 + $0x670] sm:$0xff]
  %v11886 = vld [vmem:[%s10 + $0x678] sm:$0xff]
  %v11887 = vld [vmem:[%s10 + $0x680] sm:$0xff]
  %v11888 = vld [vmem:[%s10 + $0x688] sm:$0xff]
  %v11889 = vld [vmem:[%s10 + $0x690] sm:$0xff]
  %v11890 = vld [vmem:[%s10 + $0x698] sm:$0xff]
  %v11891 = vld [vmem:[%s10 + $0x6a0] sm:$0xff]
  %v11892 = vld [vmem:[%s10 + $0x6a8] sm:$0xff]
  %v11893 = vld [vmem:[%s10 + $0x6b0] sm:$0xff]
  %v11894 = vld [vmem:[%s10 + $0x6b8] sm:$0xff]
  %v11895 = vld [vmem:[%s10 + $0x6c0] sm:$0xff]
  %v11896 = vld [vmem:[%s10 + $0x6c8] sm:$0xff]
  %v11897 = vld [vmem:[%s10 + $0x6d0] sm:$0xff]
  %v11898 = vld [vmem:[%s10 + $0x6d8] sm:$0xff]
  %v11899 = vld [vmem:[%s10 + $0x6e0] sm:$0xff]
  %v11900 = vld [vmem:[%s10 + $0x6e8] sm:$0xff]
  %v11901 = vld [vmem:[%s10 + $0x6f0] sm:$0xff]
  %v11902 = vld [vmem:[%s10 + $0x6f8] sm:$0xff]
  %v11903 = vld [vmem:[%s10 + $0x700] sm:$0xff]
  %v11904 = vld [vmem:[%s10 + $0x708] sm:$0xff]
  %v11905 = vld [vmem:[%s10 + $0x710] sm:$0xff]
  %v11906 = vld [vmem:[%s10 + $0x718] sm:$0xff]
  %v11907 = vld [vmem:[%s10 + $0x720] sm:$0xff]
  %v11908 = vld [vmem:[%s10 + $0x728] sm:$0xff]
  %v11909 = vld [vmem:[%s10 + $0x730] sm:$0xff]
  %v11910 = vld [vmem:[%s10 + $0x738] sm:$0xff]
  %v11911 = vld [vmem:[%s10 + $0x740] sm:$0xff]
  %v11912 = vld [vmem:[%s10 + $0x748] sm:$0xff]
  %v11913 = vld [vmem:[%s10 + $0x750] sm:$0xff]
  %v11914 = vld [vmem:[%s10 + $0x758] sm:$0xff]
  %v11915 = vld [vmem:[%s10 + $0x760] sm:$0xff]
  %v11916 = vld [vmem:[%s10 + $0x768] sm:$0xff]
  %v11917 = vld [vmem:[%s10 + $0x770] sm:$0xff]
  %v11918 = vld [vmem:[%s10 + $0x778] sm:$0xff]
  %v11919 = vld [vmem:[%s10 + $0x780] sm:$0xff]
  %v11920 = vld [vmem:[%s10 + $0x788] sm:$0xff]
  %v11921 = vld [vmem:[%s10 + $0x790] sm:$0xff]
  %v11922 = vld [vmem:[%s10 + $0x798] sm:$0xff]
  %v11923 = vld [vmem:[%s10 + $0x7a0] sm:$0xff]
  %v11924 = vld [vmem:[%s10 + $0x7a8] sm:$0xff]
  %v11925 = vld [vmem:[%s10 + $0x7b0] sm:$0xff]
  %v11926 = vld [vmem:[%s10 + $0x7b8] sm:$0xff]
  %v11927 = vld [vmem:[%s10 + $0x7c0] sm:$0xff]
  %v11928 = vld [vmem:[%s10 + $0x7c8] sm:$0xff]
  %v11929 = vld [vmem:[%s10 + $0x7d0] sm:$0xff]
  %v11930 = vld [vmem:[%s10 + $0x7d8] sm:$0xff]
  %v11931 = vld [vmem:[%s10 + $0x7e0] sm:$0xff]
  %v11932 = vld [vmem:[%s10 + $0x7e8] sm:$0xff]
  %v11933 = vld [vmem:[%s10 + $0x7f0] sm:$0xff]
  %v11934 = vld [vmem:[%s10 + $0x7f8] sm:$0xff]
  %v11935 = vld [vmem:[%s10 + $0x800] sm:$0xff]
  %v11936 = vld [vmem:[%s10 + $0x808] sm:$0xff]
  %v11937 = vld [vmem:[%s10 + $0x810] sm:$0xff]
  %v11938 = vld [vmem:[%s10 + $0x818] sm:$0xff]
  %v11939 = vld [vmem:[%s10 + $0x820] sm:$0xff]
  %v11940 = vld [vmem:[%s10 + $0x828] sm:$0xff]
  %v11941 = vld [vmem:[%s10 + $0x830] sm:$0xff]
  %v11942 = vld [vmem:[%s10 + $0x838] sm:$0xff]
  %v11943 = vld [vmem:[%s10 + $0x840] sm:$0xff]
  %v11944 = vld [vmem:[%s10 + $0x848] sm:$0xff]
  %v11945 = vld [vmem:[%s10 + $0x850] sm:$0xff]
  %v11946 = vld [vmem:[%s10 + $0x858] sm:$0xff]
  %v11947 = vld [vmem:[%s10 + $0x860] sm:$0xff]
  %v11948 = vld [vmem:[%s10 + $0x868] sm:$0xff]
  %v11949 = vld [vmem:[%s10 + $0x870] sm:$0xff]
  %v11950 = vld [vmem:[%s10 + $0x878] sm:$0xff]
  %v11951 = vld [vmem:[%s10 + $0x880] sm:$0xff]
  %v11952 = vld [vmem:[%s10 + $0x888] sm:$0xff]
  %v11953 = vld [vmem:[%s10 + $0x890] sm:$0xff]
  %v11954 = vld [vmem:[%s10 + $0x898] sm:$0xff]
  %v11955 = vld [vmem:[%s10 + $0x8a0] sm:$0xff]
  %v11956 = vld [vmem:[%s10 + $0x8a8] sm:$0xff]
  %v11957 = vld [vmem:[%s10 + $0x8b0] sm:$0xff]
  %v11958 = vld [vmem:[%s10 + $0x8b8] sm:$0xff]
  %v11959 = vld [vmem:[%s10 + $0x8c0] sm:$0xff]
  %v11960 = vld [vmem:[%s10 + $0x8c8] sm:$0xff]
  %v11961 = vld [vmem:[%s10 + $0x8d0] sm:$0xff]
  %v11962 = vld [vmem:[%s10 + $0x8d8] sm:$0xff]
  %v11963 = vld [vmem:[%s10 + $0x8e0] sm:$0xff]
  %v11964 = vld [vmem:[%s10 + $0x8e8] sm:$0xff]
  %v11965 = vld [vmem:[%s10 + $0x8f0] sm:$0xff]
  %v11966 = vld [vmem:[%s10 + $0x8f8] sm:$0xff]
  %v11967 = vld [vmem:[%s11] sm:$0x3]
  %v11969 = vperm.slane %v11967, 0
  %v11970 = vperm.slane %v11967, 1
  %v11982 = vunpack.c.l.b16 %v11670
  %v11983 = vunpack.c.h.b16 %v11670
  %v11984 = vunpack.c.l.b16 %v11671
  %v11985 = vunpack.c.h.b16 %v11671
  %v11986 = vunpack.c.l.b16 %v11672
  %v11987 = vunpack.c.h.b16 %v11672
  %v11988 = vunpack.c.l.b16 %v11673
  %v11989 = vunpack.c.h.b16 %v11673
  %v11990 = vunpack.c.l.b16 %v11674
  %v11991 = vunpack.c.h.b16 %v11674
  %v11992 = vunpack.c.l.b16 %v11675
  %v11993 = vunpack.c.h.b16 %v11675
  %v11994 = vunpack.c.l.b16 %v11676
  %v11995 = vunpack.c.h.b16 %v11676
  %v11996 = vunpack.c.l.b16 %v11677
  %v11997 = vunpack.c.h.b16 %v11677
  %v11998 = vunpack.c.l.b16 %v11678
  %v11999 = vunpack.c.h.b16 %v11678
  %v12000 = vpack.c.b16 %v11982, %v11982
  %v12001 = vpack.c.b16 %v11983, %v11983
  %v12002 = vpack.c.b16 %v11984, %v11984
  %v12003 = vpack.c.b16 %v11985, %v11985
  %v12004 = vpack.c.b16 %v11986, %v11986
  %v12005 = vpack.c.b16 %v11987, %v11987
  %v12006 = vpack.c.b16 %v11988, %v11988
  %v12007 = vpack.c.b16 %v11989, %v11989
  %v12008 = vpack.c.b16 %v11990, %v11990
  %v12009 = vpack.c.b16 %v11991, %v11991
  %v12010 = vpack.c.b16 %v11992, %v11992
  %v12011 = vpack.c.b16 %v11993, %v11993
  %v12012 = vpack.c.b16 %v11994, %v11994
  %v12013 = vpack.c.b16 %v11995, %v11995
  %v12014 = vpack.c.b16 %v11996, %v11996
  %v12015 = vpack.c.b16 %v11997, %v11997
  %v12016 = vpack.c.b16 %v11998, %v11998
  %v12017 = vpack.c.b16 %v11999, %v11999
  %v12324 = vunpack.c.l.b16 %v11679
  %v12325 = vunpack.c.h.b16 %v11679
  %v12326 = vunpack.c.l.b16 %v11680
  %v12327 = vunpack.c.h.b16 %v11680
  %v12328 = vunpack.c.l.b16 %v11681
  %v12329 = vunpack.c.h.b16 %v11681
  %v12330 = vunpack.c.l.b16 %v11682
  %v12331 = vunpack.c.h.b16 %v11682
  %v12332 = vunpack.c.l.b16 %v11683
  %v12333 = vunpack.c.h.b16 %v11683
  %v12334 = vunpack.c.l.b16 %v11684
  %v12335 = vunpack.c.h.b16 %v11684
  %v12336 = vunpack.c.l.b16 %v11685
  %v12337 = vunpack.c.h.b16 %v11685
  %v12338 = vunpack.c.l.b16 %v11686
  %v12339 = vunpack.c.h.b16 %v11686
  %v12340 = vunpack.c.l.b16 %v11687
  %v12341 = vunpack.c.h.b16 %v11687
  %v12342 = vunpack.c.l.b16 %v11688
  %v12343 = vunpack.c.h.b16 %v11688
  %v12344 = vunpack.c.l.b16 %v11689
  %v12345 = vunpack.c.h.b16 %v11689
  %v12346 = vunpack.c.l.b16 %v11690
  %v12347 = vunpack.c.h.b16 %v11690
  %v12348 = vunpack.c.l.b16 %v11691
  %v12349 = vunpack.c.h.b16 %v11691
  %v12350 = vunpack.c.l.b16 %v11692
  %v12351 = vunpack.c.h.b16 %v11692
  %v12352 = vunpack.c.l.b16 %v11693
  %v12353 = vunpack.c.h.b16 %v11693
  %v12354 = vunpack.c.l.b16 %v11694
  %v12355 = vunpack.c.h.b16 %v11694
  %v12356 = vunpack.c.l.b16 %v11695
  %v12357 = vunpack.c.h.b16 %v11695
  %v12358 = vunpack.c.l.b16 %v11696
  %v12359 = vunpack.c.h.b16 %v11696
  %v12360 = vunpack.c.l.b16 %v11697
  %v12361 = vunpack.c.h.b16 %v11697
  %v12362 = vunpack.c.l.b16 %v11698
  %v12363 = vunpack.c.h.b16 %v11698
  %v12364 = vunpack.c.l.b16 %v11699
  %v12365 = vunpack.c.h.b16 %v11699
  %v12366 = vunpack.c.l.b16 %v11700
  %v12367 = vunpack.c.h.b16 %v11700
  %v12368 = vunpack.c.l.b16 %v11701
  %v12369 = vunpack.c.h.b16 %v11701
  %v12370 = vunpack.c.l.b16 %v11702
  %v12371 = vunpack.c.h.b16 %v11702
  %v12372 = vunpack.c.l.b16 %v11703
  %v12373 = vunpack.c.h.b16 %v11703
  %v12374 = vunpack.c.l.b16 %v11704
  %v12375 = vunpack.c.h.b16 %v11704
  %v12376 = vunpack.c.l.b16 %v11705
  %v12377 = vunpack.c.h.b16 %v11705
  %v12378 = vunpack.c.l.b16 %v11706
  %v12379 = vunpack.c.h.b16 %v11706
  %v12380 = vunpack.c.l.b16 %v11707
  %v12381 = vunpack.c.h.b16 %v11707
  %v12382 = vunpack.c.l.b16 %v11708
  %v12383 = vunpack.c.h.b16 %v11708
  %v12384 = vunpack.c.l.b16 %v11709
  %v12385 = vunpack.c.h.b16 %v11709
  %v12386 = vunpack.c.l.b16 %v11710
  %v12387 = vunpack.c.h.b16 %v11710
  %v12388 = vunpack.c.l.b16 %v11711
  %v12389 = vunpack.c.h.b16 %v11711
  %v12390 = vunpack.c.l.b16 %v11712
  %v12391 = vunpack.c.h.b16 %v11712
  %v12392 = vunpack.c.l.b16 %v11713
  %v12393 = vunpack.c.h.b16 %v11713
  %v12394 = vunpack.c.l.b16 %v11714
  %v12395 = vunpack.c.h.b16 %v11714
  %v12396 = vunpack.c.l.b16 %v11715
  %v12397 = vunpack.c.h.b16 %v11715
  %v12398 = vunpack.c.l.b16 %v11716
  %v12399 = vunpack.c.h.b16 %v11716
  %v12400 = vunpack.c.l.b16 %v11717
  %v12401 = vunpack.c.h.b16 %v11717
  %v12402 = vunpack.c.l.b16 %v11718
  %v12403 = vunpack.c.h.b16 %v11718
  %v12404 = vunpack.c.l.b16 %v11719
  %v12405 = vunpack.c.h.b16 %v11719
  %v12406 = vunpack.c.l.b16 %v11720
  %v12407 = vunpack.c.h.b16 %v11720
  %v12408 = vunpack.c.l.b16 %v11721
  %v12409 = vunpack.c.h.b16 %v11721
  %v12410 = vunpack.c.l.b16 %v11722
  %v12411 = vunpack.c.h.b16 %v11722
  %v12412 = vunpack.c.l.b16 %v11723
  %v12413 = vunpack.c.h.b16 %v11723
  %v12414 = vunpack.c.l.b16 %v11724
  %v12415 = vunpack.c.h.b16 %v11724
  %v12416 = vunpack.c.l.b16 %v11725
  %v12417 = vunpack.c.h.b16 %v11725
  %v12418 = vunpack.c.l.b16 %v11726
  %v12419 = vunpack.c.h.b16 %v11726
  %v12420 = vunpack.c.l.b16 %v11727
  %v12421 = vunpack.c.h.b16 %v11727
  %v12422 = vunpack.c.l.b16 %v11728
  %v12423 = vunpack.c.h.b16 %v11728
  %v12424 = vunpack.c.l.b16 %v11729
  %v12425 = vunpack.c.h.b16 %v11729
  %v12426 = vunpack.c.l.b16 %v11730
  %v12427 = vunpack.c.h.b16 %v11730
  %v12428 = vunpack.c.l.b16 %v11731
  %v12429 = vunpack.c.h.b16 %v11731
  %v12430 = vunpack.c.l.b16 %v11732
  %v12431 = vunpack.c.h.b16 %v11732
  %v12432 = vunpack.c.l.b16 %v11733
  %v12433 = vunpack.c.h.b16 %v11733
  %v12434 = vunpack.c.l.b16 %v11734
  %v12435 = vunpack.c.h.b16 %v11734
  %v12436 = vunpack.c.l.b16 %v11735
  %v12437 = vunpack.c.h.b16 %v11735
  %v12438 = vunpack.c.l.b16 %v11736
  %v12439 = vunpack.c.h.b16 %v11736
  %v12440 = vunpack.c.l.b16 %v11737
  %v12441 = vunpack.c.h.b16 %v11737
  %v12442 = vunpack.c.l.b16 %v11738
  %v12443 = vunpack.c.h.b16 %v11738
  %v12444 = vunpack.c.l.b16 %v11739
  %v12445 = vunpack.c.h.b16 %v11739
  %v12446 = vunpack.c.l.b16 %v11740
  %v12447 = vunpack.c.h.b16 %v11740
  %v12448 = vunpack.c.l.b16 %v11741
  %v12449 = vunpack.c.h.b16 %v11741
  %v12450 = vunpack.c.l.b16 %v11742
  %v12451 = vunpack.c.h.b16 %v11742
  %v12452 = vunpack.c.l.b16 %v11743
  %v12453 = vunpack.c.h.b16 %v11743
  %v12454 = vunpack.c.l.b16 %v11744
  %v12455 = vunpack.c.h.b16 %v11744
  %v12456 = vunpack.c.l.b16 %v11745
  %v12457 = vunpack.c.h.b16 %v11745
  %v12458 = vunpack.c.l.b16 %v11746
  %v12459 = vunpack.c.h.b16 %v11746
  %v12460 = vunpack.c.l.b16 %v11747
  %v12461 = vunpack.c.h.b16 %v11747
  %v12462 = vunpack.c.l.b16 %v11748
  %v12463 = vunpack.c.h.b16 %v11748
  %v12464 = vunpack.c.l.b16 %v11749
  %v12465 = vunpack.c.h.b16 %v11749
  %v12466 = vunpack.c.l.b16 %v11750
  %v12467 = vunpack.c.h.b16 %v11750
  %v12468 = vunpack.c.l.b16 %v11751
  %v12469 = vunpack.c.h.b16 %v11751
  %v12470 = vunpack.c.l.b16 %v11752
  %v12471 = vunpack.c.h.b16 %v11752
  %v12472 = vunpack.c.l.b16 %v11753
  %v12473 = vunpack.c.h.b16 %v11753
  %v12474 = vunpack.c.l.b16 %v11754
  %v12475 = vunpack.c.h.b16 %v11754
  %v12476 = vunpack.c.l.b16 %v11755
  %v12477 = vunpack.c.h.b16 %v11755
  %v12478 = vunpack.c.l.b16 %v11756
  %v12479 = vunpack.c.h.b16 %v11756
  %v12480 = vunpack.c.l.b16 %v11757
  %v12481 = vunpack.c.h.b16 %v11757
  %v12482 = vunpack.c.l.b16 %v11758
  %v12483 = vunpack.c.h.b16 %v11758
  %v12484 = vunpack.c.l.b16 %v11759
  %v12485 = vunpack.c.h.b16 %v11759
  %v12486 = vunpack.c.l.b16 %v11760
  %v12487 = vunpack.c.h.b16 %v11760
  %v12488 = vunpack.c.l.b16 %v11761
  %v12489 = vunpack.c.h.b16 %v11761
  %v12490 = vunpack.c.l.b16 %v11762
  %v12491 = vunpack.c.h.b16 %v11762
  %v12492 = vunpack.c.l.b16 %v11763
  %v12493 = vunpack.c.h.b16 %v11763
  %v12494 = vunpack.c.l.b16 %v11764
  %v12495 = vunpack.c.h.b16 %v11764
  %v12496 = vunpack.c.l.b16 %v11765
  %v12497 = vunpack.c.h.b16 %v11765
  %v12498 = vunpack.c.l.b16 %v11766
  %v12499 = vunpack.c.h.b16 %v11766
  %v12500 = vunpack.c.l.b16 %v11767
  %v12501 = vunpack.c.h.b16 %v11767
  %v12502 = vunpack.c.l.b16 %v11768
  %v12503 = vunpack.c.h.b16 %v11768
  %v12504 = vunpack.c.l.b16 %v11769
  %v12505 = vunpack.c.h.b16 %v11769
  %v12506 = vunpack.c.l.b16 %v11770
  %v12507 = vunpack.c.h.b16 %v11770
  %v12508 = vunpack.c.l.b16 %v11771
  %v12509 = vunpack.c.h.b16 %v11771
  %v12510 = vunpack.c.l.b16 %v11772
  %v12511 = vunpack.c.h.b16 %v11772
  %v12512 = vunpack.c.l.b16 %v11773
  %v12513 = vunpack.c.h.b16 %v11773
  %v12514 = vunpack.c.l.b16 %v11774
  %v12515 = vunpack.c.h.b16 %v11774
  %v12516 = vunpack.c.l.b16 %v11775
  %v12517 = vunpack.c.h.b16 %v11775
  %v12518 = vunpack.c.l.b16 %v11776
  %v12519 = vunpack.c.h.b16 %v11776
  %v12520 = vunpack.c.l.b16 %v11777
  %v12521 = vunpack.c.h.b16 %v11777
  %v12522 = vunpack.c.l.b16 %v11778
  %v12523 = vunpack.c.h.b16 %v11778
  %v12524 = vunpack.c.l.b16 %v11779
  %v12525 = vunpack.c.h.b16 %v11779
  %v12526 = vunpack.c.l.b16 %v11780
  %v12527 = vunpack.c.h.b16 %v11780
  %v12528 = vunpack.c.l.b16 %v11781
  %v12529 = vunpack.c.h.b16 %v11781
  %v12530 = vunpack.c.l.b16 %v11782
  %v12531 = vunpack.c.h.b16 %v11782
  %v12532 = vunpack.c.l.b16 %v11783
  %v12533 = vunpack.c.h.b16 %v11783
  %v12534 = vunpack.c.l.b16 %v11784
  %v12535 = vunpack.c.h.b16 %v11784
  %v12536 = vunpack.c.l.b16 %v11785
  %v12537 = vunpack.c.h.b16 %v11785
  %v12538 = vunpack.c.l.b16 %v11786
  %v12539 = vunpack.c.h.b16 %v11786
  %v12540 = vunpack.c.l.b16 %v11787
  %v12541 = vunpack.c.h.b16 %v11787
  %v12542 = vunpack.c.l.b16 %v11788
  %v12543 = vunpack.c.h.b16 %v11788
  %v12544 = vunpack.c.l.b16 %v11789
  %v12545 = vunpack.c.h.b16 %v11789
  %v12546 = vunpack.c.l.b16 %v11790
  %v12547 = vunpack.c.h.b16 %v11790
  %v12548 = vunpack.c.l.b16 %v11791
  %v12549 = vunpack.c.h.b16 %v11791
  %v12550 = vunpack.c.l.b16 %v11792
  %v12551 = vunpack.c.h.b16 %v11792
  %v12552 = vunpack.c.l.b16 %v11793
  %v12553 = vunpack.c.h.b16 %v11793
  %v12554 = vunpack.c.l.b16 %v11794
  %v12555 = vunpack.c.h.b16 %v11794
  %v12556 = vunpack.c.l.b16 %v11795
  %v12557 = vunpack.c.h.b16 %v11795
  %v12558 = vunpack.c.l.b16 %v11796
  %v12559 = vunpack.c.h.b16 %v11796
  %v12560 = vunpack.c.l.b16 %v11797
  %v12561 = vunpack.c.h.b16 %v11797
  %v12562 = vunpack.c.l.b16 %v11798
  %v12563 = vunpack.c.h.b16 %v11798
  %v12564 = vunpack.c.l.b16 %v11799
  %v12565 = vunpack.c.h.b16 %v11799
  %v12566 = vunpack.c.l.b16 %v11800
  %v12567 = vunpack.c.h.b16 %v11800
  %v12568 = vunpack.c.l.b16 %v11801
  %v12569 = vunpack.c.h.b16 %v11801
  %v12570 = vunpack.c.l.b16 %v11802
  %v12571 = vunpack.c.h.b16 %v11802
  %v12572 = vunpack.c.l.b16 %v11803
  %v12573 = vunpack.c.h.b16 %v11803
  %v12574 = vunpack.c.l.b16 %v11804
  %v12575 = vunpack.c.h.b16 %v11804
  %v12576 = vunpack.c.l.b16 %v11805
  %v12577 = vunpack.c.h.b16 %v11805
  %v12578 = vunpack.c.l.b16 %v11806
  %v12579 = vunpack.c.h.b16 %v11806
  %v12580 = vunpack.c.l.b16 %v11807
  %v12581 = vunpack.c.h.b16 %v11807
  %v12582 = vunpack.c.l.b16 %v11808
  %v12583 = vunpack.c.h.b16 %v11808
  %v12584 = vunpack.c.l.b16 %v11809
  %v12585 = vunpack.c.h.b16 %v11809
  %v12586 = vunpack.c.l.b16 %v11810
  %v12587 = vunpack.c.h.b16 %v11810
  %v12588 = vunpack.c.l.b16 %v11811
  %v12589 = vunpack.c.h.b16 %v11811
  %v12590 = vunpack.c.l.b16 %v11812
  %v12591 = vunpack.c.h.b16 %v11812
  %v12592 = vunpack.c.l.b16 %v11813
  %v12593 = vunpack.c.h.b16 %v11813
  %v12594 = vunpack.c.l.b16 %v11814
  %v12595 = vunpack.c.h.b16 %v11814
  %v12596 = vunpack.c.l.b16 %v11815
  %v12597 = vunpack.c.h.b16 %v11815
  %v12598 = vunpack.c.l.b16 %v11816
  %v12599 = vunpack.c.h.b16 %v11816
  %v12600 = vunpack.c.l.b16 %v11817
  %v12601 = vunpack.c.h.b16 %v11817
  %v12602 = vunpack.c.l.b16 %v11818
  %v12603 = vunpack.c.h.b16 %v11818
  %v12604 = vunpack.c.l.b16 %v11819
  %v12605 = vunpack.c.h.b16 %v11819
  %v12606 = vunpack.c.l.b16 %v11820
  %v12607 = vunpack.c.h.b16 %v11820
  %v12608 = vunpack.c.l.b16 %v11821
  %v12609 = vunpack.c.h.b16 %v11821
  %v12610 = vunpack.c.l.b16 %v11822
  %v12611 = vunpack.c.h.b16 %v11822
  %v12612 = vunpack.c.l.b16 %v11823
  %v12613 = vunpack.c.h.b16 %v11823
  %v12614 = vunpack.c.l.b16 %v11824
  %v12615 = vunpack.c.h.b16 %v11824
  %v12616 = vunpack.c.l.b16 %v11825
  %v12617 = vunpack.c.h.b16 %v11825
  %v12618 = vunpack.c.l.b16 %v11826
  %v12619 = vunpack.c.h.b16 %v11826
  %v12620 = vunpack.c.l.b16 %v11827
  %v12621 = vunpack.c.h.b16 %v11827
  %v12622 = vunpack.c.l.b16 %v11828
  %v12623 = vunpack.c.h.b16 %v11828
  %v12624 = vunpack.c.l.b16 %v11829
  %v12625 = vunpack.c.h.b16 %v11829
  %v12626 = vunpack.c.l.b16 %v11830
  %v12627 = vunpack.c.h.b16 %v11830
  %v12628 = vunpack.c.l.b16 %v11831
  %v12629 = vunpack.c.h.b16 %v11831
  %v12630 = vunpack.c.l.b16 %v11832
  %v12631 = vunpack.c.h.b16 %v11832
  %v12632 = vunpack.c.l.b16 %v11833
  %v12633 = vunpack.c.h.b16 %v11833
  %v12634 = vunpack.c.l.b16 %v11834
  %v12635 = vunpack.c.h.b16 %v11834
  %v12636 = vunpack.c.l.b16 %v11835
  %v12637 = vunpack.c.h.b16 %v11835
  %v12638 = vunpack.c.l.b16 %v11836
  %v12639 = vunpack.c.h.b16 %v11836
  %v12640 = vunpack.c.l.b16 %v11837
  %v12641 = vunpack.c.h.b16 %v11837
  %v12642 = vunpack.c.l.b16 %v11838
  %v12643 = vunpack.c.h.b16 %v11838
  %v12644 = vunpack.c.l.b16 %v11839
  %v12645 = vunpack.c.h.b16 %v11839
  %v12646 = vunpack.c.l.b16 %v11840
  %v12647 = vunpack.c.h.b16 %v11840
  %v12648 = vunpack.c.l.b16 %v11841
  %v12649 = vunpack.c.h.b16 %v11841
  %v12650 = vunpack.c.l.b16 %v11842
  %v12651 = vunpack.c.h.b16 %v11842
  %v12652 = vunpack.c.l.b16 %v11843
  %v12653 = vunpack.c.h.b16 %v11843
  %v12654 = vunpack.c.l.b16 %v11844
  %v12655 = vunpack.c.h.b16 %v11844
  %v12656 = vunpack.c.l.b16 %v11845
  %v12657 = vunpack.c.h.b16 %v11845
  %v12658 = vunpack.c.l.b16 %v11846
  %v12659 = vunpack.c.h.b16 %v11846
  %v12660 = vunpack.c.l.b16 %v11847
  %v12661 = vunpack.c.h.b16 %v11847
  %v12662 = vunpack.c.l.b16 %v11848
  %v12663 = vunpack.c.h.b16 %v11848
  %v12664 = vunpack.c.l.b16 %v11849
  %v12665 = vunpack.c.h.b16 %v11849
  %v12666 = vunpack.c.l.b16 %v11850
  %v12667 = vunpack.c.h.b16 %v11850
  %v12668 = vunpack.c.l.b16 %v11851
  %v12669 = vunpack.c.h.b16 %v11851
  %v12670 = vunpack.c.l.b16 %v11852
  %v12671 = vunpack.c.h.b16 %v11852
  %v12672 = vunpack.c.l.b16 %v11853
  %v12673 = vunpack.c.h.b16 %v11853
  %v12674 = vunpack.c.l.b16 %v11854
  %v12675 = vunpack.c.h.b16 %v11854
  %v12676 = vunpack.c.l.b16 %v11855
  %v12677 = vunpack.c.h.b16 %v11855
  %v12678 = vunpack.c.l.b16 %v11856
  %v12679 = vunpack.c.h.b16 %v11856
  %v12680 = vunpack.c.l.b16 %v11857
  %v12681 = vunpack.c.h.b16 %v11857
  %v12682 = vunpack.c.l.b16 %v11858
  %v12683 = vunpack.c.h.b16 %v11858
  %v12684 = vunpack.c.l.b16 %v11859
  %v12685 = vunpack.c.h.b16 %v11859
  %v12686 = vunpack.c.l.b16 %v11860
  %v12687 = vunpack.c.h.b16 %v11860
  %v12688 = vunpack.c.l.b16 %v11861
  %v12689 = vunpack.c.h.b16 %v11861
  %v12690 = vunpack.c.l.b16 %v11862
  %v12691 = vunpack.c.h.b16 %v11862
  %v12692 = vunpack.c.l.b16 %v11863
  %v12693 = vunpack.c.h.b16 %v11863
  %v12694 = vunpack.c.l.b16 %v11864
  %v12695 = vunpack.c.h.b16 %v11864
  %v12696 = vunpack.c.l.b16 %v11865
  %v12697 = vunpack.c.h.b16 %v11865
  %v12698 = vunpack.c.l.b16 %v11866
  %v12699 = vunpack.c.h.b16 %v11866
  %v12700 = vunpack.c.l.b16 %v11867
  %v12701 = vunpack.c.h.b16 %v11867
  %v12702 = vunpack.c.l.b16 %v11868
  %v12703 = vunpack.c.h.b16 %v11868
  %v12704 = vunpack.c.l.b16 %v11869
  %v12705 = vunpack.c.h.b16 %v11869
  %v12706 = vunpack.c.l.b16 %v11870
  %v12707 = vunpack.c.h.b16 %v11870
  %v12708 = vunpack.c.l.b16 %v11871
  %v12709 = vunpack.c.h.b16 %v11871
  %v12710 = vunpack.c.l.b16 %v11872
  %v12711 = vunpack.c.h.b16 %v11872
  %v12712 = vunpack.c.l.b16 %v11873
  %v12713 = vunpack.c.h.b16 %v11873
  %v12714 = vunpack.c.l.b16 %v11874
  %v12715 = vunpack.c.h.b16 %v11874
  %v12716 = vunpack.c.l.b16 %v11875
  %v12717 = vunpack.c.h.b16 %v11875
  %v12718 = vunpack.c.l.b16 %v11876
  %v12719 = vunpack.c.h.b16 %v11876
  %v12720 = vunpack.c.l.b16 %v11877
  %v12721 = vunpack.c.h.b16 %v11877
  %v12722 = vunpack.c.l.b16 %v11878
  %v12723 = vunpack.c.h.b16 %v11878
  %v12724 = vunpack.c.l.b16 %v11879
  %v12725 = vunpack.c.h.b16 %v11879
  %v12726 = vunpack.c.l.b16 %v11880
  %v12727 = vunpack.c.h.b16 %v11880
  %v12728 = vunpack.c.l.b16 %v11881
  %v12729 = vunpack.c.h.b16 %v11881
  %v12730 = vunpack.c.l.b16 %v11882
  %v12731 = vunpack.c.h.b16 %v11882
  %v12732 = vunpack.c.l.b16 %v11883
  %v12733 = vunpack.c.h.b16 %v11883
  %v12734 = vunpack.c.l.b16 %v11884
  %v12735 = vunpack.c.h.b16 %v11884
  %v12736 = vunpack.c.l.b16 %v11885
  %v12737 = vunpack.c.h.b16 %v11885
  %v12738 = vunpack.c.l.b16 %v11886
  %v12739 = vunpack.c.h.b16 %v11886
  %v12740 = vunpack.c.l.b16 %v11887
  %v12741 = vunpack.c.h.b16 %v11887
  %v12742 = vunpack.c.l.b16 %v11888
  %v12743 = vunpack.c.h.b16 %v11888
  %v12744 = vunpack.c.l.b16 %v11889
  %v12745 = vunpack.c.h.b16 %v11889
  %v12746 = vunpack.c.l.b16 %v11890
  %v12747 = vunpack.c.h.b16 %v11890
  %v12748 = vunpack.c.l.b16 %v11891
  %v12749 = vunpack.c.h.b16 %v11891
  %v12750 = vunpack.c.l.b16 %v11892
  %v12751 = vunpack.c.h.b16 %v11892
  %v12752 = vunpack.c.l.b16 %v11893
  %v12753 = vunpack.c.h.b16 %v11893
  %v12754 = vunpack.c.l.b16 %v11894
  %v12755 = vunpack.c.h.b16 %v11894
  %v12756 = vunpack.c.l.b16 %v11895
  %v12757 = vunpack.c.h.b16 %v11895
  %v12758 = vunpack.c.l.b16 %v11896
  %v12759 = vunpack.c.h.b16 %v11896
  %v12760 = vunpack.c.l.b16 %v11897
  %v12761 = vunpack.c.h.b16 %v11897
  %v12762 = vunpack.c.l.b16 %v11898
  %v12763 = vunpack.c.h.b16 %v11898
  %v12764 = vunpack.c.l.b16 %v11899
  %v12765 = vunpack.c.h.b16 %v11899
  %v12766 = vunpack.c.l.b16 %v11900
  %v12767 = vunpack.c.h.b16 %v11900
  %v12768 = vunpack.c.l.b16 %v11901
  %v12769 = vunpack.c.h.b16 %v11901
  %v12770 = vunpack.c.l.b16 %v11902
  %v12771 = vunpack.c.h.b16 %v11902
  %v12772 = vunpack.c.l.b16 %v11903
  %v12773 = vunpack.c.h.b16 %v11903
  %v12774 = vunpack.c.l.b16 %v11904
  %v12775 = vunpack.c.h.b16 %v11904
  %v12776 = vunpack.c.l.b16 %v11905
  %v12777 = vunpack.c.h.b16 %v11905
  %v12778 = vunpack.c.l.b16 %v11906
  %v12779 = vunpack.c.h.b16 %v11906
  %v12780 = vunpack.c.l.b16 %v11907
  %v12781 = vunpack.c.h.b16 %v11907
  %v12782 = vunpack.c.l.b16 %v11908
  %v12783 = vunpack.c.h.b16 %v11908
  %v12784 = vunpack.c.l.b16 %v11909
  %v12785 = vunpack.c.h.b16 %v11909
  %v12786 = vunpack.c.l.b16 %v11910
  %v12787 = vunpack.c.h.b16 %v11910
  %v12788 = vunpack.c.l.b16 %v11911
  %v12789 = vunpack.c.h.b16 %v11911
  %v12790 = vunpack.c.l.b16 %v11912
  %v12791 = vunpack.c.h.b16 %v11912
  %v12792 = vunpack.c.l.b16 %v11913
  %v12793 = vunpack.c.h.b16 %v11913
  %v12794 = vunpack.c.l.b16 %v11914
  %v12795 = vunpack.c.h.b16 %v11914
  %v12796 = vunpack.c.l.b16 %v11915
  %v12797 = vunpack.c.h.b16 %v11915
  %v12798 = vunpack.c.l.b16 %v11916
  %v12799 = vunpack.c.h.b16 %v11916
  %v12800 = vunpack.c.l.b16 %v11917
  %v12801 = vunpack.c.h.b16 %v11917
  %v12802 = vunpack.c.l.b16 %v11918
  %v12803 = vunpack.c.h.b16 %v11918
  %v12804 = vunpack.c.l.b16 %v11919
  %v12805 = vunpack.c.h.b16 %v11919
  %v12806 = vunpack.c.l.b16 %v11920
  %v12807 = vunpack.c.h.b16 %v11920
  %v12808 = vunpack.c.l.b16 %v11921
  %v12809 = vunpack.c.h.b16 %v11921
  %v12810 = vunpack.c.l.b16 %v11922
  %v12811 = vunpack.c.h.b16 %v11922
  %v12812 = vunpack.c.l.b16 %v11923
  %v12813 = vunpack.c.h.b16 %v11923
  %v12814 = vunpack.c.l.b16 %v11924
  %v12815 = vunpack.c.h.b16 %v11924
  %v12816 = vunpack.c.l.b16 %v11925
  %v12817 = vunpack.c.h.b16 %v11925
  %v12818 = vunpack.c.l.b16 %v11926
  %v12819 = vunpack.c.h.b16 %v11926
  %v12820 = vunpack.c.l.b16 %v11927
  %v12821 = vunpack.c.h.b16 %v11927
  %v12822 = vunpack.c.l.b16 %v11928
  %v12823 = vunpack.c.h.b16 %v11928
  %v12824 = vunpack.c.l.b16 %v11929
  %v12825 = vunpack.c.h.b16 %v11929
  %v12826 = vunpack.c.l.b16 %v11930
  %v12827 = vunpack.c.h.b16 %v11930
  %v12828 = vunpack.c.l.b16 %v11931
  %v12829 = vunpack.c.h.b16 %v11931
  %v12830 = vunpack.c.l.b16 %v11932
  %v12831 = vunpack.c.h.b16 %v11932
  %v12832 = vunpack.c.l.b16 %v11933
  %v12833 = vunpack.c.h.b16 %v11933
  %v12834 = vunpack.c.l.b16 %v11934
  %v12835 = vunpack.c.h.b16 %v11934
  %v12836 = vunpack.c.l.b16 %v11935
  %v12837 = vunpack.c.h.b16 %v11935
  %v12838 = vunpack.c.l.b16 %v11936
  %v12839 = vunpack.c.h.b16 %v11936
  %v12840 = vunpack.c.l.b16 %v11937
  %v12841 = vunpack.c.h.b16 %v11937
  %v12842 = vunpack.c.l.b16 %v11938
  %v12843 = vunpack.c.h.b16 %v11938
  %v12844 = vunpack.c.l.b16 %v11939
  %v12845 = vunpack.c.h.b16 %v11939
  %v12846 = vunpack.c.l.b16 %v11940
  %v12847 = vunpack.c.h.b16 %v11940
  %v12848 = vunpack.c.l.b16 %v11941
  %v12849 = vunpack.c.h.b16 %v11941
  %v12850 = vunpack.c.l.b16 %v11942
  %v12851 = vunpack.c.h.b16 %v11942
  %v12852 = vunpack.c.l.b16 %v11943
  %v12853 = vunpack.c.h.b16 %v11943
  %v12854 = vunpack.c.l.b16 %v11944
  %v12855 = vunpack.c.h.b16 %v11944
  %v12856 = vunpack.c.l.b16 %v11945
  %v12857 = vunpack.c.h.b16 %v11945
  %v12858 = vunpack.c.l.b16 %v11946
  %v12859 = vunpack.c.h.b16 %v11946
  %v12860 = vunpack.c.l.b16 %v11947
  %v12861 = vunpack.c.h.b16 %v11947
  %v12862 = vunpack.c.l.b16 %v11948
  %v12863 = vunpack.c.h.b16 %v11948
  %v12864 = vunpack.c.l.b16 %v11949
  %v12865 = vunpack.c.h.b16 %v11949
  %v12866 = vunpack.c.l.b16 %v11950
  %v12867 = vunpack.c.h.b16 %v11950
  %v12868 = vunpack.c.l.b16 %v11951
  %v12869 = vunpack.c.h.b16 %v11951
  %v12870 = vunpack.c.l.b16 %v11952
  %v12871 = vunpack.c.h.b16 %v11952
  %v12872 = vunpack.c.l.b16 %v11953
  %v12873 = vunpack.c.h.b16 %v11953
  %v12874 = vunpack.c.l.b16 %v11954
  %v12875 = vunpack.c.h.b16 %v11954
  %v12876 = vunpack.c.l.b16 %v11955
  %v12877 = vunpack.c.h.b16 %v11955
  %v12878 = vunpack.c.l.b16 %v11956
  %v12879 = vunpack.c.h.b16 %v11956
  %v12880 = vunpack.c.l.b16 %v11957
  %v12881 = vunpack.c.h.b16 %v11957
  %v12882 = vunpack.c.l.b16 %v11958
  %v12883 = vunpack.c.h.b16 %v11958
  %v12884 = vunpack.c.l.b16 %v11959
  %v12885 = vunpack.c.h.b16 %v11959
  %v12886 = vunpack.c.l.b16 %v11960
  %v12887 = vunpack.c.h.b16 %v11960
  %v12888 = vunpack.c.l.b16 %v11961
  %v12889 = vunpack.c.h.b16 %v11961
  %v12890 = vunpack.c.l.b16 %v11962
  %v12891 = vunpack.c.h.b16 %v11962
  %v12892 = vunpack.c.l.b16 %v11963
  %v12893 = vunpack.c.h.b16 %v11963
  %v12894 = vunpack.c.l.b16 %v11964
  %v12895 = vunpack.c.h.b16 %v11964
  %v12896 = vunpack.c.l.b16 %v11965
  %v12897 = vunpack.c.h.b16 %v11965
  %v12898 = vunpack.c.l.b16 %v11966
  %v12899 = vunpack.c.h.b16 %v11966
  %v12900 = vpack.c.b16 %v12326, %v12324
  %v12901 = vpack.c.b16 %v12327, %v12325
  %v12902 = vpack.c.b16 %v12330, %v12328
  %v12903 = vpack.c.b16 %v12331, %v12329
  %v12904 = vpack.c.b16 %v12334, %v12332
  %v12905 = vpack.c.b16 %v12335, %v12333
  %v12906 = vpack.c.b16 %v12338, %v12336
  %v12907 = vpack.c.b16 %v12339, %v12337
  %v12908 = vpack.c.b16 %v12342, %v12340
  %v12909 = vpack.c.b16 %v12343, %v12341
  %v12910 = vpack.c.b16 %v12346, %v12344
  %v12911 = vpack.c.b16 %v12347, %v12345
  %v12912 = vpack.c.b16 %v12350, %v12348
  %v12913 = vpack.c.b16 %v12351, %v12349
  %v12914 = vpack.c.b16 %v12354, %v12352
  %v12915 = vpack.c.b16 %v12355, %v12353
  %v12916 = vpack.c.b16 %v12358, %v12356
  %v12917 = vpack.c.b16 %v12359, %v12357
  %v12918 = vpack.c.b16 %v12362, %v12360
  %v12919 = vpack.c.b16 %v12363, %v12361
  %v12920 = vpack.c.b16 %v12366, %v12364
  %v12921 = vpack.c.b16 %v12367, %v12365
  %v12922 = vpack.c.b16 %v12370, %v12368
  %v12923 = vpack.c.b16 %v12371, %v12369
  %v12924 = vpack.c.b16 %v12374, %v12372
  %v12925 = vpack.c.b16 %v12375, %v12373
  %v12926 = vpack.c.b16 %v12378, %v12376
  %v12927 = vpack.c.b16 %v12379, %v12377
  %v12928 = vpack.c.b16 %v12382, %v12380
  %v12929 = vpack.c.b16 %v12383, %v12381
  %v12930 = vpack.c.b16 %v12386, %v12384
  %v12931 = vpack.c.b16 %v12387, %v12385
  %v12932 = vpack.c.b16 %v12390, %v12388
  %v12933 = vpack.c.b16 %v12391, %v12389
  %v12934 = vpack.c.b16 %v12394, %v12392
  %v12935 = vpack.c.b16 %v12395, %v12393
  %v12936 = vpack.c.b16 %v12398, %v12396
  %v12937 = vpack.c.b16 %v12399, %v12397
  %v12938 = vpack.c.b16 %v12402, %v12400
  %v12939 = vpack.c.b16 %v12403, %v12401
  %v12940 = vpack.c.b16 %v12406, %v12404
  %v12941 = vpack.c.b16 %v12407, %v12405
  %v12942 = vpack.c.b16 %v12410, %v12408
  %v12943 = vpack.c.b16 %v12411, %v12409
  %v12944 = vpack.c.b16 %v12414, %v12412
  %v12945 = vpack.c.b16 %v12415, %v12413
  %v12946 = vpack.c.b16 %v12418, %v12416
  %v12947 = vpack.c.b16 %v12419, %v12417
  %v12948 = vpack.c.b16 %v12422, %v12420
  %v12949 = vpack.c.b16 %v12423, %v12421
  %v12950 = vpack.c.b16 %v12426, %v12424
  %v12951 = vpack.c.b16 %v12427, %v12425
  %v12952 = vpack.c.b16 %v12430, %v12428
  %v12953 = vpack.c.b16 %v12431, %v12429
  %v12954 = vpack.c.b16 %v12434, %v12432
  %v12955 = vpack.c.b16 %v12435, %v12433
  %v12956 = vpack.c.b16 %v12438, %v12436
  %v12957 = vpack.c.b16 %v12439, %v12437
  %v12958 = vpack.c.b16 %v12442, %v12440
  %v12959 = vpack.c.b16 %v12443, %v12441
  %v12960 = vpack.c.b16 %v12446, %v12444
  %v12961 = vpack.c.b16 %v12447, %v12445
  %v12962 = vpack.c.b16 %v12450, %v12448
  %v12963 = vpack.c.b16 %v12451, %v12449
  %v12964 = vpack.c.b16 %v12454, %v12452
  %v12965 = vpack.c.b16 %v12455, %v12453
  %v12966 = vpack.c.b16 %v12458, %v12456
  %v12967 = vpack.c.b16 %v12459, %v12457
  %v12968 = vpack.c.b16 %v12462, %v12460
  %v12969 = vpack.c.b16 %v12463, %v12461
  %v12970 = vpack.c.b16 %v12466, %v12464
  %v12971 = vpack.c.b16 %v12467, %v12465
  %v12972 = vpack.c.b16 %v12470, %v12468
  %v12973 = vpack.c.b16 %v12471, %v12469
  %v12974 = vpack.c.b16 %v12474, %v12472
  %v12975 = vpack.c.b16 %v12475, %v12473
  %v12976 = vpack.c.b16 %v12478, %v12476
  %v12977 = vpack.c.b16 %v12479, %v12477
  %v12978 = vpack.c.b16 %v12482, %v12480
  %v12979 = vpack.c.b16 %v12483, %v12481
  %v12980 = vpack.c.b16 %v12486, %v12484
  %v12981 = vpack.c.b16 %v12487, %v12485
  %v12982 = vpack.c.b16 %v12490, %v12488
  %v12983 = vpack.c.b16 %v12491, %v12489
  %v12984 = vpack.c.b16 %v12494, %v12492
  %v12985 = vpack.c.b16 %v12495, %v12493
  %v12986 = vpack.c.b16 %v12498, %v12496
  %v12987 = vpack.c.b16 %v12499, %v12497
  %v12988 = vpack.c.b16 %v12502, %v12500
  %v12989 = vpack.c.b16 %v12503, %v12501
  %v12990 = vpack.c.b16 %v12506, %v12504
  %v12991 = vpack.c.b16 %v12507, %v12505
  %v12992 = vpack.c.b16 %v12510, %v12508
  %v12993 = vpack.c.b16 %v12511, %v12509
  %v12994 = vpack.c.b16 %v12514, %v12512
  %v12995 = vpack.c.b16 %v12515, %v12513
  %v12996 = vpack.c.b16 %v12518, %v12516
  %v12997 = vpack.c.b16 %v12519, %v12517
  %v12998 = vpack.c.b16 %v12522, %v12520
  %v12999 = vpack.c.b16 %v12523, %v12521
  %v13000 = vpack.c.b16 %v12526, %v12524
  %v13001 = vpack.c.b16 %v12527, %v12525
  %v13002 = vpack.c.b16 %v12530, %v12528
  %v13003 = vpack.c.b16 %v12531, %v12529
  %v13004 = vpack.c.b16 %v12534, %v12532
  %v13005 = vpack.c.b16 %v12535, %v12533
  %v13006 = vpack.c.b16 %v12538, %v12536
  %v13007 = vpack.c.b16 %v12539, %v12537
  %v13008 = vpack.c.b16 %v12542, %v12540
  %v13009 = vpack.c.b16 %v12543, %v12541
  %v13010 = vpack.c.b16 %v12546, %v12544
  %v13011 = vpack.c.b16 %v12547, %v12545
  %v13012 = vpack.c.b16 %v12550, %v12548
  %v13013 = vpack.c.b16 %v12551, %v12549
  %v13014 = vpack.c.b16 %v12554, %v12552
  %v13015 = vpack.c.b16 %v12555, %v12553
  %v13016 = vpack.c.b16 %v12558, %v12556
  %v13017 = vpack.c.b16 %v12559, %v12557
  %v13018 = vpack.c.b16 %v12562, %v12560
  %v13019 = vpack.c.b16 %v12563, %v12561
  %v13020 = vpack.c.b16 %v12566, %v12564
  %v13021 = vpack.c.b16 %v12567, %v12565
  %v13022 = vpack.c.b16 %v12570, %v12568
  %v13023 = vpack.c.b16 %v12571, %v12569
  %v13024 = vpack.c.b16 %v12574, %v12572
  %v13025 = vpack.c.b16 %v12575, %v12573
  %v13026 = vpack.c.b16 %v12578, %v12576
  %v13027 = vpack.c.b16 %v12579, %v12577
  %v13028 = vpack.c.b16 %v12582, %v12580
  %v13029 = vpack.c.b16 %v12583, %v12581
  %v13030 = vpack.c.b16 %v12586, %v12584
  %v13031 = vpack.c.b16 %v12587, %v12585
  %v13032 = vpack.c.b16 %v12590, %v12588
  %v13033 = vpack.c.b16 %v12591, %v12589
  %v13034 = vpack.c.b16 %v12594, %v12592
  %v13035 = vpack.c.b16 %v12595, %v12593
  %v13036 = vpack.c.b16 %v12598, %v12596
  %v13037 = vpack.c.b16 %v12599, %v12597
  %v13038 = vpack.c.b16 %v12602, %v12600
  %v13039 = vpack.c.b16 %v12603, %v12601
  %v13040 = vpack.c.b16 %v12606, %v12604
  %v13041 = vpack.c.b16 %v12607, %v12605
  %v13042 = vpack.c.b16 %v12610, %v12608
  %v13043 = vpack.c.b16 %v12611, %v12609
  %v13044 = vpack.c.b16 %v12614, %v12612
  %v13045 = vpack.c.b16 %v12615, %v12613
  %v13046 = vpack.c.b16 %v12618, %v12616
  %v13047 = vpack.c.b16 %v12619, %v12617
  %v13048 = vpack.c.b16 %v12622, %v12620
  %v13049 = vpack.c.b16 %v12623, %v12621
  %v13050 = vpack.c.b16 %v12626, %v12624
  %v13051 = vpack.c.b16 %v12627, %v12625
  %v13052 = vpack.c.b16 %v12630, %v12628
  %v13053 = vpack.c.b16 %v12631, %v12629
  %v13054 = vpack.c.b16 %v12634, %v12632
  %v13055 = vpack.c.b16 %v12635, %v12633
  %v13056 = vpack.c.b16 %v12638, %v12636
  %v13057 = vpack.c.b16 %v12639, %v12637
  %v13058 = vpack.c.b16 %v12642, %v12640
  %v13059 = vpack.c.b16 %v12643, %v12641
  %v13060 = vpack.c.b16 %v12646, %v12644
  %v13061 = vpack.c.b16 %v12647, %v12645
  %v13062 = vpack.c.b16 %v12650, %v12648
  %v13063 = vpack.c.b16 %v12651, %v12649
  %v13064 = vpack.c.b16 %v12654, %v12652
  %v13065 = vpack.c.b16 %v12655, %v12653
  %v13066 = vpack.c.b16 %v12658, %v12656
  %v13067 = vpack.c.b16 %v12659, %v12657
  %v13068 = vpack.c.b16 %v12662, %v12660
  %v13069 = vpack.c.b16 %v12663, %v12661
  %v13070 = vpack.c.b16 %v12666, %v12664
  %v13071 = vpack.c.b16 %v12667, %v12665
  %v13072 = vpack.c.b16 %v12670, %v12668
  %v13073 = vpack.c.b16 %v12671, %v12669
  %v13074 = vpack.c.b16 %v12674, %v12672
  %v13075 = vpack.c.b16 %v12675, %v12673
  %v13076 = vpack.c.b16 %v12678, %v12676
  %v13077 = vpack.c.b16 %v12679, %v12677
  %v13078 = vpack.c.b16 %v12682, %v12680
  %v13079 = vpack.c.b16 %v12683, %v12681
  %v13080 = vpack.c.b16 %v12686, %v12684
  %v13081 = vpack.c.b16 %v12687, %v12685
  %v13082 = vpack.c.b16 %v12690, %v12688
  %v13083 = vpack.c.b16 %v12691, %v12689
  %v13084 = vpack.c.b16 %v12694, %v12692
  %v13085 = vpack.c.b16 %v12695, %v12693
  %v13086 = vpack.c.b16 %v12698, %v12696
  %v13087 = vpack.c.b16 %v12699, %v12697
  %v13088 = vpack.c.b16 %v12702, %v12700
  %v13089 = vpack.c.b16 %v12703, %v12701
  %v13090 = vpack.c.b16 %v12706, %v12704
  %v13091 = vpack.c.b16 %v12707, %v12705
  %v13092 = vpack.c.b16 %v12710, %v12708
  %v13093 = vpack.c.b16 %v12711, %v12709
  %v13094 = vpack.c.b16 %v12714, %v12712
  %v13095 = vpack.c.b16 %v12715, %v12713
  %v13096 = vpack.c.b16 %v12718, %v12716
  %v13097 = vpack.c.b16 %v12719, %v12717
  %v13098 = vpack.c.b16 %v12722, %v12720
  %v13099 = vpack.c.b16 %v12723, %v12721
  %v13100 = vpack.c.b16 %v12726, %v12724
  %v13101 = vpack.c.b16 %v12727, %v12725
  %v13102 = vpack.c.b16 %v12730, %v12728
  %v13103 = vpack.c.b16 %v12731, %v12729
  %v13104 = vpack.c.b16 %v12734, %v12732
  %v13105 = vpack.c.b16 %v12735, %v12733
  %v13106 = vpack.c.b16 %v12738, %v12736
  %v13107 = vpack.c.b16 %v12739, %v12737
  %v13108 = vpack.c.b16 %v12742, %v12740
  %v13109 = vpack.c.b16 %v12743, %v12741
  %v13110 = vpack.c.b16 %v12746, %v12744
  %v13111 = vpack.c.b16 %v12747, %v12745
  %v13112 = vpack.c.b16 %v12750, %v12748
  %v13113 = vpack.c.b16 %v12751, %v12749
  %v13114 = vpack.c.b16 %v12754, %v12752
  %v13115 = vpack.c.b16 %v12755, %v12753
  %v13116 = vpack.c.b16 %v12758, %v12756
  %v13117 = vpack.c.b16 %v12759, %v12757
  %v13118 = vpack.c.b16 %v12762, %v12760
  %v13119 = vpack.c.b16 %v12763, %v12761
  %v13120 = vpack.c.b16 %v12766, %v12764
  %v13121 = vpack.c.b16 %v12767, %v12765
  %v13122 = vpack.c.b16 %v12770, %v12768
  %v13123 = vpack.c.b16 %v12771, %v12769
  %v13124 = vpack.c.b16 %v12774, %v12772
  %v13125 = vpack.c.b16 %v12775, %v12773
  %v13126 = vpack.c.b16 %v12778, %v12776
  %v13127 = vpack.c.b16 %v12779, %v12777
  %v13128 = vpack.c.b16 %v12782, %v12780
  %v13129 = vpack.c.b16 %v12783, %v12781
  %v13130 = vpack.c.b16 %v12786, %v12784
  %v13131 = vpack.c.b16 %v12787, %v12785
  %v13132 = vpack.c.b16 %v12790, %v12788
  %v13133 = vpack.c.b16 %v12791, %v12789
  %v13134 = vpack.c.b16 %v12794, %v12792
  %v13135 = vpack.c.b16 %v12795, %v12793
  %v13136 = vpack.c.b16 %v12798, %v12796
  %v13137 = vpack.c.b16 %v12799, %v12797
  %v13138 = vpack.c.b16 %v12802, %v12800
  %v13139 = vpack.c.b16 %v12803, %v12801
  %v13140 = vpack.c.b16 %v12806, %v12804
  %v13141 = vpack.c.b16 %v12807, %v12805
  %v13142 = vpack.c.b16 %v12810, %v12808
  %v13143 = vpack.c.b16 %v12811, %v12809
  %v13144 = vpack.c.b16 %v12814, %v12812
  %v13145 = vpack.c.b16 %v12815, %v12813
  %v13146 = vpack.c.b16 %v12818, %v12816
  %v13147 = vpack.c.b16 %v12819, %v12817
  %v13148 = vpack.c.b16 %v12822, %v12820
  %v13149 = vpack.c.b16 %v12823, %v12821
  %v13150 = vpack.c.b16 %v12826, %v12824
  %v13151 = vpack.c.b16 %v12827, %v12825
  %v13152 = vpack.c.b16 %v12830, %v12828
  %v13153 = vpack.c.b16 %v12831, %v12829
  %v13154 = vpack.c.b16 %v12834, %v12832
  %v13155 = vpack.c.b16 %v12835, %v12833
  %v13156 = vpack.c.b16 %v12838, %v12836
  %v13157 = vpack.c.b16 %v12839, %v12837
  %v13158 = vpack.c.b16 %v12842, %v12840
  %v13159 = vpack.c.b16 %v12843, %v12841
  %v13160 = vpack.c.b16 %v12846, %v12844
  %v13161 = vpack.c.b16 %v12847, %v12845
  %v13162 = vpack.c.b16 %v12850, %v12848
  %v13163 = vpack.c.b16 %v12851, %v12849
  %v13164 = vpack.c.b16 %v12854, %v12852
  %v13165 = vpack.c.b16 %v12855, %v12853
  %v13166 = vpack.c.b16 %v12858, %v12856
  %v13167 = vpack.c.b16 %v12859, %v12857
  %v13168 = vpack.c.b16 %v12862, %v12860
  %v13169 = vpack.c.b16 %v12863, %v12861
  %v13170 = vpack.c.b16 %v12866, %v12864
  %v13171 = vpack.c.b16 %v12867, %v12865
  %v13172 = vpack.c.b16 %v12870, %v12868
  %v13173 = vpack.c.b16 %v12871, %v12869
  %v13174 = vpack.c.b16 %v12874, %v12872
  %v13175 = vpack.c.b16 %v12875, %v12873
  %v13176 = vpack.c.b16 %v12878, %v12876
  %v13177 = vpack.c.b16 %v12879, %v12877
  %v13178 = vpack.c.b16 %v12882, %v12880
  %v13179 = vpack.c.b16 %v12883, %v12881
  %v13180 = vpack.c.b16 %v12886, %v12884
  %v13181 = vpack.c.b16 %v12887, %v12885
  %v13182 = vpack.c.b16 %v12890, %v12888
  %v13183 = vpack.c.b16 %v12891, %v12889
  %v13184 = vpack.c.b16 %v12894, %v12892
  %v13185 = vpack.c.b16 %v12895, %v12893
  %v13186 = vpack.c.b16 %v12898, %v12896
  %v13187 = vpack.c.b16 %v12899, %v12897
  %13476 = vmatpush.bf16.msra.mxu0 %v12914
  %13477 = vmatpush.bf16.msra.mxu0 %v12912
  %13478 = vmatpush.bf16.msra.mxu0 %v12910
  %13479 = vmatpush.bf16.msra.mxu0 %v12908
  %13480 = vmatpush.bf16.msra.mxu0 %v12906
  %13481 = vmatpush.bf16.msra.mxu0 %v12904
  %13482 = vmatpush.bf16.msra.mxu0 %v12902
  %13483 = vmatpush.bf16.msra.mxu0 %v12900
  %13484 = vmatmul.bf16.gmra.mxu0 %v12000
  %v13485 = vpop.f32.mrf.mxu0
  %v13486 = vadd.f32 %v11969, %v13485
  %v13487 = vpop.f32.mrf.mxu0
  %13488 = vdwg.mxu0
  %13489 = vmatpush.bf16.msra.mxu0 %v12930
  %13490 = vmatpush.bf16.msra.mxu0 %v12928
  %13491 = vmatpush.bf16.msra.mxu0 %v12926
  %13492 = vmatpush.bf16.msra.mxu0 %v12924
  %13493 = vmatpush.bf16.msra.mxu0 %v12922
  %13494 = vmatpush.bf16.msra.mxu0 %v12920
  %13495 = vmatpush.bf16.msra.mxu0 %v12918
  %13496 = vmatpush.bf16.msra.mxu0 %v12916
  %13497 = vmatmul.bf16.gmra.mxu0 %v12001
  %v13498 = vpop.f32.mrf.mxu0
  %v13499 = vadd.f32 %v13486, %v13498
  %v13500 = vpop.f32.mrf.mxu0
  %13501 = vdwg.mxu0
  %13502 = vmatpush.bf16.msra.mxu0 %v12946
  %13503 = vmatpush.bf16.msra.mxu0 %v12944
  %13504 = vmatpush.bf16.msra.mxu0 %v12942
  %13505 = vmatpush.bf16.msra.mxu0 %v12940
  %13506 = vmatpush.bf16.msra.mxu0 %v12938
  %13507 = vmatpush.bf16.msra.mxu0 %v12936
  %13508 = vmatpush.bf16.msra.mxu0 %v12934
  %13509 = vmatpush.bf16.msra.mxu0 %v12932
  %13510 = vmatmul.bf16.gmra.mxu0 %v12002
  %v13511 = vpop.f32.mrf.mxu0
  %v13512 = vadd.f32 %v13499, %v13511
  %v13513 = vpop.f32.mrf.mxu0
  %13514 = vdwg.mxu0
  %13515 = vmatpush.bf16.msra.mxu0 %v12962
  %13516 = vmatpush.bf16.msra.mxu0 %v12960
  %13517 = vmatpush.bf16.msra.mxu0 %v12958
  %13518 = vmatpush.bf16.msra.mxu0 %v12956
  %13519 = vmatpush.bf16.msra.mxu0 %v12954
  %13520 = vmatpush.bf16.msra.mxu0 %v12952
  %13521 = vmatpush.bf16.msra.mxu0 %v12950
  %13522 = vmatpush.bf16.msra.mxu0 %v12948
  %13523 = vmatmul.bf16.gmra.mxu0 %v12003
  %v13524 = vpop.f32.mrf.mxu0
  %v13525 = vadd.f32 %v13512, %v13524
  %v13526 = vpop.f32.mrf.mxu0
  %13527 = vdwg.mxu0
  %13528 = vmatpush.bf16.msra.mxu0 %v12978
  %13529 = vmatpush.bf16.msra.mxu0 %v12976
  %13530 = vmatpush.bf16.msra.mxu0 %v12974
  %13531 = vmatpush.bf16.msra.mxu0 %v12972
  %13532 = vmatpush.bf16.msra.mxu0 %v12970
  %13533 = vmatpush.bf16.msra.mxu0 %v12968
  %13534 = vmatpush.bf16.msra.mxu0 %v12966
  %13535 = vmatpush.bf16.msra.mxu0 %v12964
  %13536 = vmatmul.bf16.gmra.mxu0 %v12004
  %v13537 = vpop.f32.mrf.mxu0
  %v13538 = vadd.f32 %v13525, %v13537
  %v13539 = vpop.f32.mrf.mxu0
  %13540 = vdwg.mxu0
  %13541 = vmatpush.bf16.msra.mxu0 %v12994
  %13542 = vmatpush.bf16.msra.mxu0 %v12992
  %13543 = vmatpush.bf16.msra.mxu0 %v12990
  %13544 = vmatpush.bf16.msra.mxu0 %v12988
  %13545 = vmatpush.bf16.msra.mxu0 %v12986
  %13546 = vmatpush.bf16.msra.mxu0 %v12984
  %13547 = vmatpush.bf16.msra.mxu0 %v12982
  %13548 = vmatpush.bf16.msra.mxu0 %v12980
  %13549 = vmatmul.bf16.gmra.mxu0 %v12005
  %v13550 = vpop.f32.mrf.mxu0
  %v13551 = vadd.f32 %v13538, %v13550
  %v13552 = vpop.f32.mrf.mxu0
  %13553 = vdwg.mxu0
  %13554 = vmatpush.bf16.msra.mxu0 %v13010
  %13555 = vmatpush.bf16.msra.mxu0 %v13008
  %13556 = vmatpush.bf16.msra.mxu0 %v13006
  %13557 = vmatpush.bf16.msra.mxu0 %v13004
  %13558 = vmatpush.bf16.msra.mxu0 %v13002
  %13559 = vmatpush.bf16.msra.mxu0 %v13000
  %13560 = vmatpush.bf16.msra.mxu0 %v12998
  %13561 = vmatpush.bf16.msra.mxu0 %v12996
  %13562 = vmatmul.bf16.gmra.mxu0 %v12006
  %v13563 = vpop.f32.mrf.mxu0
  %v13564 = vadd.f32 %v13551, %v13563
  %v13565 = vpop.f32.mrf.mxu0
  %13566 = vdwg.mxu0
  %13567 = vmatpush.bf16.msra.mxu0 %v13026
  %13568 = vmatpush.bf16.msra.mxu0 %v13024
  %13569 = vmatpush.bf16.msra.mxu0 %v13022
  %13570 = vmatpush.bf16.msra.mxu0 %v13020
  %13571 = vmatpush.bf16.msra.mxu0 %v13018
  %13572 = vmatpush.bf16.msra.mxu0 %v13016
  %13573 = vmatpush.bf16.msra.mxu0 %v13014
  %13574 = vmatpush.bf16.msra.mxu0 %v13012
  %13575 = vmatmul.bf16.gmra.mxu0 %v12007
  %v13576 = vpop.f32.mrf.mxu0
  %v13577 = vadd.f32 %v13564, %v13576
  %v13578 = vpop.f32.mrf.mxu0
  %13579 = vdwg.mxu0
  %13580 = vmatpush.bf16.msra.mxu0 %v13042
  %13581 = vmatpush.bf16.msra.mxu0 %v13040
  %13582 = vmatpush.bf16.msra.mxu0 %v13038
  %13583 = vmatpush.bf16.msra.mxu0 %v13036
  %13584 = vmatpush.bf16.msra.mxu0 %v13034
  %13585 = vmatpush.bf16.msra.mxu0 %v13032
  %13586 = vmatpush.bf16.msra.mxu0 %v13030
  %13587 = vmatpush.bf16.msra.mxu0 %v13028
  %13588 = vmatmul.bf16.gmra.mxu0 %v12008
  %v13589 = vpop.f32.mrf.mxu0
  %v13590 = vadd.f32 %v13577, %v13589
  %v13591 = vpop.f32.mrf.mxu0
  %13592 = vdwg.mxu0
  %13593 = vmatpush.bf16.msra.mxu0 %v13058
  %13594 = vmatpush.bf16.msra.mxu0 %v13056
  %13595 = vmatpush.bf16.msra.mxu0 %v13054
  %13596 = vmatpush.bf16.msra.mxu0 %v13052
  %13597 = vmatpush.bf16.msra.mxu0 %v13050
  %13598 = vmatpush.bf16.msra.mxu0 %v13048
  %13599 = vmatpush.bf16.msra.mxu0 %v13046
  %13600 = vmatpush.bf16.msra.mxu0 %v13044
  %13601 = vmatmul.bf16.gmra.mxu0 %v12009
  %v13602 = vpop.f32.mrf.mxu0
  %v13603 = vadd.f32 %v13590, %v13602
  %v13604 = vpop.f32.mrf.mxu0
  %13605 = vdwg.mxu0
  %13606 = vmatpush.bf16.msra.mxu0 %v13074
  %13607 = vmatpush.bf16.msra.mxu0 %v13072
  %13608 = vmatpush.bf16.msra.mxu0 %v13070
  %13609 = vmatpush.bf16.msra.mxu0 %v13068
  %13610 = vmatpush.bf16.msra.mxu0 %v13066
  %13611 = vmatpush.bf16.msra.mxu0 %v13064
  %13612 = vmatpush.bf16.msra.mxu0 %v13062
  %13613 = vmatpush.bf16.msra.mxu0 %v13060
  %13614 = vmatmul.bf16.gmra.mxu0 %v12010
  %v13615 = vpop.f32.mrf.mxu0
  %v13616 = vadd.f32 %v13603, %v13615
  %v13617 = vpop.f32.mrf.mxu0
  %13618 = vdwg.mxu0
  %13619 = vmatpush.bf16.msra.mxu0 %v13090
  %13620 = vmatpush.bf16.msra.mxu0 %v13088
  %13621 = vmatpush.bf16.msra.mxu0 %v13086
  %13622 = vmatpush.bf16.msra.mxu0 %v13084
  %13623 = vmatpush.bf16.msra.mxu0 %v13082
  %13624 = vmatpush.bf16.msra.mxu0 %v13080
  %13625 = vmatpush.bf16.msra.mxu0 %v13078
  %13626 = vmatpush.bf16.msra.mxu0 %v13076
  %13627 = vmatmul.bf16.gmra.mxu0 %v12011
  %v13628 = vpop.f32.mrf.mxu0
  %v13629 = vadd.f32 %v13616, %v13628
  %v13630 = vpop.f32.mrf.mxu0
  %13631 = vdwg.mxu0
  %13632 = vmatpush.bf16.msra.mxu0 %v13106
  %13633 = vmatpush.bf16.msra.mxu0 %v13104
  %13634 = vmatpush.bf16.msra.mxu0 %v13102
  %13635 = vmatpush.bf16.msra.mxu0 %v13100
  %13636 = vmatpush.bf16.msra.mxu0 %v13098
  %13637 = vmatpush.bf16.msra.mxu0 %v13096
  %13638 = vmatpush.bf16.msra.mxu0 %v13094
  %13639 = vmatpush.bf16.msra.mxu0 %v13092
  %13640 = vmatmul.bf16.gmra.mxu0 %v12012
  %v13641 = vpop.f32.mrf.mxu0
  %v13642 = vadd.f32 %v13629, %v13641
  %v13643 = vpop.f32.mrf.mxu0
  %13644 = vdwg.mxu0
  %13645 = vmatpush.bf16.msra.mxu0 %v13122
  %13646 = vmatpush.bf16.msra.mxu0 %v13120
  %13647 = vmatpush.bf16.msra.mxu0 %v13118
  %13648 = vmatpush.bf16.msra.mxu0 %v13116
  %13649 = vmatpush.bf16.msra.mxu0 %v13114
  %13650 = vmatpush.bf16.msra.mxu0 %v13112
  %13651 = vmatpush.bf16.msra.mxu0 %v13110
  %13652 = vmatpush.bf16.msra.mxu0 %v13108
  %13653 = vmatmul.bf16.gmra.mxu0 %v12013
  %v13654 = vpop.f32.mrf.mxu0
  %v13655 = vadd.f32 %v13642, %v13654
  %v13656 = vpop.f32.mrf.mxu0
  %13657 = vdwg.mxu0
  %13658 = vmatpush.bf16.msra.mxu0 %v13138
  %13659 = vmatpush.bf16.msra.mxu0 %v13136
  %13660 = vmatpush.bf16.msra.mxu0 %v13134
  %13661 = vmatpush.bf16.msra.mxu0 %v13132
  %13662 = vmatpush.bf16.msra.mxu0 %v13130
  %13663 = vmatpush.bf16.msra.mxu0 %v13128
  %13664 = vmatpush.bf16.msra.mxu0 %v13126
  %13665 = vmatpush.bf16.msra.mxu0 %v13124
  %13666 = vmatmul.bf16.gmra.mxu0 %v12014
  %v13667 = vpop.f32.mrf.mxu0
  %v13668 = vadd.f32 %v13655, %v13667
  %v13669 = vpop.f32.mrf.mxu0
  %13670 = vdwg.mxu0
  %13671 = vmatpush.bf16.msra.mxu0 %v13154
  %13672 = vmatpush.bf16.msra.mxu0 %v13152
  %13673 = vmatpush.bf16.msra.mxu0 %v13150
  %13674 = vmatpush.bf16.msra.mxu0 %v13148
  %13675 = vmatpush.bf16.msra.mxu0 %v13146
  %13676 = vmatpush.bf16.msra.mxu0 %v13144
  %13677 = vmatpush.bf16.msra.mxu0 %v13142
  %13678 = vmatpush.bf16.msra.mxu0 %v13140
  %13679 = vmatmul.bf16.gmra.mxu0 %v12015
  %v13680 = vpop.f32.mrf.mxu0
  %v13681 = vadd.f32 %v13668, %v13680
  %v13682 = vpop.f32.mrf.mxu0
  %13683 = vdwg.mxu0
  %13684 = vmatpush.bf16.msra.mxu0 %v13170
  %13685 = vmatpush.bf16.msra.mxu0 %v13168
  %13686 = vmatpush.bf16.msra.mxu0 %v13166
  %13687 = vmatpush.bf16.msra.mxu0 %v13164
  %13688 = vmatpush.bf16.msra.mxu0 %v13162
  %13689 = vmatpush.bf16.msra.mxu0 %v13160
  %13690 = vmatpush.bf16.msra.mxu0 %v13158
  %13691 = vmatpush.bf16.msra.mxu0 %v13156
  %13692 = vmatmul.bf16.gmra.mxu0 %v12016
  %v13693 = vpop.f32.mrf.mxu0
  %v13694 = vadd.f32 %v13681, %v13693
  %v13695 = vpop.f32.mrf.mxu0
  %13696 = vdwg.mxu0
  %13697 = vmatpush.bf16.msra.mxu0 %v13186
  %13698 = vmatpush.bf16.msra.mxu0 %v13184
  %13699 = vmatpush.bf16.msra.mxu0 %v13182
  %13700 = vmatpush.bf16.msra.mxu0 %v13180
  %13701 = vmatpush.bf16.msra.mxu0 %v13178
  %13702 = vmatpush.bf16.msra.mxu0 %v13176
  %13703 = vmatpush.bf16.msra.mxu0 %v13174
  %13704 = vmatpush.bf16.msra.mxu0 %v13172
  %13705 = vmatmul.bf16.gmra.mxu0 %v12017
  %v13706 = vpop.f32.mrf.mxu0
  %v13707 = vadd.f32 %v13694, %v13706
  %v13708 = vpop.f32.mrf.mxu0
  %13709 = vdwg.mxu0
  %13710 = vmatpush.bf16.msra.mxu0 %v12915
  %13711 = vmatpush.bf16.msra.mxu0 %v12913
  %13712 = vmatpush.bf16.msra.mxu0 %v12911
  %13713 = vmatpush.bf16.msra.mxu0 %v12909
  %13714 = vmatpush.bf16.msra.mxu0 %v12907
  %13715 = vmatpush.bf16.msra.mxu0 %v12905
  %13716 = vmatpush.bf16.msra.mxu0 %v12903
  %13717 = vmatpush.bf16.msra.mxu0 %v12901
  %13718 = vmatmul.bf16.gmra.mxu0 %v12000
  %v13719 = vpop.f32.mrf.mxu0
  %v13720 = vadd.f32 %v11970, %v13719
  %v13721 = vpop.f32.mrf.mxu0
  %13722 = vdwg.mxu0
  %13723 = vmatpush.bf16.msra.mxu0 %v12931
  %13724 = vmatpush.bf16.msra.mxu0 %v12929
  %13725 = vmatpush.bf16.msra.mxu0 %v12927
  %13726 = vmatpush.bf16.msra.mxu0 %v12925
  %13727 = vmatpush.bf16.msra.mxu0 %v12923
  %13728 = vmatpush.bf16.msra.mxu0 %v12921
  %13729 = vmatpush.bf16.msra.mxu0 %v12919
  %13730 = vmatpush.bf16.msra.mxu0 %v12917
  %13731 = vmatmul.bf16.gmra.mxu0 %v12001
  %v13732 = vpop.f32.mrf.mxu0
  %v13733 = vadd.f32 %v13720, %v13732
  %v13734 = vpop.f32.mrf.mxu0
  %13735 = vdwg.mxu0
  %13736 = vmatpush.bf16.msra.mxu0 %v12947
  %13737 = vmatpush.bf16.msra.mxu0 %v12945
  %13738 = vmatpush.bf16.msra.mxu0 %v12943
  %13739 = vmatpush.bf16.msra.mxu0 %v12941
  %13740 = vmatpush.bf16.msra.mxu0 %v12939
  %13741 = vmatpush.bf16.msra.mxu0 %v12937
  %13742 = vmatpush.bf16.msra.mxu0 %v12935
  %13743 = vmatpush.bf16.msra.mxu0 %v12933
  %13744 = vmatmul.bf16.gmra.mxu0 %v12002
  %v13745 = vpop.f32.mrf.mxu0
  %v13746 = vadd.f32 %v13733, %v13745
  %v13747 = vpop.f32.mrf.mxu0
  %13748 = vdwg.mxu0
  %13749 = vmatpush.bf16.msra.mxu0 %v12963
  %13750 = vmatpush.bf16.msra.mxu0 %v12961
  %13751 = vmatpush.bf16.msra.mxu0 %v12959
  %13752 = vmatpush.bf16.msra.mxu0 %v12957
  %13753 = vmatpush.bf16.msra.mxu0 %v12955
  %13754 = vmatpush.bf16.msra.mxu0 %v12953
  %13755 = vmatpush.bf16.msra.mxu0 %v12951
  %13756 = vmatpush.bf16.msra.mxu0 %v12949
  %13757 = vmatmul.bf16.gmra.mxu0 %v12003
  %v13758 = vpop.f32.mrf.mxu0
  %v13759 = vadd.f32 %v13746, %v13758
  %v13760 = vpop.f32.mrf.mxu0
  %13761 = vdwg.mxu0
  %13762 = vmatpush.bf16.msra.mxu0 %v12979
  %13763 = vmatpush.bf16.msra.mxu0 %v12977
  %13764 = vmatpush.bf16.msra.mxu0 %v12975
  %13765 = vmatpush.bf16.msra.mxu0 %v12973
  %13766 = vmatpush.bf16.msra.mxu0 %v12971
  %13767 = vmatpush.bf16.msra.mxu0 %v12969
  %13768 = vmatpush.bf16.msra.mxu0 %v12967
  %13769 = vmatpush.bf16.msra.mxu0 %v12965
  %13770 = vmatmul.bf16.gmra.mxu0 %v12004
  %v13771 = vpop.f32.mrf.mxu0
  %v13772 = vadd.f32 %v13759, %v13771
  %v13773 = vpop.f32.mrf.mxu0
  %13774 = vdwg.mxu0
  %13775 = vmatpush.bf16.msra.mxu0 %v12995
  %13776 = vmatpush.bf16.msra.mxu0 %v12993
  %13777 = vmatpush.bf16.msra.mxu0 %v12991
  %13778 = vmatpush.bf16.msra.mxu0 %v12989
  %13779 = vmatpush.bf16.msra.mxu0 %v12987
  %13780 = vmatpush.bf16.msra.mxu0 %v12985
  %13781 = vmatpush.bf16.msra.mxu0 %v12983
  %13782 = vmatpush.bf16.msra.mxu0 %v12981
  %13783 = vmatmul.bf16.gmra.mxu0 %v12005
  %v13784 = vpop.f32.mrf.mxu0
  %v13785 = vadd.f32 %v13772, %v13784
  %v13786 = vpop.f32.mrf.mxu0
  %13787 = vdwg.mxu0
  %13788 = vmatpush.bf16.msra.mxu0 %v13011
  %13789 = vmatpush.bf16.msra.mxu0 %v13009
  %13790 = vmatpush.bf16.msra.mxu0 %v13007
  %13791 = vmatpush.bf16.msra.mxu0 %v13005
  %13792 = vmatpush.bf16.msra.mxu0 %v13003
  %13793 = vmatpush.bf16.msra.mxu0 %v13001
  %13794 = vmatpush.bf16.msra.mxu0 %v12999
  %13795 = vmatpush.bf16.msra.mxu0 %v12997
  %13796 = vmatmul.bf16.gmra.mxu0 %v12006
  %v13797 = vpop.f32.mrf.mxu0
  %v13798 = vadd.f32 %v13785, %v13797
  %v13799 = vpop.f32.mrf.mxu0
  %13800 = vdwg.mxu0
  %13801 = vmatpush.bf16.msra.mxu0 %v13027
  %13802 = vmatpush.bf16.msra.mxu0 %v13025
  %13803 = vmatpush.bf16.msra.mxu0 %v13023
  %13804 = vmatpush.bf16.msra.mxu0 %v13021
  %13805 = vmatpush.bf16.msra.mxu0 %v13019
  %13806 = vmatpush.bf16.msra.mxu0 %v13017
  %13807 = vmatpush.bf16.msra.mxu0 %v13015
  %13808 = vmatpush.bf16.msra.mxu0 %v13013
  %13809 = vmatmul.bf16.gmra.mxu0 %v12007
  %v13810 = vpop.f32.mrf.mxu0
  %v13811 = vadd.f32 %v13798, %v13810
  %v13812 = vpop.f32.mrf.mxu0
  %13813 = vdwg.mxu0
  %13814 = vmatpush.bf16.msra.mxu0 %v13043
  %13815 = vmatpush.bf16.msra.mxu0 %v13041
  %13816 = vmatpush.bf16.msra.mxu0 %v13039
  %13817 = vmatpush.bf16.msra.mxu0 %v13037
  %13818 = vmatpush.bf16.msra.mxu0 %v13035
  %13819 = vmatpush.bf16.msra.mxu0 %v13033
  %13820 = vmatpush.bf16.msra.mxu0 %v13031
  %13821 = vmatpush.bf16.msra.mxu0 %v13029
  %13822 = vmatmul.bf16.gmra.mxu0 %v12008
  %v13823 = vpop.f32.mrf.mxu0
  %v13824 = vadd.f32 %v13811, %v13823
  %v13825 = vpop.f32.mrf.mxu0
  %13826 = vdwg.mxu0
  %13827 = vmatpush.bf16.msra.mxu0 %v13059
  %13828 = vmatpush.bf16.msra.mxu0 %v13057
  %13829 = vmatpush.bf16.msra.mxu0 %v13055
  %13830 = vmatpush.bf16.msra.mxu0 %v13053
  %13831 = vmatpush.bf16.msra.mxu0 %v13051
  %13832 = vmatpush.bf16.msra.mxu0 %v13049
  %13833 = vmatpush.bf16.msra.mxu0 %v13047
  %13834 = vmatpush.bf16.msra.mxu0 %v13045
  %13835 = vmatmul.bf16.gmra.mxu0 %v12009
  %v13836 = vpop.f32.mrf.mxu0
  %v13837 = vadd.f32 %v13824, %v13836
  %v13838 = vpop.f32.mrf.mxu0
  %13839 = vdwg.mxu0
  %13840 = vmatpush.bf16.msra.mxu0 %v13075
  %13841 = vmatpush.bf16.msra.mxu0 %v13073
  %13842 = vmatpush.bf16.msra.mxu0 %v13071
  %13843 = vmatpush.bf16.msra.mxu0 %v13069
  %13844 = vmatpush.bf16.msra.mxu0 %v13067
  %13845 = vmatpush.bf16.msra.mxu0 %v13065
  %13846 = vmatpush.bf16.msra.mxu0 %v13063
  %13847 = vmatpush.bf16.msra.mxu0 %v13061
  %13848 = vmatmul.bf16.gmra.mxu0 %v12010
  %v13849 = vpop.f32.mrf.mxu0
  %v13850 = vadd.f32 %v13837, %v13849
  %v13851 = vpop.f32.mrf.mxu0
  %13852 = vdwg.mxu0
  %13853 = vmatpush.bf16.msra.mxu0 %v13091
  %13854 = vmatpush.bf16.msra.mxu0 %v13089
  %13855 = vmatpush.bf16.msra.mxu0 %v13087
  %13856 = vmatpush.bf16.msra.mxu0 %v13085
  %13857 = vmatpush.bf16.msra.mxu0 %v13083
  %13858 = vmatpush.bf16.msra.mxu0 %v13081
  %13859 = vmatpush.bf16.msra.mxu0 %v13079
  %13860 = vmatpush.bf16.msra.mxu0 %v13077
  %13861 = vmatmul.bf16.gmra.mxu0 %v12011
  %v13862 = vpop.f32.mrf.mxu0
  %v13863 = vadd.f32 %v13850, %v13862
  %v13864 = vpop.f32.mrf.mxu0
  %13865 = vdwg.mxu0
  %13866 = vmatpush.bf16.msra.mxu0 %v13107
  %13867 = vmatpush.bf16.msra.mxu0 %v13105
  %13868 = vmatpush.bf16.msra.mxu0 %v13103
  %13869 = vmatpush.bf16.msra.mxu0 %v13101
  %13870 = vmatpush.bf16.msra.mxu0 %v13099
  %13871 = vmatpush.bf16.msra.mxu0 %v13097
  %13872 = vmatpush.bf16.msra.mxu0 %v13095
  %13873 = vmatpush.bf16.msra.mxu0 %v13093
  %13874 = vmatmul.bf16.gmra.mxu0 %v12012
  %v13875 = vpop.f32.mrf.mxu0
  %v13876 = vadd.f32 %v13863, %v13875
  %v13877 = vpop.f32.mrf.mxu0
  %13878 = vdwg.mxu0
  %13879 = vmatpush.bf16.msra.mxu0 %v13123
  %13880 = vmatpush.bf16.msra.mxu0 %v13121
  %13881 = vmatpush.bf16.msra.mxu0 %v13119
  %13882 = vmatpush.bf16.msra.mxu0 %v13117
  %13883 = vmatpush.bf16.msra.mxu0 %v13115
  %13884 = vmatpush.bf16.msra.mxu0 %v13113
  %13885 = vmatpush.bf16.msra.mxu0 %v13111
  %13886 = vmatpush.bf16.msra.mxu0 %v13109
  %13887 = vmatmul.bf16.gmra.mxu0 %v12013
  %v13888 = vpop.f32.mrf.mxu0
  %v13889 = vadd.f32 %v13876, %v13888
  %v13890 = vpop.f32.mrf.mxu0
  %13891 = vdwg.mxu0
  %13892 = vmatpush.bf16.msra.mxu0 %v13139
  %13893 = vmatpush.bf16.msra.mxu0 %v13137
  %13894 = vmatpush.bf16.msra.mxu0 %v13135
  %13895 = vmatpush.bf16.msra.mxu0 %v13133
  %13896 = vmatpush.bf16.msra.mxu0 %v13131
  %13897 = vmatpush.bf16.msra.mxu0 %v13129
  %13898 = vmatpush.bf16.msra.mxu0 %v13127
  %13899 = vmatpush.bf16.msra.mxu0 %v13125
  %13900 = vmatmul.bf16.gmra.mxu0 %v12014
  %v13901 = vpop.f32.mrf.mxu0
  %v13902 = vadd.f32 %v13889, %v13901
  %v13903 = vpop.f32.mrf.mxu0
  %13904 = vdwg.mxu0
  %13905 = vmatpush.bf16.msra.mxu0 %v13155
  %13906 = vmatpush.bf16.msra.mxu0 %v13153
  %13907 = vmatpush.bf16.msra.mxu0 %v13151
  %13908 = vmatpush.bf16.msra.mxu0 %v13149
  %13909 = vmatpush.bf16.msra.mxu0 %v13147
  %13910 = vmatpush.bf16.msra.mxu0 %v13145
  %13911 = vmatpush.bf16.msra.mxu0 %v13143
  %13912 = vmatpush.bf16.msra.mxu0 %v13141
  %13913 = vmatmul.bf16.gmra.mxu0 %v12015
  %v13914 = vpop.f32.mrf.mxu0
  %v13915 = vadd.f32 %v13902, %v13914
  %v13916 = vpop.f32.mrf.mxu0
  %13917 = vdwg.mxu0
  %13918 = vmatpush.bf16.msra.mxu0 %v13171
  %13919 = vmatpush.bf16.msra.mxu0 %v13169
  %13920 = vmatpush.bf16.msra.mxu0 %v13167
  %13921 = vmatpush.bf16.msra.mxu0 %v13165
  %13922 = vmatpush.bf16.msra.mxu0 %v13163
  %13923 = vmatpush.bf16.msra.mxu0 %v13161
  %13924 = vmatpush.bf16.msra.mxu0 %v13159
  %13925 = vmatpush.bf16.msra.mxu0 %v13157
  %13926 = vmatmul.bf16.gmra.mxu0 %v12016
  %v13927 = vpop.f32.mrf.mxu0
  %v13928 = vadd.f32 %v13915, %v13927
  %v13929 = vpop.f32.mrf.mxu0
  %13930 = vdwg.mxu0
  %13931 = vmatpush.bf16.msra.mxu0 %v13187
  %13932 = vmatpush.bf16.msra.mxu0 %v13185
  %13933 = vmatpush.bf16.msra.mxu0 %v13183
  %13934 = vmatpush.bf16.msra.mxu0 %v13181
  %13935 = vmatpush.bf16.msra.mxu0 %v13179
  %13936 = vmatpush.bf16.msra.mxu0 %v13177
  %13937 = vmatpush.bf16.msra.mxu0 %v13175
  %13938 = vmatpush.bf16.msra.mxu0 %v13173
  %13939 = vmatmul.bf16.gmra.mxu0 %v12017
  %v13940 = vpop.f32.mrf.mxu0
  %v13941 = vadd.f32 %v13928, %v13940
  %v13942 = vpop.f32.mrf.mxu0
  %13943 = vdwg.mxu0
  %v13944 = vmax.f32 %v13707, 0.0
  %v13945 = vmax.f32 %v13941, 0.0
  %v13948 = vrot.slane %v13944, 2
  %v13949 = vrot.slane %v13945, 2
  %v13952 = vmax.f32 %v13944, %v13948
  %v13953 = vmax.f32 %v13945, %v13949
  %v13956 = vrot.slane %v13952, 4
  %v13957 = vrot.slane %v13953, 4
  %v13960 = vmax.f32 %v13952, %v13956
  %v13961 = vmax.f32 %v13953, %v13957
  %v13962 = vpack.c.bf16 %v13960, %v13960
  %v13963 = vpack.c.bf16 %v13961, %v13961
  %v13964 = vld [vmem:[%s12] sm:$0xf]
  %v13965 = vld [vmem:[%s12 + $0x4] sm:$0xf]
  %v13966 = vld [vmem:[%s12 + $0x8] sm:$0xf]
  %v13967 = vld [vmem:[%s12 + $0xc] sm:$0xf]
  %v13968 = vld [vmem:[%s12 + $0x10] sm:$0xf]
  %v13969 = vld [vmem:[%s12 + $0x14] sm:$0xf]
  %v13970 = vld [vmem:[%s12 + $0x18] sm:$0xf]
  %v13971 = vld [vmem:[%s12 + $0x1c] sm:$0xf]
  %v13972 = vld [vmem:[%s12 + $0x20] sm:$0xf]
  %v13973 = vld [vmem:[%s12 + $0x24] sm:$0xf]
  %v13974 = vld [vmem:[%s12 + $0x28] sm:$0xf]
  %v13975 = vld [vmem:[%s12 + $0x2c] sm:$0xf]
  %v13976 = vld [vmem:[%s12 + $0x30] sm:$0xf]
  %v13977 = vld [vmem:[%s12 + $0x34] sm:$0xf]
  %v13978 = vld [vmem:[%s12 + $0x38] sm:$0xf]
  %v13979 = vld [vmem:[%s12 + $0x3c] sm:$0xf]
  %v13980 = vld [vmem:[%s12 + $0x40] sm:$0xf]
  %v13981 = vld [vmem:[%s12 + $0x44] sm:$0xf]
  %v13982 = vld [vmem:[%s12 + $0x48] sm:$0xf]
  %v13983 = vld [vmem:[%s12 + $0x4c] sm:$0xf]
  %v13984 = vld [vmem:[%s12 + $0x50] sm:$0xf]
  %v13985 = vld [vmem:[%s12 + $0x54] sm:$0xf]
  %v13986 = vld [vmem:[%s12 + $0x58] sm:$0xf]
  %v13987 = vld [vmem:[%s12 + $0x5c] sm:$0xf]
  %v13988 = vld [vmem:[%s12 + $0x60] sm:$0xf]
  %v13989 = vld [vmem:[%s12 + $0x64] sm:$0xf]
  %v13990 = vld [vmem:[%s12 + $0x68] sm:$0xf]
  %v13991 = vld [vmem:[%s12 + $0x6c] sm:$0xf]
  %v13992 = vld [vmem:[%s12 + $0x70] sm:$0xf]
  %v13993 = vld [vmem:[%s12 + $0x74] sm:$0xf]
  %v13994 = vld [vmem:[%s12 + $0x78] sm:$0xf]
  %v13995 = vld [vmem:[%s12 + $0x7c] sm:$0xf]
  %v13996 = vld [vmem:[%s13] sm:$0x1]
  %v13998 = vperm.slane %v13996, 0
  %v14032 = vunpack.c.l.b16 %v13964
  %v14033 = vunpack.c.l.b16 %v13965
  %v14034 = vunpack.c.l.b16 %v13966
  %v14035 = vunpack.c.l.b16 %v13967
  %v14036 = vunpack.c.l.b16 %v13968
  %v14037 = vunpack.c.l.b16 %v13969
  %v14038 = vunpack.c.l.b16 %v13970
  %v14039 = vunpack.c.l.b16 %v13971
  %v14040 = vunpack.c.l.b16 %v13972
  %v14041 = vunpack.c.l.b16 %v13973
  %v14042 = vunpack.c.l.b16 %v13974
  %v14043 = vunpack.c.l.b16 %v13975
  %v14044 = vunpack.c.l.b16 %v13976
  %v14045 = vunpack.c.l.b16 %v13977
  %v14046 = vunpack.c.l.b16 %v13978
  %v14047 = vunpack.c.l.b16 %v13979
  %v14048 = vunpack.c.l.b16 %v13980
  %v14049 = vunpack.c.l.b16 %v13981
  %v14050 = vunpack.c.l.b16 %v13982
  %v14051 = vunpack.c.l.b16 %v13983
  %v14052 = vunpack.c.l.b16 %v13984
  %v14053 = vunpack.c.l.b16 %v13985
  %v14054 = vunpack.c.l.b16 %v13986
  %v14055 = vunpack.c.l.b16 %v13987
  %v14056 = vunpack.c.l.b16 %v13988
  %v14057 = vunpack.c.l.b16 %v13989
  %v14058 = vunpack.c.l.b16 %v13990
  %v14059 = vunpack.c.l.b16 %v13991
  %v14060 = vunpack.c.l.b16 %v13992
  %v14061 = vunpack.c.l.b16 %v13993
  %v14062 = vunpack.c.l.b16 %v13994
  %v14063 = vunpack.c.l.b16 %v13995
  %v14064 = vpack.c.b16 %v14033, %v14032
  %v14065 = vpack.c.b16 %v14035, %v14034
  %v14066 = vpack.c.b16 %v14037, %v14036
  %v14067 = vpack.c.b16 %v14039, %v14038
  %v14068 = vpack.c.b16 %v14041, %v14040
  %v14069 = vpack.c.b16 %v14043, %v14042
  %v14070 = vpack.c.b16 %v14045, %v14044
  %v14071 = vpack.c.b16 %v14047, %v14046
  %v14072 = vpack.c.b16 %v14049, %v14048
  %v14073 = vpack.c.b16 %v14051, %v14050
  %v14074 = vpack.c.b16 %v14053, %v14052
  %v14075 = vpack.c.b16 %v14055, %v14054
  %v14076 = vpack.c.b16 %v14057, %v14056
  %v14077 = vpack.c.b16 %v14059, %v14058
  %v14078 = vpack.c.b16 %v14061, %v14060
  %v14079 = vpack.c.b16 %v14063, %v14062
  %14096 = vmatpush.bf16.msra.mxu0 %v14071
  %14097 = vmatpush.bf16.msra.mxu0 %v14070
  %14098 = vmatpush.bf16.msra.mxu0 %v14069
  %14099 = vmatpush.bf16.msra.mxu0 %v14068
  %14100 = vmatpush.bf16.msra.mxu0 %v14067
  %14101 = vmatpush.bf16.msra.mxu0 %v14066
  %14102 = vmatpush.bf16.msra.mxu0 %v14065
  %14103 = vmatpush.bf16.msra.mxu0 %v14064
  %14104 = vmatmul.bf16.gmra.mxu0 %v13962
  %v14105 = vpop.f32.mrf.mxu0
  %v14106 = vadd.f32 %v13998, %v14105
  %v14107 = vpop.f32.mrf.mxu0
  %14108 = vdwg.mxu0
  %14109 = vmatpush.bf16.msra.mxu0 %v14079
  %14110 = vmatpush.bf16.msra.mxu0 %v14078
  %14111 = vmatpush.bf16.msra.mxu0 %v14077
  %14112 = vmatpush.bf16.msra.mxu0 %v14076
  %14113 = vmatpush.bf16.msra.mxu0 %v14075
  %14114 = vmatpush.bf16.msra.mxu0 %v14074
  %14115 = vmatpush.bf16.msra.mxu0 %v14073
  %14116 = vmatpush.bf16.msra.mxu0 %v14072
  %14117 = vmatmul.bf16.gmra.mxu0 %v13963
  %v14118 = vpop.f32.mrf.mxu0
  %v14119 = vadd.f32 %v14106, %v14118
  %v14120 = vpop.f32.mrf.mxu0
  %14121 = vdwg.mxu0
  %v14122 = vsel %vm4449, %v14119, -inf
  %14123 = vmax.xlane.f32.xlu0 %v14122
  %v14124 = vpop.xlane.xlu0 %14123
  %v14125 = vsub.f32 %v14119, %v14124
  %v14126 = vmul.f32 %v14125, 1.442695
  %v14127 = vpow.pop %v14126
  %v14128 = vsel %vm4449, %v14127, 0.0
  %14129 = vadd.xlane.f32.xlu0 %v14128
  %v14130 = vpop.xlane.xlu0 %14129
  %v14131 = vlog2.pop %v14130
  %v14132 = vmul.f32 %v14131, 0.6931472
  %v14133 = vadd.f32 %v14124, %v14132
  %v14134 = vlaneseq
  %v14135 = vand.u32 %v14134, 127
  %v14136 = vld [vmem:[%s0] sm:$0x3]
  %vm14137 = vcmp.eq.s32.totalorder %v14135, %v14136
  %v14138 = vsel %vm14137, %v14119, 0.0
  %v14139 = vsel %vm4449, %v14138, 0.0
  %14140 = vadd.xlane.f32.xlu0 %v14139
  %v14141 = vpop.xlane.xlu0 %14140
  %v14142 = vsub.f32 %v14133, %v14141
  %v14143 = vsel %vm4449, %v14142, 0.0
  %v14144 = vrot.slane %v14143, 4
  %v14145 = vadd.f32 %v14143, %v14144
  %v14146 = vrot.slane %v14145, 2
  %v14147 = vadd.f32 %v14145, %v14146
  %v14148 = vrot.slane %v14147, 1
  %v14149 = vadd.f32 %v14147, %v14148
  %14150 = vst [vmem:[%s14] sm:$0xff] %v14149
  // Predicated region
  $region58: #{alexnet_forward.1} parent=0 // pred_check
    _
  $region59: #{alexnet_forward.1} parent=0 // pred_check_branch
    %14152 = sbr.rel (0) target = $region61
  $region60: #{alexnet_forward.1} parent=0 // pred_region
    _
  $region61: #{alexnet_forward.1} parent=0 // pred_fallthru
    _
  // Predicated region
  $region62: #{alexnet_forward.1} parent=0 // pred_check
    _
  $region63: #{alexnet_forward.1} parent=0 // pred_check_branch
    %14154 = sbr.rel (0) target = $region65
  $region64: #{alexnet_forward.1} parent=0 // pred_region
    _
  $region65: #{alexnet_forward.1} parent=0 // pred_fallthru
    _

</llo_original>
